<compile_context>
chip_gen: v7x
topology: tpu7x:2x2x1
jax: 0.10.0
libtpu: 0.0.40
codegen_flags: <defaults>
</compile_context>

<pallas_src>
import functools

import jax
import jax.numpy as jnp
from jax.experimental import pallas as pl
from jax.experimental.pallas import tpu as pltpu

NEG_INF = -1e30
NEG_SLOPE = 0.2  # LeakyReLU slope used for the GAT edge scores


# ------------------------------ fused kernel ------------------------------

def _fused_forward_kernel(*refs, num_layers, num_heads, layer_dims,
                          num_joints, batch):
    """Entire DualGraphTransformer forward in one kernel (all VMEM resident)."""
    n_in = 3 + 8 * num_layers + 4
    x_ref, smask_ref, tmask_ref = refs[0:3]
    layer_refs = [refs[3 + 8 * i: 3 + 8 * (i + 1)] for i in range(num_layers)]
    wbn_ref, bbn_ref, wf_ref, bf_ref = refs[3 + 8 * num_layers: n_in]
    out_ref = refs[n_in]
    h_scr, o_scr, qkv_scr, flat_scr = refs[n_in + 1:]

    def nt(a, b):  # a @ b.T : contract the last dim of both operands
        return jax.lax.dot_general(a, b, (((1,), (1,)), ((), ())),
                                   preferred_element_type=jnp.float32)

    smask = smask_ref[...] > 0.5                      # (BN, BN) adjacency (block diag)
    tmask = tmask_ref[...] > 0.5                      # (BN, BN) same-joint causal
    x = x_ref[...].astype(jnp.float32)                # (BN, Cin), rows = (frame, joint)

    for layer in range(num_layers):
        w_sp, a_src, a_dst, b_sp, wqkv, bqkv, wo, bo = layer_refs[layer]
        cout = layer_dims[layer][1]
        dh = cout // num_heads

        # ----------------- spatial: GAT-style graph attention -----------------
        h = jnp.dot(x, w_sp[...], preferred_element_type=jnp.float32)   # (BN, cout)
        h_scr[:, :cout] = h
        for hh in range(num_heads):
            lo = hh * dh
            h_h = h_scr[:, lo:lo + dh]                # (BN, dh)
            a_s = a_src[hh:hh + 1, :]                 # (1, dh)
            a_d = a_dst[hh:hh + 1, :]                 # (1, dh)
            # e[i, j] = <h_i, a_src> + <h_j, a_dst>
            e = nt(h_h, a_s) + nt(a_d, h_h)           # (BN,1) + (1,BN) -> (BN,BN)
            e = jnp.where(e > 0, e, NEG_SLOPE * e)    # LeakyReLU
            e = jnp.where(smask, e, NEG_INF)          # adjacency mask (same frame)
            m = jnp.max(e, axis=-1, keepdims=True)
            p = jnp.exp(e - m)
            p = p / jnp.sum(p, axis=-1, keepdims=True)
            o_scr[:, lo:lo + dh] = jnp.dot(p, h_h,
                                           preferred_element_type=jnp.float32)
        x = jnp.maximum(o_scr[:, :cout] + b_sp[...], 0.0)   # GAT bias + ReLU

        # ------- temporal: causal multi-head attention over frames / joint ----
        qkv = jnp.dot(x, wqkv[...], preferred_element_type=jnp.float32) + bqkv[...]
        qkv_scr[:, :3 * cout] = qkv                   # fused Q|K|V, lane-dense
        scale = 1.0 / float(dh) ** 0.5
        for hh in range(num_heads):
            lo = hh * dh
            q_h = qkv_scr[:, lo:lo + dh]
            k_h = qkv_scr[:, cout + lo:cout + lo + dh]
            v_h = qkv_scr[:, 2 * cout + lo:2 * cout + lo + dh]
            s = nt(q_h, k_h) * scale                  # (BN, BN)
            s = jnp.where(tmask, s, NEG_INF)          # same joint & causal in frame
            m = jnp.max(s, axis=-1, keepdims=True)
            p = jnp.exp(s - m)
            p = p / jnp.sum(p, axis=-1, keepdims=True)
            o_scr[:, lo:lo + dh] = jnp.dot(p, v_h,
                                           preferred_element_type=jnp.float32)
        x = jnp.dot(o_scr[:, :cout], wo[...], preferred_element_type=jnp.float32)
        x = jnp.maximum(x + bo[...], 0.0)             # out-proj bias + ReLU

    # ---------------- bottleneck + 'b n c -> b (n c)' + classifier -------------
    c_last = layer_dims[-1][1]
    tb = jnp.dot(x, wbn_ref[...], preferred_element_type=jnp.float32) + bbn_ref[...]
    h_scr[:, :c_last] = tb                            # stage rows (b, n)
    for b in range(batch):                            # tiny in-VMEM row repack
        for n in range(num_joints):
            r = b * num_joints + n
            flat_scr[b:b + 1, n * c_last:(n + 1) * c_last] = h_scr[r:r + 1, :c_last]
    out = jnp.dot(flat_scr[...], wf_ref[...], preferred_element_type=jnp.float32)
    out_ref[...] = (out + bf_ref[...]).astype(out_ref.dtype)


# ------------------------------ model wrapper ------------------------------

def dual_graph_transformer(t, adj, params, num_layers, num_heads):
    b, n, cin = t.shape
    bn = b * n
    x2 = t.reshape(bn, cin).astype(jnp.float32)

    # Spatial mask: block-diagonal adjacency over rows ordered (frame, joint).
    smask = jnp.kron(jnp.eye(b, dtype=jnp.float32),
                     (adj > 0).astype(jnp.float32))                     # (BN, BN)
    # Temporal mask: same joint & causal over frames.
    frame = jnp.arange(bn) // n
    joint = jnp.arange(bn) % n
    tmask = ((joint[:, None] == joint[None, :]) &
             (frame[:, None] >= frame[None, :])).astype(jnp.float32)    # (BN, BN)

    inputs = [x2, smask, tmask]
    layer_dims = []
    for i in range(num_layers):
        sp = params["spatial"][i]
        tp = params["temporal"][i]
        inputs += [sp["w"], sp["a_src"], sp["a_dst"], sp["bias"],
                   tp["wqkv"], tp["bqkv"], tp["wo"], tp["bo"]]
        layer_dims.append((sp["w"].shape[0], sp["w"].shape[1]))
    inputs += [params["bottle_neck"]["w"], params["bottle_neck"]["b"],
               params["final"]["w"], params["final"]["b"]]

    for _, c in layer_dims:
        assert c % num_heads == 0
    c_last = layer_dims[-1][1]
    c_max = max(c for _, c in layer_dims)
    classes = params["final"]["w"].shape[1]

    kernel = functools.partial(
        _fused_forward_kernel,
        num_layers=num_layers, num_heads=num_heads,
        layer_dims=tuple(layer_dims), num_joints=n, batch=b)

    return pl.pallas_call(
        kernel,
        out_shape=jax.ShapeDtypeStruct((b, classes), jnp.float32),
        scratch_shapes=[
            pltpu.VMEM((bn, c_max), jnp.float32),        # projected / bottleneck feats
            pltpu.VMEM((bn, c_max), jnp.float32),        # per-head output assembly
            pltpu.VMEM((bn, 3 * c_max), jnp.float32),    # fused QKV
            pltpu.VMEM((b, n * c_last), jnp.float32),    # flattened 'b (n c)' feats
        ],
    )(*inputs)


# ------------------------------ parameters ---------------------------------

def glorot(key, shape):
    fan_in, fan_out = shape[0], shape[-1]
    lim = (6.0 / (fan_in + fan_out)) ** 0.5
    return jax.random.uniform(key, shape, jnp.float32, -lim, lim)


def init_params(key, in_channels, hidden_channels, out_channels,
                num_layers, num_heads, num_joints, classes):
    channels = [in_channels] + [hidden_channels] * (num_layers - 1) + [out_channels]
    keys = jax.random.split(key, num_layers * 2 + 2)
    params = {"spatial": [], "temporal": []}
    for i in range(num_layers):
        cin, cout = channels[i], channels[i + 1]
        dh = cout // num_heads
        k0, k1, k2 = jax.random.split(keys[i], 3)
        params["spatial"].append(dict(
            w=glorot(k0, (cin, cout)),
            a_src=glorot(k1, (num_heads, dh)),
            a_dst=glorot(k2, (num_heads, dh)),
            bias=jnp.zeros((1, cout), jnp.float32)))
    for i in range(num_layers):
        dim = channels[i + 1]                 # sequential=True temporal dims
        k0, k1 = jax.random.split(keys[num_layers + i], 2)
        params["temporal"].append(dict(
            wqkv=glorot(k0, (dim, 3 * dim)),  # fused Q|K|V projection
            bqkv=jnp.zeros((1, 3 * dim), jnp.float32),
            wo=glorot(k1, (dim, dim)),
            bo=jnp.zeros((1, dim), jnp.float32)))
    params["bottle_neck"] = dict(
        w=glorot(keys[-2], (out_channels, out_channels)),
        b=jnp.zeros((1, out_channels), jnp.float32))
    params["final"] = dict(
        w=glorot(keys[-1], (out_channels * num_joints, classes)),
        b=jnp.zeros((1, classes), jnp.float32))
    return params


# --------------------------------- demo ------------------------------------

if __name__ == "__main__":
    in_channels, hidden_channels, out_channels = 4, 32, 32
    num_layers, num_heads, num_joints, classes = 2, 4, 8, 16
    batch = 4  # frames

    key = jax.random.PRNGKey(0)
    kparam, kx, kadj = jax.random.split(key, 3)

    params = init_params(kparam, in_channels, hidden_channels, out_channels,
                         num_layers, num_heads, num_joints, classes)

    t = jax.random.normal(kx, (batch, num_joints, in_channels), jnp.float32)
    adj = (jax.random.uniform(kadj, (num_joints, num_joints)) > 0.5).astype(jnp.float32)
    adj = jnp.maximum(adj, adj.T)
    adj = jnp.maximum(adj, jnp.eye(num_joints, dtype=jnp.float32))  # self loops

    out = dual_graph_transformer(t, adj, params, num_layers, num_heads)
    jax.block_until_ready(out)
    assert out.shape == (batch, classes), out.shape
    assert bool(jnp.all(jnp.isfinite(out)))
    print("KERNEL_OK")
</pallas_src>

<mosaic_0001>
module attributes {stable_mosaic.version = 11 : i64} {
  func.func @_fused_forward_kernel(%arg0: memref<32x4xf32, #tpu.memory_space<vmem>>, %arg1: memref<32x32xf32, #tpu.memory_space<vmem>>, %arg2: memref<32x32xf32, #tpu.memory_space<vmem>>, %arg3: memref<4x32xf32, #tpu.memory_space<vmem>>, %arg4: memref<4x8xf32, #tpu.memory_space<vmem>>, %arg5: memref<4x8xf32, #tpu.memory_space<vmem>>, %arg6: memref<1x32xf32, #tpu.memory_space<vmem>>, %arg7: memref<32x96xf32, #tpu.memory_space<vmem>>, %arg8: memref<1x96xf32, #tpu.memory_space<vmem>>, %arg9: memref<32x32xf32, #tpu.memory_space<vmem>>, %arg10: memref<1x32xf32, #tpu.memory_space<vmem>>, %arg11: memref<32x32xf32, #tpu.memory_space<vmem>>, %arg12: memref<4x8xf32, #tpu.memory_space<vmem>>, %arg13: memref<4x8xf32, #tpu.memory_space<vmem>>, %arg14: memref<1x32xf32, #tpu.memory_space<vmem>>, %arg15: memref<32x96xf32, #tpu.memory_space<vmem>>, %arg16: memref<1x96xf32, #tpu.memory_space<vmem>>, %arg17: memref<32x32xf32, #tpu.memory_space<vmem>>, %arg18: memref<1x32xf32, #tpu.memory_space<vmem>>, %arg19: memref<32x32xf32, #tpu.memory_space<vmem>>, %arg20: memref<1x32xf32, #tpu.memory_space<vmem>>, %arg21: memref<256x16xf32, #tpu.memory_space<vmem>>, %arg22: memref<1x16xf32, #tpu.memory_space<vmem>>, %arg23: memref<4x16xf32, #tpu.memory_space<vmem>>, %arg24: memref<32x32xf32, #tpu.memory_space<vmem>>, %arg25: memref<32x32xf32, #tpu.memory_space<vmem>>, %arg26: memref<32x96xf32, #tpu.memory_space<vmem>>, %arg27: memref<4x256xf32, #tpu.memory_space<vmem>>) attributes {dimension_semantics = [], scalar_prefetch = 0 : i64, scratch_operands = 4 : i64, tpu.core_type = #tpu.core_type<tc>} {
    %c0 = arith.constant 0 : index
    %c0_0 = arith.constant 0 : index
    %0 = vector.load %arg1[%c0, %c0_0] : memref<32x32xf32, #tpu.memory_space<vmem>>, vector<32x32xf32>
    %cst = arith.constant 5.000000e-01 : f32
    %1 = vector.broadcast %cst : f32 to vector<32x32xf32>
    %2 = arith.cmpf ogt, %0, %1 : vector<32x32xf32>
    %c0_1 = arith.constant 0 : index
    %c0_2 = arith.constant 0 : index
    %3 = vector.load %arg2[%c0_1, %c0_2] : memref<32x32xf32, #tpu.memory_space<vmem>>, vector<32x32xf32>
    %cst_3 = arith.constant 5.000000e-01 : f32
    %4 = vector.broadcast %cst_3 : f32 to vector<32x32xf32>
    %5 = arith.cmpf ogt, %3, %4 : vector<32x32xf32>
    %c0_4 = arith.constant 0 : index
    %c0_5 = arith.constant 0 : index
    %6 = vector.load %arg0[%c0_4, %c0_5] : memref<32x4xf32, #tpu.memory_space<vmem>>, vector<32x4xf32>
    %c0_6 = arith.constant 0 : index
    %c0_7 = arith.constant 0 : index
    %7 = vector.load %arg3[%c0_6, %c0_7] : memref<4x32xf32, #tpu.memory_space<vmem>>, vector<4x32xf32>
    %cst_8 = arith.constant dense<0.000000e+00> : vector<32x32xf32>
    %8 = tpu.matmul %6, %7, %cst_8 {dimension_numbers = #tpu.dot_dimension_numbers<[1], [0], [0], [1], [0, 0, 1, 1], [], []>} : vector<32x4xf32>, vector<4x32xf32>, vector<32x32xf32> -> vector<32x32xf32>
    %c0_9 = arith.constant 0 : index
    %c0_10 = arith.constant 0 : index
    %9 = vector.load %arg24[%c0_9, %c0_10] : memref<32x32xf32, #tpu.memory_space<vmem>>, vector<32x32xf32>
    tpu.vector_store %arg24[%c0_9, %c0_10], %8 {strides = array<i32>} : memref<32x32xf32, #tpu.memory_space<vmem>>, vector<32x32xf32>,
    %c0_11 = arith.constant 0 : index
    %c0_12 = arith.constant 0 : index
    %10 = vector.load %arg24[%c0_11, %c0_12] : memref<32x32xf32, #tpu.memory_space<vmem>>, vector<32x8xf32>
    %c0_13 = arith.constant 0 : index
    %c0_14 = arith.constant 0 : index
    %11 = vector.load %arg4[%c0_13, %c0_14] : memref<4x8xf32, #tpu.memory_space<vmem>>, vector<1x8xf32>
    %c0_15 = arith.constant 0 : index
    %c0_16 = arith.constant 0 : index
    %12 = vector.load %arg5[%c0_15, %c0_16] : memref<4x8xf32, #tpu.memory_space<vmem>>, vector<1x8xf32>
    %cst_17 = arith.constant dense<0.000000e+00> : vector<32x1xf32>
    %13 = tpu.matmul %10, %11, %cst_17 {dimension_numbers = #tpu.dot_dimension_numbers<[1], [1], [0], [0], [0, 0, 1, 0], [], []>} : vector<32x8xf32>, vector<1x8xf32>, vector<32x1xf32> -> vector<32x1xf32>
    %cst_18 = arith.constant dense<0.000000e+00> : vector<1x32xf32>
    %14 = tpu.matmul %12, %10, %cst_18 {dimension_numbers = #tpu.dot_dimension_numbers<[1], [1], [0], [0], [0, 0, 1, 0], [], []>} : vector<1x8xf32>, vector<32x8xf32>, vector<1x32xf32> -> vector<1x32xf32>
    %15 = vector.broadcast %13 : vector<32x1xf32> to vector<32x32xf32>
    %16 = vector.broadcast %14 : vector<1x32xf32> to vector<32x32xf32>
    %17 = arith.addf %15, %16 : vector<32x32xf32>
    %cst_19 = arith.constant 0.000000e+00 : f32
    %18 = vector.broadcast %cst_19 : f32 to vector<32x32xf32>
    %19 = arith.cmpf ogt, %17, %18 : vector<32x32xf32>
    %cst_20 = arith.constant 2.000000e-01 : f32
    %20 = vector.broadcast %cst_20 : f32 to vector<32x32xf32>
    %21 = arith.mulf %20, %17 : vector<32x32xf32>
    %22 = arith.select %19, %17, %21 : vector<32x32xi1>, vector<32x32xf32>
    %cst_21 = arith.constant -1.000000e+30 : f32
    %23 = vector.broadcast %cst_21 : f32 to vector<32x32xf32>
    %24 = arith.select %2, %22, %23 : vector<32x32xi1>, vector<32x32xf32>
    %cst_22 = arith.constant dense<0xFF800000> : vector<32xf32>
    %25 = vector.multi_reduction <maximumf>, %24, %cst_22 [1] : vector<32x32xf32> to vector<32xf32>
    %26 = vector.shape_cast %25 : vector<32xf32> to vector<32x1xf32>
    %27 = vector.broadcast %26 : vector<32x1xf32> to vector<32x32xf32>
    %28 = arith.subf %24, %27 : vector<32x32xf32>
    %29 = math.exp %28 : vector<32x32xf32>
    %cst_23 = arith.constant dense<0.000000e+00> : vector<32xf32>
    %30 = vector.multi_reduction <add>, %29, %cst_23 [1] : vector<32x32xf32> to vector<32xf32>
    %31 = vector.shape_cast %30 : vector<32xf32> to vector<32x1xf32>
    %32 = vector.broadcast %31 : vector<32x1xf32> to vector<32x32xf32>
    %33 = arith.divf %29, %32 : vector<32x32xf32>
    %cst_24 = arith.constant dense<0.000000e+00> : vector<32x8xf32>
    %34 = tpu.matmul %33, %10, %cst_24 {dimension_numbers = #tpu.dot_dimension_numbers<[1], [0], [0], [1], [0, 0, 1, 1], [], []>} : vector<32x32xf32>, vector<32x8xf32>, vector<32x8xf32> -> vector<32x8xf32>
    %c0_25 = arith.constant 0 : index
    %c0_26 = arith.constant 0 : index
    %35 = vector.load %arg25[%c0_25, %c0_26] : memref<32x32xf32, #tpu.memory_space<vmem>>, vector<32x8xf32>
    tpu.vector_store %arg25[%c0_25, %c0_26], %34 {strides = array<i32>} : memref<32x32xf32, #tpu.memory_space<vmem>>, vector<32x8xf32>,
    %c0_27 = arith.constant 0 : index
    %c8 = arith.constant 8 : index
    %36 = vector.load %arg24[%c0_27, %c8] : memref<32x32xf32, #tpu.memory_space<vmem>>, vector<32x8xf32>
    %c1 = arith.constant 1 : index
    %c0_28 = arith.constant 0 : index
    %37 = vector.load %arg4[%c1, %c0_28] : memref<4x8xf32, #tpu.memory_space<vmem>>, vector<1x8xf32>
    %c1_29 = arith.constant 1 : index
    %c0_30 = arith.constant 0 : index
    %38 = vector.load %arg5[%c1_29, %c0_30] : memref<4x8xf32, #tpu.memory_space<vmem>>, vector<1x8xf32>
    %cst_31 = arith.constant dense<0.000000e+00> : vector<32x1xf32>
    %39 = tpu.matmul %36, %37, %cst_31 {dimension_numbers = #tpu.dot_dimension_numbers<[1], [1], [0], [0], [0, 0, 1, 0], [], []>} : vector<32x8xf32>, vector<1x8xf32>, vector<32x1xf32> -> vector<32x1xf32>
    %cst_32 = arith.constant dense<0.000000e+00> : vector<1x32xf32>
    %40 = tpu.matmul %38, %36, %cst_32 {dimension_numbers = #tpu.dot_dimension_numbers<[1], [1], [0], [0], [0, 0, 1, 0], [], []>} : vector<1x8xf32>, vector<32x8xf32>, vector<1x32xf32> -> vector<1x32xf32>
    %41 = vector.broadcast %39 : vector<32x1xf32> to vector<32x32xf32>
    %42 = vector.broadcast %40 : vector<1x32xf32> to vector<32x32xf32>
    %43 = arith.addf %41, %42 : vector<32x32xf32>
    %cst_33 = arith.constant 0.000000e+00 : f32
    %44 = vector.broadcast %cst_33 : f32 to vector<32x32xf32>
    %45 = arith.cmpf ogt, %43, %44 : vector<32x32xf32>
    %cst_34 = arith.constant 2.000000e-01 : f32
    %46 = vector.broadcast %cst_34 : f32 to vector<32x32xf32>
    %47 = arith.mulf %46, %43 : vector<32x32xf32>
    %48 = arith.select %45, %43, %47 : vector<32x32xi1>, vector<32x32xf32>
    %cst_35 = arith.constant -1.000000e+30 : f32
    %49 = vector.broadcast %cst_35 : f32 to vector<32x32xf32>
    %50 = arith.select %2, %48, %49 : vector<32x32xi1>, vector<32x32xf32>
    %cst_36 = arith.constant dense<0xFF800000> : vector<32xf32>
    %51 = vector.multi_reduction <maximumf>, %50, %cst_36 [1] : vector<32x32xf32> to vector<32xf32>
    %52 = vector.shape_cast %51 : vector<32xf32> to vector<32x1xf32>
    %53 = vector.broadcast %52 : vector<32x1xf32> to vector<32x32xf32>
    %54 = arith.subf %50, %53 : vector<32x32xf32>
    %55 = math.exp %54 : vector<32x32xf32>
    %cst_37 = arith.constant dense<0.000000e+00> : vector<32xf32>
    %56 = vector.multi_reduction <add>, %55, %cst_37 [1] : vector<32x32xf32> to vector<32xf32>
    %57 = vector.shape_cast %56 : vector<32xf32> to vector<32x1xf32>
    %58 = vector.broadcast %57 : vector<32x1xf32> to vector<32x32xf32>
    %59 = arith.divf %55, %58 : vector<32x32xf32>
    %cst_38 = arith.constant dense<0.000000e+00> : vector<32x8xf32>
    %60 = tpu.matmul %59, %36, %cst_38 {dimension_numbers = #tpu.dot_dimension_numbers<[1], [0], [0], [1], [0, 0, 1, 1], [], []>} : vector<32x32xf32>, vector<32x8xf32>, vector<32x8xf32> -> vector<32x8xf32>
    %c0_39 = arith.constant 0 : index
    %c8_40 = arith.constant 8 : index
    %61 = vector.load %arg25[%c0_39, %c8_40] : memref<32x32xf32, #tpu.memory_space<vmem>>, vector<32x8xf32>
    tpu.vector_store %arg25[%c0_39, %c8_40], %60 {strides = array<i32>} : memref<32x32xf32, #tpu.memory_space<vmem>>, vector<32x8xf32>,
    %c0_41 = arith.constant 0 : index
    %c16 = arith.constant 16 : index
    %62 = vector.load %arg24[%c0_41, %c16] : memref<32x32xf32, #tpu.memory_space<vmem>>, vector<32x8xf32>
    %c2 = arith.constant 2 : index
    %c0_42 = arith.constant 0 : index
    %63 = vector.load %arg4[%c2, %c0_42] : memref<4x8xf32, #tpu.memory_space<vmem>>, vector<1x8xf32>
    %c2_43 = arith.constant 2 : index
    %c0_44 = arith.constant 0 : index
    %64 = vector.load %arg5[%c2_43, %c0_44] : memref<4x8xf32, #tpu.memory_space<vmem>>, vector<1x8xf32>
    %cst_45 = arith.constant dense<0.000000e+00> : vector<32x1xf32>
    %65 = tpu.matmul %62, %63, %cst_45 {dimension_numbers = #tpu.dot_dimension_numbers<[1], [1], [0], [0], [0, 0, 1, 0], [], []>} : vector<32x8xf32>, vector<1x8xf32>, vector<32x1xf32> -> vector<32x1xf32>
    %cst_46 = arith.constant dense<0.000000e+00> : vector<1x32xf32>
    %66 = tpu.matmul %64, %62, %cst_46 {dimension_numbers = #tpu.dot_dimension_numbers<[1], [1], [0], [0], [0, 0, 1, 0], [], []>} : vector<1x8xf32>, vector<32x8xf32>, vector<1x32xf32> -> vector<1x32xf32>
    %67 = vector.broadcast %65 : vector<32x1xf32> to vector<32x32xf32>
    %68 = vector.broadcast %66 : vector<1x32xf32> to vector<32x32xf32>
    %69 = arith.addf %67, %68 : vector<32x32xf32>
    %cst_47 = arith.constant 0.000000e+00 : f32
    %70 = vector.broadcast %cst_47 : f32 to vector<32x32xf32>
    %71 = arith.cmpf ogt, %69, %70 : vector<32x32xf32>
    %cst_48 = arith.constant 2.000000e-01 : f32
    %72 = vector.broadcast %cst_48 : f32 to vector<32x32xf32>
    %73 = arith.mulf %72, %69 : vector<32x32xf32>
    %74 = arith.select %71, %69, %73 : vector<32x32xi1>, vector<32x32xf32>
    %cst_49 = arith.constant -1.000000e+30 : f32
    %75 = vector.broadcast %cst_49 : f32 to vector<32x32xf32>
    %76 = arith.select %2, %74, %75 : vector<32x32xi1>, vector<32x32xf32>
    %cst_50 = arith.constant dense<0xFF800000> : vector<32xf32>
    %77 = vector.multi_reduction <maximumf>, %76, %cst_50 [1] : vector<32x32xf32> to vector<32xf32>
    %78 = vector.shape_cast %77 : vector<32xf32> to vector<32x1xf32>
    %79 = vector.broadcast %78 : vector<32x1xf32> to vector<32x32xf32>
    %80 = arith.subf %76, %79 : vector<32x32xf32>
    %81 = math.exp %80 : vector<32x32xf32>
    %cst_51 = arith.constant dense<0.000000e+00> : vector<32xf32>
    %82 = vector.multi_reduction <add>, %81, %cst_51 [1] : vector<32x32xf32> to vector<32xf32>
    %83 = vector.shape_cast %82 : vector<32xf32> to vector<32x1xf32>
    %84 = vector.broadcast %83 : vector<32x1xf32> to vector<32x32xf32>
    %85 = arith.divf %81, %84 : vector<32x32xf32>
    %cst_52 = arith.constant dense<0.000000e+00> : vector<32x8xf32>
    %86 = tpu.matmul %85, %62, %cst_52 {dimension_numbers = #tpu.dot_dimension_numbers<[1], [0], [0], [1], [0, 0, 1, 1], [], []>} : vector<32x32xf32>, vector<32x8xf32>, vector<32x8xf32> -> vector<32x8xf32>
    %c0_53 = arith.constant 0 : index
    %c16_54 = arith.constant 16 : index
    %87 = vector.load %arg25[%c0_53, %c16_54] : memref<32x32xf32, #tpu.memory_space<vmem>>, vector<32x8xf32>
    tpu.vector_store %arg25[%c0_53, %c16_54], %86 {strides = array<i32>} : memref<32x32xf32, #tpu.memory_space<vmem>>, vector<32x8xf32>,
    %c0_55 = arith.constant 0 : index
    %c24 = arith.constant 24 : index
    %88 = vector.load %arg24[%c0_55, %c24] : memref<32x32xf32, #tpu.memory_space<vmem>>, vector<32x8xf32>
    %c3 = arith.constant 3 : index
    %c0_56 = arith.constant 0 : index
    %89 = vector.load %arg4[%c3, %c0_56] : memref<4x8xf32, #tpu.memory_space<vmem>>, vector<1x8xf32>
    %c3_57 = arith.constant 3 : index
    %c0_58 = arith.constant 0 : index
    %90 = vector.load %arg5[%c3_57, %c0_58] : memref<4x8xf32, #tpu.memory_space<vmem>>, vector<1x8xf32>
    %cst_59 = arith.constant dense<0.000000e+00> : vector<32x1xf32>
    %91 = tpu.matmul %88, %89, %cst_59 {dimension_numbers = #tpu.dot_dimension_numbers<[1], [1], [0], [0], [0, 0, 1, 0], [], []>} : vector<32x8xf32>, vector<1x8xf32>, vector<32x1xf32> -> vector<32x1xf32>
    %cst_60 = arith.constant dense<0.000000e+00> : vector<1x32xf32>
    %92 = tpu.matmul %90, %88, %cst_60 {dimension_numbers = #tpu.dot_dimension_numbers<[1], [1], [0], [0], [0, 0, 1, 0], [], []>} : vector<1x8xf32>, vector<32x8xf32>, vector<1x32xf32> -> vector<1x32xf32>
    %93 = vector.broadcast %91 : vector<32x1xf32> to vector<32x32xf32>
    %94 = vector.broadcast %92 : vector<1x32xf32> to vector<32x32xf32>
    %95 = arith.addf %93, %94 : vector<32x32xf32>
    %cst_61 = arith.constant 0.000000e+00 : f32
    %96 = vector.broadcast %cst_61 : f32 to vector<32x32xf32>
    %97 = arith.cmpf ogt, %95, %96 : vector<32x32xf32>
    %cst_62 = arith.constant 2.000000e-01 : f32
    %98 = vector.broadcast %cst_62 : f32 to vector<32x32xf32>
    %99 = arith.mulf %98, %95 : vector<32x32xf32>
    %100 = arith.select %97, %95, %99 : vector<32x32xi1>, vector<32x32xf32>
    %cst_63 = arith.constant -1.000000e+30 : f32
    %101 = vector.broadcast %cst_63 : f32 to vector<32x32xf32>
    %102 = arith.select %2, %100, %101 : vector<32x32xi1>, vector<32x32xf32>
    %cst_64 = arith.constant dense<0xFF800000> : vector<32xf32>
    %103 = vector.multi_reduction <maximumf>, %102, %cst_64 [1] : vector<32x32xf32> to vector<32xf32>
    %104 = vector.shape_cast %103 : vector<32xf32> to vector<32x1xf32>
    %105 = vector.broadcast %104 : vector<32x1xf32> to vector<32x32xf32>
    %106 = arith.subf %102, %105 : vector<32x32xf32>
    %107 = math.exp %106 : vector<32x32xf32>
    %cst_65 = arith.constant dense<0.000000e+00> : vector<32xf32>
    %108 = vector.multi_reduction <add>, %107, %cst_65 [1] : vector<32x32xf32> to vector<32xf32>
    %109 = vector.shape_cast %108 : vector<32xf32> to vector<32x1xf32>
    %110 = vector.broadcast %109 : vector<32x1xf32> to vector<32x32xf32>
    %111 = arith.divf %107, %110 : vector<32x32xf32>
    %cst_66 = arith.constant dense<0.000000e+00> : vector<32x8xf32>
    %112 = tpu.matmul %111, %88, %cst_66 {dimension_numbers = #tpu.dot_dimension_numbers<[1], [0], [0], [1], [0, 0, 1, 1], [], []>} : vector<32x32xf32>, vector<32x8xf32>, vector<32x8xf32> -> vector<32x8xf32>
    %c0_67 = arith.constant 0 : index
    %c24_68 = arith.constant 24 : index
    %113 = vector.load %arg25[%c0_67, %c24_68] : memref<32x32xf32, #tpu.memory_space<vmem>>, vector<32x8xf32>
    tpu.vector_store %arg25[%c0_67, %c24_68], %112 {strides = array<i32>} : memref<32x32xf32, #tpu.memory_space<vmem>>, vector<32x8xf32>,
    %c0_69 = arith.constant 0 : index
    %c0_70 = arith.constant 0 : index
    %114 = vector.load %arg25[%c0_69, %c0_70] : memref<32x32xf32, #tpu.memory_space<vmem>>, vector<32x32xf32>
    %c0_71 = arith.constant 0 : index
    %c0_72 = arith.constant 0 : index
    %115 = vector.load %arg6[%c0_71, %c0_72] : memref<1x32xf32, #tpu.memory_space<vmem>>, vector<1x32xf32>
    %116 = vector.broadcast %115 : vector<1x32xf32> to vector<32x32xf32>
    %117 = arith.addf %114, %116 : vector<32x32xf32>
    %cst_73 = arith.constant 0.000000e+00 : f32
    %118 = vector.broadcast %cst_73 : f32 to vector<32x32xf32>
    %119 = arith.maximumf %117, %118 : vector<32x32xf32>
    %c0_74 = arith.constant 0 : index
    %c0_75 = arith.constant 0 : index
    %120 = vector.load %arg7[%c0_74, %c0_75] : memref<32x96xf32, #tpu.memory_space<vmem>>, vector<32x96xf32>
    %cst_76 = arith.constant dense<0.000000e+00> : vector<32x96xf32>
    %121 = tpu.matmul %119, %120, %cst_76 {dimension_numbers = #tpu.dot_dimension_numbers<[1], [0], [0], [1], [0, 0, 1, 1], [], []>} : vector<32x32xf32>, vector<32x96xf32>, vector<32x96xf32> -> vector<32x96xf32>
    %c0_77 = arith.constant 0 : index
    %c0_78 = arith.constant 0 : index
    %122 = vector.load %arg8[%c0_77, %c0_78] : memref<1x96xf32, #tpu.memory_space<vmem>>, vector<1x96xf32>
    %123 = vector.broadcast %122 : vector<1x96xf32> to vector<32x96xf32>
    %124 = arith.addf %121, %123 : vector<32x96xf32>
    %c0_79 = arith.constant 0 : index
    %c0_80 = arith.constant 0 : index
    %125 = vector.load %arg26[%c0_79, %c0_80] : memref<32x96xf32, #tpu.memory_space<vmem>>, vector<32x96xf32>
    tpu.vector_store %arg26[%c0_79, %c0_80], %124 {strides = array<i32>} : memref<32x96xf32, #tpu.memory_space<vmem>>, vector<32x96xf32>,
    %c0_81 = arith.constant 0 : index
    %c0_82 = arith.constant 0 : index
    %126 = vector.load %arg26[%c0_81, %c0_82] : memref<32x96xf32, #tpu.memory_space<vmem>>, vector<32x8xf32>
    %c0_83 = arith.constant 0 : index
    %c32 = arith.constant 32 : index
    %127 = vector.load %arg26[%c0_83, %c32] : memref<32x96xf32, #tpu.memory_space<vmem>>, vector<32x8xf32>
    %c0_84 = arith.constant 0 : index
    %c64 = arith.constant 64 : index
    %128 = vector.load %arg26[%c0_84, %c64] : memref<32x96xf32, #tpu.memory_space<vmem>>, vector<32x8xf32>
    %cst_85 = arith.constant dense<0.000000e+00> : vector<32x32xf32>
    %129 = tpu.matmul %126, %127, %cst_85 {dimension_numbers = #tpu.dot_dimension_numbers<[1], [1], [0], [0], [0, 0, 1, 0], [], []>} : vector<32x8xf32>, vector<32x8xf32>, vector<32x32xf32> -> vector<32x32xf32>
    %cst_86 = arith.constant 0.353553385 : f32
    %130 = vector.broadcast %cst_86 : f32 to vector<32x32xf32>
    %131 = arith.mulf %129, %130 : vector<32x32xf32>
    %cst_87 = arith.constant -1.000000e+30 : f32
    %132 = vector.broadcast %cst_87 : f32 to vector<32x32xf32>
    %133 = arith.select %5, %131, %132 : vector<32x32xi1>, vector<32x32xf32>
    %cst_88 = arith.constant dense<0xFF800000> : vector<32xf32>
    %134 = vector.multi_reduction <maximumf>, %133, %cst_88 [1] : vector<32x32xf32> to vector<32xf32>
    %135 = vector.shape_cast %134 : vector<32xf32> to vector<32x1xf32>
    %136 = vector.broadcast %135 : vector<32x1xf32> to vector<32x32xf32>
    %137 = arith.subf %133, %136 : vector<32x32xf32>
    %138 = math.exp %137 : vector<32x32xf32>
    %cst_89 = arith.constant dense<0.000000e+00> : vector<32xf32>
    %139 = vector.multi_reduction <add>, %138, %cst_89 [1] : vector<32x32xf32> to vector<32xf32>
    %140 = vector.shape_cast %139 : vector<32xf32> to vector<32x1xf32>
    %141 = vector.broadcast %140 : vector<32x1xf32> to vector<32x32xf32>
    %142 = arith.divf %138, %141 : vector<32x32xf32>
    %cst_90 = arith.constant dense<0.000000e+00> : vector<32x8xf32>
    %143 = tpu.matmul %142, %128, %cst_90 {dimension_numbers = #tpu.dot_dimension_numbers<[1], [0], [0], [1], [0, 0, 1, 1], [], []>} : vector<32x32xf32>, vector<32x8xf32>, vector<32x8xf32> -> vector<32x8xf32>
    %c0_91 = arith.constant 0 : index
    %c0_92 = arith.constant 0 : index
    %144 = vector.load %arg25[%c0_91, %c0_92] : memref<32x32xf32, #tpu.memory_space<vmem>>, vector<32x8xf32>
    tpu.vector_store %arg25[%c0_91, %c0_92], %143 {strides = array<i32>} : memref<32x32xf32, #tpu.memory_space<vmem>>, vector<32x8xf32>,
    %c0_93 = arith.constant 0 : index
    %c8_94 = arith.constant 8 : index
    %145 = vector.load %arg26[%c0_93, %c8_94] : memref<32x96xf32, #tpu.memory_space<vmem>>, vector<32x8xf32>
    %c0_95 = arith.constant 0 : index
    %c40 = arith.constant 40 : index
    %146 = vector.load %arg26[%c0_95, %c40] : memref<32x96xf32, #tpu.memory_space<vmem>>, vector<32x8xf32>
    %c0_96 = arith.constant 0 : index
    %c72 = arith.constant 72 : index
    %147 = vector.load %arg26[%c0_96, %c72] : memref<32x96xf32, #tpu.memory_space<vmem>>, vector<32x8xf32>
    %cst_97 = arith.constant dense<0.000000e+00> : vector<32x32xf32>
    %148 = tpu.matmul %145, %146, %cst_97 {dimension_numbers = #tpu.dot_dimension_numbers<[1], [1], [0], [0], [0, 0, 1, 0], [], []>} : vector<32x8xf32>, vector<32x8xf32>, vector<32x32xf32> -> vector<32x32xf32>
    %cst_98 = arith.constant 0.353553385 : f32
    %149 = vector.broadcast %cst_98 : f32 to vector<32x32xf32>
    %150 = arith.mulf %148, %149 : vector<32x32xf32>
    %cst_99 = arith.constant -1.000000e+30 : f32
    %151 = vector.broadcast %cst_99 : f32 to vector<32x32xf32>
    %152 = arith.select %5, %150, %151 : vector<32x32xi1>, vector<32x32xf32>
    %cst_100 = arith.constant dense<0xFF800000> : vector<32xf32>
    %153 = vector.multi_reduction <maximumf>, %152, %cst_100 [1] : vector<32x32xf32> to vector<32xf32>
    %154 = vector.shape_cast %153 : vector<32xf32> to vector<32x1xf32>
    %155 = vector.broadcast %154 : vector<32x1xf32> to vector<32x32xf32>
    %156 = arith.subf %152, %155 : vector<32x32xf32>
    %157 = math.exp %156 : vector<32x32xf32>
    %cst_101 = arith.constant dense<0.000000e+00> : vector<32xf32>
    %158 = vector.multi_reduction <add>, %157, %cst_101 [1] : vector<32x32xf32> to vector<32xf32>
    %159 = vector.shape_cast %158 : vector<32xf32> to vector<32x1xf32>
    %160 = vector.broadcast %159 : vector<32x1xf32> to vector<32x32xf32>
    %161 = arith.divf %157, %160 : vector<32x32xf32>
    %cst_102 = arith.constant dense<0.000000e+00> : vector<32x8xf32>
    %162 = tpu.matmul %161, %147, %cst_102 {dimension_numbers = #tpu.dot_dimension_numbers<[1], [0], [0], [1], [0, 0, 1, 1], [], []>} : vector<32x32xf32>, vector<32x8xf32>, vector<32x8xf32> -> vector<32x8xf32>
    %c0_103 = arith.constant 0 : index
    %c8_104 = arith.constant 8 : index
    %163 = vector.load %arg25[%c0_103, %c8_104] : memref<32x32xf32, #tpu.memory_space<vmem>>, vector<32x8xf32>
    tpu.vector_store %arg25[%c0_103, %c8_104], %162 {strides = array<i32>} : memref<32x32xf32, #tpu.memory_space<vmem>>, vector<32x8xf32>,
    %c0_105 = arith.constant 0 : index
    %c16_106 = arith.constant 16 : index
    %164 = vector.load %arg26[%c0_105, %c16_106] : memref<32x96xf32, #tpu.memory_space<vmem>>, vector<32x8xf32>
    %c0_107 = arith.constant 0 : index
    %c48 = arith.constant 48 : index
    %165 = vector.load %arg26[%c0_107, %c48] : memref<32x96xf32, #tpu.memory_space<vmem>>, vector<32x8xf32>
    %c0_108 = arith.constant 0 : index
    %c80 = arith.constant 80 : index
    %166 = vector.load %arg26[%c0_108, %c80] : memref<32x96xf32, #tpu.memory_space<vmem>>, vector<32x8xf32>
    %cst_109 = arith.constant dense<0.000000e+00> : vector<32x32xf32>
    %167 = tpu.matmul %164, %165, %cst_109 {dimension_numbers = #tpu.dot_dimension_numbers<[1], [1], [0], [0], [0, 0, 1, 0], [], []>} : vector<32x8xf32>, vector<32x8xf32>, vector<32x32xf32> -> vector<32x32xf32>
    %cst_110 = arith.constant 0.353553385 : f32
    %168 = vector.broadcast %cst_110 : f32 to vector<32x32xf32>
    %169 = arith.mulf %167, %168 : vector<32x32xf32>
    %cst_111 = arith.constant -1.000000e+30 : f32
    %170 = vector.broadcast %cst_111 : f32 to vector<32x32xf32>
    %171 = arith.select %5, %169, %170 : vector<32x32xi1>, vector<32x32xf32>
    %cst_112 = arith.constant dense<0xFF800000> : vector<32xf32>
    %172 = vector.multi_reduction <maximumf>, %171, %cst_112 [1] : vector<32x32xf32> to vector<32xf32>
    %173 = vector.shape_cast %172 : vector<32xf32> to vector<32x1xf32>
    %174 = vector.broadcast %173 : vector<32x1xf32> to vector<32x32xf32>
    %175 = arith.subf %171, %174 : vector<32x32xf32>
    %176 = math.exp %175 : vector<32x32xf32>
    %cst_113 = arith.constant dense<0.000000e+00> : vector<32xf32>
    %177 = vector.multi_reduction <add>, %176, %cst_113 [1] : vector<32x32xf32> to vector<32xf32>
    %178 = vector.shape_cast %177 : vector<32xf32> to vector<32x1xf32>
    %179 = vector.broadcast %178 : vector<32x1xf32> to vector<32x32xf32>
    %180 = arith.divf %176, %179 : vector<32x32xf32>
    %cst_114 = arith.constant dense<0.000000e+00> : vector<32x8xf32>
    %181 = tpu.matmul %180, %166, %cst_114 {dimension_numbers = #tpu.dot_dimension_numbers<[1], [0], [0], [1], [0, 0, 1, 1], [], []>} : vector<32x32xf32>, vector<32x8xf32>, vector<32x8xf32> -> vector<32x8xf32>
    %c0_115 = arith.constant 0 : index
    %c16_116 = arith.constant 16 : index
    %182 = vector.load %arg25[%c0_115, %c16_116] : memref<32x32xf32, #tpu.memory_space<vmem>>, vector<32x8xf32>
    tpu.vector_store %arg25[%c0_115, %c16_116], %181 {strides = array<i32>} : memref<32x32xf32, #tpu.memory_space<vmem>>, vector<32x8xf32>,
    %c0_117 = arith.constant 0 : index
    %c24_118 = arith.constant 24 : index
    %183 = vector.load %arg26[%c0_117, %c24_118] : memref<32x96xf32, #tpu.memory_space<vmem>>, vector<32x8xf32>
    %c0_119 = arith.constant 0 : index
    %c56 = arith.constant 56 : index
    %184 = vector.load %arg26[%c0_119, %c56] : memref<32x96xf32, #tpu.memory_space<vmem>>, vector<32x8xf32>
    %c0_120 = arith.constant 0 : index
    %c88 = arith.constant 88 : index
    %185 = vector.load %arg26[%c0_120, %c88] : memref<32x96xf32, #tpu.memory_space<vmem>>, vector<32x8xf32>
    %cst_121 = arith.constant dense<0.000000e+00> : vector<32x32xf32>
    %186 = tpu.matmul %183, %184, %cst_121 {dimension_numbers = #tpu.dot_dimension_numbers<[1], [1], [0], [0], [0, 0, 1, 0], [], []>} : vector<32x8xf32>, vector<32x8xf32>, vector<32x32xf32> -> vector<32x32xf32>
    %cst_122 = arith.constant 0.353553385 : f32
    %187 = vector.broadcast %cst_122 : f32 to vector<32x32xf32>
    %188 = arith.mulf %186, %187 : vector<32x32xf32>
    %cst_123 = arith.constant -1.000000e+30 : f32
    %189 = vector.broadcast %cst_123 : f32 to vector<32x32xf32>
    %190 = arith.select %5, %188, %189 : vector<32x32xi1>, vector<32x32xf32>
    %cst_124 = arith.constant dense<0xFF800000> : vector<32xf32>
    %191 = vector.multi_reduction <maximumf>, %190, %cst_124 [1] : vector<32x32xf32> to vector<32xf32>
    %192 = vector.shape_cast %191 : vector<32xf32> to vector<32x1xf32>
    %193 = vector.broadcast %192 : vector<32x1xf32> to vector<32x32xf32>
    %194 = arith.subf %190, %193 : vector<32x32xf32>
    %195 = math.exp %194 : vector<32x32xf32>
    %cst_125 = arith.constant dense<0.000000e+00> : vector<32xf32>
    %196 = vector.multi_reduction <add>, %195, %cst_125 [1] : vector<32x32xf32> to vector<32xf32>
    %197 = vector.shape_cast %196 : vector<32xf32> to vector<32x1xf32>
    %198 = vector.broadcast %197 : vector<32x1xf32> to vector<32x32xf32>
    %199 = arith.divf %195, %198 : vector<32x32xf32>
    %cst_126 = arith.constant dense<0.000000e+00> : vector<32x8xf32>
    %200 = tpu.matmul %199, %185, %cst_126 {dimension_numbers = #tpu.dot_dimension_numbers<[1], [0], [0], [1], [0, 0, 1, 1], [], []>} : vector<32x32xf32>, vector<32x8xf32>, vector<32x8xf32> -> vector<32x8xf32>
    %c0_127 = arith.constant 0 : index
    %c24_128 = arith.constant 24 : index
    %201 = vector.load %arg25[%c0_127, %c24_128] : memref<32x32xf32, #tpu.memory_space<vmem>>, vector<32x8xf32>
    tpu.vector_store %arg25[%c0_127, %c24_128], %200 {strides = array<i32>} : memref<32x32xf32, #tpu.memory_space<vmem>>, vector<32x8xf32>,
    %c0_129 = arith.constant 0 : index
    %c0_130 = arith.constant 0 : index
    %202 = vector.load %arg25[%c0_129, %c0_130] : memref<32x32xf32, #tpu.memory_space<vmem>>, vector<32x32xf32>
    %c0_131 = arith.constant 0 : index
    %c0_132 = arith.constant 0 : index
    %203 = vector.load %arg9[%c0_131, %c0_132] : memref<32x32xf32, #tpu.memory_space<vmem>>, vector<32x32xf32>
    %cst_133 = arith.constant dense<0.000000e+00> : vector<32x32xf32>
    %204 = tpu.matmul %202, %203, %cst_133 {dimension_numbers = #tpu.dot_dimension_numbers<[1], [0], [0], [1], [0, 0, 1, 1], [], []>} : vector<32x32xf32>, vector<32x32xf32>, vector<32x32xf32> -> vector<32x32xf32>
    %c0_134 = arith.constant 0 : index
    %c0_135 = arith.constant 0 : index
    %205 = vector.load %arg10[%c0_134, %c0_135] : memref<1x32xf32, #tpu.memory_space<vmem>>, vector<1x32xf32>
    %206 = vector.broadcast %205 : vector<1x32xf32> to vector<32x32xf32>
    %207 = arith.addf %204, %206 : vector<32x32xf32>
    %cst_136 = arith.constant 0.000000e+00 : f32
    %208 = vector.broadcast %cst_136 : f32 to vector<32x32xf32>
    %209 = arith.maximumf %207, %208 : vector<32x32xf32>
    %c0_137 = arith.constant 0 : index
    %c0_138 = arith.constant 0 : index
    %210 = vector.load %arg11[%c0_137, %c0_138] : memref<32x32xf32, #tpu.memory_space<vmem>>, vector<32x32xf32>
    %cst_139 = arith.constant dense<0.000000e+00> : vector<32x32xf32>
    %211 = tpu.matmul %209, %210, %cst_139 {dimension_numbers = #tpu.dot_dimension_numbers<[1], [0], [0], [1], [0, 0, 1, 1], [], []>} : vector<32x32xf32>, vector<32x32xf32>, vector<32x32xf32> -> vector<32x32xf32>
    %c0_140 = arith.constant 0 : index
    %c0_141 = arith.constant 0 : index
    %212 = vector.load %arg24[%c0_140, %c0_141] : memref<32x32xf32, #tpu.memory_space<vmem>>, vector<32x32xf32>
    tpu.vector_store %arg24[%c0_140, %c0_141], %211 {strides = array<i32>} : memref<32x32xf32, #tpu.memory_space<vmem>>, vector<32x32xf32>,
    %c0_142 = arith.constant 0 : index
    %c0_143 = arith.constant 0 : index
    %213 = vector.load %arg24[%c0_142, %c0_143] : memref<32x32xf32, #tpu.memory_space<vmem>>, vector<32x8xf32>
    %c0_144 = arith.constant 0 : index
    %c0_145 = arith.constant 0 : index
    %214 = vector.load %arg12[%c0_144, %c0_145] : memref<4x8xf32, #tpu.memory_space<vmem>>, vector<1x8xf32>
    %c0_146 = arith.constant 0 : index
    %c0_147 = arith.constant 0 : index
    %215 = vector.load %arg13[%c0_146, %c0_147] : memref<4x8xf32, #tpu.memory_space<vmem>>, vector<1x8xf32>
    %cst_148 = arith.constant dense<0.000000e+00> : vector<32x1xf32>
    %216 = tpu.matmul %213, %214, %cst_148 {dimension_numbers = #tpu.dot_dimension_numbers<[1], [1], [0], [0], [0, 0, 1, 0], [], []>} : vector<32x8xf32>, vector<1x8xf32>, vector<32x1xf32> -> vector<32x1xf32>
    %cst_149 = arith.constant dense<0.000000e+00> : vector<1x32xf32>
    %217 = tpu.matmul %215, %213, %cst_149 {dimension_numbers = #tpu.dot_dimension_numbers<[1], [1], [0], [0], [0, 0, 1, 0], [], []>} : vector<1x8xf32>, vector<32x8xf32>, vector<1x32xf32> -> vector<1x32xf32>
    %218 = vector.broadcast %216 : vector<32x1xf32> to vector<32x32xf32>
    %219 = vector.broadcast %217 : vector<1x32xf32> to vector<32x32xf32>
    %220 = arith.addf %218, %219 : vector<32x32xf32>
    %cst_150 = arith.constant 0.000000e+00 : f32
    %221 = vector.broadcast %cst_150 : f32 to vector<32x32xf32>
    %222 = arith.cmpf ogt, %220, %221 : vector<32x32xf32>
    %cst_151 = arith.constant 2.000000e-01 : f32
    %223 = vector.broadcast %cst_151 : f32 to vector<32x32xf32>
    %224 = arith.mulf %223, %220 : vector<32x32xf32>
    %225 = arith.select %222, %220, %224 : vector<32x32xi1>, vector<32x32xf32>
    %cst_152 = arith.constant -1.000000e+30 : f32
    %226 = vector.broadcast %cst_152 : f32 to vector<32x32xf32>
    %227 = arith.select %2, %225, %226 : vector<32x32xi1>, vector<32x32xf32>
    %cst_153 = arith.constant dense<0xFF800000> : vector<32xf32>
    %228 = vector.multi_reduction <maximumf>, %227, %cst_153 [1] : vector<32x32xf32> to vector<32xf32>
    %229 = vector.shape_cast %228 : vector<32xf32> to vector<32x1xf32>
    %230 = vector.broadcast %229 : vector<32x1xf32> to vector<32x32xf32>
    %231 = arith.subf %227, %230 : vector<32x32xf32>
    %232 = math.exp %231 : vector<32x32xf32>
    %cst_154 = arith.constant dense<0.000000e+00> : vector<32xf32>
    %233 = vector.multi_reduction <add>, %232, %cst_154 [1] : vector<32x32xf32> to vector<32xf32>
    %234 = vector.shape_cast %233 : vector<32xf32> to vector<32x1xf32>
    %235 = vector.broadcast %234 : vector<32x1xf32> to vector<32x32xf32>
    %236 = arith.divf %232, %235 : vector<32x32xf32>
    %cst_155 = arith.constant dense<0.000000e+00> : vector<32x8xf32>
    %237 = tpu.matmul %236, %213, %cst_155 {dimension_numbers = #tpu.dot_dimension_numbers<[1], [0], [0], [1], [0, 0, 1, 1], [], []>} : vector<32x32xf32>, vector<32x8xf32>, vector<32x8xf32> -> vector<32x8xf32>
    %c0_156 = arith.constant 0 : index
    %c0_157 = arith.constant 0 : index
    %238 = vector.load %arg25[%c0_156, %c0_157] : memref<32x32xf32, #tpu.memory_space<vmem>>, vector<32x8xf32>
    tpu.vector_store %arg25[%c0_156, %c0_157], %237 {strides = array<i32>} : memref<32x32xf32, #tpu.memory_space<vmem>>, vector<32x8xf32>,
    %c0_158 = arith.constant 0 : index
    %c8_159 = arith.constant 8 : index
    %239 = vector.load %arg24[%c0_158, %c8_159] : memref<32x32xf32, #tpu.memory_space<vmem>>, vector<32x8xf32>
    %c1_160 = arith.constant 1 : index
    %c0_161 = arith.constant 0 : index
    %240 = vector.load %arg12[%c1_160, %c0_161] : memref<4x8xf32, #tpu.memory_space<vmem>>, vector<1x8xf32>
    %c1_162 = arith.constant 1 : index
    %c0_163 = arith.constant 0 : index
    %241 = vector.load %arg13[%c1_162, %c0_163] : memref<4x8xf32, #tpu.memory_space<vmem>>, vector<1x8xf32>
    %cst_164 = arith.constant dense<0.000000e+00> : vector<32x1xf32>
    %242 = tpu.matmul %239, %240, %cst_164 {dimension_numbers = #tpu.dot_dimension_numbers<[1], [1], [0], [0], [0, 0, 1, 0], [], []>} : vector<32x8xf32>, vector<1x8xf32>, vector<32x1xf32> -> vector<32x1xf32>
    %cst_165 = arith.constant dense<0.000000e+00> : vector<1x32xf32>
    %243 = tpu.matmul %241, %239, %cst_165 {dimension_numbers = #tpu.dot_dimension_numbers<[1], [1], [0], [0], [0, 0, 1, 0], [], []>} : vector<1x8xf32>, vector<32x8xf32>, vector<1x32xf32> -> vector<1x32xf32>
    %244 = vector.broadcast %242 : vector<32x1xf32> to vector<32x32xf32>
    %245 = vector.broadcast %243 : vector<1x32xf32> to vector<32x32xf32>
    %246 = arith.addf %244, %245 : vector<32x32xf32>
    %cst_166 = arith.constant 0.000000e+00 : f32
    %247 = vector.broadcast %cst_166 : f32 to vector<32x32xf32>
    %248 = arith.cmpf ogt, %246, %247 : vector<32x32xf32>
    %cst_167 = arith.constant 2.000000e-01 : f32
    %249 = vector.broadcast %cst_167 : f32 to vector<32x32xf32>
    %250 = arith.mulf %249, %246 : vector<32x32xf32>
    %251 = arith.select %248, %246, %250 : vector<32x32xi1>, vector<32x32xf32>
    %cst_168 = arith.constant -1.000000e+30 : f32
    %252 = vector.broadcast %cst_168 : f32 to vector<32x32xf32>
    %253 = arith.select %2, %251, %252 : vector<32x32xi1>, vector<32x32xf32>
    %cst_169 = arith.constant dense<0xFF800000> : vector<32xf32>
    %254 = vector.multi_reduction <maximumf>, %253, %cst_169 [1] : vector<32x32xf32> to vector<32xf32>
    %255 = vector.shape_cast %254 : vector<32xf32> to vector<32x1xf32>
    %256 = vector.broadcast %255 : vector<32x1xf32> to vector<32x32xf32>
    %257 = arith.subf %253, %256 : vector<32x32xf32>
    %258 = math.exp %257 : vector<32x32xf32>
    %cst_170 = arith.constant dense<0.000000e+00> : vector<32xf32>
    %259 = vector.multi_reduction <add>, %258, %cst_170 [1] : vector<32x32xf32> to vector<32xf32>
    %260 = vector.shape_cast %259 : vector<32xf32> to vector<32x1xf32>
    %261 = vector.broadcast %260 : vector<32x1xf32> to vector<32x32xf32>
    %262 = arith.divf %258, %261 : vector<32x32xf32>
    %cst_171 = arith.constant dense<0.000000e+00> : vector<32x8xf32>
    %263 = tpu.matmul %262, %239, %cst_171 {dimension_numbers = #tpu.dot_dimension_numbers<[1], [0], [0], [1], [0, 0, 1, 1], [], []>} : vector<32x32xf32>, vector<32x8xf32>, vector<32x8xf32> -> vector<32x8xf32>
    %c0_172 = arith.constant 0 : index
    %c8_173 = arith.constant 8 : index
    %264 = vector.load %arg25[%c0_172, %c8_173] : memref<32x32xf32, #tpu.memory_space<vmem>>, vector<32x8xf32>
    tpu.vector_store %arg25[%c0_172, %c8_173], %263 {strides = array<i32>} : memref<32x32xf32, #tpu.memory_space<vmem>>, vector<32x8xf32>,
    %c0_174 = arith.constant 0 : index
    %c16_175 = arith.constant 16 : index
    %265 = vector.load %arg24[%c0_174, %c16_175] : memref<32x32xf32, #tpu.memory_space<vmem>>, vector<32x8xf32>
    %c2_176 = arith.constant 2 : index
    %c0_177 = arith.constant 0 : index
    %266 = vector.load %arg12[%c2_176, %c0_177] : memref<4x8xf32, #tpu.memory_space<vmem>>, vector<1x8xf32>
    %c2_178 = arith.constant 2 : index
    %c0_179 = arith.constant 0 : index
    %267 = vector.load %arg13[%c2_178, %c0_179] : memref<4x8xf32, #tpu.memory_space<vmem>>, vector<1x8xf32>
    %cst_180 = arith.constant dense<0.000000e+00> : vector<32x1xf32>
    %268 = tpu.matmul %265, %266, %cst_180 {dimension_numbers = #tpu.dot_dimension_numbers<[1], [1], [0], [0], [0, 0, 1, 0], [], []>} : vector<32x8xf32>, vector<1x8xf32>, vector<32x1xf32> -> vector<32x1xf32>
    %cst_181 = arith.constant dense<0.000000e+00> : vector<1x32xf32>
    %269 = tpu.matmul %267, %265, %cst_181 {dimension_numbers = #tpu.dot_dimension_numbers<[1], [1], [0], [0], [0, 0, 1, 0], [], []>} : vector<1x8xf32>, vector<32x8xf32>, vector<1x32xf32> -> vector<1x32xf32>
    %270 = vector.broadcast %268 : vector<32x1xf32> to vector<32x32xf32>
    %271 = vector.broadcast %269 : vector<1x32xf32> to vector<32x32xf32>
    %272 = arith.addf %270, %271 : vector<32x32xf32>
    %cst_182 = arith.constant 0.000000e+00 : f32
    %273 = vector.broadcast %cst_182 : f32 to vector<32x32xf32>
    %274 = arith.cmpf ogt, %272, %273 : vector<32x32xf32>
    %cst_183 = arith.constant 2.000000e-01 : f32
    %275 = vector.broadcast %cst_183 : f32 to vector<32x32xf32>
    %276 = arith.mulf %275, %272 : vector<32x32xf32>
    %277 = arith.select %274, %272, %276 : vector<32x32xi1>, vector<32x32xf32>
    %cst_184 = arith.constant -1.000000e+30 : f32
    %278 = vector.broadcast %cst_184 : f32 to vector<32x32xf32>
    %279 = arith.select %2, %277, %278 : vector<32x32xi1>, vector<32x32xf32>
    %cst_185 = arith.constant dense<0xFF800000> : vector<32xf32>
    %280 = vector.multi_reduction <maximumf>, %279, %cst_185 [1] : vector<32x32xf32> to vector<32xf32>
    %281 = vector.shape_cast %280 : vector<32xf32> to vector<32x1xf32>
    %282 = vector.broadcast %281 : vector<32x1xf32> to vector<32x32xf32>
    %283 = arith.subf %279, %282 : vector<32x32xf32>
    %284 = math.exp %283 : vector<32x32xf32>
    %cst_186 = arith.constant dense<0.000000e+00> : vector<32xf32>
    %285 = vector.multi_reduction <add>, %284, %cst_186 [1] : vector<32x32xf32> to vector<32xf32>
    %286 = vector.shape_cast %285 : vector<32xf32> to vector<32x1xf32>
    %287 = vector.broadcast %286 : vector<32x1xf32> to vector<32x32xf32>
    %288 = arith.divf %284, %287 : vector<32x32xf32>
    %cst_187 = arith.constant dense<0.000000e+00> : vector<32x8xf32>
    %289 = tpu.matmul %288, %265, %cst_187 {dimension_numbers = #tpu.dot_dimension_numbers<[1], [0], [0], [1], [0, 0, 1, 1], [], []>} : vector<32x32xf32>, vector<32x8xf32>, vector<32x8xf32> -> vector<32x8xf32>
    %c0_188 = arith.constant 0 : index
    %c16_189 = arith.constant 16 : index
    %290 = vector.load %arg25[%c0_188, %c16_189] : memref<32x32xf32, #tpu.memory_space<vmem>>, vector<32x8xf32>
    tpu.vector_store %arg25[%c0_188, %c16_189], %289 {strides = array<i32>} : memref<32x32xf32, #tpu.memory_space<vmem>>, vector<32x8xf32>,
    %c0_190 = arith.constant 0 : index
    %c24_191 = arith.constant 24 : index
    %291 = vector.load %arg24[%c0_190, %c24_191] : memref<32x32xf32, #tpu.memory_space<vmem>>, vector<32x8xf32>
    %c3_192 = arith.constant 3 : index
    %c0_193 = arith.constant 0 : index
    %292 = vector.load %arg12[%c3_192, %c0_193] : memref<4x8xf32, #tpu.memory_space<vmem>>, vector<1x8xf32>
    %c3_194 = arith.constant 3 : index
    %c0_195 = arith.constant 0 : index
    %293 = vector.load %arg13[%c3_194, %c0_195] : memref<4x8xf32, #tpu.memory_space<vmem>>, vector<1x8xf32>
    %cst_196 = arith.constant dense<0.000000e+00> : vector<32x1xf32>
    %294 = tpu.matmul %291, %292, %cst_196 {dimension_numbers = #tpu.dot_dimension_numbers<[1], [1], [0], [0], [0, 0, 1, 0], [], []>} : vector<32x8xf32>, vector<1x8xf32>, vector<32x1xf32> -> vector<32x1xf32>
    %cst_197 = arith.constant dense<0.000000e+00> : vector<1x32xf32>
    %295 = tpu.matmul %293, %291, %cst_197 {dimension_numbers = #tpu.dot_dimension_numbers<[1], [1], [0], [0], [0, 0, 1, 0], [], []>} : vector<1x8xf32>, vector<32x8xf32>, vector<1x32xf32> -> vector<1x32xf32>
    %296 = vector.broadcast %294 : vector<32x1xf32> to vector<32x32xf32>
    %297 = vector.broadcast %295 : vector<1x32xf32> to vector<32x32xf32>
    %298 = arith.addf %296, %297 : vector<32x32xf32>
    %cst_198 = arith.constant 0.000000e+00 : f32
    %299 = vector.broadcast %cst_198 : f32 to vector<32x32xf32>
    %300 = arith.cmpf ogt, %298, %299 : vector<32x32xf32>
    %cst_199 = arith.constant 2.000000e-01 : f32
    %301 = vector.broadcast %cst_199 : f32 to vector<32x32xf32>
    %302 = arith.mulf %301, %298 : vector<32x32xf32>
    %303 = arith.select %300, %298, %302 : vector<32x32xi1>, vector<32x32xf32>
    %cst_200 = arith.constant -1.000000e+30 : f32
    %304 = vector.broadcast %cst_200 : f32 to vector<32x32xf32>
    %305 = arith.select %2, %303, %304 : vector<32x32xi1>, vector<32x32xf32>
    %cst_201 = arith.constant dense<0xFF800000> : vector<32xf32>
    %306 = vector.multi_reduction <maximumf>, %305, %cst_201 [1] : vector<32x32xf32> to vector<32xf32>
    %307 = vector.shape_cast %306 : vector<32xf32> to vector<32x1xf32>
    %308 = vector.broadcast %307 : vector<32x1xf32> to vector<32x32xf32>
    %309 = arith.subf %305, %308 : vector<32x32xf32>
    %310 = math.exp %309 : vector<32x32xf32>
    %cst_202 = arith.constant dense<0.000000e+00> : vector<32xf32>
    %311 = vector.multi_reduction <add>, %310, %cst_202 [1] : vector<32x32xf32> to vector<32xf32>
    %312 = vector.shape_cast %311 : vector<32xf32> to vector<32x1xf32>
    %313 = vector.broadcast %312 : vector<32x1xf32> to vector<32x32xf32>
    %314 = arith.divf %310, %313 : vector<32x32xf32>
    %cst_203 = arith.constant dense<0.000000e+00> : vector<32x8xf32>
    %315 = tpu.matmul %314, %291, %cst_203 {dimension_numbers = #tpu.dot_dimension_numbers<[1], [0], [0], [1], [0, 0, 1, 1], [], []>} : vector<32x32xf32>, vector<32x8xf32>, vector<32x8xf32> -> vector<32x8xf32>
    %c0_204 = arith.constant 0 : index
    %c24_205 = arith.constant 24 : index
    %316 = vector.load %arg25[%c0_204, %c24_205] : memref<32x32xf32, #tpu.memory_space<vmem>>, vector<32x8xf32>
    tpu.vector_store %arg25[%c0_204, %c24_205], %315 {strides = array<i32>} : memref<32x32xf32, #tpu.memory_space<vmem>>, vector<32x8xf32>,
    %c0_206 = arith.constant 0 : index
    %c0_207 = arith.constant 0 : index
    %317 = vector.load %arg25[%c0_206, %c0_207] : memref<32x32xf32, #tpu.memory_space<vmem>>, vector<32x32xf32>
    %c0_208 = arith.constant 0 : index
    %c0_209 = arith.constant 0 : index
    %318 = vector.load %arg14[%c0_208, %c0_209] : memref<1x32xf32, #tpu.memory_space<vmem>>, vector<1x32xf32>
    %319 = vector.broadcast %318 : vector<1x32xf32> to vector<32x32xf32>
    %320 = arith.addf %317, %319 : vector<32x32xf32>
    %cst_210 = arith.constant 0.000000e+00 : f32
    %321 = vector.broadcast %cst_210 : f32 to vector<32x32xf32>
    %322 = arith.maximumf %320, %321 : vector<32x32xf32>
    %c0_211 = arith.constant 0 : index
    %c0_212 = arith.constant 0 : index
    %323 = vector.load %arg15[%c0_211, %c0_212] : memref<32x96xf32, #tpu.memory_space<vmem>>, vector<32x96xf32>
    %cst_213 = arith.constant dense<0.000000e+00> : vector<32x96xf32>
    %324 = tpu.matmul %322, %323, %cst_213 {dimension_numbers = #tpu.dot_dimension_numbers<[1], [0], [0], [1], [0, 0, 1, 1], [], []>} : vector<32x32xf32>, vector<32x96xf32>, vector<32x96xf32> -> vector<32x96xf32>
    %c0_214 = arith.constant 0 : index
    %c0_215 = arith.constant 0 : index
    %325 = vector.load %arg16[%c0_214, %c0_215] : memref<1x96xf32, #tpu.memory_space<vmem>>, vector<1x96xf32>
    %326 = vector.broadcast %325 : vector<1x96xf32> to vector<32x96xf32>
    %327 = arith.addf %324, %326 : vector<32x96xf32>
    %c0_216 = arith.constant 0 : index
    %c0_217 = arith.constant 0 : index
    %328 = vector.load %arg26[%c0_216, %c0_217] : memref<32x96xf32, #tpu.memory_space<vmem>>, vector<32x96xf32>
    tpu.vector_store %arg26[%c0_216, %c0_217], %327 {strides = array<i32>} : memref<32x96xf32, #tpu.memory_space<vmem>>, vector<32x96xf32>,
    %c0_218 = arith.constant 0 : index
    %c0_219 = arith.constant 0 : index
    %329 = vector.load %arg26[%c0_218, %c0_219] : memref<32x96xf32, #tpu.memory_space<vmem>>, vector<32x8xf32>
    %c0_220 = arith.constant 0 : index
    %c32_221 = arith.constant 32 : index
    %330 = vector.load %arg26[%c0_220, %c32_221] : memref<32x96xf32, #tpu.memory_space<vmem>>, vector<32x8xf32>
    %c0_222 = arith.constant 0 : index
    %c64_223 = arith.constant 64 : index
    %331 = vector.load %arg26[%c0_222, %c64_223] : memref<32x96xf32, #tpu.memory_space<vmem>>, vector<32x8xf32>
    %cst_224 = arith.constant dense<0.000000e+00> : vector<32x32xf32>
    %332 = tpu.matmul %329, %330, %cst_224 {dimension_numbers = #tpu.dot_dimension_numbers<[1], [1], [0], [0], [0, 0, 1, 0], [], []>} : vector<32x8xf32>, vector<32x8xf32>, vector<32x32xf32> -> vector<32x32xf32>
    %cst_225 = arith.constant 0.353553385 : f32
    %333 = vector.broadcast %cst_225 : f32 to vector<32x32xf32>
    %334 = arith.mulf %332, %333 : vector<32x32xf32>
    %cst_226 = arith.constant -1.000000e+30 : f32
    %335 = vector.broadcast %cst_226 : f32 to vector<32x32xf32>
    %336 = arith.select %5, %334, %335 : vector<32x32xi1>, vector<32x32xf32>
    %cst_227 = arith.constant dense<0xFF800000> : vector<32xf32>
    %337 = vector.multi_reduction <maximumf>, %336, %cst_227 [1] : vector<32x32xf32> to vector<32xf32>
    %338 = vector.shape_cast %337 : vector<32xf32> to vector<32x1xf32>
    %339 = vector.broadcast %338 : vector<32x1xf32> to vector<32x32xf32>
    %340 = arith.subf %336, %339 : vector<32x32xf32>
    %341 = math.exp %340 : vector<32x32xf32>
    %cst_228 = arith.constant dense<0.000000e+00> : vector<32xf32>
    %342 = vector.multi_reduction <add>, %341, %cst_228 [1] : vector<32x32xf32> to vector<32xf32>
    %343 = vector.shape_cast %342 : vector<32xf32> to vector<32x1xf32>
    %344 = vector.broadcast %343 : vector<32x1xf32> to vector<32x32xf32>
    %345 = arith.divf %341, %344 : vector<32x32xf32>
    %cst_229 = arith.constant dense<0.000000e+00> : vector<32x8xf32>
    %346 = tpu.matmul %345, %331, %cst_229 {dimension_numbers = #tpu.dot_dimension_numbers<[1], [0], [0], [1], [0, 0, 1, 1], [], []>} : vector<32x32xf32>, vector<32x8xf32>, vector<32x8xf32> -> vector<32x8xf32>
    %c0_230 = arith.constant 0 : index
    %c0_231 = arith.constant 0 : index
    %347 = vector.load %arg25[%c0_230, %c0_231] : memref<32x32xf32, #tpu.memory_space<vmem>>, vector<32x8xf32>
    tpu.vector_store %arg25[%c0_230, %c0_231], %346 {strides = array<i32>} : memref<32x32xf32, #tpu.memory_space<vmem>>, vector<32x8xf32>,
    %c0_232 = arith.constant 0 : index
    %c8_233 = arith.constant 8 : index
    %348 = vector.load %arg26[%c0_232, %c8_233] : memref<32x96xf32, #tpu.memory_space<vmem>>, vector<32x8xf32>
    %c0_234 = arith.constant 0 : index
    %c40_235 = arith.constant 40 : index
    %349 = vector.load %arg26[%c0_234, %c40_235] : memref<32x96xf32, #tpu.memory_space<vmem>>, vector<32x8xf32>
    %c0_236 = arith.constant 0 : index
    %c72_237 = arith.constant 72 : index
    %350 = vector.load %arg26[%c0_236, %c72_237] : memref<32x96xf32, #tpu.memory_space<vmem>>, vector<32x8xf32>
    %cst_238 = arith.constant dense<0.000000e+00> : vector<32x32xf32>
    %351 = tpu.matmul %348, %349, %cst_238 {dimension_numbers = #tpu.dot_dimension_numbers<[1], [1], [0], [0], [0, 0, 1, 0], [], []>} : vector<32x8xf32>, vector<32x8xf32>, vector<32x32xf32> -> vector<32x32xf32>
    %cst_239 = arith.constant 0.353553385 : f32
    %352 = vector.broadcast %cst_239 : f32 to vector<32x32xf32>
    %353 = arith.mulf %351, %352 : vector<32x32xf32>
    %cst_240 = arith.constant -1.000000e+30 : f32
    %354 = vector.broadcast %cst_240 : f32 to vector<32x32xf32>
    %355 = arith.select %5, %353, %354 : vector<32x32xi1>, vector<32x32xf32>
    %cst_241 = arith.constant dense<0xFF800000> : vector<32xf32>
    %356 = vector.multi_reduction <maximumf>, %355, %cst_241 [1] : vector<32x32xf32> to vector<32xf32>
    %357 = vector.shape_cast %356 : vector<32xf32> to vector<32x1xf32>
    %358 = vector.broadcast %357 : vector<32x1xf32> to vector<32x32xf32>
    %359 = arith.subf %355, %358 : vector<32x32xf32>
    %360 = math.exp %359 : vector<32x32xf32>
    %cst_242 = arith.constant dense<0.000000e+00> : vector<32xf32>
    %361 = vector.multi_reduction <add>, %360, %cst_242 [1] : vector<32x32xf32> to vector<32xf32>
    %362 = vector.shape_cast %361 : vector<32xf32> to vector<32x1xf32>
    %363 = vector.broadcast %362 : vector<32x1xf32> to vector<32x32xf32>
    %364 = arith.divf %360, %363 : vector<32x32xf32>
    %cst_243 = arith.constant dense<0.000000e+00> : vector<32x8xf32>
    %365 = tpu.matmul %364, %350, %cst_243 {dimension_numbers = #tpu.dot_dimension_numbers<[1], [0], [0], [1], [0, 0, 1, 1], [], []>} : vector<32x32xf32>, vector<32x8xf32>, vector<32x8xf32> -> vector<32x8xf32>
    %c0_244 = arith.constant 0 : index
    %c8_245 = arith.constant 8 : index
    %366 = vector.load %arg25[%c0_244, %c8_245] : memref<32x32xf32, #tpu.memory_space<vmem>>, vector<32x8xf32>
    tpu.vector_store %arg25[%c0_244, %c8_245], %365 {strides = array<i32>} : memref<32x32xf32, #tpu.memory_space<vmem>>, vector<32x8xf32>,
    %c0_246 = arith.constant 0 : index
    %c16_247 = arith.constant 16 : index
    %367 = vector.load %arg26[%c0_246, %c16_247] : memref<32x96xf32, #tpu.memory_space<vmem>>, vector<32x8xf32>
    %c0_248 = arith.constant 0 : index
    %c48_249 = arith.constant 48 : index
    %368 = vector.load %arg26[%c0_248, %c48_249] : memref<32x96xf32, #tpu.memory_space<vmem>>, vector<32x8xf32>
    %c0_250 = arith.constant 0 : index
    %c80_251 = arith.constant 80 : index
    %369 = vector.load %arg26[%c0_250, %c80_251] : memref<32x96xf32, #tpu.memory_space<vmem>>, vector<32x8xf32>
    %cst_252 = arith.constant dense<0.000000e+00> : vector<32x32xf32>
    %370 = tpu.matmul %367, %368, %cst_252 {dimension_numbers = #tpu.dot_dimension_numbers<[1], [1], [0], [0], [0, 0, 1, 0], [], []>} : vector<32x8xf32>, vector<32x8xf32>, vector<32x32xf32> -> vector<32x32xf32>
    %cst_253 = arith.constant 0.353553385 : f32
    %371 = vector.broadcast %cst_253 : f32 to vector<32x32xf32>
    %372 = arith.mulf %370, %371 : vector<32x32xf32>
    %cst_254 = arith.constant -1.000000e+30 : f32
    %373 = vector.broadcast %cst_254 : f32 to vector<32x32xf32>
    %374 = arith.select %5, %372, %373 : vector<32x32xi1>, vector<32x32xf32>
    %cst_255 = arith.constant dense<0xFF800000> : vector<32xf32>
    %375 = vector.multi_reduction <maximumf>, %374, %cst_255 [1] : vector<32x32xf32> to vector<32xf32>
    %376 = vector.shape_cast %375 : vector<32xf32> to vector<32x1xf32>
    %377 = vector.broadcast %376 : vector<32x1xf32> to vector<32x32xf32>
    %378 = arith.subf %374, %377 : vector<32x32xf32>
    %379 = math.exp %378 : vector<32x32xf32>
    %cst_256 = arith.constant dense<0.000000e+00> : vector<32xf32>
    %380 = vector.multi_reduction <add>, %379, %cst_256 [1] : vector<32x32xf32> to vector<32xf32>
    %381 = vector.shape_cast %380 : vector<32xf32> to vector<32x1xf32>
    %382 = vector.broadcast %381 : vector<32x1xf32> to vector<32x32xf32>
    %383 = arith.divf %379, %382 : vector<32x32xf32>
    %cst_257 = arith.constant dense<0.000000e+00> : vector<32x8xf32>
    %384 = tpu.matmul %383, %369, %cst_257 {dimension_numbers = #tpu.dot_dimension_numbers<[1], [0], [0], [1], [0, 0, 1, 1], [], []>} : vector<32x32xf32>, vector<32x8xf32>, vector<32x8xf32> -> vector<32x8xf32>
    %c0_258 = arith.constant 0 : index
    %c16_259 = arith.constant 16 : index
    %385 = vector.load %arg25[%c0_258, %c16_259] : memref<32x32xf32, #tpu.memory_space<vmem>>, vector<32x8xf32>
    tpu.vector_store %arg25[%c0_258, %c16_259], %384 {strides = array<i32>} : memref<32x32xf32, #tpu.memory_space<vmem>>, vector<32x8xf32>,
    %c0_260 = arith.constant 0 : index
    %c24_261 = arith.constant 24 : index
    %386 = vector.load %arg26[%c0_260, %c24_261] : memref<32x96xf32, #tpu.memory_space<vmem>>, vector<32x8xf32>
    %c0_262 = arith.constant 0 : index
    %c56_263 = arith.constant 56 : index
    %387 = vector.load %arg26[%c0_262, %c56_263] : memref<32x96xf32, #tpu.memory_space<vmem>>, vector<32x8xf32>
    %c0_264 = arith.constant 0 : index
    %c88_265 = arith.constant 88 : index
    %388 = vector.load %arg26[%c0_264, %c88_265] : memref<32x96xf32, #tpu.memory_space<vmem>>, vector<32x8xf32>
    %cst_266 = arith.constant dense<0.000000e+00> : vector<32x32xf32>
    %389 = tpu.matmul %386, %387, %cst_266 {dimension_numbers = #tpu.dot_dimension_numbers<[1], [1], [0], [0], [0, 0, 1, 0], [], []>} : vector<32x8xf32>, vector<32x8xf32>, vector<32x32xf32> -> vector<32x32xf32>
    %cst_267 = arith.constant 0.353553385 : f32
    %390 = vector.broadcast %cst_267 : f32 to vector<32x32xf32>
    %391 = arith.mulf %389, %390 : vector<32x32xf32>
    %cst_268 = arith.constant -1.000000e+30 : f32
    %392 = vector.broadcast %cst_268 : f32 to vector<32x32xf32>
    %393 = arith.select %5, %391, %392 : vector<32x32xi1>, vector<32x32xf32>
    %cst_269 = arith.constant dense<0xFF800000> : vector<32xf32>
    %394 = vector.multi_reduction <maximumf>, %393, %cst_269 [1] : vector<32x32xf32> to vector<32xf32>
    %395 = vector.shape_cast %394 : vector<32xf32> to vector<32x1xf32>
    %396 = vector.broadcast %395 : vector<32x1xf32> to vector<32x32xf32>
    %397 = arith.subf %393, %396 : vector<32x32xf32>
    %398 = math.exp %397 : vector<32x32xf32>
    %cst_270 = arith.constant dense<0.000000e+00> : vector<32xf32>
    %399 = vector.multi_reduction <add>, %398, %cst_270 [1] : vector<32x32xf32> to vector<32xf32>
    %400 = vector.shape_cast %399 : vector<32xf32> to vector<32x1xf32>
    %401 = vector.broadcast %400 : vector<32x1xf32> to vector<32x32xf32>
    %402 = arith.divf %398, %401 : vector<32x32xf32>
    %cst_271 = arith.constant dense<0.000000e+00> : vector<32x8xf32>
    %403 = tpu.matmul %402, %388, %cst_271 {dimension_numbers = #tpu.dot_dimension_numbers<[1], [0], [0], [1], [0, 0, 1, 1], [], []>} : vector<32x32xf32>, vector<32x8xf32>, vector<32x8xf32> -> vector<32x8xf32>
    %c0_272 = arith.constant 0 : index
    %c24_273 = arith.constant 24 : index
    %404 = vector.load %arg25[%c0_272, %c24_273] : memref<32x32xf32, #tpu.memory_space<vmem>>, vector<32x8xf32>
    tpu.vector_store %arg25[%c0_272, %c24_273], %403 {strides = array<i32>} : memref<32x32xf32, #tpu.memory_space<vmem>>, vector<32x8xf32>,
    %c0_274 = arith.constant 0 : index
    %c0_275 = arith.constant 0 : index
    %405 = vector.load %arg25[%c0_274, %c0_275] : memref<32x32xf32, #tpu.memory_space<vmem>>, vector<32x32xf32>
    %c0_276 = arith.constant 0 : index
    %c0_277 = arith.constant 0 : index
    %406 = vector.load %arg17[%c0_276, %c0_277] : memref<32x32xf32, #tpu.memory_space<vmem>>, vector<32x32xf32>
    %cst_278 = arith.constant dense<0.000000e+00> : vector<32x32xf32>
    %407 = tpu.matmul %405, %406, %cst_278 {dimension_numbers = #tpu.dot_dimension_numbers<[1], [0], [0], [1], [0, 0, 1, 1], [], []>} : vector<32x32xf32>, vector<32x32xf32>, vector<32x32xf32> -> vector<32x32xf32>
    %c0_279 = arith.constant 0 : index
    %c0_280 = arith.constant 0 : index
    %408 = vector.load %arg18[%c0_279, %c0_280] : memref<1x32xf32, #tpu.memory_space<vmem>>, vector<1x32xf32>
    %409 = vector.broadcast %408 : vector<1x32xf32> to vector<32x32xf32>
    %410 = arith.addf %407, %409 : vector<32x32xf32>
    %cst_281 = arith.constant 0.000000e+00 : f32
    %411 = vector.broadcast %cst_281 : f32 to vector<32x32xf32>
    %412 = arith.maximumf %410, %411 : vector<32x32xf32>
    %c0_282 = arith.constant 0 : index
    %c0_283 = arith.constant 0 : index
    %413 = vector.load %arg19[%c0_282, %c0_283] : memref<32x32xf32, #tpu.memory_space<vmem>>, vector<32x32xf32>
    %cst_284 = arith.constant dense<0.000000e+00> : vector<32x32xf32>
    %414 = tpu.matmul %412, %413, %cst_284 {dimension_numbers = #tpu.dot_dimension_numbers<[1], [0], [0], [1], [0, 0, 1, 1], [], []>} : vector<32x32xf32>, vector<32x32xf32>, vector<32x32xf32> -> vector<32x32xf32>
    %c0_285 = arith.constant 0 : index
    %c0_286 = arith.constant 0 : index
    %415 = vector.load %arg20[%c0_285, %c0_286] : memref<1x32xf32, #tpu.memory_space<vmem>>, vector<1x32xf32>
    %416 = vector.broadcast %415 : vector<1x32xf32> to vector<32x32xf32>
    %417 = arith.addf %414, %416 : vector<32x32xf32>
    %c0_287 = arith.constant 0 : index
    %c0_288 = arith.constant 0 : index
    %418 = vector.load %arg24[%c0_287, %c0_288] : memref<32x32xf32, #tpu.memory_space<vmem>>, vector<32x32xf32>
    tpu.vector_store %arg24[%c0_287, %c0_288], %417 {strides = array<i32>} : memref<32x32xf32, #tpu.memory_space<vmem>>, vector<32x32xf32>,
    %c0_289 = arith.constant 0 : index
    %c0_290 = arith.constant 0 : index
    %419 = vector.load %arg24[%c0_289, %c0_290] : memref<32x32xf32, #tpu.memory_space<vmem>>, vector<1x32xf32>
    %c0_291 = arith.constant 0 : index
    %c0_292 = arith.constant 0 : index
    %420 = vector.load %arg27[%c0_291, %c0_292] : memref<4x256xf32, #tpu.memory_space<vmem>>, vector<1x32xf32>
    tpu.vector_store %arg27[%c0_291, %c0_292], %419 {strides = array<i32>} : memref<4x256xf32, #tpu.memory_space<vmem>>, vector<1x32xf32>,
    %c1_293 = arith.constant 1 : index
    %c0_294 = arith.constant 0 : index
    %421 = vector.load %arg24[%c1_293, %c0_294] : memref<32x32xf32, #tpu.memory_space<vmem>>, vector<1x32xf32>
    %c0_295 = arith.constant 0 : index
    %c32_296 = arith.constant 32 : index
    %422 = vector.load %arg27[%c0_295, %c32_296] : memref<4x256xf32, #tpu.memory_space<vmem>>, vector<1x32xf32>
    tpu.vector_store %arg27[%c0_295, %c32_296], %421 {strides = array<i32>} : memref<4x256xf32, #tpu.memory_space<vmem>>, vector<1x32xf32>,
    %c2_297 = arith.constant 2 : index
    %c0_298 = arith.constant 0 : index
    %423 = vector.load %arg24[%c2_297, %c0_298] : memref<32x32xf32, #tpu.memory_space<vmem>>, vector<1x32xf32>
    %c0_299 = arith.constant 0 : index
    %c64_300 = arith.constant 64 : index
    %424 = vector.load %arg27[%c0_299, %c64_300] : memref<4x256xf32, #tpu.memory_space<vmem>>, vector<1x32xf32>
    tpu.vector_store %arg27[%c0_299, %c64_300], %423 {strides = array<i32>} : memref<4x256xf32, #tpu.memory_space<vmem>>, vector<1x32xf32>,
    %c3_301 = arith.constant 3 : index
    %c0_302 = arith.constant 0 : index
    %425 = vector.load %arg24[%c3_301, %c0_302] : memref<32x32xf32, #tpu.memory_space<vmem>>, vector<1x32xf32>
    %c0_303 = arith.constant 0 : index
    %c96 = arith.constant 96 : index
    %426 = vector.load %arg27[%c0_303, %c96] : memref<4x256xf32, #tpu.memory_space<vmem>>, vector<1x32xf32>
    tpu.vector_store %arg27[%c0_303, %c96], %425 {strides = array<i32>} : memref<4x256xf32, #tpu.memory_space<vmem>>, vector<1x32xf32>,
    %c4 = arith.constant 4 : index
    %c0_304 = arith.constant 0 : index
    %427 = vector.load %arg24[%c4, %c0_304] : memref<32x32xf32, #tpu.memory_space<vmem>>, vector<1x32xf32>
    %c0_305 = arith.constant 0 : index
    %c128 = arith.constant 128 : index
    %428 = vector.load %arg27[%c0_305, %c128] : memref<4x256xf32, #tpu.memory_space<vmem>>, vector<1x32xf32>
    tpu.vector_store %arg27[%c0_305, %c128], %427 {strides = array<i32>} : memref<4x256xf32, #tpu.memory_space<vmem>>, vector<1x32xf32>,
    %c5 = arith.constant 5 : index
    %c0_306 = arith.constant 0 : index
    %429 = vector.load %arg24[%c5, %c0_306] : memref<32x32xf32, #tpu.memory_space<vmem>>, vector<1x32xf32>
    %c0_307 = arith.constant 0 : index
    %c160 = arith.constant 160 : index
    %430 = vector.load %arg27[%c0_307, %c160] : memref<4x256xf32, #tpu.memory_space<vmem>>, vector<1x32xf32>
    tpu.vector_store %arg27[%c0_307, %c160], %429 {strides = array<i32>} : memref<4x256xf32, #tpu.memory_space<vmem>>, vector<1x32xf32>,
    %c6 = arith.constant 6 : index
    %c0_308 = arith.constant 0 : index
    %431 = vector.load %arg24[%c6, %c0_308] : memref<32x32xf32, #tpu.memory_space<vmem>>, vector<1x32xf32>
    %c0_309 = arith.constant 0 : index
    %c192 = arith.constant 192 : index
    %432 = vector.load %arg27[%c0_309, %c192] : memref<4x256xf32, #tpu.memory_space<vmem>>, vector<1x32xf32>
    tpu.vector_store %arg27[%c0_309, %c192], %431 {strides = array<i32>} : memref<4x256xf32, #tpu.memory_space<vmem>>, vector<1x32xf32>,
    %c7 = arith.constant 7 : index
    %c0_310 = arith.constant 0 : index
    %433 = vector.load %arg24[%c7, %c0_310] : memref<32x32xf32, #tpu.memory_space<vmem>>, vector<1x32xf32>
    %c0_311 = arith.constant 0 : index
    %c224 = arith.constant 224 : index
    %434 = vector.load %arg27[%c0_311, %c224] : memref<4x256xf32, #tpu.memory_space<vmem>>, vector<1x32xf32>
    tpu.vector_store %arg27[%c0_311, %c224], %433 {strides = array<i32>} : memref<4x256xf32, #tpu.memory_space<vmem>>, vector<1x32xf32>,
    %c8_312 = arith.constant 8 : index
    %c0_313 = arith.constant 0 : index
    %435 = vector.load %arg24[%c8_312, %c0_313] : memref<32x32xf32, #tpu.memory_space<vmem>>, vector<1x32xf32>
    %c1_314 = arith.constant 1 : index
    %c0_315 = arith.constant 0 : index
    %436 = vector.load %arg27[%c1_314, %c0_315] : memref<4x256xf32, #tpu.memory_space<vmem>>, vector<1x32xf32>
    tpu.vector_store %arg27[%c1_314, %c0_315], %435 {strides = array<i32>} : memref<4x256xf32, #tpu.memory_space<vmem>>, vector<1x32xf32>,
    %c9 = arith.constant 9 : index
    %c0_316 = arith.constant 0 : index
    %437 = vector.load %arg24[%c9, %c0_316] : memref<32x32xf32, #tpu.memory_space<vmem>>, vector<1x32xf32>
    %c1_317 = arith.constant 1 : index
    %c32_318 = arith.constant 32 : index
    %438 = vector.load %arg27[%c1_317, %c32_318] : memref<4x256xf32, #tpu.memory_space<vmem>>, vector<1x32xf32>
    tpu.vector_store %arg27[%c1_317, %c32_318], %437 {strides = array<i32>} : memref<4x256xf32, #tpu.memory_space<vmem>>, vector<1x32xf32>,
    %c10 = arith.constant 10 : index
    %c0_319 = arith.constant 0 : index
    %439 = vector.load %arg24[%c10, %c0_319] : memref<32x32xf32, #tpu.memory_space<vmem>>, vector<1x32xf32>
    %c1_320 = arith.constant 1 : index
    %c64_321 = arith.constant 64 : index
    %440 = vector.load %arg27[%c1_320, %c64_321] : memref<4x256xf32, #tpu.memory_space<vmem>>, vector<1x32xf32>
    tpu.vector_store %arg27[%c1_320, %c64_321], %439 {strides = array<i32>} : memref<4x256xf32, #tpu.memory_space<vmem>>, vector<1x32xf32>,
    %c11 = arith.constant 11 : index
    %c0_322 = arith.constant 0 : index
    %441 = vector.load %arg24[%c11, %c0_322] : memref<32x32xf32, #tpu.memory_space<vmem>>, vector<1x32xf32>
    %c1_323 = arith.constant 1 : index
    %c96_324 = arith.constant 96 : index
    %442 = vector.load %arg27[%c1_323, %c96_324] : memref<4x256xf32, #tpu.memory_space<vmem>>, vector<1x32xf32>
    tpu.vector_store %arg27[%c1_323, %c96_324], %441 {strides = array<i32>} : memref<4x256xf32, #tpu.memory_space<vmem>>, vector<1x32xf32>,
    %c12 = arith.constant 12 : index
    %c0_325 = arith.constant 0 : index
    %443 = vector.load %arg24[%c12, %c0_325] : memref<32x32xf32, #tpu.memory_space<vmem>>, vector<1x32xf32>
    %c1_326 = arith.constant 1 : index
    %c128_327 = arith.constant 128 : index
    %444 = vector.load %arg27[%c1_326, %c128_327] : memref<4x256xf32, #tpu.memory_space<vmem>>, vector<1x32xf32>
    tpu.vector_store %arg27[%c1_326, %c128_327], %443 {strides = array<i32>} : memref<4x256xf32, #tpu.memory_space<vmem>>, vector<1x32xf32>,
    %c13 = arith.constant 13 : index
    %c0_328 = arith.constant 0 : index
    %445 = vector.load %arg24[%c13, %c0_328] : memref<32x32xf32, #tpu.memory_space<vmem>>, vector<1x32xf32>
    %c1_329 = arith.constant 1 : index
    %c160_330 = arith.constant 160 : index
    %446 = vector.load %arg27[%c1_329, %c160_330] : memref<4x256xf32, #tpu.memory_space<vmem>>, vector<1x32xf32>
    tpu.vector_store %arg27[%c1_329, %c160_330], %445 {strides = array<i32>} : memref<4x256xf32, #tpu.memory_space<vmem>>, vector<1x32xf32>,
    %c14 = arith.constant 14 : index
    %c0_331 = arith.constant 0 : index
    %447 = vector.load %arg24[%c14, %c0_331] : memref<32x32xf32, #tpu.memory_space<vmem>>, vector<1x32xf32>
    %c1_332 = arith.constant 1 : index
    %c192_333 = arith.constant 192 : index
    %448 = vector.load %arg27[%c1_332, %c192_333] : memref<4x256xf32, #tpu.memory_space<vmem>>, vector<1x32xf32>
    tpu.vector_store %arg27[%c1_332, %c192_333], %447 {strides = array<i32>} : memref<4x256xf32, #tpu.memory_space<vmem>>, vector<1x32xf32>,
    %c15 = arith.constant 15 : index
    %c0_334 = arith.constant 0 : index
    %449 = vector.load %arg24[%c15, %c0_334] : memref<32x32xf32, #tpu.memory_space<vmem>>, vector<1x32xf32>
    %c1_335 = arith.constant 1 : index
    %c224_336 = arith.constant 224 : index
    %450 = vector.load %arg27[%c1_335, %c224_336] : memref<4x256xf32, #tpu.memory_space<vmem>>, vector<1x32xf32>
    tpu.vector_store %arg27[%c1_335, %c224_336], %449 {strides = array<i32>} : memref<4x256xf32, #tpu.memory_space<vmem>>, vector<1x32xf32>,
    %c16_337 = arith.constant 16 : index
    %c0_338 = arith.constant 0 : index
    %451 = vector.load %arg24[%c16_337, %c0_338] : memref<32x32xf32, #tpu.memory_space<vmem>>, vector<1x32xf32>
    %c2_339 = arith.constant 2 : index
    %c0_340 = arith.constant 0 : index
    %452 = vector.load %arg27[%c2_339, %c0_340] : memref<4x256xf32, #tpu.memory_space<vmem>>, vector<1x32xf32>
    tpu.vector_store %arg27[%c2_339, %c0_340], %451 {strides = array<i32>} : memref<4x256xf32, #tpu.memory_space<vmem>>, vector<1x32xf32>,
    %c17 = arith.constant 17 : index
    %c0_341 = arith.constant 0 : index
    %453 = vector.load %arg24[%c17, %c0_341] : memref<32x32xf32, #tpu.memory_space<vmem>>, vector<1x32xf32>
    %c2_342 = arith.constant 2 : index
    %c32_343 = arith.constant 32 : index
    %454 = vector.load %arg27[%c2_342, %c32_343] : memref<4x256xf32, #tpu.memory_space<vmem>>, vector<1x32xf32>
    tpu.vector_store %arg27[%c2_342, %c32_343], %453 {strides = array<i32>} : memref<4x256xf32, #tpu.memory_space<vmem>>, vector<1x32xf32>,
    %c18 = arith.constant 18 : index
    %c0_344 = arith.constant 0 : index
    %455 = vector.load %arg24[%c18, %c0_344] : memref<32x32xf32, #tpu.memory_space<vmem>>, vector<1x32xf32>
    %c2_345 = arith.constant 2 : index
    %c64_346 = arith.constant 64 : index
    %456 = vector.load %arg27[%c2_345, %c64_346] : memref<4x256xf32, #tpu.memory_space<vmem>>, vector<1x32xf32>
    tpu.vector_store %arg27[%c2_345, %c64_346], %455 {strides = array<i32>} : memref<4x256xf32, #tpu.memory_space<vmem>>, vector<1x32xf32>,
    %c19 = arith.constant 19 : index
    %c0_347 = arith.constant 0 : index
    %457 = vector.load %arg24[%c19, %c0_347] : memref<32x32xf32, #tpu.memory_space<vmem>>, vector<1x32xf32>
    %c2_348 = arith.constant 2 : index
    %c96_349 = arith.constant 96 : index
    %458 = vector.load %arg27[%c2_348, %c96_349] : memref<4x256xf32, #tpu.memory_space<vmem>>, vector<1x32xf32>
    tpu.vector_store %arg27[%c2_348, %c96_349], %457 {strides = array<i32>} : memref<4x256xf32, #tpu.memory_space<vmem>>, vector<1x32xf32>,
    %c20 = arith.constant 20 : index
    %c0_350 = arith.constant 0 : index
    %459 = vector.load %arg24[%c20, %c0_350] : memref<32x32xf32, #tpu.memory_space<vmem>>, vector<1x32xf32>
    %c2_351 = arith.constant 2 : index
    %c128_352 = arith.constant 128 : index
    %460 = vector.load %arg27[%c2_351, %c128_352] : memref<4x256xf32, #tpu.memory_space<vmem>>, vector<1x32xf32>
    tpu.vector_store %arg27[%c2_351, %c128_352], %459 {strides = array<i32>} : memref<4x256xf32, #tpu.memory_space<vmem>>, vector<1x32xf32>,
    %c21 = arith.constant 21 : index
    %c0_353 = arith.constant 0 : index
    %461 = vector.load %arg24[%c21, %c0_353] : memref<32x32xf32, #tpu.memory_space<vmem>>, vector<1x32xf32>
    %c2_354 = arith.constant 2 : index
    %c160_355 = arith.constant 160 : index
    %462 = vector.load %arg27[%c2_354, %c160_355] : memref<4x256xf32, #tpu.memory_space<vmem>>, vector<1x32xf32>
    tpu.vector_store %arg27[%c2_354, %c160_355], %461 {strides = array<i32>} : memref<4x256xf32, #tpu.memory_space<vmem>>, vector<1x32xf32>,
    %c22 = arith.constant 22 : index
    %c0_356 = arith.constant 0 : index
    %463 = vector.load %arg24[%c22, %c0_356] : memref<32x32xf32, #tpu.memory_space<vmem>>, vector<1x32xf32>
    %c2_357 = arith.constant 2 : index
    %c192_358 = arith.constant 192 : index
    %464 = vector.load %arg27[%c2_357, %c192_358] : memref<4x256xf32, #tpu.memory_space<vmem>>, vector<1x32xf32>
    tpu.vector_store %arg27[%c2_357, %c192_358], %463 {strides = array<i32>} : memref<4x256xf32, #tpu.memory_space<vmem>>, vector<1x32xf32>,
    %c23 = arith.constant 23 : index
    %c0_359 = arith.constant 0 : index
    %465 = vector.load %arg24[%c23, %c0_359] : memref<32x32xf32, #tpu.memory_space<vmem>>, vector<1x32xf32>
    %c2_360 = arith.constant 2 : index
    %c224_361 = arith.constant 224 : index
    %466 = vector.load %arg27[%c2_360, %c224_361] : memref<4x256xf32, #tpu.memory_space<vmem>>, vector<1x32xf32>
    tpu.vector_store %arg27[%c2_360, %c224_361], %465 {strides = array<i32>} : memref<4x256xf32, #tpu.memory_space<vmem>>, vector<1x32xf32>,
    %c24_362 = arith.constant 24 : index
    %c0_363 = arith.constant 0 : index
    %467 = vector.load %arg24[%c24_362, %c0_363] : memref<32x32xf32, #tpu.memory_space<vmem>>, vector<1x32xf32>
    %c3_364 = arith.constant 3 : index
    %c0_365 = arith.constant 0 : index
    %468 = vector.load %arg27[%c3_364, %c0_365] : memref<4x256xf32, #tpu.memory_space<vmem>>, vector<1x32xf32>
    tpu.vector_store %arg27[%c3_364, %c0_365], %467 {strides = array<i32>} : memref<4x256xf32, #tpu.memory_space<vmem>>, vector<1x32xf32>,
    %c25 = arith.constant 25 : index
    %c0_366 = arith.constant 0 : index
    %469 = vector.load %arg24[%c25, %c0_366] : memref<32x32xf32, #tpu.memory_space<vmem>>, vector<1x32xf32>
    %c3_367 = arith.constant 3 : index
    %c32_368 = arith.constant 32 : index
    %470 = vector.load %arg27[%c3_367, %c32_368] : memref<4x256xf32, #tpu.memory_space<vmem>>, vector<1x32xf32>
    tpu.vector_store %arg27[%c3_367, %c32_368], %469 {strides = array<i32>} : memref<4x256xf32, #tpu.memory_space<vmem>>, vector<1x32xf32>,
    %c26 = arith.constant 26 : index
    %c0_369 = arith.constant 0 : index
    %471 = vector.load %arg24[%c26, %c0_369] : memref<32x32xf32, #tpu.memory_space<vmem>>, vector<1x32xf32>
    %c3_370 = arith.constant 3 : index
    %c64_371 = arith.constant 64 : index
    %472 = vector.load %arg27[%c3_370, %c64_371] : memref<4x256xf32, #tpu.memory_space<vmem>>, vector<1x32xf32>
    tpu.vector_store %arg27[%c3_370, %c64_371], %471 {strides = array<i32>} : memref<4x256xf32, #tpu.memory_space<vmem>>, vector<1x32xf32>,
    %c27 = arith.constant 27 : index
    %c0_372 = arith.constant 0 : index
    %473 = vector.load %arg24[%c27, %c0_372] : memref<32x32xf32, #tpu.memory_space<vmem>>, vector<1x32xf32>
    %c3_373 = arith.constant 3 : index
    %c96_374 = arith.constant 96 : index
    %474 = vector.load %arg27[%c3_373, %c96_374] : memref<4x256xf32, #tpu.memory_space<vmem>>, vector<1x32xf32>
    tpu.vector_store %arg27[%c3_373, %c96_374], %473 {strides = array<i32>} : memref<4x256xf32, #tpu.memory_space<vmem>>, vector<1x32xf32>,
    %c28 = arith.constant 28 : index
    %c0_375 = arith.constant 0 : index
    %475 = vector.load %arg24[%c28, %c0_375] : memref<32x32xf32, #tpu.memory_space<vmem>>, vector<1x32xf32>
    %c3_376 = arith.constant 3 : index
    %c128_377 = arith.constant 128 : index
    %476 = vector.load %arg27[%c3_376, %c128_377] : memref<4x256xf32, #tpu.memory_space<vmem>>, vector<1x32xf32>
    tpu.vector_store %arg27[%c3_376, %c128_377], %475 {strides = array<i32>} : memref<4x256xf32, #tpu.memory_space<vmem>>, vector<1x32xf32>,
    %c29 = arith.constant 29 : index
    %c0_378 = arith.constant 0 : index
    %477 = vector.load %arg24[%c29, %c0_378] : memref<32x32xf32, #tpu.memory_space<vmem>>, vector<1x32xf32>
    %c3_379 = arith.constant 3 : index
    %c160_380 = arith.constant 160 : index
    %478 = vector.load %arg27[%c3_379, %c160_380] : memref<4x256xf32, #tpu.memory_space<vmem>>, vector<1x32xf32>
    tpu.vector_store %arg27[%c3_379, %c160_380], %477 {strides = array<i32>} : memref<4x256xf32, #tpu.memory_space<vmem>>, vector<1x32xf32>,
    %c30 = arith.constant 30 : index
    %c0_381 = arith.constant 0 : index
    %479 = vector.load %arg24[%c30, %c0_381] : memref<32x32xf32, #tpu.memory_space<vmem>>, vector<1x32xf32>
    %c3_382 = arith.constant 3 : index
    %c192_383 = arith.constant 192 : index
    %480 = vector.load %arg27[%c3_382, %c192_383] : memref<4x256xf32, #tpu.memory_space<vmem>>, vector<1x32xf32>
    tpu.vector_store %arg27[%c3_382, %c192_383], %479 {strides = array<i32>} : memref<4x256xf32, #tpu.memory_space<vmem>>, vector<1x32xf32>,
    %c31 = arith.constant 31 : index
    %c0_384 = arith.constant 0 : index
    %481 = vector.load %arg24[%c31, %c0_384] : memref<32x32xf32, #tpu.memory_space<vmem>>, vector<1x32xf32>
    %c3_385 = arith.constant 3 : index
    %c224_386 = arith.constant 224 : index
    %482 = vector.load %arg27[%c3_385, %c224_386] : memref<4x256xf32, #tpu.memory_space<vmem>>, vector<1x32xf32>
    tpu.vector_store %arg27[%c3_385, %c224_386], %481 {strides = array<i32>} : memref<4x256xf32, #tpu.memory_space<vmem>>, vector<1x32xf32>,
    %c0_387 = arith.constant 0 : index
    %c0_388 = arith.constant 0 : index
    %483 = vector.load %arg27[%c0_387, %c0_388] : memref<4x256xf32, #tpu.memory_space<vmem>>, vector<4x256xf32>
    %c0_389 = arith.constant 0 : index
    %c0_390 = arith.constant 0 : index
    %484 = vector.load %arg21[%c0_389, %c0_390] : memref<256x16xf32, #tpu.memory_space<vmem>>, vector<256x16xf32>
    %cst_391 = arith.constant dense<0.000000e+00> : vector<4x16xf32>
    %485 = tpu.matmul %483, %484, %cst_391 {dimension_numbers = #tpu.dot_dimension_numbers<[1], [0], [0], [1], [0, 0, 1, 1], [], []>} : vector<4x256xf32>, vector<256x16xf32>, vector<4x16xf32> -> vector<4x16xf32>
    %c0_392 = arith.constant 0 : index
    %c0_393 = arith.constant 0 : index
    %486 = vector.load %arg22[%c0_392, %c0_393] : memref<1x16xf32, #tpu.memory_space<vmem>>, vector<1x16xf32>
    %487 = vector.broadcast %486 : vector<1x16xf32> to vector<4x16xf32>
    %488 = arith.addf %485, %487 : vector<4x16xf32>
    %c0_394 = arith.constant 0 : index
    %c0_395 = arith.constant 0 : index
    %489 = vector.load %arg23[%c0_394, %c0_395] : memref<4x16xf32, #tpu.memory_space<vmem>>, vector<4x16xf32>
    tpu.vector_store %arg23[%c0_394, %c0_395], %488 {strides = array<i32>} : memref<4x16xf32, #tpu.memory_space<vmem>>, vector<4x16xf32>,
    return
  }
}

</mosaic_0001>

<llo_original>
// kernel: tpu_custom_call.1
$region0: #{tpu_custom_call.1}
  #allocation0 [shape = 'u32[]', space=smem, size = 0x4, offset = 0x4, fixed_abs, tag = 'smem constant byte address 0x4 - core index']
  #allocation1 [shape = 'u32[144,128]{1,0:T(1,128)}', space=vmem, size = 0x12000, scoped, tag = 'internal scratch']
  #allocation2 [shape = 'f32[32,32]{1,0:T(8,128)}', space=vmem, size = 0x4000, scoped, tag = 'scratch operand']
  #allocation3 [shape = 'f32[32,32]{1,0:T(8,128)}', space=vmem, size = 0x4000, scoped, tag = 'scratch operand']
  #allocation4 [shape = 'f32[32,96]{1,0:T(8,128)}', space=vmem, size = 0x4000, scoped, tag = 'scratch operand']
  #allocation5 [shape = 'f32[4,256]{1,0:T(4,128)}', space=vmem, size = 0x1000, scoped, tag = 'scratch operand']
  %s0 = inlined_call_operand.vmem [shape: f32[32,4], index: 0, kind: input, shape index: {}]
  %s1 = inlined_call_operand.vmem [shape: f32[32,32], index: 1, kind: input, shape index: {}]
  %s2 = inlined_call_operand.vmem [shape: f32[32,32], index: 2, kind: input, shape index: {}]
  %s3 = inlined_call_operand.vmem [shape: f32[4,32], index: 3, kind: input, shape index: {}]
  %s4 = inlined_call_operand.vmem [shape: f32[4,8], index: 4, kind: input, shape index: {}]
  %s5 = inlined_call_operand.vmem [shape: f32[4,8], index: 5, kind: input, shape index: {}]
  %s6 = inlined_call_operand.vmem [shape: f32[1,32], index: 6, kind: input, shape index: {}]
  %s7 = inlined_call_operand.vmem [shape: f32[32,96], index: 7, kind: input, shape index: {}]
  %s8 = inlined_call_operand.vmem [shape: f32[1,96], index: 8, kind: input, shape index: {}]
  %s9 = inlined_call_operand.vmem [shape: f32[32,32], index: 9, kind: input, shape index: {}]
  %s10 = inlined_call_operand.vmem [shape: f32[1,32], index: 10, kind: input, shape index: {}]
  %s11 = inlined_call_operand.vmem [shape: f32[32,32], index: 11, kind: input, shape index: {}]
  %s12 = inlined_call_operand.vmem [shape: f32[4,8], index: 12, kind: input, shape index: {}]
  %s13 = inlined_call_operand.vmem [shape: f32[4,8], index: 13, kind: input, shape index: {}]
  %s14 = inlined_call_operand.vmem [shape: f32[1,32], index: 14, kind: input, shape index: {}]
  %s15 = inlined_call_operand.vmem [shape: f32[32,96], index: 15, kind: input, shape index: {}]
  %s16 = inlined_call_operand.vmem [shape: f32[1,96], index: 16, kind: input, shape index: {}]
  %s17 = inlined_call_operand.vmem [shape: f32[32,32], index: 17, kind: input, shape index: {}]
  %s18 = inlined_call_operand.vmem [shape: f32[1,32], index: 18, kind: input, shape index: {}]
  %s19 = inlined_call_operand.vmem [shape: f32[32,32], index: 19, kind: input, shape index: {}]
  %s20 = inlined_call_operand.vmem [shape: f32[1,32], index: 20, kind: input, shape index: {}]
  %s21 = inlined_call_operand.vmem [shape: f32[256,16], index: 21, kind: input, shape index: {}]
  %s22 = inlined_call_operand.vmem [shape: f32[1,16], index: 22, kind: input, shape index: {}]
  %s23 = inlined_call_operand.hbm [shape: f32[4,16], index: 23, kind: output, shape index: {}]
  %s24 = sld [smem:[#allocation0]]
  $region102: #{tpu_custom_call.1} parent=0
    _
  %s26 = ssub.s32 1, %s24
  %s27 = scalar_select 0, %s26, %s24
  $region1: #{tpu_custom_call.1} parent=0
    #allocation6 [shape = 'u8[2048]{0}', space=vmem, size = 0x800, scoped, tag = 'output window, operand 0, single buffered']
    #allocation7 [shape = 's32[1]{0}', space=sflag, size = 0x4, scoped, tag = 'scoped memory for tpu_custom_call.1']
    %28 = vsyncpa [#allocation7], 0
    // Predicated region
    $region2: #{tpu_custom_call.1} parent=1 // pred_check
      _
    $region3: #{tpu_custom_call.1} parent=1 // pred_check_branch
      %30 = sbr.rel (0) target = $region5
    $region4: #{tpu_custom_call.1} parent=1 // pred_region
      _
    $region5: #{tpu_custom_call.1} parent=1 // pred_fallthru
      _
    // Predicated region
    $region6: #{tpu_custom_call.1} parent=1 // pred_check
      _
    $region7: #{tpu_custom_call.1} parent=1 // pred_check_branch
      %32 = sbr.rel (0) target = $region9
    $region8: #{tpu_custom_call.1} parent=1 // pred_region
      _
    $region9: #{tpu_custom_call.1} parent=1 // pred_fallthru
      _
    // Predicated region
    $region10: #{tpu_custom_call.1} parent=1 // pred_check
      _
    $region11: #{tpu_custom_call.1} parent=1 // pred_check_branch
      %34 = sbr.rel (0) target = $region13
    $region12: #{tpu_custom_call.1} parent=1 // pred_region
      _
    $region13: #{tpu_custom_call.1} parent=1 // pred_fallthru
      _
    // Predicated region
    $region14: #{tpu_custom_call.1} parent=1 // pred_check
      _
    $region15: #{tpu_custom_call.1} parent=1 // pred_check_branch
      %36 = sbr.rel (0) target = $region17
    $region16: #{tpu_custom_call.1} parent=1 // pred_region
      _
    $region17: #{tpu_custom_call.1} parent=1 // pred_fallthru
      _
    // Predicated region
    $region18: #{tpu_custom_call.1} parent=1 // pred_check
      _
    $region19: #{tpu_custom_call.1} parent=1 // pred_check_branch
      %38 = sbr.rel (0) target = $region21
    $region20: #{tpu_custom_call.1} parent=1 // pred_region
      _
    $region21: #{tpu_custom_call.1} parent=1 // pred_fallthru
      _
    // Predicated region
    $region22: #{tpu_custom_call.1} parent=1 // pred_check
      _
    $region23: #{tpu_custom_call.1} parent=1 // pred_check_branch
      %40 = sbr.rel (0) target = $region25
    $region24: #{tpu_custom_call.1} parent=1 // pred_region
      _
    $region25: #{tpu_custom_call.1} parent=1 // pred_fallthru
      _
    // Predicated region
    $region26: #{tpu_custom_call.1} parent=1 // pred_check
      _
    $region27: #{tpu_custom_call.1} parent=1 // pred_check_branch
      %42 = sbr.rel (0) target = $region29
    $region28: #{tpu_custom_call.1} parent=1 // pred_region
      _
    $region29: #{tpu_custom_call.1} parent=1 // pred_fallthru
      _
    // Predicated region
    $region30: #{tpu_custom_call.1} parent=1 // pred_check
      _
    $region31: #{tpu_custom_call.1} parent=1 // pred_check_branch
      %44 = sbr.rel (0) target = $region33
    $region32: #{tpu_custom_call.1} parent=1 // pred_region
      _
    $region33: #{tpu_custom_call.1} parent=1 // pred_fallthru
      _
    // Predicated region
    $region34: #{tpu_custom_call.1} parent=1 // pred_check
      _
    $region35: #{tpu_custom_call.1} parent=1 // pred_check_branch
      %46 = sbr.rel (0) target = $region37
    $region36: #{tpu_custom_call.1} parent=1 // pred_region
      _
    $region37: #{tpu_custom_call.1} parent=1 // pred_fallthru
      _
    // Predicated region
    $region38: #{tpu_custom_call.1} parent=1 // pred_check
      _
    $region39: #{tpu_custom_call.1} parent=1 // pred_check_branch
      %48 = sbr.rel (0) target = $region41
    $region40: #{tpu_custom_call.1} parent=1 // pred_region
      _
    $region41: #{tpu_custom_call.1} parent=1 // pred_fallthru
      _
    // Predicated region
    $region42: #{tpu_custom_call.1} parent=1 // pred_check
      _
    $region43: #{tpu_custom_call.1} parent=1 // pred_check_branch
      %50 = sbr.rel (0) target = $region45
    $region44: #{tpu_custom_call.1} parent=1 // pred_region
      _
    $region45: #{tpu_custom_call.1} parent=1 // pred_fallthru
      _
    // Predicated region
    $region46: #{tpu_custom_call.1} parent=1 // pred_check
      _
    $region47: #{tpu_custom_call.1} parent=1 // pred_check_branch
      %52 = sbr.rel (0) target = $region49
    $region48: #{tpu_custom_call.1} parent=1 // pred_region
      _
    $region49: #{tpu_custom_call.1} parent=1 // pred_fallthru
      _
    // Predicated region
    $region50: #{tpu_custom_call.1} parent=1 // pred_check
      _
    $region51: #{tpu_custom_call.1} parent=1 // pred_check_branch
      %54 = sbr.rel (0) target = $region53
    $region52: #{tpu_custom_call.1} parent=1 // pred_region
      _
    $region53: #{tpu_custom_call.1} parent=1 // pred_fallthru
      _
    // Predicated region
    $region54: #{tpu_custom_call.1} parent=1 // pred_check
      _
    $region55: #{tpu_custom_call.1} parent=1 // pred_check_branch
      %56 = sbr.rel (0) target = $region57
    $region56: #{tpu_custom_call.1} parent=1 // pred_region
      _
    $region57: #{tpu_custom_call.1} parent=1 // pred_fallthru
      _
    // Predicated region
    $region58: #{tpu_custom_call.1} parent=1 // pred_check
      _
    $region59: #{tpu_custom_call.1} parent=1 // pred_check_branch
      %58 = sbr.rel (0) target = $region61
    $region60: #{tpu_custom_call.1} parent=1 // pred_region
      _
    $region61: #{tpu_custom_call.1} parent=1 // pred_fallthru
      _
    // Predicated region
    $region62: #{tpu_custom_call.1} parent=1 // pred_check
      _
    $region63: #{tpu_custom_call.1} parent=1 // pred_check_branch
      %60 = sbr.rel (0) target = $region65
    $region64: #{tpu_custom_call.1} parent=1 // pred_region
      _
    $region65: #{tpu_custom_call.1} parent=1 // pred_fallthru
      _
    // Predicated region
    $region66: #{tpu_custom_call.1} parent=1 // pred_check
      _
    $region67: #{tpu_custom_call.1} parent=1 // pred_check_branch
      %62 = sbr.rel (0) target = $region69
    $region68: #{tpu_custom_call.1} parent=1 // pred_region
      _
    $region69: #{tpu_custom_call.1} parent=1 // pred_fallthru
      _
    // Predicated region
    $region70: #{tpu_custom_call.1} parent=1 // pred_check
      _
    $region71: #{tpu_custom_call.1} parent=1 // pred_check_branch
      %64 = sbr.rel (0) target = $region73
    $region72: #{tpu_custom_call.1} parent=1 // pred_region
      _
    $region73: #{tpu_custom_call.1} parent=1 // pred_fallthru
      _
    // Predicated region
    $region74: #{tpu_custom_call.1} parent=1 // pred_check
      _
    $region75: #{tpu_custom_call.1} parent=1 // pred_check_branch
      %66 = sbr.rel (0) target = $region77
    $region76: #{tpu_custom_call.1} parent=1 // pred_region
      _
    $region77: #{tpu_custom_call.1} parent=1 // pred_fallthru
      _
    // Predicated region
    $region78: #{tpu_custom_call.1} parent=1 // pred_check
      _
    $region79: #{tpu_custom_call.1} parent=1 // pred_check_branch
      %68 = sbr.rel (0) target = $region81
    $region80: #{tpu_custom_call.1} parent=1 // pred_region
      _
    $region81: #{tpu_custom_call.1} parent=1 // pred_fallthru
      _
    // Predicated region
    $region82: #{tpu_custom_call.1} parent=1 // pred_check
      _
    $region83: #{tpu_custom_call.1} parent=1 // pred_check_branch
      %70 = sbr.rel (0) target = $region85
    $region84: #{tpu_custom_call.1} parent=1 // pred_region
      _
    $region85: #{tpu_custom_call.1} parent=1 // pred_fallthru
      _
    // Predicated region
    $region86: #{tpu_custom_call.1} parent=1 // pred_check
      _
    $region87: #{tpu_custom_call.1} parent=1 // pred_check_branch
      %72 = sbr.rel (0) target = $region89
    $region88: #{tpu_custom_call.1} parent=1 // pred_region
      _
    $region89: #{tpu_custom_call.1} parent=1 // pred_fallthru
      _
    // Predicated region
    $region90: #{tpu_custom_call.1} parent=1 // pred_check
      _
    $region91: #{tpu_custom_call.1} parent=1 // pred_check_branch
      %74 = sbr.rel (0) target = $region93
    $region92: #{tpu_custom_call.1} parent=1 // pred_region
      _
    $region93: #{tpu_custom_call.1} parent=1 // pred_fallthru
      _
    %v75 = vld [vmem:[%s1] sm:$0xff]
    %v76 = vld [vmem:[%s1 + $0x8] sm:$0xff]
    %v77 = vld [vmem:[%s1 + $0x10] sm:$0xff]
    %v78 = vld [vmem:[%s1 + $0x18] sm:$0xff]
    %vm79 = vcmp.gt.f32.partialorder %v75, 0.5
    %vm80 = vcmp.gt.f32.partialorder %v76, 0.5
    %vm81 = vcmp.gt.f32.partialorder %v77, 0.5
    %vm82 = vcmp.gt.f32.partialorder %v78, 0.5
    %v83 = vld [vmem:[%s2] sm:$0xff]
    %v84 = vld [vmem:[%s2 + $0x8] sm:$0xff]
    %v85 = vld [vmem:[%s2 + $0x10] sm:$0xff]
    %v86 = vld [vmem:[%s2 + $0x18] sm:$0xff]
    %vm87 = vcmp.gt.f32.partialorder %v83, 0.5
    %vm88 = vcmp.gt.f32.partialorder %v84, 0.5
    %vm89 = vcmp.gt.f32.partialorder %v85, 0.5
    %vm90 = vcmp.gt.f32.partialorder %v86, 0.5
    %v91 = vld [vmem:[%s0] sm:$0xff]
    %v92 = vld [vmem:[%s0 + $0x8] sm:$0xff]
    %v93 = vld [vmem:[%s0 + $0x10] sm:$0xff]
    %v94 = vld [vmem:[%s0 + $0x18] sm:$0xff]
    %v95 = vld [vmem:[%s3] sm:$0xf]
    %vm96 = vcmask 31744
    %v98 = vsel %vm96, %v91, 0
    %v101 = vsel %vm96, %v92, 0
    %v104 = vsel %vm96, %v93, 0
    %v107 = vsel %vm96, %v94, 0
    %vm109 = vcmask 1043456
    %v111 = vsel %vm109, %v95, 0
    %113 = vmatprep.subr.mxu0 0.0
    %114 = vmatpush1.msra.mxu0 %v111
    %115 = vmatprep.subr.mxu0 0.0
    %116 = vmatpush1.msra.mxu0 0.0
    %117 = vmatprep.subr.mxu0 0.0
    %118 = vmatpush1.msra.mxu0 0.0
    %119 = vmatprep.subr.mxu0 0.0
    %120 = vmatpush1.msra.mxu0 0.0
    %121 = vmatprep.subr.mxu0 0.0
    %122 = vmatpush1.msra.mxu0 0.0
    %123 = vmatprep.subr.mxu0 0.0
    %124 = vmatpush1.msra.mxu0 0.0
    %125 = vmatprep.subr.mxu0 0.0
    %126 = vmatpush1.msra.mxu0 0.0
    %127 = vmatprep.subr.mxu0 0.0
    %128 = vmatpush1.msra.mxu0 0.0
    %129 = vmatprep.subr.mxu0 0.0
    %130 = vmatpush1.msra.mxu0 0.0
    %131 = vmatprep.subr.mxu0 0.0
    %132 = vmatpush1.msra.mxu0 0.0
    %133 = vmatprep.subr.mxu0 0.0
    %134 = vmatpush1.msra.mxu0 0.0
    %135 = vmatprep.subr.mxu0 0.0
    %136 = vmatpush1.msra.mxu0 0.0
    %137 = vmatprep.subr.mxu0 0.0
    %138 = vmatpush1.msra.mxu0 0.0
    %139 = vmatprep.subr.mxu0 0.0
    %140 = vmatpush1.msra.mxu0 0.0
    %141 = vmatprep.subr.mxu0 0.0
    %142 = vmatpush1.msra.mxu0 0.0
    %143 = vmatprep.subr.mxu0 0.0
    %144 = vmatpush1.msra.mxu0 0.0
    %145 = vmatprep.subr.mxu0 0.0
    %146 = vmatpush1.msra.mxu0 0.0
    %147 = vmatprep.subr.mxu0 0.0
    %148 = vmatpush1.msra.mxu0 0.0
    %149 = vmatprep.subr.mxu0 0.0
    %150 = vmatpush1.msra.mxu0 0.0
    %151 = vmatprep.subr.mxu0 0.0
    %152 = vmatpush1.msra.mxu0 0.0
    %153 = vmatprep.subr.mxu0 0.0
    %154 = vmatpush1.msra.mxu0 0.0
    %155 = vmatprep.subr.mxu0 0.0
    %156 = vmatpush1.msra.mxu0 0.0
    %157 = vmatprep.subr.mxu0 0.0
    %158 = vmatpush1.msra.mxu0 0.0
    %159 = vmatprep.subr.mxu0 0.0
    %160 = vmatpush1.msra.mxu0 0.0
    %161 = vmatprep.subr.mxu0 0.0
    %162 = vmatpush1.msra.mxu0 0.0
    %163 = vmatprep.subr.mxu0 0.0
    %164 = vmatpush1.msra.mxu0 0.0
    %165 = vmatprep.subr.mxu0 0.0
    %166 = vmatpush1.msra.mxu0 0.0
    %167 = vmatprep.subr.mxu0 0.0
    %168 = vmatpush1.msra.mxu0 0.0
    %169 = vmatprep.subr.mxu0 0.0
    %170 = vmatpush1.msra.mxu0 0.0
    %171 = vmatprep.subr.mxu0 0.0
    %172 = vmatpush1.msra.mxu0 0.0
    %173 = vmatprep.subr.mxu0 0.0
    %174 = vmatpush1.msra.mxu0 0.0
    %175 = vmatprep.subr.mxu0 0.0
    %176 = vmatpush1.msra.mxu0 0.0
    %177 = vmatprep.mubr.f32.mxu0 0.0
    %178 = vmatmul.mubr.f32.gmra.mrb[0].mxu0 %v98
    %v179 = vpop.f32.mrb[0].mxu0
    %v180 = vadd.f32 0.0, %v179
    %v181 = vpop.f32.mrb[0].mxu0
    %182 = vmatprep.mubr.f32.mxu0 0.0
    %183 = vmatmul.mubr.f32.gmra.mrb[0].mxu0 %v101
    %v184 = vpop.f32.mrb[0].mxu0
    %v185 = vadd.f32 0.0, %v184
    %v186 = vpop.f32.mrb[0].mxu0
    %187 = vmatprep.mubr.f32.mxu0 0.0
    %188 = vmatmul.mubr.f32.gmra.mrb[0].mxu0 %v104
    %v189 = vpop.f32.mrb[0].mxu0
    %v190 = vadd.f32 0.0, %v189
    %v191 = vpop.f32.mrb[0].mxu0
    %192 = vmatprep.mubr.f32.mxu0 0.0
    %193 = vmatmul.mubr.f32.gmra.mrb[0].mxu0 %v107
    %v194 = vpop.f32.mrb[0].mxu0
    %v195 = vadd.f32 0.0, %v194
    %v196 = vpop.f32.mrb[0].mxu0
    %197 = vdwg.mxu0
    %vm198 = vcmask 261120
    %199 = vst.msk [vmem:[#allocation2] sm:$0xff] %vm198, %v180
    %200 = vst.msk [vmem:[#allocation2 + $0x8] sm:$0xff] %vm198, %v185
    %201 = vst.msk [vmem:[#allocation2 + $0x10] sm:$0xff] %vm198, %v190
    %202 = vst.msk [vmem:[#allocation2 + $0x18] sm:$0xff] %vm198, %v195
    %v203 = vld [vmem:[#allocation2] sm:$0xff]
    %v204 = vld [vmem:[#allocation2 + $0x8] sm:$0xff]
    %v205 = vld [vmem:[#allocation2 + $0x10] sm:$0xff]
    %v206 = vld [vmem:[#allocation2 + $0x18] sm:$0xff]
    %v207 = vld [vmem:[%s4] sm:$0x1]
    %v208 = vld [vmem:[%s5] sm:$0x1]
    %v209 = vlaneseq
    %v210 = vshrl.u32 %v209, 7
    %v211 = vsub.s32 0, %v210
    %v212 = vrot.slane %v207, %v211
    %v213 = vmul.f32 %v203, %v212
    %v214 = vmul.f32 %v204, %v212
    %v215 = vmul.f32 %v205, %v212
    %v216 = vmul.f32 %v206, %v212
    %vm217 = vcmask 64512
    %v218 = vsel %vm217, %v213, 0.0
    %219 = vadd.xlane.f32.xlu0 %v218
    %v220 = vpop.xlane.xlu0 %219
    %v221 = vsel %vm217, %v214, 0.0
    %222 = vadd.xlane.f32.xlu0 %v221
    %v223 = vpop.xlane.xlu0 %222
    %v224 = vsel %vm217, %v215, 0.0
    %225 = vadd.xlane.f32.xlu0 %v224
    %v226 = vpop.xlane.xlu0 %225
    %v227 = vsel %vm217, %v216, 0.0
    %228 = vadd.xlane.f32.xlu0 %v227
    %v229 = vpop.xlane.xlu0 %228
    %v231 = vsel %vm217, %v208, 0
    %v234 = vsel %vm217, %v203, 0
    %v237 = vsel %vm217, %v204, 0
    %v240 = vsel %vm217, %v205, 0
    %v243 = vsel %vm217, %v206, 0
    %245 = vmatprep.subr.mxu0 0.0
    %246 = vmatpush1.xpose.msra.mxu0 %v234
    %247 = vmatprep.subr.mxu0 0.0
    %248 = vmatpush1.xpose.msra.mxu0 %v237
    %249 = vmatprep.subr.mxu0 0.0
    %250 = vmatpush1.xpose.msra.mxu0 %v240
    %251 = vmatprep.subr.mxu0 0.0
    %252 = vmatpush1.xpose.msra.mxu0 %v243
    %253 = vmatprep.subr.mxu0 0.0
    %254 = vmatpush1.xpose.msra.mxu0 0.0
    %255 = vmatprep.subr.mxu0 0.0
    %256 = vmatpush1.xpose.msra.mxu0 0.0
    %257 = vmatprep.subr.mxu0 0.0
    %258 = vmatpush1.xpose.msra.mxu0 0.0
    %259 = vmatprep.subr.mxu0 0.0
    %260 = vmatpush1.xpose.msra.mxu0 0.0
    %261 = vmatprep.subr.mxu0 0.0
    %262 = vmatpush1.xpose.msra.mxu0 0.0
    %263 = vmatprep.subr.mxu0 0.0
    %264 = vmatpush1.xpose.msra.mxu0 0.0
    %265 = vmatprep.subr.mxu0 0.0
    %266 = vmatpush1.xpose.msra.mxu0 0.0
    %267 = vmatprep.subr.mxu0 0.0
    %268 = vmatpush1.xpose.msra.mxu0 0.0
    %269 = vmatprep.subr.mxu0 0.0
    %270 = vmatpush1.xpose.msra.mxu0 0.0
    %271 = vmatprep.subr.mxu0 0.0
    %272 = vmatpush1.xpose.msra.mxu0 0.0
    %273 = vmatprep.subr.mxu0 0.0
    %274 = vmatpush1.xpose.msra.mxu0 0.0
    %275 = vmatprep.subr.mxu0 0.0
    %276 = vmatpush1.xpose.msra.mxu0 0.0
    %277 = vmatprep.subr.mxu0 0.0
    %278 = vmatpush1.xpose.msra.mxu0 0.0
    %279 = vmatprep.subr.mxu0 0.0
    %280 = vmatpush1.xpose.msra.mxu0 0.0
    %281 = vmatprep.subr.mxu0 0.0
    %282 = vmatpush1.xpose.msra.mxu0 0.0
    %283 = vmatprep.subr.mxu0 0.0
    %284 = vmatpush1.xpose.msra.mxu0 0.0
    %285 = vmatprep.subr.mxu0 0.0
    %286 = vmatpush1.xpose.msra.mxu0 0.0
    %287 = vmatprep.subr.mxu0 0.0
    %288 = vmatpush1.xpose.msra.mxu0 0.0
    %289 = vmatprep.subr.mxu0 0.0
    %290 = vmatpush1.xpose.msra.mxu0 0.0
    %291 = vmatprep.subr.mxu0 0.0
    %292 = vmatpush1.xpose.msra.mxu0 0.0
    %293 = vmatprep.subr.mxu0 0.0
    %294 = vmatpush1.xpose.msra.mxu0 0.0
    %295 = vmatprep.subr.mxu0 0.0
    %296 = vmatpush1.xpose.msra.mxu0 0.0
    %297 = vmatprep.subr.mxu0 0.0
    %298 = vmatpush1.xpose.msra.mxu0 0.0
    %299 = vmatprep.subr.mxu0 0.0
    %300 = vmatpush1.xpose.msra.mxu0 0.0
    %301 = vmatprep.subr.mxu0 0.0
    %302 = vmatpush1.xpose.msra.mxu0 0.0
    %303 = vmatprep.subr.mxu0 0.0
    %304 = vmatpush1.xpose.msra.mxu0 0.0
    %305 = vmatprep.subr.mxu0 0.0
    %306 = vmatpush1.xpose.msra.mxu0 0.0
    %307 = vmatprep.subr.mxu0 0.0
    %308 = vmatpush1.xpose.msra.mxu0 0.0
    %309 = vmatprep.mubr.f32.mxu0 0.0
    %310 = vmatmul.mubr.f32.gmra.mrb[0].mxu0 %v231
    %v311 = vpop.f32.mrb[0].mxu0
    %v312 = vadd.f32 0.0, %v311
    %v313 = vpop.f32.mrb[0].mxu0
    %314 = vdwg.mxu0
    %v315 = vlaneseq
    %v316 = vshrl.u32 %v315, 7
    %v317 = vsub.s32 0, %v316
    %v318 = vrot.slane %v312, %v317
    %v319 = vadd.f32 %v220, %v318
    %v320 = vadd.f32 %v223, %v318
    %v321 = vadd.f32 %v226, %v318
    %v322 = vadd.f32 %v229, %v318
    %vm323 = vcmp.gt.f32.partialorder %v319, 0.0
    %vm324 = vcmp.gt.f32.partialorder %v320, 0.0
    %vm325 = vcmp.gt.f32.partialorder %v321, 0.0
    %vm326 = vcmp.gt.f32.partialorder %v322, 0.0
    %v327 = vmul.f32 %v319, 0.2
    %v328 = vmul.f32 %v320, 0.2
    %v329 = vmul.f32 %v321, 0.2
    %v330 = vmul.f32 %v322, 0.2
    %v331 = vsel %vm323, %v319, %v327
    %v332 = vsel %vm324, %v320, %v328
    %v333 = vsel %vm325, %v321, %v329
    %v334 = vsel %vm326, %v322, %v330
    %v335 = vsel %vm79, %v331, -1e+30
    %v336 = vsel %vm80, %v332, -1e+30
    %v337 = vsel %vm81, %v333, -1e+30
    %v338 = vsel %vm82, %v334, -1e+30
    %v339 = vsel %vm198, %v335, -inf
    %340 = vmax.xlane.f32.xlu0 %v339
    %v341 = vpop.xlane.xlu0 %340
    %v342 = vsel %vm198, %v336, -inf
    %343 = vmax.xlane.f32.xlu0 %v342
    %v344 = vpop.xlane.xlu0 %343
    %v345 = vsel %vm198, %v337, -inf
    %346 = vmax.xlane.f32.xlu0 %v345
    %v347 = vpop.xlane.xlu0 %346
    %v348 = vsel %vm198, %v338, -inf
    %349 = vmax.xlane.f32.xlu0 %v348
    %v350 = vpop.xlane.xlu0 %349
    %v351 = vsub.f32 %v335, %v341
    %v352 = vsub.f32 %v336, %v344
    %v353 = vsub.f32 %v337, %v347
    %v354 = vsub.f32 %v338, %v350
    %v355 = vmul.f32 %v351, 1.442695
    %v356 = vpow.pop %v355
    %v357 = vmul.f32 %v352, 1.442695
    %v358 = vpow.pop %v357
    %v359 = vmul.f32 %v353, 1.442695
    %v360 = vpow.pop %v359
    %v361 = vmul.f32 %v354, 1.442695
    %v362 = vpow.pop %v361
    %v363 = vsel %vm198, %v356, 0.0
    %364 = vadd.xlane.f32.xlu0 %v363
    %v365 = vpop.xlane.xlu0 %364
    %v366 = vsel %vm198, %v358, 0.0
    %367 = vadd.xlane.f32.xlu0 %v366
    %v368 = vpop.xlane.xlu0 %367
    %v369 = vsel %vm198, %v360, 0.0
    %370 = vadd.xlane.f32.xlu0 %v369
    %v371 = vpop.xlane.xlu0 %370
    %v372 = vsel %vm198, %v362, 0.0
    %373 = vadd.xlane.f32.xlu0 %v372
    %v374 = vpop.xlane.xlu0 %373
    %v375 = vrcp.pop %v365
    %v376 = vmul.f32 %v356, %v375
    %v377 = vrcp.pop %v368
    %v378 = vmul.f32 %v358, %v377
    %v379 = vrcp.pop %v371
    %v380 = vmul.f32 %v360, %v379
    %v381 = vrcp.pop %v374
    %v382 = vmul.f32 %v362, %v381
    %v384 = vsel %vm198, %v376, 0
    %v387 = vsel %vm198, %v378, 0
    %v390 = vsel %vm198, %v380, 0
    %v393 = vsel %vm198, %v382, 0
    %395 = vmatprep.subr.mxu0 0.0
    %396 = vmatpush1.msra.mxu0 %v203
    %397 = vmatprep.subr.mxu0 0.0
    %398 = vmatpush1.msra.mxu0 %v204
    %399 = vmatprep.subr.mxu0 0.0
    %400 = vmatpush1.msra.mxu0 %v205
    %401 = vmatprep.subr.mxu0 0.0
    %402 = vmatpush1.msra.mxu0 %v206
    %403 = vmatprep.subr.mxu0 0.0
    %404 = vmatpush1.msra.mxu0 0.0
    %405 = vmatprep.subr.mxu0 0.0
    %406 = vmatpush1.msra.mxu0 0.0
    %407 = vmatprep.subr.mxu0 0.0
    %408 = vmatpush1.msra.mxu0 0.0
    %409 = vmatprep.subr.mxu0 0.0
    %410 = vmatpush1.msra.mxu0 0.0
    %411 = vmatprep.subr.mxu0 0.0
    %412 = vmatpush1.msra.mxu0 0.0
    %413 = vmatprep.subr.mxu0 0.0
    %414 = vmatpush1.msra.mxu0 0.0
    %415 = vmatprep.subr.mxu0 0.0
    %416 = vmatpush1.msra.mxu0 0.0
    %417 = vmatprep.subr.mxu0 0.0
    %418 = vmatpush1.msra.mxu0 0.0
    %419 = vmatprep.subr.mxu0 0.0
    %420 = vmatpush1.msra.mxu0 0.0
    %421 = vmatprep.subr.mxu0 0.0
    %422 = vmatpush1.msra.mxu0 0.0
    %423 = vmatprep.subr.mxu0 0.0
    %424 = vmatpush1.msra.mxu0 0.0
    %425 = vmatprep.subr.mxu0 0.0
    %426 = vmatpush1.msra.mxu0 0.0
    %427 = vmatprep.subr.mxu0 0.0
    %428 = vmatpush1.msra.mxu0 0.0
    %429 = vmatprep.subr.mxu0 0.0
    %430 = vmatpush1.msra.mxu0 0.0
    %431 = vmatprep.subr.mxu0 0.0
    %432 = vmatpush1.msra.mxu0 0.0
    %433 = vmatprep.subr.mxu0 0.0
    %434 = vmatpush1.msra.mxu0 0.0
    %435 = vmatprep.subr.mxu0 0.0
    %436 = vmatpush1.msra.mxu0 0.0
    %437 = vmatprep.subr.mxu0 0.0
    %438 = vmatpush1.msra.mxu0 0.0
    %439 = vmatprep.subr.mxu0 0.0
    %440 = vmatpush1.msra.mxu0 0.0
    %441 = vmatprep.subr.mxu0 0.0
    %442 = vmatpush1.msra.mxu0 0.0
    %443 = vmatprep.subr.mxu0 0.0
    %444 = vmatpush1.msra.mxu0 0.0
    %445 = vmatprep.subr.mxu0 0.0
    %446 = vmatpush1.msra.mxu0 0.0
    %447 = vmatprep.subr.mxu0 0.0
    %448 = vmatpush1.msra.mxu0 0.0
    %449 = vmatprep.subr.mxu0 0.0
    %450 = vmatpush1.msra.mxu0 0.0
    %451 = vmatprep.subr.mxu0 0.0
    %452 = vmatpush1.msra.mxu0 0.0
    %453 = vmatprep.subr.mxu0 0.0
    %454 = vmatpush1.msra.mxu0 0.0
    %455 = vmatprep.subr.mxu0 0.0
    %456 = vmatpush1.msra.mxu0 0.0
    %457 = vmatprep.subr.mxu0 0.0
    %458 = vmatpush1.msra.mxu0 0.0
    %459 = vmatprep.mubr.f32.mxu0 0.0
    %460 = vmatmul.mubr.f32.gmra.mrb[0].mxu0 %v384
    %v461 = vpop.f32.mrb[0].mxu0
    %v462 = vadd.f32 0.0, %v461
    %v463 = vpop.f32.mrb[0].mxu0
    %464 = vmatprep.mubr.f32.mxu0 0.0
    %465 = vmatmul.mubr.f32.gmra.mrb[0].mxu0 %v387
    %v466 = vpop.f32.mrb[0].mxu0
    %v467 = vadd.f32 0.0, %v466
    %v468 = vpop.f32.mrb[0].mxu0
    %469 = vmatprep.mubr.f32.mxu0 0.0
    %470 = vmatmul.mubr.f32.gmra.mrb[0].mxu0 %v390
    %v471 = vpop.f32.mrb[0].mxu0
    %v472 = vadd.f32 0.0, %v471
    %v473 = vpop.f32.mrb[0].mxu0
    %474 = vmatprep.mubr.f32.mxu0 0.0
    %475 = vmatmul.mubr.f32.gmra.mrb[0].mxu0 %v393
    %v476 = vpop.f32.mrb[0].mxu0
    %v477 = vadd.f32 0.0, %v476
    %v478 = vpop.f32.mrb[0].mxu0
    %479 = vdwg.mxu0
    %480 = vst.msk [vmem:[#allocation3] sm:$0xff] %vm217, %v462
    %481 = vst.msk [vmem:[#allocation3 + $0x8] sm:$0xff] %vm217, %v467
    %482 = vst.msk [vmem:[#allocation3 + $0x10] sm:$0xff] %vm217, %v472
    %483 = vst.msk [vmem:[#allocation3 + $0x18] sm:$0xff] %vm217, %v477
    %v484 = vld [vmem:[#allocation2] sm:$0xff]
    %v485 = vld [vmem:[#allocation2 + $0x8] sm:$0xff]
    %v486 = vld [vmem:[#allocation2 + $0x10] sm:$0xff]
    %v487 = vld [vmem:[#allocation2 + $0x18] sm:$0xff]
    %v488 = vld [vmem:[%s4 + $0x1] sm:$0x1]
    %v489 = vld [vmem:[%s5 + $0x1] sm:$0x1]
    %v490 = vlaneseq
    %v491 = vshrl.u32 %v490, 7
    %v492 = vsub.s32 0, %v491
    %v493 = vrot.slane %v488, %v492
    %495 = vrot.lane.b32.xlu0 %v493, 8
    %v496 = vpop.permute.xlu0 %495
    %v498 = vmul.f32 %v484, %v496
    %v499 = vmul.f32 %v485, %v496
    %v500 = vmul.f32 %v486, %v496
    %v501 = vmul.f32 %v487, %v496
    %506 = vrot.lane.b32.xlu0 %v498, 120
    %v507 = vpop.permute.xlu0 %506
    %508 = vrot.lane.b32.xlu0 %v499, 120
    %v509 = vpop.permute.xlu0 %508
    %510 = vrot.lane.b32.xlu0 %v500, 120
    %v511 = vpop.permute.xlu0 %510
    %512 = vrot.lane.b32.xlu0 %v501, 120
    %v513 = vpop.permute.xlu0 %512
    %v518 = vsel %vm217, %v507, 0.0
    %519 = vadd.xlane.f32.xlu0 %v518
    %v520 = vpop.xlane.xlu0 %519
    %v521 = vsel %vm217, %v509, 0.0
    %522 = vadd.xlane.f32.xlu0 %v521
    %v523 = vpop.xlane.xlu0 %522
    %v524 = vsel %vm217, %v511, 0.0
    %525 = vadd.xlane.f32.xlu0 %v524
    %v526 = vpop.xlane.xlu0 %525
    %v527 = vsel %vm217, %v513, 0.0
    %528 = vadd.xlane.f32.xlu0 %v527
    %v529 = vpop.xlane.xlu0 %528
    %534 = vrot.lane.b32.xlu0 %v484, 120
    %v535 = vpop.permute.xlu0 %534
    %536 = vrot.lane.b32.xlu0 %v485, 120
    %v537 = vpop.permute.xlu0 %536
    %538 = vrot.lane.b32.xlu0 %v486, 120
    %v539 = vpop.permute.xlu0 %538
    %540 = vrot.lane.b32.xlu0 %v487, 120
    %v541 = vpop.permute.xlu0 %540
    %v543 = vsel %vm217, %v489, 0
    %v545 = vsel %vm217, %v535, 0
    %v547 = vsel %vm217, %v537, 0
    %v549 = vsel %vm217, %v539, 0
    %v551 = vsel %vm217, %v541, 0
    %553 = vmatprep.subr.mxu0 0.0
    %554 = vmatpush1.xpose.msra.mxu0 %v545
    %555 = vmatprep.subr.mxu0 0.0
    %556 = vmatpush1.xpose.msra.mxu0 %v547
    %557 = vmatprep.subr.mxu0 0.0
    %558 = vmatpush1.xpose.msra.mxu0 %v549
    %559 = vmatprep.subr.mxu0 0.0
    %560 = vmatpush1.xpose.msra.mxu0 %v551
    %561 = vmatprep.subr.mxu0 0.0
    %562 = vmatpush1.xpose.msra.mxu0 0.0
    %563 = vmatprep.subr.mxu0 0.0
    %564 = vmatpush1.xpose.msra.mxu0 0.0
    %565 = vmatprep.subr.mxu0 0.0
    %566 = vmatpush1.xpose.msra.mxu0 0.0
    %567 = vmatprep.subr.mxu0 0.0
    %568 = vmatpush1.xpose.msra.mxu0 0.0
    %569 = vmatprep.subr.mxu0 0.0
    %570 = vmatpush1.xpose.msra.mxu0 0.0
    %571 = vmatprep.subr.mxu0 0.0
    %572 = vmatpush1.xpose.msra.mxu0 0.0
    %573 = vmatprep.subr.mxu0 0.0
    %574 = vmatpush1.xpose.msra.mxu0 0.0
    %575 = vmatprep.subr.mxu0 0.0
    %576 = vmatpush1.xpose.msra.mxu0 0.0
    %577 = vmatprep.subr.mxu0 0.0
    %578 = vmatpush1.xpose.msra.mxu0 0.0
    %579 = vmatprep.subr.mxu0 0.0
    %580 = vmatpush1.xpose.msra.mxu0 0.0
    %581 = vmatprep.subr.mxu0 0.0
    %582 = vmatpush1.xpose.msra.mxu0 0.0
    %583 = vmatprep.subr.mxu0 0.0
    %584 = vmatpush1.xpose.msra.mxu0 0.0
    %585 = vmatprep.subr.mxu0 0.0
    %586 = vmatpush1.xpose.msra.mxu0 0.0
    %587 = vmatprep.subr.mxu0 0.0
    %588 = vmatpush1.xpose.msra.mxu0 0.0
    %589 = vmatprep.subr.mxu0 0.0
    %590 = vmatpush1.xpose.msra.mxu0 0.0
    %591 = vmatprep.subr.mxu0 0.0
    %592 = vmatpush1.xpose.msra.mxu0 0.0
    %593 = vmatprep.subr.mxu0 0.0
    %594 = vmatpush1.xpose.msra.mxu0 0.0
    %595 = vmatprep.subr.mxu0 0.0
    %596 = vmatpush1.xpose.msra.mxu0 0.0
    %597 = vmatprep.subr.mxu0 0.0
    %598 = vmatpush1.xpose.msra.mxu0 0.0
    %599 = vmatprep.subr.mxu0 0.0
    %600 = vmatpush1.xpose.msra.mxu0 0.0
    %601 = vmatprep.subr.mxu0 0.0
    %602 = vmatpush1.xpose.msra.mxu0 0.0
    %603 = vmatprep.subr.mxu0 0.0
    %604 = vmatpush1.xpose.msra.mxu0 0.0
    %605 = vmatprep.subr.mxu0 0.0
    %606 = vmatpush1.xpose.msra.mxu0 0.0
    %607 = vmatprep.subr.mxu0 0.0
    %608 = vmatpush1.xpose.msra.mxu0 0.0
    %609 = vmatprep.subr.mxu0 0.0
    %610 = vmatpush1.xpose.msra.mxu0 0.0
    %611 = vmatprep.subr.mxu0 0.0
    %612 = vmatpush1.xpose.msra.mxu0 0.0
    %613 = vmatprep.subr.mxu0 0.0
    %614 = vmatpush1.xpose.msra.mxu0 0.0
    %615 = vmatprep.subr.mxu0 0.0
    %616 = vmatpush1.xpose.msra.mxu0 0.0
    %617 = vmatprep.mubr.f32.mxu0 0.0
    %618 = vmatmul.mubr.f32.gmra.mrb[0].mxu0 %v543
    %v619 = vpop.f32.mrb[0].mxu0
    %v620 = vadd.f32 0.0, %v619
    %v621 = vpop.f32.mrb[0].mxu0
    %622 = vdwg.mxu0
    %v623 = vlaneseq
    %v624 = vshrl.u32 %v623, 7
    %v625 = vsub.s32 0, %v624
    %v626 = vrot.slane %v620, %v625
    %v627 = vadd.f32 %v520, %v626
    %v628 = vadd.f32 %v523, %v626
    %v629 = vadd.f32 %v526, %v626
    %v630 = vadd.f32 %v529, %v626
    %vm631 = vcmp.gt.f32.partialorder %v627, 0.0
    %vm632 = vcmp.gt.f32.partialorder %v628, 0.0
    %vm633 = vcmp.gt.f32.partialorder %v629, 0.0
    %vm634 = vcmp.gt.f32.partialorder %v630, 0.0
    %v635 = vmul.f32 %v627, 0.2
    %v636 = vmul.f32 %v628, 0.2
    %v637 = vmul.f32 %v629, 0.2
    %v638 = vmul.f32 %v630, 0.2
    %v639 = vsel %vm631, %v627, %v635
    %v640 = vsel %vm632, %v628, %v636
    %v641 = vsel %vm633, %v629, %v637
    %v642 = vsel %vm634, %v630, %v638
    %v643 = vsel %vm79, %v639, -1e+30
    %v644 = vsel %vm80, %v640, -1e+30
    %v645 = vsel %vm81, %v641, -1e+30
    %v646 = vsel %vm82, %v642, -1e+30
    %v647 = vsel %vm198, %v643, -inf
    %648 = vmax.xlane.f32.xlu0 %v647
    %v649 = vpop.xlane.xlu0 %648
    %v650 = vsel %vm198, %v644, -inf
    %651 = vmax.xlane.f32.xlu0 %v650
    %v652 = vpop.xlane.xlu0 %651
    %v653 = vsel %vm198, %v645, -inf
    %654 = vmax.xlane.f32.xlu0 %v653
    %v655 = vpop.xlane.xlu0 %654
    %v656 = vsel %vm198, %v646, -inf
    %657 = vmax.xlane.f32.xlu0 %v656
    %v658 = vpop.xlane.xlu0 %657
    %v659 = vsub.f32 %v643, %v649
    %v660 = vsub.f32 %v644, %v652
    %v661 = vsub.f32 %v645, %v655
    %v662 = vsub.f32 %v646, %v658
    %v663 = vmul.f32 %v659, 1.442695
    %v664 = vpow.pop %v663
    %v665 = vmul.f32 %v660, 1.442695
    %v666 = vpow.pop %v665
    %v667 = vmul.f32 %v661, 1.442695
    %v668 = vpow.pop %v667
    %v669 = vmul.f32 %v662, 1.442695
    %v670 = vpow.pop %v669
    %v671 = vsel %vm198, %v664, 0.0
    %672 = vadd.xlane.f32.xlu0 %v671
    %v673 = vpop.xlane.xlu0 %672
    %v674 = vsel %vm198, %v666, 0.0
    %675 = vadd.xlane.f32.xlu0 %v674
    %v676 = vpop.xlane.xlu0 %675
    %v677 = vsel %vm198, %v668, 0.0
    %678 = vadd.xlane.f32.xlu0 %v677
    %v679 = vpop.xlane.xlu0 %678
    %v680 = vsel %vm198, %v670, 0.0
    %681 = vadd.xlane.f32.xlu0 %v680
    %v682 = vpop.xlane.xlu0 %681
    %v683 = vrcp.pop %v673
    %v684 = vmul.f32 %v664, %v683
    %v685 = vrcp.pop %v676
    %v686 = vmul.f32 %v666, %v685
    %v687 = vrcp.pop %v679
    %v688 = vmul.f32 %v668, %v687
    %v689 = vrcp.pop %v682
    %v690 = vmul.f32 %v670, %v689
    %v696 = vsel %vm198, %v684, 0
    %v699 = vsel %vm198, %v686, 0
    %v702 = vsel %vm198, %v688, 0
    %v705 = vsel %vm198, %v690, 0
    %707 = vmatprep.subr.mxu0 0.0
    %708 = vmatpush1.msra.mxu0 %v535
    %709 = vmatprep.subr.mxu0 0.0
    %710 = vmatpush1.msra.mxu0 %v537
    %711 = vmatprep.subr.mxu0 0.0
    %712 = vmatpush1.msra.mxu0 %v539
    %713 = vmatprep.subr.mxu0 0.0
    %714 = vmatpush1.msra.mxu0 %v541
    %715 = vmatprep.subr.mxu0 0.0
    %716 = vmatpush1.msra.mxu0 0.0
    %717 = vmatprep.subr.mxu0 0.0
    %718 = vmatpush1.msra.mxu0 0.0
    %719 = vmatprep.subr.mxu0 0.0
    %720 = vmatpush1.msra.mxu0 0.0
    %721 = vmatprep.subr.mxu0 0.0
    %722 = vmatpush1.msra.mxu0 0.0
    %723 = vmatprep.subr.mxu0 0.0
    %724 = vmatpush1.msra.mxu0 0.0
    %725 = vmatprep.subr.mxu0 0.0
    %726 = vmatpush1.msra.mxu0 0.0
    %727 = vmatprep.subr.mxu0 0.0
    %728 = vmatpush1.msra.mxu0 0.0
    %729 = vmatprep.subr.mxu0 0.0
    %730 = vmatpush1.msra.mxu0 0.0
    %731 = vmatprep.subr.mxu0 0.0
    %732 = vmatpush1.msra.mxu0 0.0
    %733 = vmatprep.subr.mxu0 0.0
    %734 = vmatpush1.msra.mxu0 0.0
    %735 = vmatprep.subr.mxu0 0.0
    %736 = vmatpush1.msra.mxu0 0.0
    %737 = vmatprep.subr.mxu0 0.0
    %738 = vmatpush1.msra.mxu0 0.0
    %739 = vmatprep.subr.mxu0 0.0
    %740 = vmatpush1.msra.mxu0 0.0
    %741 = vmatprep.subr.mxu0 0.0
    %742 = vmatpush1.msra.mxu0 0.0
    %743 = vmatprep.subr.mxu0 0.0
    %744 = vmatpush1.msra.mxu0 0.0
    %745 = vmatprep.subr.mxu0 0.0
    %746 = vmatpush1.msra.mxu0 0.0
    %747 = vmatprep.subr.mxu0 0.0
    %748 = vmatpush1.msra.mxu0 0.0
    %749 = vmatprep.subr.mxu0 0.0
    %750 = vmatpush1.msra.mxu0 0.0
    %751 = vmatprep.subr.mxu0 0.0
    %752 = vmatpush1.msra.mxu0 0.0
    %753 = vmatprep.subr.mxu0 0.0
    %754 = vmatpush1.msra.mxu0 0.0
    %755 = vmatprep.subr.mxu0 0.0
    %756 = vmatpush1.msra.mxu0 0.0
    %757 = vmatprep.subr.mxu0 0.0
    %758 = vmatpush1.msra.mxu0 0.0
    %759 = vmatprep.subr.mxu0 0.0
    %760 = vmatpush1.msra.mxu0 0.0
    %761 = vmatprep.subr.mxu0 0.0
    %762 = vmatpush1.msra.mxu0 0.0
    %763 = vmatprep.subr.mxu0 0.0
    %764 = vmatpush1.msra.mxu0 0.0
    %765 = vmatprep.subr.mxu0 0.0
    %766 = vmatpush1.msra.mxu0 0.0
    %767 = vmatprep.subr.mxu0 0.0
    %768 = vmatpush1.msra.mxu0 0.0
    %769 = vmatprep.subr.mxu0 0.0
    %770 = vmatpush1.msra.mxu0 0.0
    %771 = vmatprep.mubr.f32.mxu0 0.0
    %772 = vmatmul.mubr.f32.gmra.mrb[0].mxu0 %v696
    %v773 = vpop.f32.mrb[0].mxu0
    %v774 = vadd.f32 0.0, %v773
    %v775 = vpop.f32.mrb[0].mxu0
    %776 = vmatprep.mubr.f32.mxu0 0.0
    %777 = vmatmul.mubr.f32.gmra.mrb[0].mxu0 %v699
    %v778 = vpop.f32.mrb[0].mxu0
    %v779 = vadd.f32 0.0, %v778
    %v780 = vpop.f32.mrb[0].mxu0
    %781 = vmatprep.mubr.f32.mxu0 0.0
    %782 = vmatmul.mubr.f32.gmra.mrb[0].mxu0 %v702
    %v783 = vpop.f32.mrb[0].mxu0
    %v784 = vadd.f32 0.0, %v783
    %v785 = vpop.f32.mrb[0].mxu0
    %786 = vmatprep.mubr.f32.mxu0 0.0
    %787 = vmatmul.mubr.f32.gmra.mrb[0].mxu0 %v705
    %v788 = vpop.f32.mrb[0].mxu0
    %v789 = vadd.f32 0.0, %v788
    %v790 = vpop.f32.mrb[0].mxu0
    %791 = vdwg.mxu0
    %796 = vrot.lane.b32.xlu0 %v774, 8
    %v797 = vpop.permute.xlu0 %796
    %798 = vrot.lane.b32.xlu0 %v779, 8
    %v799 = vpop.permute.xlu0 %798
    %800 = vrot.lane.b32.xlu0 %v784, 8
    %v801 = vpop.permute.xlu0 %800
    %802 = vrot.lane.b32.xlu0 %v789, 8
    %v803 = vpop.permute.xlu0 %802
    %vm808 = vcmask 130112
    %809 = vst.msk [vmem:[#allocation3] sm:$0xff] %vm808, %v797
    %810 = vst.msk [vmem:[#allocation3 + $0x8] sm:$0xff] %vm808, %v799
    %811 = vst.msk [vmem:[#allocation3 + $0x10] sm:$0xff] %vm808, %v801
    %812 = vst.msk [vmem:[#allocation3 + $0x18] sm:$0xff] %vm808, %v803
    %v813 = vld [vmem:[#allocation2] sm:$0xff]
    %v814 = vld [vmem:[#allocation2 + $0x8] sm:$0xff]
    %v815 = vld [vmem:[#allocation2 + $0x10] sm:$0xff]
    %v816 = vld [vmem:[#allocation2 + $0x18] sm:$0xff]
    %v817 = vld [vmem:[%s4 + $0x2] sm:$0x1]
    %v818 = vld [vmem:[%s5 + $0x2] sm:$0x1]
    %v819 = vlaneseq
    %v820 = vshrl.u32 %v819, 7
    %v821 = vsub.s32 0, %v820
    %v822 = vrot.slane %v817, %v821
    %824 = vrot.lane.b32.xlu0 %v822, 16
    %v825 = vpop.permute.xlu0 %824
    %v827 = vmul.f32 %v813, %v825
    %v828 = vmul.f32 %v814, %v825
    %v829 = vmul.f32 %v815, %v825
    %v830 = vmul.f32 %v816, %v825
    %835 = vrot.lane.b32.xlu0 %v827, 112
    %v836 = vpop.permute.xlu0 %835
    %837 = vrot.lane.b32.xlu0 %v828, 112
    %v838 = vpop.permute.xlu0 %837
    %839 = vrot.lane.b32.xlu0 %v829, 112
    %v840 = vpop.permute.xlu0 %839
    %841 = vrot.lane.b32.xlu0 %v830, 112
    %v842 = vpop.permute.xlu0 %841
    %v847 = vsel %vm217, %v836, 0.0
    %848 = vadd.xlane.f32.xlu0 %v847
    %v849 = vpop.xlane.xlu0 %848
    %v850 = vsel %vm217, %v838, 0.0
    %851 = vadd.xlane.f32.xlu0 %v850
    %v852 = vpop.xlane.xlu0 %851
    %v853 = vsel %vm217, %v840, 0.0
    %854 = vadd.xlane.f32.xlu0 %v853
    %v855 = vpop.xlane.xlu0 %854
    %v856 = vsel %vm217, %v842, 0.0
    %857 = vadd.xlane.f32.xlu0 %v856
    %v858 = vpop.xlane.xlu0 %857
    %863 = vrot.lane.b32.xlu0 %v813, 112
    %v864 = vpop.permute.xlu0 %863
    %865 = vrot.lane.b32.xlu0 %v814, 112
    %v866 = vpop.permute.xlu0 %865
    %867 = vrot.lane.b32.xlu0 %v815, 112
    %v868 = vpop.permute.xlu0 %867
    %869 = vrot.lane.b32.xlu0 %v816, 112
    %v870 = vpop.permute.xlu0 %869
    %v872 = vsel %vm217, %v818, 0
    %v874 = vsel %vm217, %v864, 0
    %v876 = vsel %vm217, %v866, 0
    %v878 = vsel %vm217, %v868, 0
    %v880 = vsel %vm217, %v870, 0
    %882 = vmatprep.subr.mxu0 0.0
    %883 = vmatpush1.xpose.msra.mxu0 %v874
    %884 = vmatprep.subr.mxu0 0.0
    %885 = vmatpush1.xpose.msra.mxu0 %v876
    %886 = vmatprep.subr.mxu0 0.0
    %887 = vmatpush1.xpose.msra.mxu0 %v878
    %888 = vmatprep.subr.mxu0 0.0
    %889 = vmatpush1.xpose.msra.mxu0 %v880
    %890 = vmatprep.subr.mxu0 0.0
    %891 = vmatpush1.xpose.msra.mxu0 0.0
    %892 = vmatprep.subr.mxu0 0.0
    %893 = vmatpush1.xpose.msra.mxu0 0.0
    %894 = vmatprep.subr.mxu0 0.0
    %895 = vmatpush1.xpose.msra.mxu0 0.0
    %896 = vmatprep.subr.mxu0 0.0
    %897 = vmatpush1.xpose.msra.mxu0 0.0
    %898 = vmatprep.subr.mxu0 0.0
    %899 = vmatpush1.xpose.msra.mxu0 0.0
    %900 = vmatprep.subr.mxu0 0.0
    %901 = vmatpush1.xpose.msra.mxu0 0.0
    %902 = vmatprep.subr.mxu0 0.0
    %903 = vmatpush1.xpose.msra.mxu0 0.0
    %904 = vmatprep.subr.mxu0 0.0
    %905 = vmatpush1.xpose.msra.mxu0 0.0
    %906 = vmatprep.subr.mxu0 0.0
    %907 = vmatpush1.xpose.msra.mxu0 0.0
    %908 = vmatprep.subr.mxu0 0.0
    %909 = vmatpush1.xpose.msra.mxu0 0.0
    %910 = vmatprep.subr.mxu0 0.0
    %911 = vmatpush1.xpose.msra.mxu0 0.0
    %912 = vmatprep.subr.mxu0 0.0
    %913 = vmatpush1.xpose.msra.mxu0 0.0
    %914 = vmatprep.subr.mxu0 0.0
    %915 = vmatpush1.xpose.msra.mxu0 0.0
    %916 = vmatprep.subr.mxu0 0.0
    %917 = vmatpush1.xpose.msra.mxu0 0.0
    %918 = vmatprep.subr.mxu0 0.0
    %919 = vmatpush1.xpose.msra.mxu0 0.0
    %920 = vmatprep.subr.mxu0 0.0
    %921 = vmatpush1.xpose.msra.mxu0 0.0
    %922 = vmatprep.subr.mxu0 0.0
    %923 = vmatpush1.xpose.msra.mxu0 0.0
    %924 = vmatprep.subr.mxu0 0.0
    %925 = vmatpush1.xpose.msra.mxu0 0.0
    %926 = vmatprep.subr.mxu0 0.0
    %927 = vmatpush1.xpose.msra.mxu0 0.0
    %928 = vmatprep.subr.mxu0 0.0
    %929 = vmatpush1.xpose.msra.mxu0 0.0
    %930 = vmatprep.subr.mxu0 0.0
    %931 = vmatpush1.xpose.msra.mxu0 0.0
    %932 = vmatprep.subr.mxu0 0.0
    %933 = vmatpush1.xpose.msra.mxu0 0.0
    %934 = vmatprep.subr.mxu0 0.0
    %935 = vmatpush1.xpose.msra.mxu0 0.0
    %936 = vmatprep.subr.mxu0 0.0
    %937 = vmatpush1.xpose.msra.mxu0 0.0
    %938 = vmatprep.subr.mxu0 0.0
    %939 = vmatpush1.xpose.msra.mxu0 0.0
    %940 = vmatprep.subr.mxu0 0.0
    %941 = vmatpush1.xpose.msra.mxu0 0.0
    %942 = vmatprep.subr.mxu0 0.0
    %943 = vmatpush1.xpose.msra.mxu0 0.0
    %944 = vmatprep.subr.mxu0 0.0
    %945 = vmatpush1.xpose.msra.mxu0 0.0
    %946 = vmatprep.mubr.f32.mxu0 0.0
    %947 = vmatmul.mubr.f32.gmra.mrb[0].mxu0 %v872
    %v948 = vpop.f32.mrb[0].mxu0
    %v949 = vadd.f32 0.0, %v948
    %v950 = vpop.f32.mrb[0].mxu0
    %951 = vdwg.mxu0
    %v952 = vlaneseq
    %v953 = vshrl.u32 %v952, 7
    %v954 = vsub.s32 0, %v953
    %v955 = vrot.slane %v949, %v954
    %v956 = vadd.f32 %v849, %v955
    %v957 = vadd.f32 %v852, %v955
    %v958 = vadd.f32 %v855, %v955
    %v959 = vadd.f32 %v858, %v955
    %vm960 = vcmp.gt.f32.partialorder %v956, 0.0
    %vm961 = vcmp.gt.f32.partialorder %v957, 0.0
    %vm962 = vcmp.gt.f32.partialorder %v958, 0.0
    %vm963 = vcmp.gt.f32.partialorder %v959, 0.0
    %v964 = vmul.f32 %v956, 0.2
    %v965 = vmul.f32 %v957, 0.2
    %v966 = vmul.f32 %v958, 0.2
    %v967 = vmul.f32 %v959, 0.2
    %v968 = vsel %vm960, %v956, %v964
    %v969 = vsel %vm961, %v957, %v965
    %v970 = vsel %vm962, %v958, %v966
    %v971 = vsel %vm963, %v959, %v967
    %v972 = vsel %vm79, %v968, -1e+30
    %v973 = vsel %vm80, %v969, -1e+30
    %v974 = vsel %vm81, %v970, -1e+30
    %v975 = vsel %vm82, %v971, -1e+30
    %v976 = vsel %vm198, %v972, -inf
    %977 = vmax.xlane.f32.xlu0 %v976
    %v978 = vpop.xlane.xlu0 %977
    %v979 = vsel %vm198, %v973, -inf
    %980 = vmax.xlane.f32.xlu0 %v979
    %v981 = vpop.xlane.xlu0 %980
    %v982 = vsel %vm198, %v974, -inf
    %983 = vmax.xlane.f32.xlu0 %v982
    %v984 = vpop.xlane.xlu0 %983
    %v985 = vsel %vm198, %v975, -inf
    %986 = vmax.xlane.f32.xlu0 %v985
    %v987 = vpop.xlane.xlu0 %986
    %v988 = vsub.f32 %v972, %v978
    %v989 = vsub.f32 %v973, %v981
    %v990 = vsub.f32 %v974, %v984
    %v991 = vsub.f32 %v975, %v987
    %v992 = vmul.f32 %v988, 1.442695
    %v993 = vpow.pop %v992
    %v994 = vmul.f32 %v989, 1.442695
    %v995 = vpow.pop %v994
    %v996 = vmul.f32 %v990, 1.442695
    %v997 = vpow.pop %v996
    %v998 = vmul.f32 %v991, 1.442695
    %v999 = vpow.pop %v998
    %v1000 = vsel %vm198, %v993, 0.0
    %1001 = vadd.xlane.f32.xlu0 %v1000
    %v1002 = vpop.xlane.xlu0 %1001
    %v1003 = vsel %vm198, %v995, 0.0
    %1004 = vadd.xlane.f32.xlu0 %v1003
    %v1005 = vpop.xlane.xlu0 %1004
    %v1006 = vsel %vm198, %v997, 0.0
    %1007 = vadd.xlane.f32.xlu0 %v1006
    %v1008 = vpop.xlane.xlu0 %1007
    %v1009 = vsel %vm198, %v999, 0.0
    %1010 = vadd.xlane.f32.xlu0 %v1009
    %v1011 = vpop.xlane.xlu0 %1010
    %v1012 = vrcp.pop %v1002
    %v1013 = vmul.f32 %v993, %v1012
    %v1014 = vrcp.pop %v1005
    %v1015 = vmul.f32 %v995, %v1014
    %v1016 = vrcp.pop %v1008
    %v1017 = vmul.f32 %v997, %v1016
    %v1018 = vrcp.pop %v1011
    %v1019 = vmul.f32 %v999, %v1018
    %v1025 = vsel %vm198, %v1013, 0
    %v1028 = vsel %vm198, %v1015, 0
    %v1031 = vsel %vm198, %v1017, 0
    %v1034 = vsel %vm198, %v1019, 0
    %1036 = vmatprep.subr.mxu0 0.0
    %1037 = vmatpush1.msra.mxu0 %v864
    %1038 = vmatprep.subr.mxu0 0.0
    %1039 = vmatpush1.msra.mxu0 %v866
    %1040 = vmatprep.subr.mxu0 0.0
    %1041 = vmatpush1.msra.mxu0 %v868
    %1042 = vmatprep.subr.mxu0 0.0
    %1043 = vmatpush1.msra.mxu0 %v870
    %1044 = vmatprep.subr.mxu0 0.0
    %1045 = vmatpush1.msra.mxu0 0.0
    %1046 = vmatprep.subr.mxu0 0.0
    %1047 = vmatpush1.msra.mxu0 0.0
    %1048 = vmatprep.subr.mxu0 0.0
    %1049 = vmatpush1.msra.mxu0 0.0
    %1050 = vmatprep.subr.mxu0 0.0
    %1051 = vmatpush1.msra.mxu0 0.0
    %1052 = vmatprep.subr.mxu0 0.0
    %1053 = vmatpush1.msra.mxu0 0.0
    %1054 = vmatprep.subr.mxu0 0.0
    %1055 = vmatpush1.msra.mxu0 0.0
    %1056 = vmatprep.subr.mxu0 0.0
    %1057 = vmatpush1.msra.mxu0 0.0
    %1058 = vmatprep.subr.mxu0 0.0
    %1059 = vmatpush1.msra.mxu0 0.0
    %1060 = vmatprep.subr.mxu0 0.0
    %1061 = vmatpush1.msra.mxu0 0.0
    %1062 = vmatprep.subr.mxu0 0.0
    %1063 = vmatpush1.msra.mxu0 0.0
    %1064 = vmatprep.subr.mxu0 0.0
    %1065 = vmatpush1.msra.mxu0 0.0
    %1066 = vmatprep.subr.mxu0 0.0
    %1067 = vmatpush1.msra.mxu0 0.0
    %1068 = vmatprep.subr.mxu0 0.0
    %1069 = vmatpush1.msra.mxu0 0.0
    %1070 = vmatprep.subr.mxu0 0.0
    %1071 = vmatpush1.msra.mxu0 0.0
    %1072 = vmatprep.subr.mxu0 0.0
    %1073 = vmatpush1.msra.mxu0 0.0
    %1074 = vmatprep.subr.mxu0 0.0
    %1075 = vmatpush1.msra.mxu0 0.0
    %1076 = vmatprep.subr.mxu0 0.0
    %1077 = vmatpush1.msra.mxu0 0.0
    %1078 = vmatprep.subr.mxu0 0.0
    %1079 = vmatpush1.msra.mxu0 0.0
    %1080 = vmatprep.subr.mxu0 0.0
    %1081 = vmatpush1.msra.mxu0 0.0
    %1082 = vmatprep.subr.mxu0 0.0
    %1083 = vmatpush1.msra.mxu0 0.0
    %1084 = vmatprep.subr.mxu0 0.0
    %1085 = vmatpush1.msra.mxu0 0.0
    %1086 = vmatprep.subr.mxu0 0.0
    %1087 = vmatpush1.msra.mxu0 0.0
    %1088 = vmatprep.subr.mxu0 0.0
    %1089 = vmatpush1.msra.mxu0 0.0
    %1090 = vmatprep.subr.mxu0 0.0
    %1091 = vmatpush1.msra.mxu0 0.0
    %1092 = vmatprep.subr.mxu0 0.0
    %1093 = vmatpush1.msra.mxu0 0.0
    %1094 = vmatprep.subr.mxu0 0.0
    %1095 = vmatpush1.msra.mxu0 0.0
    %1096 = vmatprep.subr.mxu0 0.0
    %1097 = vmatpush1.msra.mxu0 0.0
    %1098 = vmatprep.subr.mxu0 0.0
    %1099 = vmatpush1.msra.mxu0 0.0
    %1100 = vmatprep.mubr.f32.mxu0 0.0
    %1101 = vmatmul.mubr.f32.gmra.mrb[0].mxu0 %v1025
    %v1102 = vpop.f32.mrb[0].mxu0
    %v1103 = vadd.f32 0.0, %v1102
    %v1104 = vpop.f32.mrb[0].mxu0
    %1105 = vmatprep.mubr.f32.mxu0 0.0
    %1106 = vmatmul.mubr.f32.gmra.mrb[0].mxu0 %v1028
    %v1107 = vpop.f32.mrb[0].mxu0
    %v1108 = vadd.f32 0.0, %v1107
    %v1109 = vpop.f32.mrb[0].mxu0
    %1110 = vmatprep.mubr.f32.mxu0 0.0
    %1111 = vmatmul.mubr.f32.gmra.mrb[0].mxu0 %v1031
    %v1112 = vpop.f32.mrb[0].mxu0
    %v1113 = vadd.f32 0.0, %v1112
    %v1114 = vpop.f32.mrb[0].mxu0
    %1115 = vmatprep.mubr.f32.mxu0 0.0
    %1116 = vmatmul.mubr.f32.gmra.mrb[0].mxu0 %v1034
    %v1117 = vpop.f32.mrb[0].mxu0
    %v1118 = vadd.f32 0.0, %v1117
    %v1119 = vpop.f32.mrb[0].mxu0
    %1120 = vdwg.mxu0
    %1125 = vrot.lane.b32.xlu0 %v1103, 16
    %v1126 = vpop.permute.xlu0 %1125
    %1127 = vrot.lane.b32.xlu0 %v1108, 16
    %v1128 = vpop.permute.xlu0 %1127
    %1129 = vrot.lane.b32.xlu0 %v1113, 16
    %v1130 = vpop.permute.xlu0 %1129
    %1131 = vrot.lane.b32.xlu0 %v1118, 16
    %v1132 = vpop.permute.xlu0 %1131
    %vm1137 = vcmask 195712
    %1138 = vst.msk [vmem:[#allocation3] sm:$0xff] %vm1137, %v1126
    %1139 = vst.msk [vmem:[#allocation3 + $0x8] sm:$0xff] %vm1137, %v1128
    %1140 = vst.msk [vmem:[#allocation3 + $0x10] sm:$0xff] %vm1137, %v1130
    %1141 = vst.msk [vmem:[#allocation3 + $0x18] sm:$0xff] %vm1137, %v1132
    %v1142 = vld [vmem:[#allocation2] sm:$0xff]
    %v1143 = vld [vmem:[#allocation2 + $0x8] sm:$0xff]
    %v1144 = vld [vmem:[#allocation2 + $0x10] sm:$0xff]
    %v1145 = vld [vmem:[#allocation2 + $0x18] sm:$0xff]
    %v1146 = vld [vmem:[%s4 + $0x3] sm:$0x1]
    %v1147 = vld [vmem:[%s5 + $0x3] sm:$0x1]
    %v1148 = vlaneseq
    %v1149 = vshrl.u32 %v1148, 7
    %v1150 = vsub.s32 0, %v1149
    %v1151 = vrot.slane %v1146, %v1150
    %1153 = vrot.lane.b32.xlu0 %v1151, 24
    %v1154 = vpop.permute.xlu0 %1153
    %v1156 = vmul.f32 %v1142, %v1154
    %v1157 = vmul.f32 %v1143, %v1154
    %v1158 = vmul.f32 %v1144, %v1154
    %v1159 = vmul.f32 %v1145, %v1154
    %1164 = vrot.lane.b32.xlu0 %v1156, 104
    %v1165 = vpop.permute.xlu0 %1164
    %1166 = vrot.lane.b32.xlu0 %v1157, 104
    %v1167 = vpop.permute.xlu0 %1166
    %1168 = vrot.lane.b32.xlu0 %v1158, 104
    %v1169 = vpop.permute.xlu0 %1168
    %1170 = vrot.lane.b32.xlu0 %v1159, 104
    %v1171 = vpop.permute.xlu0 %1170
    %v1176 = vsel %vm217, %v1165, 0.0
    %1177 = vadd.xlane.f32.xlu0 %v1176
    %v1178 = vpop.xlane.xlu0 %1177
    %v1179 = vsel %vm217, %v1167, 0.0
    %1180 = vadd.xlane.f32.xlu0 %v1179
    %v1181 = vpop.xlane.xlu0 %1180
    %v1182 = vsel %vm217, %v1169, 0.0
    %1183 = vadd.xlane.f32.xlu0 %v1182
    %v1184 = vpop.xlane.xlu0 %1183
    %v1185 = vsel %vm217, %v1171, 0.0
    %1186 = vadd.xlane.f32.xlu0 %v1185
    %v1187 = vpop.xlane.xlu0 %1186
    %1192 = vrot.lane.b32.xlu0 %v1142, 104
    %v1193 = vpop.permute.xlu0 %1192
    %1194 = vrot.lane.b32.xlu0 %v1143, 104
    %v1195 = vpop.permute.xlu0 %1194
    %1196 = vrot.lane.b32.xlu0 %v1144, 104
    %v1197 = vpop.permute.xlu0 %1196
    %1198 = vrot.lane.b32.xlu0 %v1145, 104
    %v1199 = vpop.permute.xlu0 %1198
    %v1201 = vsel %vm217, %v1147, 0
    %v1203 = vsel %vm217, %v1193, 0
    %v1205 = vsel %vm217, %v1195, 0
    %v1207 = vsel %vm217, %v1197, 0
    %v1209 = vsel %vm217, %v1199, 0
    %1211 = vmatprep.subr.mxu0 0.0
    %1212 = vmatpush1.xpose.msra.mxu0 %v1203
    %1213 = vmatprep.subr.mxu0 0.0
    %1214 = vmatpush1.xpose.msra.mxu0 %v1205
    %1215 = vmatprep.subr.mxu0 0.0
    %1216 = vmatpush1.xpose.msra.mxu0 %v1207
    %1217 = vmatprep.subr.mxu0 0.0
    %1218 = vmatpush1.xpose.msra.mxu0 %v1209
    %1219 = vmatprep.subr.mxu0 0.0
    %1220 = vmatpush1.xpose.msra.mxu0 0.0
    %1221 = vmatprep.subr.mxu0 0.0
    %1222 = vmatpush1.xpose.msra.mxu0 0.0
    %1223 = vmatprep.subr.mxu0 0.0
    %1224 = vmatpush1.xpose.msra.mxu0 0.0
    %1225 = vmatprep.subr.mxu0 0.0
    %1226 = vmatpush1.xpose.msra.mxu0 0.0
    %1227 = vmatprep.subr.mxu0 0.0
    %1228 = vmatpush1.xpose.msra.mxu0 0.0
    %1229 = vmatprep.subr.mxu0 0.0
    %1230 = vmatpush1.xpose.msra.mxu0 0.0
    %1231 = vmatprep.subr.mxu0 0.0
    %1232 = vmatpush1.xpose.msra.mxu0 0.0
    %1233 = vmatprep.subr.mxu0 0.0
    %1234 = vmatpush1.xpose.msra.mxu0 0.0
    %1235 = vmatprep.subr.mxu0 0.0
    %1236 = vmatpush1.xpose.msra.mxu0 0.0
    %1237 = vmatprep.subr.mxu0 0.0
    %1238 = vmatpush1.xpose.msra.mxu0 0.0
    %1239 = vmatprep.subr.mxu0 0.0
    %1240 = vmatpush1.xpose.msra.mxu0 0.0
    %1241 = vmatprep.subr.mxu0 0.0
    %1242 = vmatpush1.xpose.msra.mxu0 0.0
    %1243 = vmatprep.subr.mxu0 0.0
    %1244 = vmatpush1.xpose.msra.mxu0 0.0
    %1245 = vmatprep.subr.mxu0 0.0
    %1246 = vmatpush1.xpose.msra.mxu0 0.0
    %1247 = vmatprep.subr.mxu0 0.0
    %1248 = vmatpush1.xpose.msra.mxu0 0.0
    %1249 = vmatprep.subr.mxu0 0.0
    %1250 = vmatpush1.xpose.msra.mxu0 0.0
    %1251 = vmatprep.subr.mxu0 0.0
    %1252 = vmatpush1.xpose.msra.mxu0 0.0
    %1253 = vmatprep.subr.mxu0 0.0
    %1254 = vmatpush1.xpose.msra.mxu0 0.0
    %1255 = vmatprep.subr.mxu0 0.0
    %1256 = vmatpush1.xpose.msra.mxu0 0.0
    %1257 = vmatprep.subr.mxu0 0.0
    %1258 = vmatpush1.xpose.msra.mxu0 0.0
    %1259 = vmatprep.subr.mxu0 0.0
    %1260 = vmatpush1.xpose.msra.mxu0 0.0
    %1261 = vmatprep.subr.mxu0 0.0
    %1262 = vmatpush1.xpose.msra.mxu0 0.0
    %1263 = vmatprep.subr.mxu0 0.0
    %1264 = vmatpush1.xpose.msra.mxu0 0.0
    %1265 = vmatprep.subr.mxu0 0.0
    %1266 = vmatpush1.xpose.msra.mxu0 0.0
    %1267 = vmatprep.subr.mxu0 0.0
    %1268 = vmatpush1.xpose.msra.mxu0 0.0
    %1269 = vmatprep.subr.mxu0 0.0
    %1270 = vmatpush1.xpose.msra.mxu0 0.0
    %1271 = vmatprep.subr.mxu0 0.0
    %1272 = vmatpush1.xpose.msra.mxu0 0.0
    %1273 = vmatprep.subr.mxu0 0.0
    %1274 = vmatpush1.xpose.msra.mxu0 0.0
    %1275 = vmatprep.mubr.f32.mxu0 0.0
    %1276 = vmatmul.mubr.f32.gmra.mrb[0].mxu0 %v1201
    %v1277 = vpop.f32.mrb[0].mxu0
    %v1278 = vadd.f32 0.0, %v1277
    %v1279 = vpop.f32.mrb[0].mxu0
    %1280 = vdwg.mxu0
    %v1281 = vlaneseq
    %v1282 = vshrl.u32 %v1281, 7
    %v1283 = vsub.s32 0, %v1282
    %v1284 = vrot.slane %v1278, %v1283
    %v1285 = vadd.f32 %v1178, %v1284
    %v1286 = vadd.f32 %v1181, %v1284
    %v1287 = vadd.f32 %v1184, %v1284
    %v1288 = vadd.f32 %v1187, %v1284
    %vm1289 = vcmp.gt.f32.partialorder %v1285, 0.0
    %vm1290 = vcmp.gt.f32.partialorder %v1286, 0.0
    %vm1291 = vcmp.gt.f32.partialorder %v1287, 0.0
    %vm1292 = vcmp.gt.f32.partialorder %v1288, 0.0
    %v1293 = vmul.f32 %v1285, 0.2
    %v1294 = vmul.f32 %v1286, 0.2
    %v1295 = vmul.f32 %v1287, 0.2
    %v1296 = vmul.f32 %v1288, 0.2
    %v1297 = vsel %vm1289, %v1285, %v1293
    %v1298 = vsel %vm1290, %v1286, %v1294
    %v1299 = vsel %vm1291, %v1287, %v1295
    %v1300 = vsel %vm1292, %v1288, %v1296
    %v1301 = vsel %vm79, %v1297, -1e+30
    %v1302 = vsel %vm80, %v1298, -1e+30
    %v1303 = vsel %vm81, %v1299, -1e+30
    %v1304 = vsel %vm82, %v1300, -1e+30
    %v1305 = vsel %vm198, %v1301, -inf
    %1306 = vmax.xlane.f32.xlu0 %v1305
    %v1307 = vpop.xlane.xlu0 %1306
    %v1308 = vsel %vm198, %v1302, -inf
    %1309 = vmax.xlane.f32.xlu0 %v1308
    %v1310 = vpop.xlane.xlu0 %1309
    %v1311 = vsel %vm198, %v1303, -inf
    %1312 = vmax.xlane.f32.xlu0 %v1311
    %v1313 = vpop.xlane.xlu0 %1312
    %v1314 = vsel %vm198, %v1304, -inf
    %1315 = vmax.xlane.f32.xlu0 %v1314
    %v1316 = vpop.xlane.xlu0 %1315
    %v1317 = vsub.f32 %v1301, %v1307
    %v1318 = vsub.f32 %v1302, %v1310
    %v1319 = vsub.f32 %v1303, %v1313
    %v1320 = vsub.f32 %v1304, %v1316
    %v1321 = vmul.f32 %v1317, 1.442695
    %v1322 = vpow.pop %v1321
    %v1323 = vmul.f32 %v1318, 1.442695
    %v1324 = vpow.pop %v1323
    %v1325 = vmul.f32 %v1319, 1.442695
    %v1326 = vpow.pop %v1325
    %v1327 = vmul.f32 %v1320, 1.442695
    %v1328 = vpow.pop %v1327
    %v1329 = vsel %vm198, %v1322, 0.0
    %1330 = vadd.xlane.f32.xlu0 %v1329
    %v1331 = vpop.xlane.xlu0 %1330
    %v1332 = vsel %vm198, %v1324, 0.0
    %1333 = vadd.xlane.f32.xlu0 %v1332
    %v1334 = vpop.xlane.xlu0 %1333
    %v1335 = vsel %vm198, %v1326, 0.0
    %1336 = vadd.xlane.f32.xlu0 %v1335
    %v1337 = vpop.xlane.xlu0 %1336
    %v1338 = vsel %vm198, %v1328, 0.0
    %1339 = vadd.xlane.f32.xlu0 %v1338
    %v1340 = vpop.xlane.xlu0 %1339
    %v1341 = vrcp.pop %v1331
    %v1342 = vmul.f32 %v1322, %v1341
    %v1343 = vrcp.pop %v1334
    %v1344 = vmul.f32 %v1324, %v1343
    %v1345 = vrcp.pop %v1337
    %v1346 = vmul.f32 %v1326, %v1345
    %v1347 = vrcp.pop %v1340
    %v1348 = vmul.f32 %v1328, %v1347
    %v1354 = vsel %vm198, %v1342, 0
    %v1357 = vsel %vm198, %v1344, 0
    %v1360 = vsel %vm198, %v1346, 0
    %v1363 = vsel %vm198, %v1348, 0
    %1365 = vmatprep.subr.mxu0 0.0
    %1366 = vmatpush1.msra.mxu0 %v1193
    %1367 = vmatprep.subr.mxu0 0.0
    %1368 = vmatpush1.msra.mxu0 %v1195
    %1369 = vmatprep.subr.mxu0 0.0
    %1370 = vmatpush1.msra.mxu0 %v1197
    %1371 = vmatprep.subr.mxu0 0.0
    %1372 = vmatpush1.msra.mxu0 %v1199
    %1373 = vmatprep.subr.mxu0 0.0
    %1374 = vmatpush1.msra.mxu0 0.0
    %1375 = vmatprep.subr.mxu0 0.0
    %1376 = vmatpush1.msra.mxu0 0.0
    %1377 = vmatprep.subr.mxu0 0.0
    %1378 = vmatpush1.msra.mxu0 0.0
    %1379 = vmatprep.subr.mxu0 0.0
    %1380 = vmatpush1.msra.mxu0 0.0
    %1381 = vmatprep.subr.mxu0 0.0
    %1382 = vmatpush1.msra.mxu0 0.0
    %1383 = vmatprep.subr.mxu0 0.0
    %1384 = vmatpush1.msra.mxu0 0.0
    %1385 = vmatprep.subr.mxu0 0.0
    %1386 = vmatpush1.msra.mxu0 0.0
    %1387 = vmatprep.subr.mxu0 0.0
    %1388 = vmatpush1.msra.mxu0 0.0
    %1389 = vmatprep.subr.mxu0 0.0
    %1390 = vmatpush1.msra.mxu0 0.0
    %1391 = vmatprep.subr.mxu0 0.0
    %1392 = vmatpush1.msra.mxu0 0.0
    %1393 = vmatprep.subr.mxu0 0.0
    %1394 = vmatpush1.msra.mxu0 0.0
    %1395 = vmatprep.subr.mxu0 0.0
    %1396 = vmatpush1.msra.mxu0 0.0
    %1397 = vmatprep.subr.mxu0 0.0
    %1398 = vmatpush1.msra.mxu0 0.0
    %1399 = vmatprep.subr.mxu0 0.0
    %1400 = vmatpush1.msra.mxu0 0.0
    %1401 = vmatprep.subr.mxu0 0.0
    %1402 = vmatpush1.msra.mxu0 0.0
    %1403 = vmatprep.subr.mxu0 0.0
    %1404 = vmatpush1.msra.mxu0 0.0
    %1405 = vmatprep.subr.mxu0 0.0
    %1406 = vmatpush1.msra.mxu0 0.0
    %1407 = vmatprep.subr.mxu0 0.0
    %1408 = vmatpush1.msra.mxu0 0.0
    %1409 = vmatprep.subr.mxu0 0.0
    %1410 = vmatpush1.msra.mxu0 0.0
    %1411 = vmatprep.subr.mxu0 0.0
    %1412 = vmatpush1.msra.mxu0 0.0
    %1413 = vmatprep.subr.mxu0 0.0
    %1414 = vmatpush1.msra.mxu0 0.0
    %1415 = vmatprep.subr.mxu0 0.0
    %1416 = vmatpush1.msra.mxu0 0.0
    %1417 = vmatprep.subr.mxu0 0.0
    %1418 = vmatpush1.msra.mxu0 0.0
    %1419 = vmatprep.subr.mxu0 0.0
    %1420 = vmatpush1.msra.mxu0 0.0
    %1421 = vmatprep.subr.mxu0 0.0
    %1422 = vmatpush1.msra.mxu0 0.0
    %1423 = vmatprep.subr.mxu0 0.0
    %1424 = vmatpush1.msra.mxu0 0.0
    %1425 = vmatprep.subr.mxu0 0.0
    %1426 = vmatpush1.msra.mxu0 0.0
    %1427 = vmatprep.subr.mxu0 0.0
    %1428 = vmatpush1.msra.mxu0 0.0
    %1429 = vmatprep.mubr.f32.mxu0 0.0
    %1430 = vmatmul.mubr.f32.gmra.mrb[0].mxu0 %v1354
    %v1431 = vpop.f32.mrb[0].mxu0
    %v1432 = vadd.f32 0.0, %v1431
    %v1433 = vpop.f32.mrb[0].mxu0
    %1434 = vmatprep.mubr.f32.mxu0 0.0
    %1435 = vmatmul.mubr.f32.gmra.mrb[0].mxu0 %v1357
    %v1436 = vpop.f32.mrb[0].mxu0
    %v1437 = vadd.f32 0.0, %v1436
    %v1438 = vpop.f32.mrb[0].mxu0
    %1439 = vmatprep.mubr.f32.mxu0 0.0
    %1440 = vmatmul.mubr.f32.gmra.mrb[0].mxu0 %v1360
    %v1441 = vpop.f32.mrb[0].mxu0
    %v1442 = vadd.f32 0.0, %v1441
    %v1443 = vpop.f32.mrb[0].mxu0
    %1444 = vmatprep.mubr.f32.mxu0 0.0
    %1445 = vmatmul.mubr.f32.gmra.mrb[0].mxu0 %v1363
    %v1446 = vpop.f32.mrb[0].mxu0
    %v1447 = vadd.f32 0.0, %v1446
    %v1448 = vpop.f32.mrb[0].mxu0
    %1449 = vdwg.mxu0
    %1454 = vrot.lane.b32.xlu0 %v1432, 24
    %v1455 = vpop.permute.xlu0 %1454
    %1456 = vrot.lane.b32.xlu0 %v1437, 24
    %v1457 = vpop.permute.xlu0 %1456
    %1458 = vrot.lane.b32.xlu0 %v1442, 24
    %v1459 = vpop.permute.xlu0 %1458
    %1460 = vrot.lane.b32.xlu0 %v1447, 24
    %v1461 = vpop.permute.xlu0 %1460
    %vm1466 = vcmask 261312
    %1467 = vst.msk [vmem:[#allocation3] sm:$0xff] %vm1466, %v1455
    %1468 = vst.msk [vmem:[#allocation3 + $0x8] sm:$0xff] %vm1466, %v1457
    %1469 = vst.msk [vmem:[#allocation3 + $0x10] sm:$0xff] %vm1466, %v1459
    %1470 = vst.msk [vmem:[#allocation3 + $0x18] sm:$0xff] %vm1466, %v1461
    %v1471 = vld [vmem:[#allocation3] sm:$0xff]
    %v1472 = vld [vmem:[#allocation3 + $0x8] sm:$0xff]
    %v1473 = vld [vmem:[#allocation3 + $0x10] sm:$0xff]
    %v1474 = vld [vmem:[#allocation3 + $0x18] sm:$0xff]
    %v1475 = vld [vmem:[%s6] sm:$0x1]
    %v1477 = vlaneseq
    %v1478 = vshrl.u32 %v1477, 7
    %v1479 = vsub.s32 0, %v1478
    %v1480 = vrot.slane %v1475, %v1479
    %v1482 = vadd.f32 %v1471, %v1480
    %v1483 = vadd.f32 %v1472, %v1480
    %v1484 = vadd.f32 %v1473, %v1480
    %v1485 = vadd.f32 %v1474, %v1480
    %v1486 = vmax.f32 %v1482, 0.0
    %v1487 = vmax.f32 %v1483, 0.0
    %v1488 = vmax.f32 %v1484, 0.0
    %v1489 = vmax.f32 %v1485, 0.0
    %v1490 = vld [vmem:[%s7] sm:$0xff]
    %v1491 = vld [vmem:[%s7 + $0x8] sm:$0xff]
    %v1492 = vld [vmem:[%s7 + $0x10] sm:$0xff]
    %v1493 = vld [vmem:[%s7 + $0x18] sm:$0xff]
    %v1494 = vld [vmem:[%s8] sm:$0x1]
    %v1496 = vlaneseq
    %v1497 = vshrl.u32 %v1496, 7
    %v1498 = vsub.s32 0, %v1497
    %v1499 = vrot.slane %v1494, %v1498
    %v1502 = vsel %vm198, %v1486, 0
    %v1505 = vsel %vm198, %v1487, 0
    %v1508 = vsel %vm198, %v1488, 0
    %v1511 = vsel %vm198, %v1489, 0
    %1513 = vmatprep.subr.mxu0 0.0
    %1514 = vmatpush1.msra.mxu0 %v1490
    %1515 = vmatprep.subr.mxu0 0.0
    %1516 = vmatpush1.msra.mxu0 %v1491
    %1517 = vmatprep.subr.mxu0 0.0
    %1518 = vmatpush1.msra.mxu0 %v1492
    %1519 = vmatprep.subr.mxu0 0.0
    %1520 = vmatpush1.msra.mxu0 %v1493
    %1521 = vmatprep.subr.mxu0 0.0
    %1522 = vmatpush1.msra.mxu0 0.0
    %1523 = vmatprep.subr.mxu0 0.0
    %1524 = vmatpush1.msra.mxu0 0.0
    %1525 = vmatprep.subr.mxu0 0.0
    %1526 = vmatpush1.msra.mxu0 0.0
    %1527 = vmatprep.subr.mxu0 0.0
    %1528 = vmatpush1.msra.mxu0 0.0
    %1529 = vmatprep.subr.mxu0 0.0
    %1530 = vmatpush1.msra.mxu0 0.0
    %1531 = vmatprep.subr.mxu0 0.0
    %1532 = vmatpush1.msra.mxu0 0.0
    %1533 = vmatprep.subr.mxu0 0.0
    %1534 = vmatpush1.msra.mxu0 0.0
    %1535 = vmatprep.subr.mxu0 0.0
    %1536 = vmatpush1.msra.mxu0 0.0
    %1537 = vmatprep.subr.mxu0 0.0
    %1538 = vmatpush1.msra.mxu0 0.0
    %1539 = vmatprep.subr.mxu0 0.0
    %1540 = vmatpush1.msra.mxu0 0.0
    %1541 = vmatprep.subr.mxu0 0.0
    %1542 = vmatpush1.msra.mxu0 0.0
    %1543 = vmatprep.subr.mxu0 0.0
    %1544 = vmatpush1.msra.mxu0 0.0
    %1545 = vmatprep.subr.mxu0 0.0
    %1546 = vmatpush1.msra.mxu0 0.0
    %1547 = vmatprep.subr.mxu0 0.0
    %1548 = vmatpush1.msra.mxu0 0.0
    %1549 = vmatprep.subr.mxu0 0.0
    %1550 = vmatpush1.msra.mxu0 0.0
    %1551 = vmatprep.subr.mxu0 0.0
    %1552 = vmatpush1.msra.mxu0 0.0
    %1553 = vmatprep.subr.mxu0 0.0
    %1554 = vmatpush1.msra.mxu0 0.0
    %1555 = vmatprep.subr.mxu0 0.0
    %1556 = vmatpush1.msra.mxu0 0.0
    %1557 = vmatprep.subr.mxu0 0.0
    %1558 = vmatpush1.msra.mxu0 0.0
    %1559 = vmatprep.subr.mxu0 0.0
    %1560 = vmatpush1.msra.mxu0 0.0
    %1561 = vmatprep.subr.mxu0 0.0
    %1562 = vmatpush1.msra.mxu0 0.0
    %1563 = vmatprep.subr.mxu0 0.0
    %1564 = vmatpush1.msra.mxu0 0.0
    %1565 = vmatprep.subr.mxu0 0.0
    %1566 = vmatpush1.msra.mxu0 0.0
    %1567 = vmatprep.subr.mxu0 0.0
    %1568 = vmatpush1.msra.mxu0 0.0
    %1569 = vmatprep.subr.mxu0 0.0
    %1570 = vmatpush1.msra.mxu0 0.0
    %1571 = vmatprep.subr.mxu0 0.0
    %1572 = vmatpush1.msra.mxu0 0.0
    %1573 = vmatprep.subr.mxu0 0.0
    %1574 = vmatpush1.msra.mxu0 0.0
    %1575 = vmatprep.subr.mxu0 0.0
    %1576 = vmatpush1.msra.mxu0 0.0
    %1577 = vmatprep.mubr.f32.mxu0 0.0
    %1578 = vmatmul.mubr.f32.gmra.mrb[0].mxu0 %v1502
    %v1579 = vpop.f32.mrb[0].mxu0
    %v1580 = vadd.f32 %v1499, %v1579
    %v1581 = vpop.f32.mrb[0].mxu0
    %1582 = vmatprep.mubr.f32.mxu0 0.0
    %1583 = vmatmul.mubr.f32.gmra.mrb[0].mxu0 %v1505
    %v1584 = vpop.f32.mrb[0].mxu0
    %v1585 = vadd.f32 %v1499, %v1584
    %v1586 = vpop.f32.mrb[0].mxu0
    %1587 = vmatprep.mubr.f32.mxu0 0.0
    %1588 = vmatmul.mubr.f32.gmra.mrb[0].mxu0 %v1508
    %v1589 = vpop.f32.mrb[0].mxu0
    %v1590 = vadd.f32 %v1499, %v1589
    %v1591 = vpop.f32.mrb[0].mxu0
    %1592 = vmatprep.mubr.f32.mxu0 0.0
    %1593 = vmatmul.mubr.f32.gmra.mrb[0].mxu0 %v1511
    %v1594 = vpop.f32.mrb[0].mxu0
    %v1595 = vadd.f32 %v1499, %v1594
    %v1596 = vpop.f32.mrb[0].mxu0
    %1597 = vdwg.mxu0
    %vm1598 = vcmask 785408
    %1599 = vst.msk [vmem:[#allocation4] sm:$0xff] %vm1598, %v1580
    %1600 = vst.msk [vmem:[#allocation4 + $0x8] sm:$0xff] %vm1598, %v1585
    %1601 = vst.msk [vmem:[#allocation4 + $0x10] sm:$0xff] %vm1598, %v1590
    %1602 = vst.msk [vmem:[#allocation4 + $0x18] sm:$0xff] %vm1598, %v1595
    %v1603 = vld [vmem:[#allocation4] sm:$0xff]
    %v1604 = vld [vmem:[#allocation4 + $0x8] sm:$0xff]
    %v1605 = vld [vmem:[#allocation4 + $0x10] sm:$0xff]
    %v1606 = vld [vmem:[#allocation4 + $0x18] sm:$0xff]
    %1611 = vrot.lane.b32.xlu0 %v1603, 96
    %v1612 = vpop.permute.xlu0 %1611
    %1613 = vrot.lane.b32.xlu0 %v1604, 96
    %v1614 = vpop.permute.xlu0 %1613
    %1615 = vrot.lane.b32.xlu0 %v1605, 96
    %v1616 = vpop.permute.xlu0 %1615
    %1617 = vrot.lane.b32.xlu0 %v1606, 96
    %v1618 = vpop.permute.xlu0 %1617
    %v1619 = vsel %vm217, %v1603, 0
    %v1621 = vsel %vm217, %v1604, 0
    %v1623 = vsel %vm217, %v1605, 0
    %v1625 = vsel %vm217, %v1606, 0
    %v1627 = vsel %vm217, %v1612, 0
    %v1629 = vsel %vm217, %v1614, 0
    %v1631 = vsel %vm217, %v1616, 0
    %v1633 = vsel %vm217, %v1618, 0
    %1635 = vmatprep.subr.mxu0 0.0
    %1636 = vmatpush1.xpose.msra.mxu0 %v1627
    %1637 = vmatprep.subr.mxu0 0.0
    %1638 = vmatpush1.xpose.msra.mxu0 %v1629
    %1639 = vmatprep.subr.mxu0 0.0
    %1640 = vmatpush1.xpose.msra.mxu0 %v1631
    %1641 = vmatprep.subr.mxu0 0.0
    %1642 = vmatpush1.xpose.msra.mxu0 %v1633
    %1643 = vmatprep.subr.mxu0 0.0
    %1644 = vmatpush1.xpose.msra.mxu0 0.0
    %1645 = vmatprep.subr.mxu0 0.0
    %1646 = vmatpush1.xpose.msra.mxu0 0.0
    %1647 = vmatprep.subr.mxu0 0.0
    %1648 = vmatpush1.xpose.msra.mxu0 0.0
    %1649 = vmatprep.subr.mxu0 0.0
    %1650 = vmatpush1.xpose.msra.mxu0 0.0
    %1651 = vmatprep.subr.mxu0 0.0
    %1652 = vmatpush1.xpose.msra.mxu0 0.0
    %1653 = vmatprep.subr.mxu0 0.0
    %1654 = vmatpush1.xpose.msra.mxu0 0.0
    %1655 = vmatprep.subr.mxu0 0.0
    %1656 = vmatpush1.xpose.msra.mxu0 0.0
    %1657 = vmatprep.subr.mxu0 0.0
    %1658 = vmatpush1.xpose.msra.mxu0 0.0
    %1659 = vmatprep.subr.mxu0 0.0
    %1660 = vmatpush1.xpose.msra.mxu0 0.0
    %1661 = vmatprep.subr.mxu0 0.0
    %1662 = vmatpush1.xpose.msra.mxu0 0.0
    %1663 = vmatprep.subr.mxu0 0.0
    %1664 = vmatpush1.xpose.msra.mxu0 0.0
    %1665 = vmatprep.subr.mxu0 0.0
    %1666 = vmatpush1.xpose.msra.mxu0 0.0
    %1667 = vmatprep.subr.mxu0 0.0
    %1668 = vmatpush1.xpose.msra.mxu0 0.0
    %1669 = vmatprep.subr.mxu0 0.0
    %1670 = vmatpush1.xpose.msra.mxu0 0.0
    %1671 = vmatprep.subr.mxu0 0.0
    %1672 = vmatpush1.xpose.msra.mxu0 0.0
    %1673 = vmatprep.subr.mxu0 0.0
    %1674 = vmatpush1.xpose.msra.mxu0 0.0
    %1675 = vmatprep.subr.mxu0 0.0
    %1676 = vmatpush1.xpose.msra.mxu0 0.0
    %1677 = vmatprep.subr.mxu0 0.0
    %1678 = vmatpush1.xpose.msra.mxu0 0.0
    %1679 = vmatprep.subr.mxu0 0.0
    %1680 = vmatpush1.xpose.msra.mxu0 0.0
    %1681 = vmatprep.subr.mxu0 0.0
    %1682 = vmatpush1.xpose.msra.mxu0 0.0
    %1683 = vmatprep.subr.mxu0 0.0
    %1684 = vmatpush1.xpose.msra.mxu0 0.0
    %1685 = vmatprep.subr.mxu0 0.0
    %1686 = vmatpush1.xpose.msra.mxu0 0.0
    %1687 = vmatprep.subr.mxu0 0.0
    %1688 = vmatpush1.xpose.msra.mxu0 0.0
    %1689 = vmatprep.subr.mxu0 0.0
    %1690 = vmatpush1.xpose.msra.mxu0 0.0
    %1691 = vmatprep.subr.mxu0 0.0
    %1692 = vmatpush1.xpose.msra.mxu0 0.0
    %1693 = vmatprep.subr.mxu0 0.0
    %1694 = vmatpush1.xpose.msra.mxu0 0.0
    %1695 = vmatprep.subr.mxu0 0.0
    %1696 = vmatpush1.xpose.msra.mxu0 0.0
    %1697 = vmatprep.subr.mxu0 0.0
    %1698 = vmatpush1.xpose.msra.mxu0 0.0
    %1699 = vmatprep.mubr.f32.mxu0 0.0
    %1700 = vmatmul.mubr.f32.gmra.mrb[0].mxu0 %v1619
    %v1701 = vpop.f32.mrb[0].mxu0
    %v1702 = vadd.f32 0.0, %v1701
    %v1703 = vpop.f32.mrb[0].mxu0
    %1704 = vmatprep.mubr.f32.mxu0 0.0
    %1705 = vmatmul.mubr.f32.gmra.mrb[0].mxu0 %v1621
    %v1706 = vpop.f32.mrb[0].mxu0
    %v1707 = vadd.f32 0.0, %v1706
    %v1708 = vpop.f32.mrb[0].mxu0
    %1709 = vmatprep.mubr.f32.mxu0 0.0
    %1710 = vmatmul.mubr.f32.gmra.mrb[0].mxu0 %v1623
    %v1711 = vpop.f32.mrb[0].mxu0
    %v1712 = vadd.f32 0.0, %v1711
    %v1713 = vpop.f32.mrb[0].mxu0
    %1714 = vmatprep.mubr.f32.mxu0 0.0
    %1715 = vmatmul.mubr.f32.gmra.mrb[0].mxu0 %v1625
    %v1716 = vpop.f32.mrb[0].mxu0
    %v1717 = vadd.f32 0.0, %v1716
    %v1718 = vpop.f32.mrb[0].mxu0
    %1719 = vdwg.mxu0
    %v1720 = vmul.f32 %v1702, 0.35355338
    %v1721 = vmul.f32 %v1707, 0.35355338
    %v1722 = vmul.f32 %v1712, 0.35355338
    %v1723 = vmul.f32 %v1717, 0.35355338
    %v1724 = vsel %vm87, %v1720, -1e+30
    %v1725 = vsel %vm88, %v1721, -1e+30
    %v1726 = vsel %vm89, %v1722, -1e+30
    %v1727 = vsel %vm90, %v1723, -1e+30
    %v1728 = vsel %vm198, %v1724, -inf
    %1729 = vmax.xlane.f32.xlu0 %v1728
    %v1730 = vpop.xlane.xlu0 %1729
    %v1731 = vsel %vm198, %v1725, -inf
    %1732 = vmax.xlane.f32.xlu0 %v1731
    %v1733 = vpop.xlane.xlu0 %1732
    %v1734 = vsel %vm198, %v1726, -inf
    %1735 = vmax.xlane.f32.xlu0 %v1734
    %v1736 = vpop.xlane.xlu0 %1735
    %v1737 = vsel %vm198, %v1727, -inf
    %1738 = vmax.xlane.f32.xlu0 %v1737
    %v1739 = vpop.xlane.xlu0 %1738
    %v1740 = vsub.f32 %v1724, %v1730
    %v1741 = vsub.f32 %v1725, %v1733
    %v1742 = vsub.f32 %v1726, %v1736
    %v1743 = vsub.f32 %v1727, %v1739
    %v1744 = vmul.f32 %v1740, 1.442695
    %v1745 = vpow.pop %v1744
    %v1746 = vmul.f32 %v1741, 1.442695
    %v1747 = vpow.pop %v1746
    %v1748 = vmul.f32 %v1742, 1.442695
    %v1749 = vpow.pop %v1748
    %v1750 = vmul.f32 %v1743, 1.442695
    %v1751 = vpow.pop %v1750
    %v1752 = vsel %vm198, %v1745, 0.0
    %1753 = vadd.xlane.f32.xlu0 %v1752
    %v1754 = vpop.xlane.xlu0 %1753
    %v1755 = vsel %vm198, %v1747, 0.0
    %1756 = vadd.xlane.f32.xlu0 %v1755
    %v1757 = vpop.xlane.xlu0 %1756
    %v1758 = vsel %vm198, %v1749, 0.0
    %1759 = vadd.xlane.f32.xlu0 %v1758
    %v1760 = vpop.xlane.xlu0 %1759
    %v1761 = vsel %vm198, %v1751, 0.0
    %1762 = vadd.xlane.f32.xlu0 %v1761
    %v1763 = vpop.xlane.xlu0 %1762
    %v1764 = vrcp.pop %v1754
    %v1765 = vmul.f32 %v1745, %v1764
    %v1766 = vrcp.pop %v1757
    %v1767 = vmul.f32 %v1747, %v1766
    %v1768 = vrcp.pop %v1760
    %v1769 = vmul.f32 %v1749, %v1768
    %v1770 = vrcp.pop %v1763
    %v1771 = vmul.f32 %v1751, %v1770
    %1772 = vrot.lane.b32.xlu0 %v1603, 64
    %v1773 = vpop.permute.xlu0 %1772
    %1774 = vrot.lane.b32.xlu0 %v1604, 64
    %v1775 = vpop.permute.xlu0 %1774
    %1776 = vrot.lane.b32.xlu0 %v1605, 64
    %v1777 = vpop.permute.xlu0 %1776
    %1778 = vrot.lane.b32.xlu0 %v1606, 64
    %v1779 = vpop.permute.xlu0 %1778
    %v1785 = vsel %vm198, %v1765, 0
    %v1788 = vsel %vm198, %v1767, 0
    %v1791 = vsel %vm198, %v1769, 0
    %v1794 = vsel %vm198, %v1771, 0
    %1796 = vmatprep.subr.mxu0 0.0
    %1797 = vmatpush1.msra.mxu0 %v1773
    %1798 = vmatprep.subr.mxu0 0.0
    %1799 = vmatpush1.msra.mxu0 %v1775
    %1800 = vmatprep.subr.mxu0 0.0
    %1801 = vmatpush1.msra.mxu0 %v1777
    %1802 = vmatprep.subr.mxu0 0.0
    %1803 = vmatpush1.msra.mxu0 %v1779
    %1804 = vmatprep.subr.mxu0 0.0
    %1805 = vmatpush1.msra.mxu0 0.0
    %1806 = vmatprep.subr.mxu0 0.0
    %1807 = vmatpush1.msra.mxu0 0.0
    %1808 = vmatprep.subr.mxu0 0.0
    %1809 = vmatpush1.msra.mxu0 0.0
    %1810 = vmatprep.subr.mxu0 0.0
    %1811 = vmatpush1.msra.mxu0 0.0
    %1812 = vmatprep.subr.mxu0 0.0
    %1813 = vmatpush1.msra.mxu0 0.0
    %1814 = vmatprep.subr.mxu0 0.0
    %1815 = vmatpush1.msra.mxu0 0.0
    %1816 = vmatprep.subr.mxu0 0.0
    %1817 = vmatpush1.msra.mxu0 0.0
    %1818 = vmatprep.subr.mxu0 0.0
    %1819 = vmatpush1.msra.mxu0 0.0
    %1820 = vmatprep.subr.mxu0 0.0
    %1821 = vmatpush1.msra.mxu0 0.0
    %1822 = vmatprep.subr.mxu0 0.0
    %1823 = vmatpush1.msra.mxu0 0.0
    %1824 = vmatprep.subr.mxu0 0.0
    %1825 = vmatpush1.msra.mxu0 0.0
    %1826 = vmatprep.subr.mxu0 0.0
    %1827 = vmatpush1.msra.mxu0 0.0
    %1828 = vmatprep.subr.mxu0 0.0
    %1829 = vmatpush1.msra.mxu0 0.0
    %1830 = vmatprep.subr.mxu0 0.0
    %1831 = vmatpush1.msra.mxu0 0.0
    %1832 = vmatprep.subr.mxu0 0.0
    %1833 = vmatpush1.msra.mxu0 0.0
    %1834 = vmatprep.subr.mxu0 0.0
    %1835 = vmatpush1.msra.mxu0 0.0
    %1836 = vmatprep.subr.mxu0 0.0
    %1837 = vmatpush1.msra.mxu0 0.0
    %1838 = vmatprep.subr.mxu0 0.0
    %1839 = vmatpush1.msra.mxu0 0.0
    %1840 = vmatprep.subr.mxu0 0.0
    %1841 = vmatpush1.msra.mxu0 0.0
    %1842 = vmatprep.subr.mxu0 0.0
    %1843 = vmatpush1.msra.mxu0 0.0
    %1844 = vmatprep.subr.mxu0 0.0
    %1845 = vmatpush1.msra.mxu0 0.0
    %1846 = vmatprep.subr.mxu0 0.0
    %1847 = vmatpush1.msra.mxu0 0.0
    %1848 = vmatprep.subr.mxu0 0.0
    %1849 = vmatpush1.msra.mxu0 0.0
    %1850 = vmatprep.subr.mxu0 0.0
    %1851 = vmatpush1.msra.mxu0 0.0
    %1852 = vmatprep.subr.mxu0 0.0
    %1853 = vmatpush1.msra.mxu0 0.0
    %1854 = vmatprep.subr.mxu0 0.0
    %1855 = vmatpush1.msra.mxu0 0.0
    %1856 = vmatprep.subr.mxu0 0.0
    %1857 = vmatpush1.msra.mxu0 0.0
    %1858 = vmatprep.subr.mxu0 0.0
    %1859 = vmatpush1.msra.mxu0 0.0
    %1860 = vmatprep.mubr.f32.mxu0 0.0
    %1861 = vmatmul.mubr.f32.gmra.mrb[0].mxu0 %v1785
    %v1862 = vpop.f32.mrb[0].mxu0
    %v1863 = vadd.f32 0.0, %v1862
    %v1864 = vpop.f32.mrb[0].mxu0
    %1865 = vmatprep.mubr.f32.mxu0 0.0
    %1866 = vmatmul.mubr.f32.gmra.mrb[0].mxu0 %v1788
    %v1867 = vpop.f32.mrb[0].mxu0
    %v1868 = vadd.f32 0.0, %v1867
    %v1869 = vpop.f32.mrb[0].mxu0
    %1870 = vmatprep.mubr.f32.mxu0 0.0
    %1871 = vmatmul.mubr.f32.gmra.mrb[0].mxu0 %v1791
    %v1872 = vpop.f32.mrb[0].mxu0
    %v1873 = vadd.f32 0.0, %v1872
    %v1874 = vpop.f32.mrb[0].mxu0
    %1875 = vmatprep.mubr.f32.mxu0 0.0
    %1876 = vmatmul.mubr.f32.gmra.mrb[0].mxu0 %v1794
    %v1877 = vpop.f32.mrb[0].mxu0
    %v1878 = vadd.f32 0.0, %v1877
    %v1879 = vpop.f32.mrb[0].mxu0
    %1880 = vdwg.mxu0
    %1881 = vst.msk [vmem:[#allocation3] sm:$0xff] %vm217, %v1863
    %1882 = vst.msk [vmem:[#allocation3 + $0x8] sm:$0xff] %vm217, %v1868
    %1883 = vst.msk [vmem:[#allocation3 + $0x10] sm:$0xff] %vm217, %v1873
    %1884 = vst.msk [vmem:[#allocation3 + $0x18] sm:$0xff] %vm217, %v1878
    %v1885 = vld [vmem:[#allocation4] sm:$0xff]
    %v1886 = vld [vmem:[#allocation4 + $0x8] sm:$0xff]
    %v1887 = vld [vmem:[#allocation4 + $0x10] sm:$0xff]
    %v1888 = vld [vmem:[#allocation4 + $0x18] sm:$0xff]
    %1893 = vrot.lane.b32.xlu0 %v1885, 120
    %v1894 = vpop.permute.xlu0 %1893
    %1895 = vrot.lane.b32.xlu0 %v1886, 120
    %v1896 = vpop.permute.xlu0 %1895
    %1897 = vrot.lane.b32.xlu0 %v1887, 120
    %v1898 = vpop.permute.xlu0 %1897
    %1899 = vrot.lane.b32.xlu0 %v1888, 120
    %v1900 = vpop.permute.xlu0 %1899
    %1901 = vrot.lane.b32.xlu0 %v1885, 88
    %v1902 = vpop.permute.xlu0 %1901
    %1903 = vrot.lane.b32.xlu0 %v1886, 88
    %v1904 = vpop.permute.xlu0 %1903
    %1905 = vrot.lane.b32.xlu0 %v1887, 88
    %v1906 = vpop.permute.xlu0 %1905
    %1907 = vrot.lane.b32.xlu0 %v1888, 88
    %v1908 = vpop.permute.xlu0 %1907
    %v1909 = vsel %vm217, %v1894, 0
    %v1911 = vsel %vm217, %v1896, 0
    %v1913 = vsel %vm217, %v1898, 0
    %v1915 = vsel %vm217, %v1900, 0
    %v1917 = vsel %vm217, %v1902, 0
    %v1919 = vsel %vm217, %v1904, 0
    %v1921 = vsel %vm217, %v1906, 0
    %v1923 = vsel %vm217, %v1908, 0
    %1925 = vmatprep.subr.mxu0 0.0
    %1926 = vmatpush1.xpose.msra.mxu0 %v1917
    %1927 = vmatprep.subr.mxu0 0.0
    %1928 = vmatpush1.xpose.msra.mxu0 %v1919
    %1929 = vmatprep.subr.mxu0 0.0
    %1930 = vmatpush1.xpose.msra.mxu0 %v1921
    %1931 = vmatprep.subr.mxu0 0.0
    %1932 = vmatpush1.xpose.msra.mxu0 %v1923
    %1933 = vmatprep.subr.mxu0 0.0
    %1934 = vmatpush1.xpose.msra.mxu0 0.0
    %1935 = vmatprep.subr.mxu0 0.0
    %1936 = vmatpush1.xpose.msra.mxu0 0.0
    %1937 = vmatprep.subr.mxu0 0.0
    %1938 = vmatpush1.xpose.msra.mxu0 0.0
    %1939 = vmatprep.subr.mxu0 0.0
    %1940 = vmatpush1.xpose.msra.mxu0 0.0
    %1941 = vmatprep.subr.mxu0 0.0
    %1942 = vmatpush1.xpose.msra.mxu0 0.0
    %1943 = vmatprep.subr.mxu0 0.0
    %1944 = vmatpush1.xpose.msra.mxu0 0.0
    %1945 = vmatprep.subr.mxu0 0.0
    %1946 = vmatpush1.xpose.msra.mxu0 0.0
    %1947 = vmatprep.subr.mxu0 0.0
    %1948 = vmatpush1.xpose.msra.mxu0 0.0
    %1949 = vmatprep.subr.mxu0 0.0
    %1950 = vmatpush1.xpose.msra.mxu0 0.0
    %1951 = vmatprep.subr.mxu0 0.0
    %1952 = vmatpush1.xpose.msra.mxu0 0.0
    %1953 = vmatprep.subr.mxu0 0.0
    %1954 = vmatpush1.xpose.msra.mxu0 0.0
    %1955 = vmatprep.subr.mxu0 0.0
    %1956 = vmatpush1.xpose.msra.mxu0 0.0
    %1957 = vmatprep.subr.mxu0 0.0
    %1958 = vmatpush1.xpose.msra.mxu0 0.0
    %1959 = vmatprep.subr.mxu0 0.0
    %1960 = vmatpush1.xpose.msra.mxu0 0.0
    %1961 = vmatprep.subr.mxu0 0.0
    %1962 = vmatpush1.xpose.msra.mxu0 0.0
    %1963 = vmatprep.subr.mxu0 0.0
    %1964 = vmatpush1.xpose.msra.mxu0 0.0
    %1965 = vmatprep.subr.mxu0 0.0
    %1966 = vmatpush1.xpose.msra.mxu0 0.0
    %1967 = vmatprep.subr.mxu0 0.0
    %1968 = vmatpush1.xpose.msra.mxu0 0.0
    %1969 = vmatprep.subr.mxu0 0.0
    %1970 = vmatpush1.xpose.msra.mxu0 0.0
    %1971 = vmatprep.subr.mxu0 0.0
    %1972 = vmatpush1.xpose.msra.mxu0 0.0
    %1973 = vmatprep.subr.mxu0 0.0
    %1974 = vmatpush1.xpose.msra.mxu0 0.0
    %1975 = vmatprep.subr.mxu0 0.0
    %1976 = vmatpush1.xpose.msra.mxu0 0.0
    %1977 = vmatprep.subr.mxu0 0.0
    %1978 = vmatpush1.xpose.msra.mxu0 0.0
    %1979 = vmatprep.subr.mxu0 0.0
    %1980 = vmatpush1.xpose.msra.mxu0 0.0
    %1981 = vmatprep.subr.mxu0 0.0
    %1982 = vmatpush1.xpose.msra.mxu0 0.0
    %1983 = vmatprep.subr.mxu0 0.0
    %1984 = vmatpush1.xpose.msra.mxu0 0.0
    %1985 = vmatprep.subr.mxu0 0.0
    %1986 = vmatpush1.xpose.msra.mxu0 0.0
    %1987 = vmatprep.subr.mxu0 0.0
    %1988 = vmatpush1.xpose.msra.mxu0 0.0
    %1989 = vmatprep.mubr.f32.mxu0 0.0
    %1990 = vmatmul.mubr.f32.gmra.mrb[0].mxu0 %v1909
    %v1991 = vpop.f32.mrb[0].mxu0
    %v1992 = vadd.f32 0.0, %v1991
    %v1993 = vpop.f32.mrb[0].mxu0
    %1994 = vmatprep.mubr.f32.mxu0 0.0
    %1995 = vmatmul.mubr.f32.gmra.mrb[0].mxu0 %v1911
    %v1996 = vpop.f32.mrb[0].mxu0
    %v1997 = vadd.f32 0.0, %v1996
    %v1998 = vpop.f32.mrb[0].mxu0
    %1999 = vmatprep.mubr.f32.mxu0 0.0
    %2000 = vmatmul.mubr.f32.gmra.mrb[0].mxu0 %v1913
    %v2001 = vpop.f32.mrb[0].mxu0
    %v2002 = vadd.f32 0.0, %v2001
    %v2003 = vpop.f32.mrb[0].mxu0
    %2004 = vmatprep.mubr.f32.mxu0 0.0
    %2005 = vmatmul.mubr.f32.gmra.mrb[0].mxu0 %v1915
    %v2006 = vpop.f32.mrb[0].mxu0
    %v2007 = vadd.f32 0.0, %v2006
    %v2008 = vpop.f32.mrb[0].mxu0
    %2009 = vdwg.mxu0
    %v2010 = vmul.f32 %v1992, 0.35355338
    %v2011 = vmul.f32 %v1997, 0.35355338
    %v2012 = vmul.f32 %v2002, 0.35355338
    %v2013 = vmul.f32 %v2007, 0.35355338
    %v2014 = vsel %vm87, %v2010, -1e+30
    %v2015 = vsel %vm88, %v2011, -1e+30
    %v2016 = vsel %vm89, %v2012, -1e+30
    %v2017 = vsel %vm90, %v2013, -1e+30
    %v2018 = vsel %vm198, %v2014, -inf
    %2019 = vmax.xlane.f32.xlu0 %v2018
    %v2020 = vpop.xlane.xlu0 %2019
    %v2021 = vsel %vm198, %v2015, -inf
    %2022 = vmax.xlane.f32.xlu0 %v2021
    %v2023 = vpop.xlane.xlu0 %2022
    %v2024 = vsel %vm198, %v2016, -inf
    %2025 = vmax.xlane.f32.xlu0 %v2024
    %v2026 = vpop.xlane.xlu0 %2025
    %v2027 = vsel %vm198, %v2017, -inf
    %2028 = vmax.xlane.f32.xlu0 %v2027
    %v2029 = vpop.xlane.xlu0 %2028
    %v2030 = vsub.f32 %v2014, %v2020
    %v2031 = vsub.f32 %v2015, %v2023
    %v2032 = vsub.f32 %v2016, %v2026
    %v2033 = vsub.f32 %v2017, %v2029
    %v2034 = vmul.f32 %v2030, 1.442695
    %v2035 = vpow.pop %v2034
    %v2036 = vmul.f32 %v2031, 1.442695
    %v2037 = vpow.pop %v2036
    %v2038 = vmul.f32 %v2032, 1.442695
    %v2039 = vpow.pop %v2038
    %v2040 = vmul.f32 %v2033, 1.442695
    %v2041 = vpow.pop %v2040
    %v2042 = vsel %vm198, %v2035, 0.0
    %2043 = vadd.xlane.f32.xlu0 %v2042
    %v2044 = vpop.xlane.xlu0 %2043
    %v2045 = vsel %vm198, %v2037, 0.0
    %2046 = vadd.xlane.f32.xlu0 %v2045
    %v2047 = vpop.xlane.xlu0 %2046
    %v2048 = vsel %vm198, %v2039, 0.0
    %2049 = vadd.xlane.f32.xlu0 %v2048
    %v2050 = vpop.xlane.xlu0 %2049
    %v2051 = vsel %vm198, %v2041, 0.0
    %2052 = vadd.xlane.f32.xlu0 %v2051
    %v2053 = vpop.xlane.xlu0 %2052
    %v2054 = vrcp.pop %v2044
    %v2055 = vmul.f32 %v2035, %v2054
    %v2056 = vrcp.pop %v2047
    %v2057 = vmul.f32 %v2037, %v2056
    %v2058 = vrcp.pop %v2050
    %v2059 = vmul.f32 %v2039, %v2058
    %v2060 = vrcp.pop %v2053
    %v2061 = vmul.f32 %v2041, %v2060
    %2062 = vrot.lane.b32.xlu0 %v1885, 56
    %v2063 = vpop.permute.xlu0 %2062
    %2064 = vrot.lane.b32.xlu0 %v1886, 56
    %v2065 = vpop.permute.xlu0 %2064
    %2066 = vrot.lane.b32.xlu0 %v1887, 56
    %v2067 = vpop.permute.xlu0 %2066
    %2068 = vrot.lane.b32.xlu0 %v1888, 56
    %v2069 = vpop.permute.xlu0 %2068
    %v2075 = vsel %vm198, %v2055, 0
    %v2078 = vsel %vm198, %v2057, 0
    %v2081 = vsel %vm198, %v2059, 0
    %v2084 = vsel %vm198, %v2061, 0
    %2086 = vmatprep.subr.mxu0 0.0
    %2087 = vmatpush1.msra.mxu0 %v2063
    %2088 = vmatprep.subr.mxu0 0.0
    %2089 = vmatpush1.msra.mxu0 %v2065
    %2090 = vmatprep.subr.mxu0 0.0
    %2091 = vmatpush1.msra.mxu0 %v2067
    %2092 = vmatprep.subr.mxu0 0.0
    %2093 = vmatpush1.msra.mxu0 %v2069
    %2094 = vmatprep.subr.mxu0 0.0
    %2095 = vmatpush1.msra.mxu0 0.0
    %2096 = vmatprep.subr.mxu0 0.0
    %2097 = vmatpush1.msra.mxu0 0.0
    %2098 = vmatprep.subr.mxu0 0.0
    %2099 = vmatpush1.msra.mxu0 0.0
    %2100 = vmatprep.subr.mxu0 0.0
    %2101 = vmatpush1.msra.mxu0 0.0
    %2102 = vmatprep.subr.mxu0 0.0
    %2103 = vmatpush1.msra.mxu0 0.0
    %2104 = vmatprep.subr.mxu0 0.0
    %2105 = vmatpush1.msra.mxu0 0.0
    %2106 = vmatprep.subr.mxu0 0.0
    %2107 = vmatpush1.msra.mxu0 0.0
    %2108 = vmatprep.subr.mxu0 0.0
    %2109 = vmatpush1.msra.mxu0 0.0
    %2110 = vmatprep.subr.mxu0 0.0
    %2111 = vmatpush1.msra.mxu0 0.0
    %2112 = vmatprep.subr.mxu0 0.0
    %2113 = vmatpush1.msra.mxu0 0.0
    %2114 = vmatprep.subr.mxu0 0.0
    %2115 = vmatpush1.msra.mxu0 0.0
    %2116 = vmatprep.subr.mxu0 0.0
    %2117 = vmatpush1.msra.mxu0 0.0
    %2118 = vmatprep.subr.mxu0 0.0
    %2119 = vmatpush1.msra.mxu0 0.0
    %2120 = vmatprep.subr.mxu0 0.0
    %2121 = vmatpush1.msra.mxu0 0.0
    %2122 = vmatprep.subr.mxu0 0.0
    %2123 = vmatpush1.msra.mxu0 0.0
    %2124 = vmatprep.subr.mxu0 0.0
    %2125 = vmatpush1.msra.mxu0 0.0
    %2126 = vmatprep.subr.mxu0 0.0
    %2127 = vmatpush1.msra.mxu0 0.0
    %2128 = vmatprep.subr.mxu0 0.0
    %2129 = vmatpush1.msra.mxu0 0.0
    %2130 = vmatprep.subr.mxu0 0.0
    %2131 = vmatpush1.msra.mxu0 0.0
    %2132 = vmatprep.subr.mxu0 0.0
    %2133 = vmatpush1.msra.mxu0 0.0
    %2134 = vmatprep.subr.mxu0 0.0
    %2135 = vmatpush1.msra.mxu0 0.0
    %2136 = vmatprep.subr.mxu0 0.0
    %2137 = vmatpush1.msra.mxu0 0.0
    %2138 = vmatprep.subr.mxu0 0.0
    %2139 = vmatpush1.msra.mxu0 0.0
    %2140 = vmatprep.subr.mxu0 0.0
    %2141 = vmatpush1.msra.mxu0 0.0
    %2142 = vmatprep.subr.mxu0 0.0
    %2143 = vmatpush1.msra.mxu0 0.0
    %2144 = vmatprep.subr.mxu0 0.0
    %2145 = vmatpush1.msra.mxu0 0.0
    %2146 = vmatprep.subr.mxu0 0.0
    %2147 = vmatpush1.msra.mxu0 0.0
    %2148 = vmatprep.subr.mxu0 0.0
    %2149 = vmatpush1.msra.mxu0 0.0
    %2150 = vmatprep.mubr.f32.mxu0 0.0
    %2151 = vmatmul.mubr.f32.gmra.mrb[0].mxu0 %v2075
    %v2152 = vpop.f32.mrb[0].mxu0
    %v2153 = vadd.f32 0.0, %v2152
    %v2154 = vpop.f32.mrb[0].mxu0
    %2155 = vmatprep.mubr.f32.mxu0 0.0
    %2156 = vmatmul.mubr.f32.gmra.mrb[0].mxu0 %v2078
    %v2157 = vpop.f32.mrb[0].mxu0
    %v2158 = vadd.f32 0.0, %v2157
    %v2159 = vpop.f32.mrb[0].mxu0
    %2160 = vmatprep.mubr.f32.mxu0 0.0
    %2161 = vmatmul.mubr.f32.gmra.mrb[0].mxu0 %v2081
    %v2162 = vpop.f32.mrb[0].mxu0
    %v2163 = vadd.f32 0.0, %v2162
    %v2164 = vpop.f32.mrb[0].mxu0
    %2165 = vmatprep.mubr.f32.mxu0 0.0
    %2166 = vmatmul.mubr.f32.gmra.mrb[0].mxu0 %v2084
    %v2167 = vpop.f32.mrb[0].mxu0
    %v2168 = vadd.f32 0.0, %v2167
    %v2169 = vpop.f32.mrb[0].mxu0
    %2170 = vdwg.mxu0
    %2175 = vrot.lane.b32.xlu0 %v2153, 8
    %v2176 = vpop.permute.xlu0 %2175
    %2177 = vrot.lane.b32.xlu0 %v2158, 8
    %v2178 = vpop.permute.xlu0 %2177
    %2179 = vrot.lane.b32.xlu0 %v2163, 8
    %v2180 = vpop.permute.xlu0 %2179
    %2181 = vrot.lane.b32.xlu0 %v2168, 8
    %v2182 = vpop.permute.xlu0 %2181
    %2187 = vst.msk [vmem:[#allocation3] sm:$0xff] %vm808, %v2176
    %2188 = vst.msk [vmem:[#allocation3 + $0x8] sm:$0xff] %vm808, %v2178
    %2189 = vst.msk [vmem:[#allocation3 + $0x10] sm:$0xff] %vm808, %v2180
    %2190 = vst.msk [vmem:[#allocation3 + $0x18] sm:$0xff] %vm808, %v2182
    %v2191 = vld [vmem:[#allocation4] sm:$0xff]
    %v2192 = vld [vmem:[#allocation4 + $0x8] sm:$0xff]
    %v2193 = vld [vmem:[#allocation4 + $0x10] sm:$0xff]
    %v2194 = vld [vmem:[#allocation4 + $0x18] sm:$0xff]
    %2199 = vrot.lane.b32.xlu0 %v2191, 112
    %v2200 = vpop.permute.xlu0 %2199
    %2201 = vrot.lane.b32.xlu0 %v2192, 112
    %v2202 = vpop.permute.xlu0 %2201
    %2203 = vrot.lane.b32.xlu0 %v2193, 112
    %v2204 = vpop.permute.xlu0 %2203
    %2205 = vrot.lane.b32.xlu0 %v2194, 112
    %v2206 = vpop.permute.xlu0 %2205
    %2207 = vrot.lane.b32.xlu0 %v2191, 80
    %v2208 = vpop.permute.xlu0 %2207
    %2209 = vrot.lane.b32.xlu0 %v2192, 80
    %v2210 = vpop.permute.xlu0 %2209
    %2211 = vrot.lane.b32.xlu0 %v2193, 80
    %v2212 = vpop.permute.xlu0 %2211
    %2213 = vrot.lane.b32.xlu0 %v2194, 80
    %v2214 = vpop.permute.xlu0 %2213
    %v2215 = vsel %vm217, %v2200, 0
    %v2217 = vsel %vm217, %v2202, 0
    %v2219 = vsel %vm217, %v2204, 0
    %v2221 = vsel %vm217, %v2206, 0
    %v2223 = vsel %vm217, %v2208, 0
    %v2225 = vsel %vm217, %v2210, 0
    %v2227 = vsel %vm217, %v2212, 0
    %v2229 = vsel %vm217, %v2214, 0
    %2231 = vmatprep.subr.mxu0 0.0
    %2232 = vmatpush1.xpose.msra.mxu0 %v2223
    %2233 = vmatprep.subr.mxu0 0.0
    %2234 = vmatpush1.xpose.msra.mxu0 %v2225
    %2235 = vmatprep.subr.mxu0 0.0
    %2236 = vmatpush1.xpose.msra.mxu0 %v2227
    %2237 = vmatprep.subr.mxu0 0.0
    %2238 = vmatpush1.xpose.msra.mxu0 %v2229
    %2239 = vmatprep.subr.mxu0 0.0
    %2240 = vmatpush1.xpose.msra.mxu0 0.0
    %2241 = vmatprep.subr.mxu0 0.0
    %2242 = vmatpush1.xpose.msra.mxu0 0.0
    %2243 = vmatprep.subr.mxu0 0.0
    %2244 = vmatpush1.xpose.msra.mxu0 0.0
    %2245 = vmatprep.subr.mxu0 0.0
    %2246 = vmatpush1.xpose.msra.mxu0 0.0
    %2247 = vmatprep.subr.mxu0 0.0
    %2248 = vmatpush1.xpose.msra.mxu0 0.0
    %2249 = vmatprep.subr.mxu0 0.0
    %2250 = vmatpush1.xpose.msra.mxu0 0.0
    %2251 = vmatprep.subr.mxu0 0.0
    %2252 = vmatpush1.xpose.msra.mxu0 0.0
    %2253 = vmatprep.subr.mxu0 0.0
    %2254 = vmatpush1.xpose.msra.mxu0 0.0
    %2255 = vmatprep.subr.mxu0 0.0
    %2256 = vmatpush1.xpose.msra.mxu0 0.0
    %2257 = vmatprep.subr.mxu0 0.0
    %2258 = vmatpush1.xpose.msra.mxu0 0.0
    %2259 = vmatprep.subr.mxu0 0.0
    %2260 = vmatpush1.xpose.msra.mxu0 0.0
    %2261 = vmatprep.subr.mxu0 0.0
    %2262 = vmatpush1.xpose.msra.mxu0 0.0
    %2263 = vmatprep.subr.mxu0 0.0
    %2264 = vmatpush1.xpose.msra.mxu0 0.0
    %2265 = vmatprep.subr.mxu0 0.0
    %2266 = vmatpush1.xpose.msra.mxu0 0.0
    %2267 = vmatprep.subr.mxu0 0.0
    %2268 = vmatpush1.xpose.msra.mxu0 0.0
    %2269 = vmatprep.subr.mxu0 0.0
    %2270 = vmatpush1.xpose.msra.mxu0 0.0
    %2271 = vmatprep.subr.mxu0 0.0
    %2272 = vmatpush1.xpose.msra.mxu0 0.0
    %2273 = vmatprep.subr.mxu0 0.0
    %2274 = vmatpush1.xpose.msra.mxu0 0.0
    %2275 = vmatprep.subr.mxu0 0.0
    %2276 = vmatpush1.xpose.msra.mxu0 0.0
    %2277 = vmatprep.subr.mxu0 0.0
    %2278 = vmatpush1.xpose.msra.mxu0 0.0
    %2279 = vmatprep.subr.mxu0 0.0
    %2280 = vmatpush1.xpose.msra.mxu0 0.0
    %2281 = vmatprep.subr.mxu0 0.0
    %2282 = vmatpush1.xpose.msra.mxu0 0.0
    %2283 = vmatprep.subr.mxu0 0.0
    %2284 = vmatpush1.xpose.msra.mxu0 0.0
    %2285 = vmatprep.subr.mxu0 0.0
    %2286 = vmatpush1.xpose.msra.mxu0 0.0
    %2287 = vmatprep.subr.mxu0 0.0
    %2288 = vmatpush1.xpose.msra.mxu0 0.0
    %2289 = vmatprep.subr.mxu0 0.0
    %2290 = vmatpush1.xpose.msra.mxu0 0.0
    %2291 = vmatprep.subr.mxu0 0.0
    %2292 = vmatpush1.xpose.msra.mxu0 0.0
    %2293 = vmatprep.subr.mxu0 0.0
    %2294 = vmatpush1.xpose.msra.mxu0 0.0
    %2295 = vmatprep.mubr.f32.mxu0 0.0
    %2296 = vmatmul.mubr.f32.gmra.mrb[0].mxu0 %v2215
    %v2297 = vpop.f32.mrb[0].mxu0
    %v2298 = vadd.f32 0.0, %v2297
    %v2299 = vpop.f32.mrb[0].mxu0
    %2300 = vmatprep.mubr.f32.mxu0 0.0
    %2301 = vmatmul.mubr.f32.gmra.mrb[0].mxu0 %v2217
    %v2302 = vpop.f32.mrb[0].mxu0
    %v2303 = vadd.f32 0.0, %v2302
    %v2304 = vpop.f32.mrb[0].mxu0
    %2305 = vmatprep.mubr.f32.mxu0 0.0
    %2306 = vmatmul.mubr.f32.gmra.mrb[0].mxu0 %v2219
    %v2307 = vpop.f32.mrb[0].mxu0
    %v2308 = vadd.f32 0.0, %v2307
    %v2309 = vpop.f32.mrb[0].mxu0
    %2310 = vmatprep.mubr.f32.mxu0 0.0
    %2311 = vmatmul.mubr.f32.gmra.mrb[0].mxu0 %v2221
    %v2312 = vpop.f32.mrb[0].mxu0
    %v2313 = vadd.f32 0.0, %v2312
    %v2314 = vpop.f32.mrb[0].mxu0
    %2315 = vdwg.mxu0
    %v2316 = vmul.f32 %v2298, 0.35355338
    %v2317 = vmul.f32 %v2303, 0.35355338
    %v2318 = vmul.f32 %v2308, 0.35355338
    %v2319 = vmul.f32 %v2313, 0.35355338
    %v2320 = vsel %vm87, %v2316, -1e+30
    %v2321 = vsel %vm88, %v2317, -1e+30
    %v2322 = vsel %vm89, %v2318, -1e+30
    %v2323 = vsel %vm90, %v2319, -1e+30
    %v2324 = vsel %vm198, %v2320, -inf
    %2325 = vmax.xlane.f32.xlu0 %v2324
    %v2326 = vpop.xlane.xlu0 %2325
    %v2327 = vsel %vm198, %v2321, -inf
    %2328 = vmax.xlane.f32.xlu0 %v2327
    %v2329 = vpop.xlane.xlu0 %2328
    %v2330 = vsel %vm198, %v2322, -inf
    %2331 = vmax.xlane.f32.xlu0 %v2330
    %v2332 = vpop.xlane.xlu0 %2331
    %v2333 = vsel %vm198, %v2323, -inf
    %2334 = vmax.xlane.f32.xlu0 %v2333
    %v2335 = vpop.xlane.xlu0 %2334
    %v2336 = vsub.f32 %v2320, %v2326
    %v2337 = vsub.f32 %v2321, %v2329
    %v2338 = vsub.f32 %v2322, %v2332
    %v2339 = vsub.f32 %v2323, %v2335
    %v2340 = vmul.f32 %v2336, 1.442695
    %v2341 = vpow.pop %v2340
    %v2342 = vmul.f32 %v2337, 1.442695
    %v2343 = vpow.pop %v2342
    %v2344 = vmul.f32 %v2338, 1.442695
    %v2345 = vpow.pop %v2344
    %v2346 = vmul.f32 %v2339, 1.442695
    %v2347 = vpow.pop %v2346
    %v2348 = vsel %vm198, %v2341, 0.0
    %2349 = vadd.xlane.f32.xlu0 %v2348
    %v2350 = vpop.xlane.xlu0 %2349
    %v2351 = vsel %vm198, %v2343, 0.0
    %2352 = vadd.xlane.f32.xlu0 %v2351
    %v2353 = vpop.xlane.xlu0 %2352
    %v2354 = vsel %vm198, %v2345, 0.0
    %2355 = vadd.xlane.f32.xlu0 %v2354
    %v2356 = vpop.xlane.xlu0 %2355
    %v2357 = vsel %vm198, %v2347, 0.0
    %2358 = vadd.xlane.f32.xlu0 %v2357
    %v2359 = vpop.xlane.xlu0 %2358
    %v2360 = vrcp.pop %v2350
    %v2361 = vmul.f32 %v2341, %v2360
    %v2362 = vrcp.pop %v2353
    %v2363 = vmul.f32 %v2343, %v2362
    %v2364 = vrcp.pop %v2356
    %v2365 = vmul.f32 %v2345, %v2364
    %v2366 = vrcp.pop %v2359
    %v2367 = vmul.f32 %v2347, %v2366
    %2368 = vrot.lane.b32.xlu0 %v2191, 48
    %v2369 = vpop.permute.xlu0 %2368
    %2370 = vrot.lane.b32.xlu0 %v2192, 48
    %v2371 = vpop.permute.xlu0 %2370
    %2372 = vrot.lane.b32.xlu0 %v2193, 48
    %v2373 = vpop.permute.xlu0 %2372
    %2374 = vrot.lane.b32.xlu0 %v2194, 48
    %v2375 = vpop.permute.xlu0 %2374
    %v2381 = vsel %vm198, %v2361, 0
    %v2384 = vsel %vm198, %v2363, 0
    %v2387 = vsel %vm198, %v2365, 0
    %v2390 = vsel %vm198, %v2367, 0
    %2392 = vmatprep.subr.mxu0 0.0
    %2393 = vmatpush1.msra.mxu0 %v2369
    %2394 = vmatprep.subr.mxu0 0.0
    %2395 = vmatpush1.msra.mxu0 %v2371
    %2396 = vmatprep.subr.mxu0 0.0
    %2397 = vmatpush1.msra.mxu0 %v2373
    %2398 = vmatprep.subr.mxu0 0.0
    %2399 = vmatpush1.msra.mxu0 %v2375
    %2400 = vmatprep.subr.mxu0 0.0
    %2401 = vmatpush1.msra.mxu0 0.0
    %2402 = vmatprep.subr.mxu0 0.0
    %2403 = vmatpush1.msra.mxu0 0.0
    %2404 = vmatprep.subr.mxu0 0.0
    %2405 = vmatpush1.msra.mxu0 0.0
    %2406 = vmatprep.subr.mxu0 0.0
    %2407 = vmatpush1.msra.mxu0 0.0
    %2408 = vmatprep.subr.mxu0 0.0
    %2409 = vmatpush1.msra.mxu0 0.0
    %2410 = vmatprep.subr.mxu0 0.0
    %2411 = vmatpush1.msra.mxu0 0.0
    %2412 = vmatprep.subr.mxu0 0.0
    %2413 = vmatpush1.msra.mxu0 0.0
    %2414 = vmatprep.subr.mxu0 0.0
    %2415 = vmatpush1.msra.mxu0 0.0
    %2416 = vmatprep.subr.mxu0 0.0
    %2417 = vmatpush1.msra.mxu0 0.0
    %2418 = vmatprep.subr.mxu0 0.0
    %2419 = vmatpush1.msra.mxu0 0.0
    %2420 = vmatprep.subr.mxu0 0.0
    %2421 = vmatpush1.msra.mxu0 0.0
    %2422 = vmatprep.subr.mxu0 0.0
    %2423 = vmatpush1.msra.mxu0 0.0
    %2424 = vmatprep.subr.mxu0 0.0
    %2425 = vmatpush1.msra.mxu0 0.0
    %2426 = vmatprep.subr.mxu0 0.0
    %2427 = vmatpush1.msra.mxu0 0.0
    %2428 = vmatprep.subr.mxu0 0.0
    %2429 = vmatpush1.msra.mxu0 0.0
    %2430 = vmatprep.subr.mxu0 0.0
    %2431 = vmatpush1.msra.mxu0 0.0
    %2432 = vmatprep.subr.mxu0 0.0
    %2433 = vmatpush1.msra.mxu0 0.0
    %2434 = vmatprep.subr.mxu0 0.0
    %2435 = vmatpush1.msra.mxu0 0.0
    %2436 = vmatprep.subr.mxu0 0.0
    %2437 = vmatpush1.msra.mxu0 0.0
    %2438 = vmatprep.subr.mxu0 0.0
    %2439 = vmatpush1.msra.mxu0 0.0
    %2440 = vmatprep.subr.mxu0 0.0
    %2441 = vmatpush1.msra.mxu0 0.0
    %2442 = vmatprep.subr.mxu0 0.0
    %2443 = vmatpush1.msra.mxu0 0.0
    %2444 = vmatprep.subr.mxu0 0.0
    %2445 = vmatpush1.msra.mxu0 0.0
    %2446 = vmatprep.subr.mxu0 0.0
    %2447 = vmatpush1.msra.mxu0 0.0
    %2448 = vmatprep.subr.mxu0 0.0
    %2449 = vmatpush1.msra.mxu0 0.0
    %2450 = vmatprep.subr.mxu0 0.0
    %2451 = vmatpush1.msra.mxu0 0.0
    %2452 = vmatprep.subr.mxu0 0.0
    %2453 = vmatpush1.msra.mxu0 0.0
    %2454 = vmatprep.subr.mxu0 0.0
    %2455 = vmatpush1.msra.mxu0 0.0
    %2456 = vmatprep.mubr.f32.mxu0 0.0
    %2457 = vmatmul.mubr.f32.gmra.mrb[0].mxu0 %v2381
    %v2458 = vpop.f32.mrb[0].mxu0
    %v2459 = vadd.f32 0.0, %v2458
    %v2460 = vpop.f32.mrb[0].mxu0
    %2461 = vmatprep.mubr.f32.mxu0 0.0
    %2462 = vmatmul.mubr.f32.gmra.mrb[0].mxu0 %v2384
    %v2463 = vpop.f32.mrb[0].mxu0
    %v2464 = vadd.f32 0.0, %v2463
    %v2465 = vpop.f32.mrb[0].mxu0
    %2466 = vmatprep.mubr.f32.mxu0 0.0
    %2467 = vmatmul.mubr.f32.gmra.mrb[0].mxu0 %v2387
    %v2468 = vpop.f32.mrb[0].mxu0
    %v2469 = vadd.f32 0.0, %v2468
    %v2470 = vpop.f32.mrb[0].mxu0
    %2471 = vmatprep.mubr.f32.mxu0 0.0
    %2472 = vmatmul.mubr.f32.gmra.mrb[0].mxu0 %v2390
    %v2473 = vpop.f32.mrb[0].mxu0
    %v2474 = vadd.f32 0.0, %v2473
    %v2475 = vpop.f32.mrb[0].mxu0
    %2476 = vdwg.mxu0
    %2481 = vrot.lane.b32.xlu0 %v2459, 16
    %v2482 = vpop.permute.xlu0 %2481
    %2483 = vrot.lane.b32.xlu0 %v2464, 16
    %v2484 = vpop.permute.xlu0 %2483
    %2485 = vrot.lane.b32.xlu0 %v2469, 16
    %v2486 = vpop.permute.xlu0 %2485
    %2487 = vrot.lane.b32.xlu0 %v2474, 16
    %v2488 = vpop.permute.xlu0 %2487
    %2493 = vst.msk [vmem:[#allocation3] sm:$0xff] %vm1137, %v2482
    %2494 = vst.msk [vmem:[#allocation3 + $0x8] sm:$0xff] %vm1137, %v2484
    %2495 = vst.msk [vmem:[#allocation3 + $0x10] sm:$0xff] %vm1137, %v2486
    %2496 = vst.msk [vmem:[#allocation3 + $0x18] sm:$0xff] %vm1137, %v2488
    %v2497 = vld [vmem:[#allocation4] sm:$0xff]
    %v2498 = vld [vmem:[#allocation4 + $0x8] sm:$0xff]
    %v2499 = vld [vmem:[#allocation4 + $0x10] sm:$0xff]
    %v2500 = vld [vmem:[#allocation4 + $0x18] sm:$0xff]
    %2505 = vrot.lane.b32.xlu0 %v2497, 104
    %v2506 = vpop.permute.xlu0 %2505
    %2507 = vrot.lane.b32.xlu0 %v2498, 104
    %v2508 = vpop.permute.xlu0 %2507
    %2509 = vrot.lane.b32.xlu0 %v2499, 104
    %v2510 = vpop.permute.xlu0 %2509
    %2511 = vrot.lane.b32.xlu0 %v2500, 104
    %v2512 = vpop.permute.xlu0 %2511
    %2513 = vrot.lane.b32.xlu0 %v2497, 72
    %v2514 = vpop.permute.xlu0 %2513
    %2515 = vrot.lane.b32.xlu0 %v2498, 72
    %v2516 = vpop.permute.xlu0 %2515
    %2517 = vrot.lane.b32.xlu0 %v2499, 72
    %v2518 = vpop.permute.xlu0 %2517
    %2519 = vrot.lane.b32.xlu0 %v2500, 72
    %v2520 = vpop.permute.xlu0 %2519
    %v2521 = vsel %vm217, %v2506, 0
    %v2523 = vsel %vm217, %v2508, 0
    %v2525 = vsel %vm217, %v2510, 0
    %v2527 = vsel %vm217, %v2512, 0
    %v2529 = vsel %vm217, %v2514, 0
    %v2531 = vsel %vm217, %v2516, 0
    %v2533 = vsel %vm217, %v2518, 0
    %v2535 = vsel %vm217, %v2520, 0
    %2537 = vmatprep.subr.mxu0 0.0
    %2538 = vmatpush1.xpose.msra.mxu0 %v2529
    %2539 = vmatprep.subr.mxu0 0.0
    %2540 = vmatpush1.xpose.msra.mxu0 %v2531
    %2541 = vmatprep.subr.mxu0 0.0
    %2542 = vmatpush1.xpose.msra.mxu0 %v2533
    %2543 = vmatprep.subr.mxu0 0.0
    %2544 = vmatpush1.xpose.msra.mxu0 %v2535
    %2545 = vmatprep.subr.mxu0 0.0
    %2546 = vmatpush1.xpose.msra.mxu0 0.0
    %2547 = vmatprep.subr.mxu0 0.0
    %2548 = vmatpush1.xpose.msra.mxu0 0.0
    %2549 = vmatprep.subr.mxu0 0.0
    %2550 = vmatpush1.xpose.msra.mxu0 0.0
    %2551 = vmatprep.subr.mxu0 0.0
    %2552 = vmatpush1.xpose.msra.mxu0 0.0
    %2553 = vmatprep.subr.mxu0 0.0
    %2554 = vmatpush1.xpose.msra.mxu0 0.0
    %2555 = vmatprep.subr.mxu0 0.0
    %2556 = vmatpush1.xpose.msra.mxu0 0.0
    %2557 = vmatprep.subr.mxu0 0.0
    %2558 = vmatpush1.xpose.msra.mxu0 0.0
    %2559 = vmatprep.subr.mxu0 0.0
    %2560 = vmatpush1.xpose.msra.mxu0 0.0
    %2561 = vmatprep.subr.mxu0 0.0
    %2562 = vmatpush1.xpose.msra.mxu0 0.0
    %2563 = vmatprep.subr.mxu0 0.0
    %2564 = vmatpush1.xpose.msra.mxu0 0.0
    %2565 = vmatprep.subr.mxu0 0.0
    %2566 = vmatpush1.xpose.msra.mxu0 0.0
    %2567 = vmatprep.subr.mxu0 0.0
    %2568 = vmatpush1.xpose.msra.mxu0 0.0
    %2569 = vmatprep.subr.mxu0 0.0
    %2570 = vmatpush1.xpose.msra.mxu0 0.0
    %2571 = vmatprep.subr.mxu0 0.0
    %2572 = vmatpush1.xpose.msra.mxu0 0.0
    %2573 = vmatprep.subr.mxu0 0.0
    %2574 = vmatpush1.xpose.msra.mxu0 0.0
    %2575 = vmatprep.subr.mxu0 0.0
    %2576 = vmatpush1.xpose.msra.mxu0 0.0
    %2577 = vmatprep.subr.mxu0 0.0
    %2578 = vmatpush1.xpose.msra.mxu0 0.0
    %2579 = vmatprep.subr.mxu0 0.0
    %2580 = vmatpush1.xpose.msra.mxu0 0.0
    %2581 = vmatprep.subr.mxu0 0.0
    %2582 = vmatpush1.xpose.msra.mxu0 0.0
    %2583 = vmatprep.subr.mxu0 0.0
    %2584 = vmatpush1.xpose.msra.mxu0 0.0
    %2585 = vmatprep.subr.mxu0 0.0
    %2586 = vmatpush1.xpose.msra.mxu0 0.0
    %2587 = vmatprep.subr.mxu0 0.0
    %2588 = vmatpush1.xpose.msra.mxu0 0.0
    %2589 = vmatprep.subr.mxu0 0.0
    %2590 = vmatpush1.xpose.msra.mxu0 0.0
    %2591 = vmatprep.subr.mxu0 0.0
    %2592 = vmatpush1.xpose.msra.mxu0 0.0
    %2593 = vmatprep.subr.mxu0 0.0
    %2594 = vmatpush1.xpose.msra.mxu0 0.0
    %2595 = vmatprep.subr.mxu0 0.0
    %2596 = vmatpush1.xpose.msra.mxu0 0.0
    %2597 = vmatprep.subr.mxu0 0.0
    %2598 = vmatpush1.xpose.msra.mxu0 0.0
    %2599 = vmatprep.subr.mxu0 0.0
    %2600 = vmatpush1.xpose.msra.mxu0 0.0
    %2601 = vmatprep.mubr.f32.mxu0 0.0
    %2602 = vmatmul.mubr.f32.gmra.mrb[0].mxu0 %v2521
    %v2603 = vpop.f32.mrb[0].mxu0
    %v2604 = vadd.f32 0.0, %v2603
    %v2605 = vpop.f32.mrb[0].mxu0
    %2606 = vmatprep.mubr.f32.mxu0 0.0
    %2607 = vmatmul.mubr.f32.gmra.mrb[0].mxu0 %v2523
    %v2608 = vpop.f32.mrb[0].mxu0
    %v2609 = vadd.f32 0.0, %v2608
    %v2610 = vpop.f32.mrb[0].mxu0
    %2611 = vmatprep.mubr.f32.mxu0 0.0
    %2612 = vmatmul.mubr.f32.gmra.mrb[0].mxu0 %v2525
    %v2613 = vpop.f32.mrb[0].mxu0
    %v2614 = vadd.f32 0.0, %v2613
    %v2615 = vpop.f32.mrb[0].mxu0
    %2616 = vmatprep.mubr.f32.mxu0 0.0
    %2617 = vmatmul.mubr.f32.gmra.mrb[0].mxu0 %v2527
    %v2618 = vpop.f32.mrb[0].mxu0
    %v2619 = vadd.f32 0.0, %v2618
    %v2620 = vpop.f32.mrb[0].mxu0
    %2621 = vdwg.mxu0
    %v2622 = vmul.f32 %v2604, 0.35355338
    %v2623 = vmul.f32 %v2609, 0.35355338
    %v2624 = vmul.f32 %v2614, 0.35355338
    %v2625 = vmul.f32 %v2619, 0.35355338
    %v2626 = vsel %vm87, %v2622, -1e+30
    %v2627 = vsel %vm88, %v2623, -1e+30
    %v2628 = vsel %vm89, %v2624, -1e+30
    %v2629 = vsel %vm90, %v2625, -1e+30
    %v2630 = vsel %vm198, %v2626, -inf
    %2631 = vmax.xlane.f32.xlu0 %v2630
    %v2632 = vpop.xlane.xlu0 %2631
    %v2633 = vsel %vm198, %v2627, -inf
    %2634 = vmax.xlane.f32.xlu0 %v2633
    %v2635 = vpop.xlane.xlu0 %2634
    %v2636 = vsel %vm198, %v2628, -inf
    %2637 = vmax.xlane.f32.xlu0 %v2636
    %v2638 = vpop.xlane.xlu0 %2637
    %v2639 = vsel %vm198, %v2629, -inf
    %2640 = vmax.xlane.f32.xlu0 %v2639
    %v2641 = vpop.xlane.xlu0 %2640
    %v2642 = vsub.f32 %v2626, %v2632
    %v2643 = vsub.f32 %v2627, %v2635
    %v2644 = vsub.f32 %v2628, %v2638
    %v2645 = vsub.f32 %v2629, %v2641
    %v2646 = vmul.f32 %v2642, 1.442695
    %v2647 = vpow.pop %v2646
    %v2648 = vmul.f32 %v2643, 1.442695
    %v2649 = vpow.pop %v2648
    %v2650 = vmul.f32 %v2644, 1.442695
    %v2651 = vpow.pop %v2650
    %v2652 = vmul.f32 %v2645, 1.442695
    %v2653 = vpow.pop %v2652
    %v2654 = vsel %vm198, %v2647, 0.0
    %2655 = vadd.xlane.f32.xlu0 %v2654
    %v2656 = vpop.xlane.xlu0 %2655
    %v2657 = vsel %vm198, %v2649, 0.0
    %2658 = vadd.xlane.f32.xlu0 %v2657
    %v2659 = vpop.xlane.xlu0 %2658
    %v2660 = vsel %vm198, %v2651, 0.0
    %2661 = vadd.xlane.f32.xlu0 %v2660
    %v2662 = vpop.xlane.xlu0 %2661
    %v2663 = vsel %vm198, %v2653, 0.0
    %2664 = vadd.xlane.f32.xlu0 %v2663
    %v2665 = vpop.xlane.xlu0 %2664
    %v2666 = vrcp.pop %v2656
    %v2667 = vmul.f32 %v2647, %v2666
    %v2668 = vrcp.pop %v2659
    %v2669 = vmul.f32 %v2649, %v2668
    %v2670 = vrcp.pop %v2662
    %v2671 = vmul.f32 %v2651, %v2670
    %v2672 = vrcp.pop %v2665
    %v2673 = vmul.f32 %v2653, %v2672
    %2674 = vrot.lane.b32.xlu0 %v2497, 40
    %v2675 = vpop.permute.xlu0 %2674
    %2676 = vrot.lane.b32.xlu0 %v2498, 40
    %v2677 = vpop.permute.xlu0 %2676
    %2678 = vrot.lane.b32.xlu0 %v2499, 40
    %v2679 = vpop.permute.xlu0 %2678
    %2680 = vrot.lane.b32.xlu0 %v2500, 40
    %v2681 = vpop.permute.xlu0 %2680
    %v2687 = vsel %vm198, %v2667, 0
    %v2690 = vsel %vm198, %v2669, 0
    %v2693 = vsel %vm198, %v2671, 0
    %v2696 = vsel %vm198, %v2673, 0
    %2698 = vmatprep.subr.mxu0 0.0
    %2699 = vmatpush1.msra.mxu0 %v2675
    %2700 = vmatprep.subr.mxu0 0.0
    %2701 = vmatpush1.msra.mxu0 %v2677
    %2702 = vmatprep.subr.mxu0 0.0
    %2703 = vmatpush1.msra.mxu0 %v2679
    %2704 = vmatprep.subr.mxu0 0.0
    %2705 = vmatpush1.msra.mxu0 %v2681
    %2706 = vmatprep.subr.mxu0 0.0
    %2707 = vmatpush1.msra.mxu0 0.0
    %2708 = vmatprep.subr.mxu0 0.0
    %2709 = vmatpush1.msra.mxu0 0.0
    %2710 = vmatprep.subr.mxu0 0.0
    %2711 = vmatpush1.msra.mxu0 0.0
    %2712 = vmatprep.subr.mxu0 0.0
    %2713 = vmatpush1.msra.mxu0 0.0
    %2714 = vmatprep.subr.mxu0 0.0
    %2715 = vmatpush1.msra.mxu0 0.0
    %2716 = vmatprep.subr.mxu0 0.0
    %2717 = vmatpush1.msra.mxu0 0.0
    %2718 = vmatprep.subr.mxu0 0.0
    %2719 = vmatpush1.msra.mxu0 0.0
    %2720 = vmatprep.subr.mxu0 0.0
    %2721 = vmatpush1.msra.mxu0 0.0
    %2722 = vmatprep.subr.mxu0 0.0
    %2723 = vmatpush1.msra.mxu0 0.0
    %2724 = vmatprep.subr.mxu0 0.0
    %2725 = vmatpush1.msra.mxu0 0.0
    %2726 = vmatprep.subr.mxu0 0.0
    %2727 = vmatpush1.msra.mxu0 0.0
    %2728 = vmatprep.subr.mxu0 0.0
    %2729 = vmatpush1.msra.mxu0 0.0
    %2730 = vmatprep.subr.mxu0 0.0
    %2731 = vmatpush1.msra.mxu0 0.0
    %2732 = vmatprep.subr.mxu0 0.0
    %2733 = vmatpush1.msra.mxu0 0.0
    %2734 = vmatprep.subr.mxu0 0.0
    %2735 = vmatpush1.msra.mxu0 0.0
    %2736 = vmatprep.subr.mxu0 0.0
    %2737 = vmatpush1.msra.mxu0 0.0
    %2738 = vmatprep.subr.mxu0 0.0
    %2739 = vmatpush1.msra.mxu0 0.0
    %2740 = vmatprep.subr.mxu0 0.0
    %2741 = vmatpush1.msra.mxu0 0.0
    %2742 = vmatprep.subr.mxu0 0.0
    %2743 = vmatpush1.msra.mxu0 0.0
    %2744 = vmatprep.subr.mxu0 0.0
    %2745 = vmatpush1.msra.mxu0 0.0
    %2746 = vmatprep.subr.mxu0 0.0
    %2747 = vmatpush1.msra.mxu0 0.0
    %2748 = vmatprep.subr.mxu0 0.0
    %2749 = vmatpush1.msra.mxu0 0.0
    %2750 = vmatprep.subr.mxu0 0.0
    %2751 = vmatpush1.msra.mxu0 0.0
    %2752 = vmatprep.subr.mxu0 0.0
    %2753 = vmatpush1.msra.mxu0 0.0
    %2754 = vmatprep.subr.mxu0 0.0
    %2755 = vmatpush1.msra.mxu0 0.0
    %2756 = vmatprep.subr.mxu0 0.0
    %2757 = vmatpush1.msra.mxu0 0.0
    %2758 = vmatprep.subr.mxu0 0.0
    %2759 = vmatpush1.msra.mxu0 0.0
    %2760 = vmatprep.subr.mxu0 0.0
    %2761 = vmatpush1.msra.mxu0 0.0
    %2762 = vmatprep.mubr.f32.mxu0 0.0
    %2763 = vmatmul.mubr.f32.gmra.mrb[0].mxu0 %v2687
    %v2764 = vpop.f32.mrb[0].mxu0
    %v2765 = vadd.f32 0.0, %v2764
    %v2766 = vpop.f32.mrb[0].mxu0
    %2767 = vmatprep.mubr.f32.mxu0 0.0
    %2768 = vmatmul.mubr.f32.gmra.mrb[0].mxu0 %v2690
    %v2769 = vpop.f32.mrb[0].mxu0
    %v2770 = vadd.f32 0.0, %v2769
    %v2771 = vpop.f32.mrb[0].mxu0
    %2772 = vmatprep.mubr.f32.mxu0 0.0
    %2773 = vmatmul.mubr.f32.gmra.mrb[0].mxu0 %v2693
    %v2774 = vpop.f32.mrb[0].mxu0
    %v2775 = vadd.f32 0.0, %v2774
    %v2776 = vpop.f32.mrb[0].mxu0
    %2777 = vmatprep.mubr.f32.mxu0 0.0
    %2778 = vmatmul.mubr.f32.gmra.mrb[0].mxu0 %v2696
    %v2779 = vpop.f32.mrb[0].mxu0
    %v2780 = vadd.f32 0.0, %v2779
    %v2781 = vpop.f32.mrb[0].mxu0
    %2782 = vdwg.mxu0
    %2787 = vrot.lane.b32.xlu0 %v2765, 24
    %v2788 = vpop.permute.xlu0 %2787
    %2789 = vrot.lane.b32.xlu0 %v2770, 24
    %v2790 = vpop.permute.xlu0 %2789
    %2791 = vrot.lane.b32.xlu0 %v2775, 24
    %v2792 = vpop.permute.xlu0 %2791
    %2793 = vrot.lane.b32.xlu0 %v2780, 24
    %v2794 = vpop.permute.xlu0 %2793
    %2799 = vst.msk [vmem:[#allocation3] sm:$0xff] %vm1466, %v2788
    %2800 = vst.msk [vmem:[#allocation3 + $0x8] sm:$0xff] %vm1466, %v2790
    %2801 = vst.msk [vmem:[#allocation3 + $0x10] sm:$0xff] %vm1466, %v2792
    %2802 = vst.msk [vmem:[#allocation3 + $0x18] sm:$0xff] %vm1466, %v2794
    %v2803 = vld [vmem:[#allocation3] sm:$0xff]
    %v2804 = vld [vmem:[#allocation3 + $0x8] sm:$0xff]
    %v2805 = vld [vmem:[#allocation3 + $0x10] sm:$0xff]
    %v2806 = vld [vmem:[#allocation3 + $0x18] sm:$0xff]
    %v2807 = vld [vmem:[%s9] sm:$0xff]
    %v2808 = vld [vmem:[%s9 + $0x8] sm:$0xff]
    %v2809 = vld [vmem:[%s9 + $0x10] sm:$0xff]
    %v2810 = vld [vmem:[%s9 + $0x18] sm:$0xff]
    %v2811 = vld [vmem:[%s10] sm:$0x1]
    %v2813 = vlaneseq
    %v2814 = vshrl.u32 %v2813, 7
    %v2815 = vsub.s32 0, %v2814
    %v2816 = vrot.slane %v2811, %v2815
    %v2819 = vsel %vm198, %v2803, 0
    %v2822 = vsel %vm198, %v2804, 0
    %v2825 = vsel %vm198, %v2805, 0
    %v2828 = vsel %vm198, %v2806, 0
    %2830 = vmatprep.subr.mxu0 0.0
    %2831 = vmatpush1.msra.mxu0 %v2807
    %2832 = vmatprep.subr.mxu0 0.0
    %2833 = vmatpush1.msra.mxu0 %v2808
    %2834 = vmatprep.subr.mxu0 0.0
    %2835 = vmatpush1.msra.mxu0 %v2809
    %2836 = vmatprep.subr.mxu0 0.0
    %2837 = vmatpush1.msra.mxu0 %v2810
    %2838 = vmatprep.subr.mxu0 0.0
    %2839 = vmatpush1.msra.mxu0 0.0
    %2840 = vmatprep.subr.mxu0 0.0
    %2841 = vmatpush1.msra.mxu0 0.0
    %2842 = vmatprep.subr.mxu0 0.0
    %2843 = vmatpush1.msra.mxu0 0.0
    %2844 = vmatprep.subr.mxu0 0.0
    %2845 = vmatpush1.msra.mxu0 0.0
    %2846 = vmatprep.subr.mxu0 0.0
    %2847 = vmatpush1.msra.mxu0 0.0
    %2848 = vmatprep.subr.mxu0 0.0
    %2849 = vmatpush1.msra.mxu0 0.0
    %2850 = vmatprep.subr.mxu0 0.0
    %2851 = vmatpush1.msra.mxu0 0.0
    %2852 = vmatprep.subr.mxu0 0.0
    %2853 = vmatpush1.msra.mxu0 0.0
    %2854 = vmatprep.subr.mxu0 0.0
    %2855 = vmatpush1.msra.mxu0 0.0
    %2856 = vmatprep.subr.mxu0 0.0
    %2857 = vmatpush1.msra.mxu0 0.0
    %2858 = vmatprep.subr.mxu0 0.0
    %2859 = vmatpush1.msra.mxu0 0.0
    %2860 = vmatprep.subr.mxu0 0.0
    %2861 = vmatpush1.msra.mxu0 0.0
    %2862 = vmatprep.subr.mxu0 0.0
    %2863 = vmatpush1.msra.mxu0 0.0
    %2864 = vmatprep.subr.mxu0 0.0
    %2865 = vmatpush1.msra.mxu0 0.0
    %2866 = vmatprep.subr.mxu0 0.0
    %2867 = vmatpush1.msra.mxu0 0.0
    %2868 = vmatprep.subr.mxu0 0.0
    %2869 = vmatpush1.msra.mxu0 0.0
    %2870 = vmatprep.subr.mxu0 0.0
    %2871 = vmatpush1.msra.mxu0 0.0
    %2872 = vmatprep.subr.mxu0 0.0
    %2873 = vmatpush1.msra.mxu0 0.0
    %2874 = vmatprep.subr.mxu0 0.0
    %2875 = vmatpush1.msra.mxu0 0.0
    %2876 = vmatprep.subr.mxu0 0.0
    %2877 = vmatpush1.msra.mxu0 0.0
    %2878 = vmatprep.subr.mxu0 0.0
    %2879 = vmatpush1.msra.mxu0 0.0
    %2880 = vmatprep.subr.mxu0 0.0
    %2881 = vmatpush1.msra.mxu0 0.0
    %2882 = vmatprep.subr.mxu0 0.0
    %2883 = vmatpush1.msra.mxu0 0.0
    %2884 = vmatprep.subr.mxu0 0.0
    %2885 = vmatpush1.msra.mxu0 0.0
    %2886 = vmatprep.subr.mxu0 0.0
    %2887 = vmatpush1.msra.mxu0 0.0
    %2888 = vmatprep.subr.mxu0 0.0
    %2889 = vmatpush1.msra.mxu0 0.0
    %2890 = vmatprep.subr.mxu0 0.0
    %2891 = vmatpush1.msra.mxu0 0.0
    %2892 = vmatprep.subr.mxu0 0.0
    %2893 = vmatpush1.msra.mxu0 0.0
    %2894 = vmatprep.mubr.f32.mxu0 0.0
    %2895 = vmatmul.mubr.f32.gmra.mrb[0].mxu0 %v2819
    %v2896 = vpop.f32.mrb[0].mxu0
    %v2897 = vadd.f32 %v2816, %v2896
    %v2898 = vpop.f32.mrb[0].mxu0
    %2899 = vmatprep.mubr.f32.mxu0 0.0
    %2900 = vmatmul.mubr.f32.gmra.mrb[0].mxu0 %v2822
    %v2901 = vpop.f32.mrb[0].mxu0
    %v2902 = vadd.f32 %v2816, %v2901
    %v2903 = vpop.f32.mrb[0].mxu0
    %2904 = vmatprep.mubr.f32.mxu0 0.0
    %2905 = vmatmul.mubr.f32.gmra.mrb[0].mxu0 %v2825
    %v2906 = vpop.f32.mrb[0].mxu0
    %v2907 = vadd.f32 %v2816, %v2906
    %v2908 = vpop.f32.mrb[0].mxu0
    %2909 = vmatprep.mubr.f32.mxu0 0.0
    %2910 = vmatmul.mubr.f32.gmra.mrb[0].mxu0 %v2828
    %v2911 = vpop.f32.mrb[0].mxu0
    %v2912 = vadd.f32 %v2816, %v2911
    %v2913 = vpop.f32.mrb[0].mxu0
    %2914 = vdwg.mxu0
    %v2915 = vmax.f32 %v2897, 0.0
    %v2916 = vmax.f32 %v2902, 0.0
    %v2917 = vmax.f32 %v2907, 0.0
    %v2918 = vmax.f32 %v2912, 0.0
    %v2919 = vld [vmem:[%s11] sm:$0xff]
    %v2920 = vld [vmem:[%s11 + $0x8] sm:$0xff]
    %v2921 = vld [vmem:[%s11 + $0x10] sm:$0xff]
    %v2922 = vld [vmem:[%s11 + $0x18] sm:$0xff]
    %v2924 = vsel %vm198, %v2915, 0
    %v2927 = vsel %vm198, %v2916, 0
    %v2930 = vsel %vm198, %v2917, 0
    %v2933 = vsel %vm198, %v2918, 0
    %2935 = vmatprep.subr.mxu0 0.0
    %2936 = vmatpush1.msra.mxu0 %v2919
    %2937 = vmatprep.subr.mxu0 0.0
    %2938 = vmatpush1.msra.mxu0 %v2920
    %2939 = vmatprep.subr.mxu0 0.0
    %2940 = vmatpush1.msra.mxu0 %v2921
    %2941 = vmatprep.subr.mxu0 0.0
    %2942 = vmatpush1.msra.mxu0 %v2922
    %2943 = vmatprep.subr.mxu0 0.0
    %2944 = vmatpush1.msra.mxu0 0.0
    %2945 = vmatprep.subr.mxu0 0.0
    %2946 = vmatpush1.msra.mxu0 0.0
    %2947 = vmatprep.subr.mxu0 0.0
    %2948 = vmatpush1.msra.mxu0 0.0
    %2949 = vmatprep.subr.mxu0 0.0
    %2950 = vmatpush1.msra.mxu0 0.0
    %2951 = vmatprep.subr.mxu0 0.0
    %2952 = vmatpush1.msra.mxu0 0.0
    %2953 = vmatprep.subr.mxu0 0.0
    %2954 = vmatpush1.msra.mxu0 0.0
    %2955 = vmatprep.subr.mxu0 0.0
    %2956 = vmatpush1.msra.mxu0 0.0
    %2957 = vmatprep.subr.mxu0 0.0
    %2958 = vmatpush1.msra.mxu0 0.0
    %2959 = vmatprep.subr.mxu0 0.0
    %2960 = vmatpush1.msra.mxu0 0.0
    %2961 = vmatprep.subr.mxu0 0.0
    %2962 = vmatpush1.msra.mxu0 0.0
    %2963 = vmatprep.subr.mxu0 0.0
    %2964 = vmatpush1.msra.mxu0 0.0
    %2965 = vmatprep.subr.mxu0 0.0
    %2966 = vmatpush1.msra.mxu0 0.0
    %2967 = vmatprep.subr.mxu0 0.0
    %2968 = vmatpush1.msra.mxu0 0.0
    %2969 = vmatprep.subr.mxu0 0.0
    %2970 = vmatpush1.msra.mxu0 0.0
    %2971 = vmatprep.subr.mxu0 0.0
    %2972 = vmatpush1.msra.mxu0 0.0
    %2973 = vmatprep.subr.mxu0 0.0
    %2974 = vmatpush1.msra.mxu0 0.0
    %2975 = vmatprep.subr.mxu0 0.0
    %2976 = vmatpush1.msra.mxu0 0.0
    %2977 = vmatprep.subr.mxu0 0.0
    %2978 = vmatpush1.msra.mxu0 0.0
    %2979 = vmatprep.subr.mxu0 0.0
    %2980 = vmatpush1.msra.mxu0 0.0
    %2981 = vmatprep.subr.mxu0 0.0
    %2982 = vmatpush1.msra.mxu0 0.0
    %2983 = vmatprep.subr.mxu0 0.0
    %2984 = vmatpush1.msra.mxu0 0.0
    %2985 = vmatprep.subr.mxu0 0.0
    %2986 = vmatpush1.msra.mxu0 0.0
    %2987 = vmatprep.subr.mxu0 0.0
    %2988 = vmatpush1.msra.mxu0 0.0
    %2989 = vmatprep.subr.mxu0 0.0
    %2990 = vmatpush1.msra.mxu0 0.0
    %2991 = vmatprep.subr.mxu0 0.0
    %2992 = vmatpush1.msra.mxu0 0.0
    %2993 = vmatprep.subr.mxu0 0.0
    %2994 = vmatpush1.msra.mxu0 0.0
    %2995 = vmatprep.subr.mxu0 0.0
    %2996 = vmatpush1.msra.mxu0 0.0
    %2997 = vmatprep.subr.mxu0 0.0
    %2998 = vmatpush1.msra.mxu0 0.0
    %2999 = vmatprep.mubr.f32.mxu0 0.0
    %3000 = vmatmul.mubr.f32.gmra.mrb[0].mxu0 %v2924
    %v3001 = vpop.f32.mrb[0].mxu0
    %v3002 = vadd.f32 0.0, %v3001
    %v3003 = vpop.f32.mrb[0].mxu0
    %3004 = vmatprep.mubr.f32.mxu0 0.0
    %3005 = vmatmul.mubr.f32.gmra.mrb[0].mxu0 %v2927
    %v3006 = vpop.f32.mrb[0].mxu0
    %v3007 = vadd.f32 0.0, %v3006
    %v3008 = vpop.f32.mrb[0].mxu0
    %3009 = vmatprep.mubr.f32.mxu0 0.0
    %3010 = vmatmul.mubr.f32.gmra.mrb[0].mxu0 %v2930
    %v3011 = vpop.f32.mrb[0].mxu0
    %v3012 = vadd.f32 0.0, %v3011
    %v3013 = vpop.f32.mrb[0].mxu0
    %3014 = vmatprep.mubr.f32.mxu0 0.0
    %3015 = vmatmul.mubr.f32.gmra.mrb[0].mxu0 %v2933
    %v3016 = vpop.f32.mrb[0].mxu0
    %v3017 = vadd.f32 0.0, %v3016
    %v3018 = vpop.f32.mrb[0].mxu0
    %3019 = vdwg.mxu0
    %3020 = vst.msk [vmem:[#allocation2] sm:$0xff] %vm198, %v3002
    %3021 = vst.msk [vmem:[#allocation2 + $0x8] sm:$0xff] %vm198, %v3007
    %3022 = vst.msk [vmem:[#allocation2 + $0x10] sm:$0xff] %vm198, %v3012
    %3023 = vst.msk [vmem:[#allocation2 + $0x18] sm:$0xff] %vm198, %v3017
    %v3024 = vld [vmem:[#allocation2] sm:$0xff]
    %v3025 = vld [vmem:[#allocation2 + $0x8] sm:$0xff]
    %v3026 = vld [vmem:[#allocation2 + $0x10] sm:$0xff]
    %v3027 = vld [vmem:[#allocation2 + $0x18] sm:$0xff]
    %v3028 = vld [vmem:[%s12] sm:$0x1]
    %v3029 = vld [vmem:[%s13] sm:$0x1]
    %v3030 = vlaneseq
    %v3031 = vshrl.u32 %v3030, 7
    %v3032 = vsub.s32 0, %v3031
    %v3033 = vrot.slane %v3028, %v3032
    %v3034 = vmul.f32 %v3024, %v3033
    %v3035 = vmul.f32 %v3025, %v3033
    %v3036 = vmul.f32 %v3026, %v3033
    %v3037 = vmul.f32 %v3027, %v3033
    %v3038 = vsel %vm217, %v3034, 0.0
    %3039 = vadd.xlane.f32.xlu0 %v3038
    %v3040 = vpop.xlane.xlu0 %3039
    %v3041 = vsel %vm217, %v3035, 0.0
    %3042 = vadd.xlane.f32.xlu0 %v3041
    %v3043 = vpop.xlane.xlu0 %3042
    %v3044 = vsel %vm217, %v3036, 0.0
    %3045 = vadd.xlane.f32.xlu0 %v3044
    %v3046 = vpop.xlane.xlu0 %3045
    %v3047 = vsel %vm217, %v3037, 0.0
    %3048 = vadd.xlane.f32.xlu0 %v3047
    %v3049 = vpop.xlane.xlu0 %3048
    %v3051 = vsel %vm217, %v3029, 0
    %v3054 = vsel %vm217, %v3024, 0
    %v3057 = vsel %vm217, %v3025, 0
    %v3060 = vsel %vm217, %v3026, 0
    %v3063 = vsel %vm217, %v3027, 0
    %3065 = vmatprep.subr.mxu0 0.0
    %3066 = vmatpush1.xpose.msra.mxu0 %v3054
    %3067 = vmatprep.subr.mxu0 0.0
    %3068 = vmatpush1.xpose.msra.mxu0 %v3057
    %3069 = vmatprep.subr.mxu0 0.0
    %3070 = vmatpush1.xpose.msra.mxu0 %v3060
    %3071 = vmatprep.subr.mxu0 0.0
    %3072 = vmatpush1.xpose.msra.mxu0 %v3063
    %3073 = vmatprep.subr.mxu0 0.0
    %3074 = vmatpush1.xpose.msra.mxu0 0.0
    %3075 = vmatprep.subr.mxu0 0.0
    %3076 = vmatpush1.xpose.msra.mxu0 0.0
    %3077 = vmatprep.subr.mxu0 0.0
    %3078 = vmatpush1.xpose.msra.mxu0 0.0
    %3079 = vmatprep.subr.mxu0 0.0
    %3080 = vmatpush1.xpose.msra.mxu0 0.0
    %3081 = vmatprep.subr.mxu0 0.0
    %3082 = vmatpush1.xpose.msra.mxu0 0.0
    %3083 = vmatprep.subr.mxu0 0.0
    %3084 = vmatpush1.xpose.msra.mxu0 0.0
    %3085 = vmatprep.subr.mxu0 0.0
    %3086 = vmatpush1.xpose.msra.mxu0 0.0
    %3087 = vmatprep.subr.mxu0 0.0
    %3088 = vmatpush1.xpose.msra.mxu0 0.0
    %3089 = vmatprep.subr.mxu0 0.0
    %3090 = vmatpush1.xpose.msra.mxu0 0.0
    %3091 = vmatprep.subr.mxu0 0.0
    %3092 = vmatpush1.xpose.msra.mxu0 0.0
    %3093 = vmatprep.subr.mxu0 0.0
    %3094 = vmatpush1.xpose.msra.mxu0 0.0
    %3095 = vmatprep.subr.mxu0 0.0
    %3096 = vmatpush1.xpose.msra.mxu0 0.0
    %3097 = vmatprep.subr.mxu0 0.0
    %3098 = vmatpush1.xpose.msra.mxu0 0.0
    %3099 = vmatprep.subr.mxu0 0.0
    %3100 = vmatpush1.xpose.msra.mxu0 0.0
    %3101 = vmatprep.subr.mxu0 0.0
    %3102 = vmatpush1.xpose.msra.mxu0 0.0
    %3103 = vmatprep.subr.mxu0 0.0
    %3104 = vmatpush1.xpose.msra.mxu0 0.0
    %3105 = vmatprep.subr.mxu0 0.0
    %3106 = vmatpush1.xpose.msra.mxu0 0.0
    %3107 = vmatprep.subr.mxu0 0.0
    %3108 = vmatpush1.xpose.msra.mxu0 0.0
    %3109 = vmatprep.subr.mxu0 0.0
    %3110 = vmatpush1.xpose.msra.mxu0 0.0
    %3111 = vmatprep.subr.mxu0 0.0
    %3112 = vmatpush1.xpose.msra.mxu0 0.0
    %3113 = vmatprep.subr.mxu0 0.0
    %3114 = vmatpush1.xpose.msra.mxu0 0.0
    %3115 = vmatprep.subr.mxu0 0.0
    %3116 = vmatpush1.xpose.msra.mxu0 0.0
    %3117 = vmatprep.subr.mxu0 0.0
    %3118 = vmatpush1.xpose.msra.mxu0 0.0
    %3119 = vmatprep.subr.mxu0 0.0
    %3120 = vmatpush1.xpose.msra.mxu0 0.0
    %3121 = vmatprep.subr.mxu0 0.0
    %3122 = vmatpush1.xpose.msra.mxu0 0.0
    %3123 = vmatprep.subr.mxu0 0.0
    %3124 = vmatpush1.xpose.msra.mxu0 0.0
    %3125 = vmatprep.subr.mxu0 0.0
    %3126 = vmatpush1.xpose.msra.mxu0 0.0
    %3127 = vmatprep.subr.mxu0 0.0
    %3128 = vmatpush1.xpose.msra.mxu0 0.0
    %3129 = vmatprep.mubr.f32.mxu0 0.0
    %3130 = vmatmul.mubr.f32.gmra.mrb[0].mxu0 %v3051
    %v3131 = vpop.f32.mrb[0].mxu0
    %v3132 = vadd.f32 0.0, %v3131
    %v3133 = vpop.f32.mrb[0].mxu0
    %3134 = vdwg.mxu0
    %v3135 = vlaneseq
    %v3136 = vshrl.u32 %v3135, 7
    %v3137 = vsub.s32 0, %v3136
    %v3138 = vrot.slane %v3132, %v3137
    %v3139 = vadd.f32 %v3040, %v3138
    %v3140 = vadd.f32 %v3043, %v3138
    %v3141 = vadd.f32 %v3046, %v3138
    %v3142 = vadd.f32 %v3049, %v3138
    %vm3143 = vcmp.gt.f32.partialorder %v3139, 0.0
    %vm3144 = vcmp.gt.f32.partialorder %v3140, 0.0
    %vm3145 = vcmp.gt.f32.partialorder %v3141, 0.0
    %vm3146 = vcmp.gt.f32.partialorder %v3142, 0.0
    %v3147 = vmul.f32 %v3139, 0.2
    %v3148 = vmul.f32 %v3140, 0.2
    %v3149 = vmul.f32 %v3141, 0.2
    %v3150 = vmul.f32 %v3142, 0.2
    %v3151 = vsel %vm3143, %v3139, %v3147
    %v3152 = vsel %vm3144, %v3140, %v3148
    %v3153 = vsel %vm3145, %v3141, %v3149
    %v3154 = vsel %vm3146, %v3142, %v3150
    %v3155 = vsel %vm79, %v3151, -1e+30
    %v3156 = vsel %vm80, %v3152, -1e+30
    %v3157 = vsel %vm81, %v3153, -1e+30
    %v3158 = vsel %vm82, %v3154, -1e+30
    %v3159 = vsel %vm198, %v3155, -inf
    %3160 = vmax.xlane.f32.xlu0 %v3159
    %v3161 = vpop.xlane.xlu0 %3160
    %v3162 = vsel %vm198, %v3156, -inf
    %3163 = vmax.xlane.f32.xlu0 %v3162
    %v3164 = vpop.xlane.xlu0 %3163
    %v3165 = vsel %vm198, %v3157, -inf
    %3166 = vmax.xlane.f32.xlu0 %v3165
    %v3167 = vpop.xlane.xlu0 %3166
    %v3168 = vsel %vm198, %v3158, -inf
    %3169 = vmax.xlane.f32.xlu0 %v3168
    %v3170 = vpop.xlane.xlu0 %3169
    %v3171 = vsub.f32 %v3155, %v3161
    %v3172 = vsub.f32 %v3156, %v3164
    %v3173 = vsub.f32 %v3157, %v3167
    %v3174 = vsub.f32 %v3158, %v3170
    %v3175 = vmul.f32 %v3171, 1.442695
    %v3176 = vpow.pop %v3175
    %v3177 = vmul.f32 %v3172, 1.442695
    %v3178 = vpow.pop %v3177
    %v3179 = vmul.f32 %v3173, 1.442695
    %v3180 = vpow.pop %v3179
    %v3181 = vmul.f32 %v3174, 1.442695
    %v3182 = vpow.pop %v3181
    %v3183 = vsel %vm198, %v3176, 0.0
    %3184 = vadd.xlane.f32.xlu0 %v3183
    %v3185 = vpop.xlane.xlu0 %3184
    %v3186 = vsel %vm198, %v3178, 0.0
    %3187 = vadd.xlane.f32.xlu0 %v3186
    %v3188 = vpop.xlane.xlu0 %3187
    %v3189 = vsel %vm198, %v3180, 0.0
    %3190 = vadd.xlane.f32.xlu0 %v3189
    %v3191 = vpop.xlane.xlu0 %3190
    %v3192 = vsel %vm198, %v3182, 0.0
    %3193 = vadd.xlane.f32.xlu0 %v3192
    %v3194 = vpop.xlane.xlu0 %3193
    %v3195 = vrcp.pop %v3185
    %v3196 = vmul.f32 %v3176, %v3195
    %v3197 = vrcp.pop %v3188
    %v3198 = vmul.f32 %v3178, %v3197
    %v3199 = vrcp.pop %v3191
    %v3200 = vmul.f32 %v3180, %v3199
    %v3201 = vrcp.pop %v3194
    %v3202 = vmul.f32 %v3182, %v3201
    %v3204 = vsel %vm198, %v3196, 0
    %v3207 = vsel %vm198, %v3198, 0
    %v3210 = vsel %vm198, %v3200, 0
    %v3213 = vsel %vm198, %v3202, 0
    %3215 = vmatprep.subr.mxu0 0.0
    %3216 = vmatpush1.msra.mxu0 %v3024
    %3217 = vmatprep.subr.mxu0 0.0
    %3218 = vmatpush1.msra.mxu0 %v3025
    %3219 = vmatprep.subr.mxu0 0.0
    %3220 = vmatpush1.msra.mxu0 %v3026
    %3221 = vmatprep.subr.mxu0 0.0
    %3222 = vmatpush1.msra.mxu0 %v3027
    %3223 = vmatprep.subr.mxu0 0.0
    %3224 = vmatpush1.msra.mxu0 0.0
    %3225 = vmatprep.subr.mxu0 0.0
    %3226 = vmatpush1.msra.mxu0 0.0
    %3227 = vmatprep.subr.mxu0 0.0
    %3228 = vmatpush1.msra.mxu0 0.0
    %3229 = vmatprep.subr.mxu0 0.0
    %3230 = vmatpush1.msra.mxu0 0.0
    %3231 = vmatprep.subr.mxu0 0.0
    %3232 = vmatpush1.msra.mxu0 0.0
    %3233 = vmatprep.subr.mxu0 0.0
    %3234 = vmatpush1.msra.mxu0 0.0
    %3235 = vmatprep.subr.mxu0 0.0
    %3236 = vmatpush1.msra.mxu0 0.0
    %3237 = vmatprep.subr.mxu0 0.0
    %3238 = vmatpush1.msra.mxu0 0.0
    %3239 = vmatprep.subr.mxu0 0.0
    %3240 = vmatpush1.msra.mxu0 0.0
    %3241 = vmatprep.subr.mxu0 0.0
    %3242 = vmatpush1.msra.mxu0 0.0
    %3243 = vmatprep.subr.mxu0 0.0
    %3244 = vmatpush1.msra.mxu0 0.0
    %3245 = vmatprep.subr.mxu0 0.0
    %3246 = vmatpush1.msra.mxu0 0.0
    %3247 = vmatprep.subr.mxu0 0.0
    %3248 = vmatpush1.msra.mxu0 0.0
    %3249 = vmatprep.subr.mxu0 0.0
    %3250 = vmatpush1.msra.mxu0 0.0
    %3251 = vmatprep.subr.mxu0 0.0
    %3252 = vmatpush1.msra.mxu0 0.0
    %3253 = vmatprep.subr.mxu0 0.0
    %3254 = vmatpush1.msra.mxu0 0.0
    %3255 = vmatprep.subr.mxu0 0.0
    %3256 = vmatpush1.msra.mxu0 0.0
    %3257 = vmatprep.subr.mxu0 0.0
    %3258 = vmatpush1.msra.mxu0 0.0
    %3259 = vmatprep.subr.mxu0 0.0
    %3260 = vmatpush1.msra.mxu0 0.0
    %3261 = vmatprep.subr.mxu0 0.0
    %3262 = vmatpush1.msra.mxu0 0.0
    %3263 = vmatprep.subr.mxu0 0.0
    %3264 = vmatpush1.msra.mxu0 0.0
    %3265 = vmatprep.subr.mxu0 0.0
    %3266 = vmatpush1.msra.mxu0 0.0
    %3267 = vmatprep.subr.mxu0 0.0
    %3268 = vmatpush1.msra.mxu0 0.0
    %3269 = vmatprep.subr.mxu0 0.0
    %3270 = vmatpush1.msra.mxu0 0.0
    %3271 = vmatprep.subr.mxu0 0.0
    %3272 = vmatpush1.msra.mxu0 0.0
    %3273 = vmatprep.subr.mxu0 0.0
    %3274 = vmatpush1.msra.mxu0 0.0
    %3275 = vmatprep.subr.mxu0 0.0
    %3276 = vmatpush1.msra.mxu0 0.0
    %3277 = vmatprep.subr.mxu0 0.0
    %3278 = vmatpush1.msra.mxu0 0.0
    %3279 = vmatprep.mubr.f32.mxu0 0.0
    %3280 = vmatmul.mubr.f32.gmra.mrb[0].mxu0 %v3204
    %v3281 = vpop.f32.mrb[0].mxu0
    %v3282 = vadd.f32 0.0, %v3281
    %v3283 = vpop.f32.mrb[0].mxu0
    %3284 = vmatprep.mubr.f32.mxu0 0.0
    %3285 = vmatmul.mubr.f32.gmra.mrb[0].mxu0 %v3207
    %v3286 = vpop.f32.mrb[0].mxu0
    %v3287 = vadd.f32 0.0, %v3286
    %v3288 = vpop.f32.mrb[0].mxu0
    %3289 = vmatprep.mubr.f32.mxu0 0.0
    %3290 = vmatmul.mubr.f32.gmra.mrb[0].mxu0 %v3210
    %v3291 = vpop.f32.mrb[0].mxu0
    %v3292 = vadd.f32 0.0, %v3291
    %v3293 = vpop.f32.mrb[0].mxu0
    %3294 = vmatprep.mubr.f32.mxu0 0.0
    %3295 = vmatmul.mubr.f32.gmra.mrb[0].mxu0 %v3213
    %v3296 = vpop.f32.mrb[0].mxu0
    %v3297 = vadd.f32 0.0, %v3296
    %v3298 = vpop.f32.mrb[0].mxu0
    %3299 = vdwg.mxu0
    %3300 = vst.msk [vmem:[#allocation3] sm:$0xff] %vm217, %v3282
    %3301 = vst.msk [vmem:[#allocation3 + $0x8] sm:$0xff] %vm217, %v3287
    %3302 = vst.msk [vmem:[#allocation3 + $0x10] sm:$0xff] %vm217, %v3292
    %3303 = vst.msk [vmem:[#allocation3 + $0x18] sm:$0xff] %vm217, %v3297
    %v3304 = vld [vmem:[#allocation2] sm:$0xff]
    %v3305 = vld [vmem:[#allocation2 + $0x8] sm:$0xff]
    %v3306 = vld [vmem:[#allocation2 + $0x10] sm:$0xff]
    %v3307 = vld [vmem:[#allocation2 + $0x18] sm:$0xff]
    %v3308 = vld [vmem:[%s12 + $0x1] sm:$0x1]
    %v3309 = vld [vmem:[%s13 + $0x1] sm:$0x1]
    %v3310 = vlaneseq
    %v3311 = vshrl.u32 %v3310, 7
    %v3312 = vsub.s32 0, %v3311
    %v3313 = vrot.slane %v3308, %v3312
    %3315 = vrot.lane.b32.xlu0 %v3313, 8
    %v3316 = vpop.permute.xlu0 %3315
    %v3318 = vmul.f32 %v3304, %v3316
    %v3319 = vmul.f32 %v3305, %v3316
    %v3320 = vmul.f32 %v3306, %v3316
    %v3321 = vmul.f32 %v3307, %v3316
    %3326 = vrot.lane.b32.xlu0 %v3318, 120
    %v3327 = vpop.permute.xlu0 %3326
    %3328 = vrot.lane.b32.xlu0 %v3319, 120
    %v3329 = vpop.permute.xlu0 %3328
    %3330 = vrot.lane.b32.xlu0 %v3320, 120
    %v3331 = vpop.permute.xlu0 %3330
    %3332 = vrot.lane.b32.xlu0 %v3321, 120
    %v3333 = vpop.permute.xlu0 %3332
    %v3338 = vsel %vm217, %v3327, 0.0
    %3339 = vadd.xlane.f32.xlu0 %v3338
    %v3340 = vpop.xlane.xlu0 %3339
    %v3341 = vsel %vm217, %v3329, 0.0
    %3342 = vadd.xlane.f32.xlu0 %v3341
    %v3343 = vpop.xlane.xlu0 %3342
    %v3344 = vsel %vm217, %v3331, 0.0
    %3345 = vadd.xlane.f32.xlu0 %v3344
    %v3346 = vpop.xlane.xlu0 %3345
    %v3347 = vsel %vm217, %v3333, 0.0
    %3348 = vadd.xlane.f32.xlu0 %v3347
    %v3349 = vpop.xlane.xlu0 %3348
    %3354 = vrot.lane.b32.xlu0 %v3304, 120
    %v3355 = vpop.permute.xlu0 %3354
    %3356 = vrot.lane.b32.xlu0 %v3305, 120
    %v3357 = vpop.permute.xlu0 %3356
    %3358 = vrot.lane.b32.xlu0 %v3306, 120
    %v3359 = vpop.permute.xlu0 %3358
    %3360 = vrot.lane.b32.xlu0 %v3307, 120
    %v3361 = vpop.permute.xlu0 %3360
    %v3363 = vsel %vm217, %v3309, 0
    %v3365 = vsel %vm217, %v3355, 0
    %v3367 = vsel %vm217, %v3357, 0
    %v3369 = vsel %vm217, %v3359, 0
    %v3371 = vsel %vm217, %v3361, 0
    %3373 = vmatprep.subr.mxu0 0.0
    %3374 = vmatpush1.xpose.msra.mxu0 %v3365
    %3375 = vmatprep.subr.mxu0 0.0
    %3376 = vmatpush1.xpose.msra.mxu0 %v3367
    %3377 = vmatprep.subr.mxu0 0.0
    %3378 = vmatpush1.xpose.msra.mxu0 %v3369
    %3379 = vmatprep.subr.mxu0 0.0
    %3380 = vmatpush1.xpose.msra.mxu0 %v3371
    %3381 = vmatprep.subr.mxu0 0.0
    %3382 = vmatpush1.xpose.msra.mxu0 0.0
    %3383 = vmatprep.subr.mxu0 0.0
    %3384 = vmatpush1.xpose.msra.mxu0 0.0
    %3385 = vmatprep.subr.mxu0 0.0
    %3386 = vmatpush1.xpose.msra.mxu0 0.0
    %3387 = vmatprep.subr.mxu0 0.0
    %3388 = vmatpush1.xpose.msra.mxu0 0.0
    %3389 = vmatprep.subr.mxu0 0.0
    %3390 = vmatpush1.xpose.msra.mxu0 0.0
    %3391 = vmatprep.subr.mxu0 0.0
    %3392 = vmatpush1.xpose.msra.mxu0 0.0
    %3393 = vmatprep.subr.mxu0 0.0
    %3394 = vmatpush1.xpose.msra.mxu0 0.0
    %3395 = vmatprep.subr.mxu0 0.0
    %3396 = vmatpush1.xpose.msra.mxu0 0.0
    %3397 = vmatprep.subr.mxu0 0.0
    %3398 = vmatpush1.xpose.msra.mxu0 0.0
    %3399 = vmatprep.subr.mxu0 0.0
    %3400 = vmatpush1.xpose.msra.mxu0 0.0
    %3401 = vmatprep.subr.mxu0 0.0
    %3402 = vmatpush1.xpose.msra.mxu0 0.0
    %3403 = vmatprep.subr.mxu0 0.0
    %3404 = vmatpush1.xpose.msra.mxu0 0.0
    %3405 = vmatprep.subr.mxu0 0.0
    %3406 = vmatpush1.xpose.msra.mxu0 0.0
    %3407 = vmatprep.subr.mxu0 0.0
    %3408 = vmatpush1.xpose.msra.mxu0 0.0
    %3409 = vmatprep.subr.mxu0 0.0
    %3410 = vmatpush1.xpose.msra.mxu0 0.0
    %3411 = vmatprep.subr.mxu0 0.0
    %3412 = vmatpush1.xpose.msra.mxu0 0.0
    %3413 = vmatprep.subr.mxu0 0.0
    %3414 = vmatpush1.xpose.msra.mxu0 0.0
    %3415 = vmatprep.subr.mxu0 0.0
    %3416 = vmatpush1.xpose.msra.mxu0 0.0
    %3417 = vmatprep.subr.mxu0 0.0
    %3418 = vmatpush1.xpose.msra.mxu0 0.0
    %3419 = vmatprep.subr.mxu0 0.0
    %3420 = vmatpush1.xpose.msra.mxu0 0.0
    %3421 = vmatprep.subr.mxu0 0.0
    %3422 = vmatpush1.xpose.msra.mxu0 0.0
    %3423 = vmatprep.subr.mxu0 0.0
    %3424 = vmatpush1.xpose.msra.mxu0 0.0
    %3425 = vmatprep.subr.mxu0 0.0
    %3426 = vmatpush1.xpose.msra.mxu0 0.0
    %3427 = vmatprep.subr.mxu0 0.0
    %3428 = vmatpush1.xpose.msra.mxu0 0.0
    %3429 = vmatprep.subr.mxu0 0.0
    %3430 = vmatpush1.xpose.msra.mxu0 0.0
    %3431 = vmatprep.subr.mxu0 0.0
    %3432 = vmatpush1.xpose.msra.mxu0 0.0
    %3433 = vmatprep.subr.mxu0 0.0
    %3434 = vmatpush1.xpose.msra.mxu0 0.0
    %3435 = vmatprep.subr.mxu0 0.0
    %3436 = vmatpush1.xpose.msra.mxu0 0.0
    %3437 = vmatprep.mubr.f32.mxu0 0.0
    %3438 = vmatmul.mubr.f32.gmra.mrb[0].mxu0 %v3363
    %v3439 = vpop.f32.mrb[0].mxu0
    %v3440 = vadd.f32 0.0, %v3439
    %v3441 = vpop.f32.mrb[0].mxu0
    %3442 = vdwg.mxu0
    %v3443 = vlaneseq
    %v3444 = vshrl.u32 %v3443, 7
    %v3445 = vsub.s32 0, %v3444
    %v3446 = vrot.slane %v3440, %v3445
    %v3447 = vadd.f32 %v3340, %v3446
    %v3448 = vadd.f32 %v3343, %v3446
    %v3449 = vadd.f32 %v3346, %v3446
    %v3450 = vadd.f32 %v3349, %v3446
    %vm3451 = vcmp.gt.f32.partialorder %v3447, 0.0
    %vm3452 = vcmp.gt.f32.partialorder %v3448, 0.0
    %vm3453 = vcmp.gt.f32.partialorder %v3449, 0.0
    %vm3454 = vcmp.gt.f32.partialorder %v3450, 0.0
    %v3455 = vmul.f32 %v3447, 0.2
    %v3456 = vmul.f32 %v3448, 0.2
    %v3457 = vmul.f32 %v3449, 0.2
    %v3458 = vmul.f32 %v3450, 0.2
    %v3459 = vsel %vm3451, %v3447, %v3455
    %v3460 = vsel %vm3452, %v3448, %v3456
    %v3461 = vsel %vm3453, %v3449, %v3457
    %v3462 = vsel %vm3454, %v3450, %v3458
    %v3463 = vsel %vm79, %v3459, -1e+30
    %v3464 = vsel %vm80, %v3460, -1e+30
    %v3465 = vsel %vm81, %v3461, -1e+30
    %v3466 = vsel %vm82, %v3462, -1e+30
    %v3467 = vsel %vm198, %v3463, -inf
    %3468 = vmax.xlane.f32.xlu0 %v3467
    %v3469 = vpop.xlane.xlu0 %3468
    %v3470 = vsel %vm198, %v3464, -inf
    %3471 = vmax.xlane.f32.xlu0 %v3470
    %v3472 = vpop.xlane.xlu0 %3471
    %v3473 = vsel %vm198, %v3465, -inf
    %3474 = vmax.xlane.f32.xlu0 %v3473
    %v3475 = vpop.xlane.xlu0 %3474
    %v3476 = vsel %vm198, %v3466, -inf
    %3477 = vmax.xlane.f32.xlu0 %v3476
    %v3478 = vpop.xlane.xlu0 %3477
    %v3479 = vsub.f32 %v3463, %v3469
    %v3480 = vsub.f32 %v3464, %v3472
    %v3481 = vsub.f32 %v3465, %v3475
    %v3482 = vsub.f32 %v3466, %v3478
    %v3483 = vmul.f32 %v3479, 1.442695
    %v3484 = vpow.pop %v3483
    %v3485 = vmul.f32 %v3480, 1.442695
    %v3486 = vpow.pop %v3485
    %v3487 = vmul.f32 %v3481, 1.442695
    %v3488 = vpow.pop %v3487
    %v3489 = vmul.f32 %v3482, 1.442695
    %v3490 = vpow.pop %v3489
    %v3491 = vsel %vm198, %v3484, 0.0
    %3492 = vadd.xlane.f32.xlu0 %v3491
    %v3493 = vpop.xlane.xlu0 %3492
    %v3494 = vsel %vm198, %v3486, 0.0
    %3495 = vadd.xlane.f32.xlu0 %v3494
    %v3496 = vpop.xlane.xlu0 %3495
    %v3497 = vsel %vm198, %v3488, 0.0
    %3498 = vadd.xlane.f32.xlu0 %v3497
    %v3499 = vpop.xlane.xlu0 %3498
    %v3500 = vsel %vm198, %v3490, 0.0
    %3501 = vadd.xlane.f32.xlu0 %v3500
    %v3502 = vpop.xlane.xlu0 %3501
    %v3503 = vrcp.pop %v3493
    %v3504 = vmul.f32 %v3484, %v3503
    %v3505 = vrcp.pop %v3496
    %v3506 = vmul.f32 %v3486, %v3505
    %v3507 = vrcp.pop %v3499
    %v3508 = vmul.f32 %v3488, %v3507
    %v3509 = vrcp.pop %v3502
    %v3510 = vmul.f32 %v3490, %v3509
    %v3516 = vsel %vm198, %v3504, 0
    %v3519 = vsel %vm198, %v3506, 0
    %v3522 = vsel %vm198, %v3508, 0
    %v3525 = vsel %vm198, %v3510, 0
    %3527 = vmatprep.subr.mxu0 0.0
    %3528 = vmatpush1.msra.mxu0 %v3355
    %3529 = vmatprep.subr.mxu0 0.0
    %3530 = vmatpush1.msra.mxu0 %v3357
    %3531 = vmatprep.subr.mxu0 0.0
    %3532 = vmatpush1.msra.mxu0 %v3359
    %3533 = vmatprep.subr.mxu0 0.0
    %3534 = vmatpush1.msra.mxu0 %v3361
    %3535 = vmatprep.subr.mxu0 0.0
    %3536 = vmatpush1.msra.mxu0 0.0
    %3537 = vmatprep.subr.mxu0 0.0
    %3538 = vmatpush1.msra.mxu0 0.0
    %3539 = vmatprep.subr.mxu0 0.0
    %3540 = vmatpush1.msra.mxu0 0.0
    %3541 = vmatprep.subr.mxu0 0.0
    %3542 = vmatpush1.msra.mxu0 0.0
    %3543 = vmatprep.subr.mxu0 0.0
    %3544 = vmatpush1.msra.mxu0 0.0
    %3545 = vmatprep.subr.mxu0 0.0
    %3546 = vmatpush1.msra.mxu0 0.0
    %3547 = vmatprep.subr.mxu0 0.0
    %3548 = vmatpush1.msra.mxu0 0.0
    %3549 = vmatprep.subr.mxu0 0.0
    %3550 = vmatpush1.msra.mxu0 0.0
    %3551 = vmatprep.subr.mxu0 0.0
    %3552 = vmatpush1.msra.mxu0 0.0
    %3553 = vmatprep.subr.mxu0 0.0
    %3554 = vmatpush1.msra.mxu0 0.0
    %3555 = vmatprep.subr.mxu0 0.0
    %3556 = vmatpush1.msra.mxu0 0.0
    %3557 = vmatprep.subr.mxu0 0.0
    %3558 = vmatpush1.msra.mxu0 0.0
    %3559 = vmatprep.subr.mxu0 0.0
    %3560 = vmatpush1.msra.mxu0 0.0
    %3561 = vmatprep.subr.mxu0 0.0
    %3562 = vmatpush1.msra.mxu0 0.0
    %3563 = vmatprep.subr.mxu0 0.0
    %3564 = vmatpush1.msra.mxu0 0.0
    %3565 = vmatprep.subr.mxu0 0.0
    %3566 = vmatpush1.msra.mxu0 0.0
    %3567 = vmatprep.subr.mxu0 0.0
    %3568 = vmatpush1.msra.mxu0 0.0
    %3569 = vmatprep.subr.mxu0 0.0
    %3570 = vmatpush1.msra.mxu0 0.0
    %3571 = vmatprep.subr.mxu0 0.0
    %3572 = vmatpush1.msra.mxu0 0.0
    %3573 = vmatprep.subr.mxu0 0.0
    %3574 = vmatpush1.msra.mxu0 0.0
    %3575 = vmatprep.subr.mxu0 0.0
    %3576 = vmatpush1.msra.mxu0 0.0
    %3577 = vmatprep.subr.mxu0 0.0
    %3578 = vmatpush1.msra.mxu0 0.0
    %3579 = vmatprep.subr.mxu0 0.0
    %3580 = vmatpush1.msra.mxu0 0.0
    %3581 = vmatprep.subr.mxu0 0.0
    %3582 = vmatpush1.msra.mxu0 0.0
    %3583 = vmatprep.subr.mxu0 0.0
    %3584 = vmatpush1.msra.mxu0 0.0
    %3585 = vmatprep.subr.mxu0 0.0
    %3586 = vmatpush1.msra.mxu0 0.0
    %3587 = vmatprep.subr.mxu0 0.0
    %3588 = vmatpush1.msra.mxu0 0.0
    %3589 = vmatprep.subr.mxu0 0.0
    %3590 = vmatpush1.msra.mxu0 0.0
    %3591 = vmatprep.mubr.f32.mxu0 0.0
    %3592 = vmatmul.mubr.f32.gmra.mrb[0].mxu0 %v3516
    %v3593 = vpop.f32.mrb[0].mxu0
    %v3594 = vadd.f32 0.0, %v3593
    %v3595 = vpop.f32.mrb[0].mxu0
    %3596 = vmatprep.mubr.f32.mxu0 0.0
    %3597 = vmatmul.mubr.f32.gmra.mrb[0].mxu0 %v3519
    %v3598 = vpop.f32.mrb[0].mxu0
    %v3599 = vadd.f32 0.0, %v3598
    %v3600 = vpop.f32.mrb[0].mxu0
    %3601 = vmatprep.mubr.f32.mxu0 0.0
    %3602 = vmatmul.mubr.f32.gmra.mrb[0].mxu0 %v3522
    %v3603 = vpop.f32.mrb[0].mxu0
    %v3604 = vadd.f32 0.0, %v3603
    %v3605 = vpop.f32.mrb[0].mxu0
    %3606 = vmatprep.mubr.f32.mxu0 0.0
    %3607 = vmatmul.mubr.f32.gmra.mrb[0].mxu0 %v3525
    %v3608 = vpop.f32.mrb[0].mxu0
    %v3609 = vadd.f32 0.0, %v3608
    %v3610 = vpop.f32.mrb[0].mxu0
    %3611 = vdwg.mxu0
    %3616 = vrot.lane.b32.xlu0 %v3594, 8
    %v3617 = vpop.permute.xlu0 %3616
    %3618 = vrot.lane.b32.xlu0 %v3599, 8
    %v3619 = vpop.permute.xlu0 %3618
    %3620 = vrot.lane.b32.xlu0 %v3604, 8
    %v3621 = vpop.permute.xlu0 %3620
    %3622 = vrot.lane.b32.xlu0 %v3609, 8
    %v3623 = vpop.permute.xlu0 %3622
    %3628 = vst.msk [vmem:[#allocation3] sm:$0xff] %vm808, %v3617
    %3629 = vst.msk [vmem:[#allocation3 + $0x8] sm:$0xff] %vm808, %v3619
    %3630 = vst.msk [vmem:[#allocation3 + $0x10] sm:$0xff] %vm808, %v3621
    %3631 = vst.msk [vmem:[#allocation3 + $0x18] sm:$0xff] %vm808, %v3623
    %v3632 = vld [vmem:[#allocation2] sm:$0xff]
    %v3633 = vld [vmem:[#allocation2 + $0x8] sm:$0xff]
    %v3634 = vld [vmem:[#allocation2 + $0x10] sm:$0xff]
    %v3635 = vld [vmem:[#allocation2 + $0x18] sm:$0xff]
    %v3636 = vld [vmem:[%s12 + $0x2] sm:$0x1]
    %v3637 = vld [vmem:[%s13 + $0x2] sm:$0x1]
    %v3638 = vlaneseq
    %v3639 = vshrl.u32 %v3638, 7
    %v3640 = vsub.s32 0, %v3639
    %v3641 = vrot.slane %v3636, %v3640
    %3643 = vrot.lane.b32.xlu0 %v3641, 16
    %v3644 = vpop.permute.xlu0 %3643
    %v3646 = vmul.f32 %v3632, %v3644
    %v3647 = vmul.f32 %v3633, %v3644
    %v3648 = vmul.f32 %v3634, %v3644
    %v3649 = vmul.f32 %v3635, %v3644
    %3654 = vrot.lane.b32.xlu0 %v3646, 112
    %v3655 = vpop.permute.xlu0 %3654
    %3656 = vrot.lane.b32.xlu0 %v3647, 112
    %v3657 = vpop.permute.xlu0 %3656
    %3658 = vrot.lane.b32.xlu0 %v3648, 112
    %v3659 = vpop.permute.xlu0 %3658
    %3660 = vrot.lane.b32.xlu0 %v3649, 112
    %v3661 = vpop.permute.xlu0 %3660
    %v3666 = vsel %vm217, %v3655, 0.0
    %3667 = vadd.xlane.f32.xlu0 %v3666
    %v3668 = vpop.xlane.xlu0 %3667
    %v3669 = vsel %vm217, %v3657, 0.0
    %3670 = vadd.xlane.f32.xlu0 %v3669
    %v3671 = vpop.xlane.xlu0 %3670
    %v3672 = vsel %vm217, %v3659, 0.0
    %3673 = vadd.xlane.f32.xlu0 %v3672
    %v3674 = vpop.xlane.xlu0 %3673
    %v3675 = vsel %vm217, %v3661, 0.0
    %3676 = vadd.xlane.f32.xlu0 %v3675
    %v3677 = vpop.xlane.xlu0 %3676
    %3682 = vrot.lane.b32.xlu0 %v3632, 112
    %v3683 = vpop.permute.xlu0 %3682
    %3684 = vrot.lane.b32.xlu0 %v3633, 112
    %v3685 = vpop.permute.xlu0 %3684
    %3686 = vrot.lane.b32.xlu0 %v3634, 112
    %v3687 = vpop.permute.xlu0 %3686
    %3688 = vrot.lane.b32.xlu0 %v3635, 112
    %v3689 = vpop.permute.xlu0 %3688
    %v3691 = vsel %vm217, %v3637, 0
    %v3693 = vsel %vm217, %v3683, 0
    %v3695 = vsel %vm217, %v3685, 0
    %v3697 = vsel %vm217, %v3687, 0
    %v3699 = vsel %vm217, %v3689, 0
    %3701 = vmatprep.subr.mxu0 0.0
    %3702 = vmatpush1.xpose.msra.mxu0 %v3693
    %3703 = vmatprep.subr.mxu0 0.0
    %3704 = vmatpush1.xpose.msra.mxu0 %v3695
    %3705 = vmatprep.subr.mxu0 0.0
    %3706 = vmatpush1.xpose.msra.mxu0 %v3697
    %3707 = vmatprep.subr.mxu0 0.0
    %3708 = vmatpush1.xpose.msra.mxu0 %v3699
    %3709 = vmatprep.subr.mxu0 0.0
    %3710 = vmatpush1.xpose.msra.mxu0 0.0
    %3711 = vmatprep.subr.mxu0 0.0
    %3712 = vmatpush1.xpose.msra.mxu0 0.0
    %3713 = vmatprep.subr.mxu0 0.0
    %3714 = vmatpush1.xpose.msra.mxu0 0.0
    %3715 = vmatprep.subr.mxu0 0.0
    %3716 = vmatpush1.xpose.msra.mxu0 0.0
    %3717 = vmatprep.subr.mxu0 0.0
    %3718 = vmatpush1.xpose.msra.mxu0 0.0
    %3719 = vmatprep.subr.mxu0 0.0
    %3720 = vmatpush1.xpose.msra.mxu0 0.0
    %3721 = vmatprep.subr.mxu0 0.0
    %3722 = vmatpush1.xpose.msra.mxu0 0.0
    %3723 = vmatprep.subr.mxu0 0.0
    %3724 = vmatpush1.xpose.msra.mxu0 0.0
    %3725 = vmatprep.subr.mxu0 0.0
    %3726 = vmatpush1.xpose.msra.mxu0 0.0
    %3727 = vmatprep.subr.mxu0 0.0
    %3728 = vmatpush1.xpose.msra.mxu0 0.0
    %3729 = vmatprep.subr.mxu0 0.0
    %3730 = vmatpush1.xpose.msra.mxu0 0.0
    %3731 = vmatprep.subr.mxu0 0.0
    %3732 = vmatpush1.xpose.msra.mxu0 0.0
    %3733 = vmatprep.subr.mxu0 0.0
    %3734 = vmatpush1.xpose.msra.mxu0 0.0
    %3735 = vmatprep.subr.mxu0 0.0
    %3736 = vmatpush1.xpose.msra.mxu0 0.0
    %3737 = vmatprep.subr.mxu0 0.0
    %3738 = vmatpush1.xpose.msra.mxu0 0.0
    %3739 = vmatprep.subr.mxu0 0.0
    %3740 = vmatpush1.xpose.msra.mxu0 0.0
    %3741 = vmatprep.subr.mxu0 0.0
    %3742 = vmatpush1.xpose.msra.mxu0 0.0
    %3743 = vmatprep.subr.mxu0 0.0
    %3744 = vmatpush1.xpose.msra.mxu0 0.0
    %3745 = vmatprep.subr.mxu0 0.0
    %3746 = vmatpush1.xpose.msra.mxu0 0.0
    %3747 = vmatprep.subr.mxu0 0.0
    %3748 = vmatpush1.xpose.msra.mxu0 0.0
    %3749 = vmatprep.subr.mxu0 0.0
    %3750 = vmatpush1.xpose.msra.mxu0 0.0
    %3751 = vmatprep.subr.mxu0 0.0
    %3752 = vmatpush1.xpose.msra.mxu0 0.0
    %3753 = vmatprep.subr.mxu0 0.0
    %3754 = vmatpush1.xpose.msra.mxu0 0.0
    %3755 = vmatprep.subr.mxu0 0.0
    %3756 = vmatpush1.xpose.msra.mxu0 0.0
    %3757 = vmatprep.subr.mxu0 0.0
    %3758 = vmatpush1.xpose.msra.mxu0 0.0
    %3759 = vmatprep.subr.mxu0 0.0
    %3760 = vmatpush1.xpose.msra.mxu0 0.0
    %3761 = vmatprep.subr.mxu0 0.0
    %3762 = vmatpush1.xpose.msra.mxu0 0.0
    %3763 = vmatprep.subr.mxu0 0.0
    %3764 = vmatpush1.xpose.msra.mxu0 0.0
    %3765 = vmatprep.mubr.f32.mxu0 0.0
    %3766 = vmatmul.mubr.f32.gmra.mrb[0].mxu0 %v3691
    %v3767 = vpop.f32.mrb[0].mxu0
    %v3768 = vadd.f32 0.0, %v3767
    %v3769 = vpop.f32.mrb[0].mxu0
    %3770 = vdwg.mxu0
    %v3771 = vlaneseq
    %v3772 = vshrl.u32 %v3771, 7
    %v3773 = vsub.s32 0, %v3772
    %v3774 = vrot.slane %v3768, %v3773
    %v3775 = vadd.f32 %v3668, %v3774
    %v3776 = vadd.f32 %v3671, %v3774
    %v3777 = vadd.f32 %v3674, %v3774
    %v3778 = vadd.f32 %v3677, %v3774
    %vm3779 = vcmp.gt.f32.partialorder %v3775, 0.0
    %vm3780 = vcmp.gt.f32.partialorder %v3776, 0.0
    %vm3781 = vcmp.gt.f32.partialorder %v3777, 0.0
    %vm3782 = vcmp.gt.f32.partialorder %v3778, 0.0
    %v3783 = vmul.f32 %v3775, 0.2
    %v3784 = vmul.f32 %v3776, 0.2
    %v3785 = vmul.f32 %v3777, 0.2
    %v3786 = vmul.f32 %v3778, 0.2
    %v3787 = vsel %vm3779, %v3775, %v3783
    %v3788 = vsel %vm3780, %v3776, %v3784
    %v3789 = vsel %vm3781, %v3777, %v3785
    %v3790 = vsel %vm3782, %v3778, %v3786
    %v3791 = vsel %vm79, %v3787, -1e+30
    %v3792 = vsel %vm80, %v3788, -1e+30
    %v3793 = vsel %vm81, %v3789, -1e+30
    %v3794 = vsel %vm82, %v3790, -1e+30
    %v3795 = vsel %vm198, %v3791, -inf
    %3796 = vmax.xlane.f32.xlu0 %v3795
    %v3797 = vpop.xlane.xlu0 %3796
    %v3798 = vsel %vm198, %v3792, -inf
    %3799 = vmax.xlane.f32.xlu0 %v3798
    %v3800 = vpop.xlane.xlu0 %3799
    %v3801 = vsel %vm198, %v3793, -inf
    %3802 = vmax.xlane.f32.xlu0 %v3801
    %v3803 = vpop.xlane.xlu0 %3802
    %v3804 = vsel %vm198, %v3794, -inf
    %3805 = vmax.xlane.f32.xlu0 %v3804
    %v3806 = vpop.xlane.xlu0 %3805
    %v3807 = vsub.f32 %v3791, %v3797
    %v3808 = vsub.f32 %v3792, %v3800
    %v3809 = vsub.f32 %v3793, %v3803
    %v3810 = vsub.f32 %v3794, %v3806
    %v3811 = vmul.f32 %v3807, 1.442695
    %v3812 = vpow.pop %v3811
    %v3813 = vmul.f32 %v3808, 1.442695
    %v3814 = vpow.pop %v3813
    %v3815 = vmul.f32 %v3809, 1.442695
    %v3816 = vpow.pop %v3815
    %v3817 = vmul.f32 %v3810, 1.442695
    %v3818 = vpow.pop %v3817
    %v3819 = vsel %vm198, %v3812, 0.0
    %3820 = vadd.xlane.f32.xlu0 %v3819
    %v3821 = vpop.xlane.xlu0 %3820
    %v3822 = vsel %vm198, %v3814, 0.0
    %3823 = vadd.xlane.f32.xlu0 %v3822
    %v3824 = vpop.xlane.xlu0 %3823
    %v3825 = vsel %vm198, %v3816, 0.0
    %3826 = vadd.xlane.f32.xlu0 %v3825
    %v3827 = vpop.xlane.xlu0 %3826
    %v3828 = vsel %vm198, %v3818, 0.0
    %3829 = vadd.xlane.f32.xlu0 %v3828
    %v3830 = vpop.xlane.xlu0 %3829
    %v3831 = vrcp.pop %v3821
    %v3832 = vmul.f32 %v3812, %v3831
    %v3833 = vrcp.pop %v3824
    %v3834 = vmul.f32 %v3814, %v3833
    %v3835 = vrcp.pop %v3827
    %v3836 = vmul.f32 %v3816, %v3835
    %v3837 = vrcp.pop %v3830
    %v3838 = vmul.f32 %v3818, %v3837
    %v3844 = vsel %vm198, %v3832, 0
    %v3847 = vsel %vm198, %v3834, 0
    %v3850 = vsel %vm198, %v3836, 0
    %v3853 = vsel %vm198, %v3838, 0
    %3855 = vmatprep.subr.mxu0 0.0
    %3856 = vmatpush1.msra.mxu0 %v3683
    %3857 = vmatprep.subr.mxu0 0.0
    %3858 = vmatpush1.msra.mxu0 %v3685
    %3859 = vmatprep.subr.mxu0 0.0
    %3860 = vmatpush1.msra.mxu0 %v3687
    %3861 = vmatprep.subr.mxu0 0.0
    %3862 = vmatpush1.msra.mxu0 %v3689
    %3863 = vmatprep.subr.mxu0 0.0
    %3864 = vmatpush1.msra.mxu0 0.0
    %3865 = vmatprep.subr.mxu0 0.0
    %3866 = vmatpush1.msra.mxu0 0.0
    %3867 = vmatprep.subr.mxu0 0.0
    %3868 = vmatpush1.msra.mxu0 0.0
    %3869 = vmatprep.subr.mxu0 0.0
    %3870 = vmatpush1.msra.mxu0 0.0
    %3871 = vmatprep.subr.mxu0 0.0
    %3872 = vmatpush1.msra.mxu0 0.0
    %3873 = vmatprep.subr.mxu0 0.0
    %3874 = vmatpush1.msra.mxu0 0.0
    %3875 = vmatprep.subr.mxu0 0.0
    %3876 = vmatpush1.msra.mxu0 0.0
    %3877 = vmatprep.subr.mxu0 0.0
    %3878 = vmatpush1.msra.mxu0 0.0
    %3879 = vmatprep.subr.mxu0 0.0
    %3880 = vmatpush1.msra.mxu0 0.0
    %3881 = vmatprep.subr.mxu0 0.0
    %3882 = vmatpush1.msra.mxu0 0.0
    %3883 = vmatprep.subr.mxu0 0.0
    %3884 = vmatpush1.msra.mxu0 0.0
    %3885 = vmatprep.subr.mxu0 0.0
    %3886 = vmatpush1.msra.mxu0 0.0
    %3887 = vmatprep.subr.mxu0 0.0
    %3888 = vmatpush1.msra.mxu0 0.0
    %3889 = vmatprep.subr.mxu0 0.0
    %3890 = vmatpush1.msra.mxu0 0.0
    %3891 = vmatprep.subr.mxu0 0.0
    %3892 = vmatpush1.msra.mxu0 0.0
    %3893 = vmatprep.subr.mxu0 0.0
    %3894 = vmatpush1.msra.mxu0 0.0
    %3895 = vmatprep.subr.mxu0 0.0
    %3896 = vmatpush1.msra.mxu0 0.0
    %3897 = vmatprep.subr.mxu0 0.0
    %3898 = vmatpush1.msra.mxu0 0.0
    %3899 = vmatprep.subr.mxu0 0.0
    %3900 = vmatpush1.msra.mxu0 0.0
    %3901 = vmatprep.subr.mxu0 0.0
    %3902 = vmatpush1.msra.mxu0 0.0
    %3903 = vmatprep.subr.mxu0 0.0
    %3904 = vmatpush1.msra.mxu0 0.0
    %3905 = vmatprep.subr.mxu0 0.0
    %3906 = vmatpush1.msra.mxu0 0.0
    %3907 = vmatprep.subr.mxu0 0.0
    %3908 = vmatpush1.msra.mxu0 0.0
    %3909 = vmatprep.subr.mxu0 0.0
    %3910 = vmatpush1.msra.mxu0 0.0
    %3911 = vmatprep.subr.mxu0 0.0
    %3912 = vmatpush1.msra.mxu0 0.0
    %3913 = vmatprep.subr.mxu0 0.0
    %3914 = vmatpush1.msra.mxu0 0.0
    %3915 = vmatprep.subr.mxu0 0.0
    %3916 = vmatpush1.msra.mxu0 0.0
    %3917 = vmatprep.subr.mxu0 0.0
    %3918 = vmatpush1.msra.mxu0 0.0
    %3919 = vmatprep.mubr.f32.mxu0 0.0
    %3920 = vmatmul.mubr.f32.gmra.mrb[0].mxu0 %v3844
    %v3921 = vpop.f32.mrb[0].mxu0
    %v3922 = vadd.f32 0.0, %v3921
    %v3923 = vpop.f32.mrb[0].mxu0
    %3924 = vmatprep.mubr.f32.mxu0 0.0
    %3925 = vmatmul.mubr.f32.gmra.mrb[0].mxu0 %v3847
    %v3926 = vpop.f32.mrb[0].mxu0
    %v3927 = vadd.f32 0.0, %v3926
    %v3928 = vpop.f32.mrb[0].mxu0
    %3929 = vmatprep.mubr.f32.mxu0 0.0
    %3930 = vmatmul.mubr.f32.gmra.mrb[0].mxu0 %v3850
    %v3931 = vpop.f32.mrb[0].mxu0
    %v3932 = vadd.f32 0.0, %v3931
    %v3933 = vpop.f32.mrb[0].mxu0
    %3934 = vmatprep.mubr.f32.mxu0 0.0
    %3935 = vmatmul.mubr.f32.gmra.mrb[0].mxu0 %v3853
    %v3936 = vpop.f32.mrb[0].mxu0
    %v3937 = vadd.f32 0.0, %v3936
    %v3938 = vpop.f32.mrb[0].mxu0
    %3939 = vdwg.mxu0
    %3944 = vrot.lane.b32.xlu0 %v3922, 16
    %v3945 = vpop.permute.xlu0 %3944
    %3946 = vrot.lane.b32.xlu0 %v3927, 16
    %v3947 = vpop.permute.xlu0 %3946
    %3948 = vrot.lane.b32.xlu0 %v3932, 16
    %v3949 = vpop.permute.xlu0 %3948
    %3950 = vrot.lane.b32.xlu0 %v3937, 16
    %v3951 = vpop.permute.xlu0 %3950
    %3956 = vst.msk [vmem:[#allocation3] sm:$0xff] %vm1137, %v3945
    %3957 = vst.msk [vmem:[#allocation3 + $0x8] sm:$0xff] %vm1137, %v3947
    %3958 = vst.msk [vmem:[#allocation3 + $0x10] sm:$0xff] %vm1137, %v3949
    %3959 = vst.msk [vmem:[#allocation3 + $0x18] sm:$0xff] %vm1137, %v3951
    %v3960 = vld [vmem:[#allocation2] sm:$0xff]
    %v3961 = vld [vmem:[#allocation2 + $0x8] sm:$0xff]
    %v3962 = vld [vmem:[#allocation2 + $0x10] sm:$0xff]
    %v3963 = vld [vmem:[#allocation2 + $0x18] sm:$0xff]
    %v3964 = vld [vmem:[%s12 + $0x3] sm:$0x1]
    %v3965 = vld [vmem:[%s13 + $0x3] sm:$0x1]
    %v3966 = vlaneseq
    %v3967 = vshrl.u32 %v3966, 7
    %v3968 = vsub.s32 0, %v3967
    %v3969 = vrot.slane %v3964, %v3968
    %3971 = vrot.lane.b32.xlu0 %v3969, 24
    %v3972 = vpop.permute.xlu0 %3971
    %v3974 = vmul.f32 %v3960, %v3972
    %v3975 = vmul.f32 %v3961, %v3972
    %v3976 = vmul.f32 %v3962, %v3972
    %v3977 = vmul.f32 %v3963, %v3972
    %3982 = vrot.lane.b32.xlu0 %v3974, 104
    %v3983 = vpop.permute.xlu0 %3982
    %3984 = vrot.lane.b32.xlu0 %v3975, 104
    %v3985 = vpop.permute.xlu0 %3984
    %3986 = vrot.lane.b32.xlu0 %v3976, 104
    %v3987 = vpop.permute.xlu0 %3986
    %3988 = vrot.lane.b32.xlu0 %v3977, 104
    %v3989 = vpop.permute.xlu0 %3988
    %v3994 = vsel %vm217, %v3983, 0.0
    %3995 = vadd.xlane.f32.xlu0 %v3994
    %v3996 = vpop.xlane.xlu0 %3995
    %v3997 = vsel %vm217, %v3985, 0.0
    %3998 = vadd.xlane.f32.xlu0 %v3997
    %v3999 = vpop.xlane.xlu0 %3998
    %v4000 = vsel %vm217, %v3987, 0.0
    %4001 = vadd.xlane.f32.xlu0 %v4000
    %v4002 = vpop.xlane.xlu0 %4001
    %v4003 = vsel %vm217, %v3989, 0.0
    %4004 = vadd.xlane.f32.xlu0 %v4003
    %v4005 = vpop.xlane.xlu0 %4004
    %4010 = vrot.lane.b32.xlu0 %v3960, 104
    %v4011 = vpop.permute.xlu0 %4010
    %4012 = vrot.lane.b32.xlu0 %v3961, 104
    %v4013 = vpop.permute.xlu0 %4012
    %4014 = vrot.lane.b32.xlu0 %v3962, 104
    %v4015 = vpop.permute.xlu0 %4014
    %4016 = vrot.lane.b32.xlu0 %v3963, 104
    %v4017 = vpop.permute.xlu0 %4016
    %v4019 = vsel %vm217, %v3965, 0
    %v4021 = vsel %vm217, %v4011, 0
    %v4023 = vsel %vm217, %v4013, 0
    %v4025 = vsel %vm217, %v4015, 0
    %v4027 = vsel %vm217, %v4017, 0
    %4029 = vmatprep.subr.mxu0 0.0
    %4030 = vmatpush1.xpose.msra.mxu0 %v4021
    %4031 = vmatprep.subr.mxu0 0.0
    %4032 = vmatpush1.xpose.msra.mxu0 %v4023
    %4033 = vmatprep.subr.mxu0 0.0
    %4034 = vmatpush1.xpose.msra.mxu0 %v4025
    %4035 = vmatprep.subr.mxu0 0.0
    %4036 = vmatpush1.xpose.msra.mxu0 %v4027
    %4037 = vmatprep.subr.mxu0 0.0
    %4038 = vmatpush1.xpose.msra.mxu0 0.0
    %4039 = vmatprep.subr.mxu0 0.0
    %4040 = vmatpush1.xpose.msra.mxu0 0.0
    %4041 = vmatprep.subr.mxu0 0.0
    %4042 = vmatpush1.xpose.msra.mxu0 0.0
    %4043 = vmatprep.subr.mxu0 0.0
    %4044 = vmatpush1.xpose.msra.mxu0 0.0
    %4045 = vmatprep.subr.mxu0 0.0
    %4046 = vmatpush1.xpose.msra.mxu0 0.0
    %4047 = vmatprep.subr.mxu0 0.0
    %4048 = vmatpush1.xpose.msra.mxu0 0.0
    %4049 = vmatprep.subr.mxu0 0.0
    %4050 = vmatpush1.xpose.msra.mxu0 0.0
    %4051 = vmatprep.subr.mxu0 0.0
    %4052 = vmatpush1.xpose.msra.mxu0 0.0
    %4053 = vmatprep.subr.mxu0 0.0
    %4054 = vmatpush1.xpose.msra.mxu0 0.0
    %4055 = vmatprep.subr.mxu0 0.0
    %4056 = vmatpush1.xpose.msra.mxu0 0.0
    %4057 = vmatprep.subr.mxu0 0.0
    %4058 = vmatpush1.xpose.msra.mxu0 0.0
    %4059 = vmatprep.subr.mxu0 0.0
    %4060 = vmatpush1.xpose.msra.mxu0 0.0
    %4061 = vmatprep.subr.mxu0 0.0
    %4062 = vmatpush1.xpose.msra.mxu0 0.0
    %4063 = vmatprep.subr.mxu0 0.0
    %4064 = vmatpush1.xpose.msra.mxu0 0.0
    %4065 = vmatprep.subr.mxu0 0.0
    %4066 = vmatpush1.xpose.msra.mxu0 0.0
    %4067 = vmatprep.subr.mxu0 0.0
    %4068 = vmatpush1.xpose.msra.mxu0 0.0
    %4069 = vmatprep.subr.mxu0 0.0
    %4070 = vmatpush1.xpose.msra.mxu0 0.0
    %4071 = vmatprep.subr.mxu0 0.0
    %4072 = vmatpush1.xpose.msra.mxu0 0.0
    %4073 = vmatprep.subr.mxu0 0.0
    %4074 = vmatpush1.xpose.msra.mxu0 0.0
    %4075 = vmatprep.subr.mxu0 0.0
    %4076 = vmatpush1.xpose.msra.mxu0 0.0
    %4077 = vmatprep.subr.mxu0 0.0
    %4078 = vmatpush1.xpose.msra.mxu0 0.0
    %4079 = vmatprep.subr.mxu0 0.0
    %4080 = vmatpush1.xpose.msra.mxu0 0.0
    %4081 = vmatprep.subr.mxu0 0.0
    %4082 = vmatpush1.xpose.msra.mxu0 0.0
    %4083 = vmatprep.subr.mxu0 0.0
    %4084 = vmatpush1.xpose.msra.mxu0 0.0
    %4085 = vmatprep.subr.mxu0 0.0
    %4086 = vmatpush1.xpose.msra.mxu0 0.0
    %4087 = vmatprep.subr.mxu0 0.0
    %4088 = vmatpush1.xpose.msra.mxu0 0.0
    %4089 = vmatprep.subr.mxu0 0.0
    %4090 = vmatpush1.xpose.msra.mxu0 0.0
    %4091 = vmatprep.subr.mxu0 0.0
    %4092 = vmatpush1.xpose.msra.mxu0 0.0
    %4093 = vmatprep.mubr.f32.mxu0 0.0
    %4094 = vmatmul.mubr.f32.gmra.mrb[0].mxu0 %v4019
    %v4095 = vpop.f32.mrb[0].mxu0
    %v4096 = vadd.f32 0.0, %v4095
    %v4097 = vpop.f32.mrb[0].mxu0
    %4098 = vdwg.mxu0
    %v4099 = vlaneseq
    %v4100 = vshrl.u32 %v4099, 7
    %v4101 = vsub.s32 0, %v4100
    %v4102 = vrot.slane %v4096, %v4101
    %v4103 = vadd.f32 %v3996, %v4102
    %v4104 = vadd.f32 %v3999, %v4102
    %v4105 = vadd.f32 %v4002, %v4102
    %v4106 = vadd.f32 %v4005, %v4102
    %vm4107 = vcmp.gt.f32.partialorder %v4103, 0.0
    %vm4108 = vcmp.gt.f32.partialorder %v4104, 0.0
    %vm4109 = vcmp.gt.f32.partialorder %v4105, 0.0
    %vm4110 = vcmp.gt.f32.partialorder %v4106, 0.0
    %v4111 = vmul.f32 %v4103, 0.2
    %v4112 = vmul.f32 %v4104, 0.2
    %v4113 = vmul.f32 %v4105, 0.2
    %v4114 = vmul.f32 %v4106, 0.2
    %v4115 = vsel %vm4107, %v4103, %v4111
    %v4116 = vsel %vm4108, %v4104, %v4112
    %v4117 = vsel %vm4109, %v4105, %v4113
    %v4118 = vsel %vm4110, %v4106, %v4114
    %v4119 = vsel %vm79, %v4115, -1e+30
    %v4120 = vsel %vm80, %v4116, -1e+30
    %v4121 = vsel %vm81, %v4117, -1e+30
    %v4122 = vsel %vm82, %v4118, -1e+30
    %v4123 = vsel %vm198, %v4119, -inf
    %4124 = vmax.xlane.f32.xlu0 %v4123
    %v4125 = vpop.xlane.xlu0 %4124
    %v4126 = vsel %vm198, %v4120, -inf
    %4127 = vmax.xlane.f32.xlu0 %v4126
    %v4128 = vpop.xlane.xlu0 %4127
    %v4129 = vsel %vm198, %v4121, -inf
    %4130 = vmax.xlane.f32.xlu0 %v4129
    %v4131 = vpop.xlane.xlu0 %4130
    %v4132 = vsel %vm198, %v4122, -inf
    %4133 = vmax.xlane.f32.xlu0 %v4132
    %v4134 = vpop.xlane.xlu0 %4133
    %v4135 = vsub.f32 %v4119, %v4125
    %v4136 = vsub.f32 %v4120, %v4128
    %v4137 = vsub.f32 %v4121, %v4131
    %v4138 = vsub.f32 %v4122, %v4134
    %v4139 = vmul.f32 %v4135, 1.442695
    %v4140 = vpow.pop %v4139
    %v4141 = vmul.f32 %v4136, 1.442695
    %v4142 = vpow.pop %v4141
    %v4143 = vmul.f32 %v4137, 1.442695
    %v4144 = vpow.pop %v4143
    %v4145 = vmul.f32 %v4138, 1.442695
    %v4146 = vpow.pop %v4145
    %v4147 = vsel %vm198, %v4140, 0.0
    %4148 = vadd.xlane.f32.xlu0 %v4147
    %v4149 = vpop.xlane.xlu0 %4148
    %v4150 = vsel %vm198, %v4142, 0.0
    %4151 = vadd.xlane.f32.xlu0 %v4150
    %v4152 = vpop.xlane.xlu0 %4151
    %v4153 = vsel %vm198, %v4144, 0.0
    %4154 = vadd.xlane.f32.xlu0 %v4153
    %v4155 = vpop.xlane.xlu0 %4154
    %v4156 = vsel %vm198, %v4146, 0.0
    %4157 = vadd.xlane.f32.xlu0 %v4156
    %v4158 = vpop.xlane.xlu0 %4157
    %v4159 = vrcp.pop %v4149
    %v4160 = vmul.f32 %v4140, %v4159
    %v4161 = vrcp.pop %v4152
    %v4162 = vmul.f32 %v4142, %v4161
    %v4163 = vrcp.pop %v4155
    %v4164 = vmul.f32 %v4144, %v4163
    %v4165 = vrcp.pop %v4158
    %v4166 = vmul.f32 %v4146, %v4165
    %v4172 = vsel %vm198, %v4160, 0
    %v4175 = vsel %vm198, %v4162, 0
    %v4178 = vsel %vm198, %v4164, 0
    %v4181 = vsel %vm198, %v4166, 0
    %4183 = vmatprep.subr.mxu0 0.0
    %4184 = vmatpush1.msra.mxu0 %v4011
    %4185 = vmatprep.subr.mxu0 0.0
    %4186 = vmatpush1.msra.mxu0 %v4013
    %4187 = vmatprep.subr.mxu0 0.0
    %4188 = vmatpush1.msra.mxu0 %v4015
    %4189 = vmatprep.subr.mxu0 0.0
    %4190 = vmatpush1.msra.mxu0 %v4017
    %4191 = vmatprep.subr.mxu0 0.0
    %4192 = vmatpush1.msra.mxu0 0.0
    %4193 = vmatprep.subr.mxu0 0.0
    %4194 = vmatpush1.msra.mxu0 0.0
    %4195 = vmatprep.subr.mxu0 0.0
    %4196 = vmatpush1.msra.mxu0 0.0
    %4197 = vmatprep.subr.mxu0 0.0
    %4198 = vmatpush1.msra.mxu0 0.0
    %4199 = vmatprep.subr.mxu0 0.0
    %4200 = vmatpush1.msra.mxu0 0.0
    %4201 = vmatprep.subr.mxu0 0.0
    %4202 = vmatpush1.msra.mxu0 0.0
    %4203 = vmatprep.subr.mxu0 0.0
    %4204 = vmatpush1.msra.mxu0 0.0
    %4205 = vmatprep.subr.mxu0 0.0
    %4206 = vmatpush1.msra.mxu0 0.0
    %4207 = vmatprep.subr.mxu0 0.0
    %4208 = vmatpush1.msra.mxu0 0.0
    %4209 = vmatprep.subr.mxu0 0.0
    %4210 = vmatpush1.msra.mxu0 0.0
    %4211 = vmatprep.subr.mxu0 0.0
    %4212 = vmatpush1.msra.mxu0 0.0
    %4213 = vmatprep.subr.mxu0 0.0
    %4214 = vmatpush1.msra.mxu0 0.0
    %4215 = vmatprep.subr.mxu0 0.0
    %4216 = vmatpush1.msra.mxu0 0.0
    %4217 = vmatprep.subr.mxu0 0.0
    %4218 = vmatpush1.msra.mxu0 0.0
    %4219 = vmatprep.subr.mxu0 0.0
    %4220 = vmatpush1.msra.mxu0 0.0
    %4221 = vmatprep.subr.mxu0 0.0
    %4222 = vmatpush1.msra.mxu0 0.0
    %4223 = vmatprep.subr.mxu0 0.0
    %4224 = vmatpush1.msra.mxu0 0.0
    %4225 = vmatprep.subr.mxu0 0.0
    %4226 = vmatpush1.msra.mxu0 0.0
    %4227 = vmatprep.subr.mxu0 0.0
    %4228 = vmatpush1.msra.mxu0 0.0
    %4229 = vmatprep.subr.mxu0 0.0
    %4230 = vmatpush1.msra.mxu0 0.0
    %4231 = vmatprep.subr.mxu0 0.0
    %4232 = vmatpush1.msra.mxu0 0.0
    %4233 = vmatprep.subr.mxu0 0.0
    %4234 = vmatpush1.msra.mxu0 0.0
    %4235 = vmatprep.subr.mxu0 0.0
    %4236 = vmatpush1.msra.mxu0 0.0
    %4237 = vmatprep.subr.mxu0 0.0
    %4238 = vmatpush1.msra.mxu0 0.0
    %4239 = vmatprep.subr.mxu0 0.0
    %4240 = vmatpush1.msra.mxu0 0.0
    %4241 = vmatprep.subr.mxu0 0.0
    %4242 = vmatpush1.msra.mxu0 0.0
    %4243 = vmatprep.subr.mxu0 0.0
    %4244 = vmatpush1.msra.mxu0 0.0
    %4245 = vmatprep.subr.mxu0 0.0
    %4246 = vmatpush1.msra.mxu0 0.0
    %4247 = vmatprep.mubr.f32.mxu0 0.0
    %4248 = vmatmul.mubr.f32.gmra.mrb[0].mxu0 %v4172
    %v4249 = vpop.f32.mrb[0].mxu0
    %v4250 = vadd.f32 0.0, %v4249
    %v4251 = vpop.f32.mrb[0].mxu0
    %4252 = vmatprep.mubr.f32.mxu0 0.0
    %4253 = vmatmul.mubr.f32.gmra.mrb[0].mxu0 %v4175
    %v4254 = vpop.f32.mrb[0].mxu0
    %v4255 = vadd.f32 0.0, %v4254
    %v4256 = vpop.f32.mrb[0].mxu0
    %4257 = vmatprep.mubr.f32.mxu0 0.0
    %4258 = vmatmul.mubr.f32.gmra.mrb[0].mxu0 %v4178
    %v4259 = vpop.f32.mrb[0].mxu0
    %v4260 = vadd.f32 0.0, %v4259
    %v4261 = vpop.f32.mrb[0].mxu0
    %4262 = vmatprep.mubr.f32.mxu0 0.0
    %4263 = vmatmul.mubr.f32.gmra.mrb[0].mxu0 %v4181
    %v4264 = vpop.f32.mrb[0].mxu0
    %v4265 = vadd.f32 0.0, %v4264
    %v4266 = vpop.f32.mrb[0].mxu0
    %4267 = vdwg.mxu0
    %4272 = vrot.lane.b32.xlu0 %v4250, 24
    %v4273 = vpop.permute.xlu0 %4272
    %4274 = vrot.lane.b32.xlu0 %v4255, 24
    %v4275 = vpop.permute.xlu0 %4274
    %4276 = vrot.lane.b32.xlu0 %v4260, 24
    %v4277 = vpop.permute.xlu0 %4276
    %4278 = vrot.lane.b32.xlu0 %v4265, 24
    %v4279 = vpop.permute.xlu0 %4278
    %4284 = vst.msk [vmem:[#allocation3] sm:$0xff] %vm1466, %v4273
    %4285 = vst.msk [vmem:[#allocation3 + $0x8] sm:$0xff] %vm1466, %v4275
    %4286 = vst.msk [vmem:[#allocation3 + $0x10] sm:$0xff] %vm1466, %v4277
    %4287 = vst.msk [vmem:[#allocation3 + $0x18] sm:$0xff] %vm1466, %v4279
    %v4288 = vld [vmem:[#allocation3] sm:$0xff]
    %v4289 = vld [vmem:[#allocation3 + $0x8] sm:$0xff]
    %v4290 = vld [vmem:[#allocation3 + $0x10] sm:$0xff]
    %v4291 = vld [vmem:[#allocation3 + $0x18] sm:$0xff]
    %v4292 = vld [vmem:[%s14] sm:$0x1]
    %v4294 = vlaneseq
    %v4295 = vshrl.u32 %v4294, 7
    %v4296 = vsub.s32 0, %v4295
    %v4297 = vrot.slane %v4292, %v4296
    %v4299 = vadd.f32 %v4288, %v4297
    %v4300 = vadd.f32 %v4289, %v4297
    %v4301 = vadd.f32 %v4290, %v4297
    %v4302 = vadd.f32 %v4291, %v4297
    %v4303 = vmax.f32 %v4299, 0.0
    %v4304 = vmax.f32 %v4300, 0.0
    %v4305 = vmax.f32 %v4301, 0.0
    %v4306 = vmax.f32 %v4302, 0.0
    %v4307 = vld [vmem:[%s15] sm:$0xff]
    %v4308 = vld [vmem:[%s15 + $0x8] sm:$0xff]
    %v4309 = vld [vmem:[%s15 + $0x10] sm:$0xff]
    %v4310 = vld [vmem:[%s15 + $0x18] sm:$0xff]
    %v4311 = vld [vmem:[%s16] sm:$0x1]
    %v4313 = vlaneseq
    %v4314 = vshrl.u32 %v4313, 7
    %v4315 = vsub.s32 0, %v4314
    %v4316 = vrot.slane %v4311, %v4315
    %v4319 = vsel %vm198, %v4303, 0
    %v4322 = vsel %vm198, %v4304, 0
    %v4325 = vsel %vm198, %v4305, 0
    %v4328 = vsel %vm198, %v4306, 0
    %4330 = vmatprep.subr.mxu0 0.0
    %4331 = vmatpush1.msra.mxu0 %v4307
    %4332 = vmatprep.subr.mxu0 0.0
    %4333 = vmatpush1.msra.mxu0 %v4308
    %4334 = vmatprep.subr.mxu0 0.0
    %4335 = vmatpush1.msra.mxu0 %v4309
    %4336 = vmatprep.subr.mxu0 0.0
    %4337 = vmatpush1.msra.mxu0 %v4310
    %4338 = vmatprep.subr.mxu0 0.0
    %4339 = vmatpush1.msra.mxu0 0.0
    %4340 = vmatprep.subr.mxu0 0.0
    %4341 = vmatpush1.msra.mxu0 0.0
    %4342 = vmatprep.subr.mxu0 0.0
    %4343 = vmatpush1.msra.mxu0 0.0
    %4344 = vmatprep.subr.mxu0 0.0
    %4345 = vmatpush1.msra.mxu0 0.0
    %4346 = vmatprep.subr.mxu0 0.0
    %4347 = vmatpush1.msra.mxu0 0.0
    %4348 = vmatprep.subr.mxu0 0.0
    %4349 = vmatpush1.msra.mxu0 0.0
    %4350 = vmatprep.subr.mxu0 0.0
    %4351 = vmatpush1.msra.mxu0 0.0
    %4352 = vmatprep.subr.mxu0 0.0
    %4353 = vmatpush1.msra.mxu0 0.0
    %4354 = vmatprep.subr.mxu0 0.0
    %4355 = vmatpush1.msra.mxu0 0.0
    %4356 = vmatprep.subr.mxu0 0.0
    %4357 = vmatpush1.msra.mxu0 0.0
    %4358 = vmatprep.subr.mxu0 0.0
    %4359 = vmatpush1.msra.mxu0 0.0
    %4360 = vmatprep.subr.mxu0 0.0
    %4361 = vmatpush1.msra.mxu0 0.0
    %4362 = vmatprep.subr.mxu0 0.0
    %4363 = vmatpush1.msra.mxu0 0.0
    %4364 = vmatprep.subr.mxu0 0.0
    %4365 = vmatpush1.msra.mxu0 0.0
    %4366 = vmatprep.subr.mxu0 0.0
    %4367 = vmatpush1.msra.mxu0 0.0
    %4368 = vmatprep.subr.mxu0 0.0
    %4369 = vmatpush1.msra.mxu0 0.0
    %4370 = vmatprep.subr.mxu0 0.0
    %4371 = vmatpush1.msra.mxu0 0.0
    %4372 = vmatprep.subr.mxu0 0.0
    %4373 = vmatpush1.msra.mxu0 0.0
    %4374 = vmatprep.subr.mxu0 0.0
    %4375 = vmatpush1.msra.mxu0 0.0
    %4376 = vmatprep.subr.mxu0 0.0
    %4377 = vmatpush1.msra.mxu0 0.0
    %4378 = vmatprep.subr.mxu0 0.0
    %4379 = vmatpush1.msra.mxu0 0.0
    %4380 = vmatprep.subr.mxu0 0.0
    %4381 = vmatpush1.msra.mxu0 0.0
    %4382 = vmatprep.subr.mxu0 0.0
    %4383 = vmatpush1.msra.mxu0 0.0
    %4384 = vmatprep.subr.mxu0 0.0
    %4385 = vmatpush1.msra.mxu0 0.0
    %4386 = vmatprep.subr.mxu0 0.0
    %4387 = vmatpush1.msra.mxu0 0.0
    %4388 = vmatprep.subr.mxu0 0.0
    %4389 = vmatpush1.msra.mxu0 0.0
    %4390 = vmatprep.subr.mxu0 0.0
    %4391 = vmatpush1.msra.mxu0 0.0
    %4392 = vmatprep.subr.mxu0 0.0
    %4393 = vmatpush1.msra.mxu0 0.0
    %4394 = vmatprep.mubr.f32.mxu0 0.0
    %4395 = vmatmul.mubr.f32.gmra.mrb[0].mxu0 %v4319
    %v4396 = vpop.f32.mrb[0].mxu0
    %v4397 = vadd.f32 %v4316, %v4396
    %v4398 = vpop.f32.mrb[0].mxu0
    %4399 = vmatprep.mubr.f32.mxu0 0.0
    %4400 = vmatmul.mubr.f32.gmra.mrb[0].mxu0 %v4322
    %v4401 = vpop.f32.mrb[0].mxu0
    %v4402 = vadd.f32 %v4316, %v4401
    %v4403 = vpop.f32.mrb[0].mxu0
    %4404 = vmatprep.mubr.f32.mxu0 0.0
    %4405 = vmatmul.mubr.f32.gmra.mrb[0].mxu0 %v4325
    %v4406 = vpop.f32.mrb[0].mxu0
    %v4407 = vadd.f32 %v4316, %v4406
    %v4408 = vpop.f32.mrb[0].mxu0
    %4409 = vmatprep.mubr.f32.mxu0 0.0
    %4410 = vmatmul.mubr.f32.gmra.mrb[0].mxu0 %v4328
    %v4411 = vpop.f32.mrb[0].mxu0
    %v4412 = vadd.f32 %v4316, %v4411
    %v4413 = vpop.f32.mrb[0].mxu0
    %4414 = vdwg.mxu0
    %4415 = vst.msk [vmem:[#allocation4] sm:$0xff] %vm1598, %v4397
    %4416 = vst.msk [vmem:[#allocation4 + $0x8] sm:$0xff] %vm1598, %v4402
    %4417 = vst.msk [vmem:[#allocation4 + $0x10] sm:$0xff] %vm1598, %v4407
    %4418 = vst.msk [vmem:[#allocation4 + $0x18] sm:$0xff] %vm1598, %v4412
    %v4419 = vld [vmem:[#allocation4] sm:$0xff]
    %v4420 = vld [vmem:[#allocation4 + $0x8] sm:$0xff]
    %v4421 = vld [vmem:[#allocation4 + $0x10] sm:$0xff]
    %v4422 = vld [vmem:[#allocation4 + $0x18] sm:$0xff]
    %4427 = vrot.lane.b32.xlu0 %v4419, 96
    %v4428 = vpop.permute.xlu0 %4427
    %4429 = vrot.lane.b32.xlu0 %v4420, 96
    %v4430 = vpop.permute.xlu0 %4429
    %4431 = vrot.lane.b32.xlu0 %v4421, 96
    %v4432 = vpop.permute.xlu0 %4431
    %4433 = vrot.lane.b32.xlu0 %v4422, 96
    %v4434 = vpop.permute.xlu0 %4433
    %v4435 = vsel %vm217, %v4419, 0
    %v4437 = vsel %vm217, %v4420, 0
    %v4439 = vsel %vm217, %v4421, 0
    %v4441 = vsel %vm217, %v4422, 0
    %v4443 = vsel %vm217, %v4428, 0
    %v4445 = vsel %vm217, %v4430, 0
    %v4447 = vsel %vm217, %v4432, 0
    %v4449 = vsel %vm217, %v4434, 0
    %4451 = vmatprep.subr.mxu0 0.0
    %4452 = vmatpush1.xpose.msra.mxu0 %v4443
    %4453 = vmatprep.subr.mxu0 0.0
    %4454 = vmatpush1.xpose.msra.mxu0 %v4445
    %4455 = vmatprep.subr.mxu0 0.0
    %4456 = vmatpush1.xpose.msra.mxu0 %v4447
    %4457 = vmatprep.subr.mxu0 0.0
    %4458 = vmatpush1.xpose.msra.mxu0 %v4449
    %4459 = vmatprep.subr.mxu0 0.0
    %4460 = vmatpush1.xpose.msra.mxu0 0.0
    %4461 = vmatprep.subr.mxu0 0.0
    %4462 = vmatpush1.xpose.msra.mxu0 0.0
    %4463 = vmatprep.subr.mxu0 0.0
    %4464 = vmatpush1.xpose.msra.mxu0 0.0
    %4465 = vmatprep.subr.mxu0 0.0
    %4466 = vmatpush1.xpose.msra.mxu0 0.0
    %4467 = vmatprep.subr.mxu0 0.0
    %4468 = vmatpush1.xpose.msra.mxu0 0.0
    %4469 = vmatprep.subr.mxu0 0.0
    %4470 = vmatpush1.xpose.msra.mxu0 0.0
    %4471 = vmatprep.subr.mxu0 0.0
    %4472 = vmatpush1.xpose.msra.mxu0 0.0
    %4473 = vmatprep.subr.mxu0 0.0
    %4474 = vmatpush1.xpose.msra.mxu0 0.0
    %4475 = vmatprep.subr.mxu0 0.0
    %4476 = vmatpush1.xpose.msra.mxu0 0.0
    %4477 = vmatprep.subr.mxu0 0.0
    %4478 = vmatpush1.xpose.msra.mxu0 0.0
    %4479 = vmatprep.subr.mxu0 0.0
    %4480 = vmatpush1.xpose.msra.mxu0 0.0
    %4481 = vmatprep.subr.mxu0 0.0
    %4482 = vmatpush1.xpose.msra.mxu0 0.0
    %4483 = vmatprep.subr.mxu0 0.0
    %4484 = vmatpush1.xpose.msra.mxu0 0.0
    %4485 = vmatprep.subr.mxu0 0.0
    %4486 = vmatpush1.xpose.msra.mxu0 0.0
    %4487 = vmatprep.subr.mxu0 0.0
    %4488 = vmatpush1.xpose.msra.mxu0 0.0
    %4489 = vmatprep.subr.mxu0 0.0
    %4490 = vmatpush1.xpose.msra.mxu0 0.0
    %4491 = vmatprep.subr.mxu0 0.0
    %4492 = vmatpush1.xpose.msra.mxu0 0.0
    %4493 = vmatprep.subr.mxu0 0.0
    %4494 = vmatpush1.xpose.msra.mxu0 0.0
    %4495 = vmatprep.subr.mxu0 0.0
    %4496 = vmatpush1.xpose.msra.mxu0 0.0
    %4497 = vmatprep.subr.mxu0 0.0
    %4498 = vmatpush1.xpose.msra.mxu0 0.0
    %4499 = vmatprep.subr.mxu0 0.0
    %4500 = vmatpush1.xpose.msra.mxu0 0.0
    %4501 = vmatprep.subr.mxu0 0.0
    %4502 = vmatpush1.xpose.msra.mxu0 0.0
    %4503 = vmatprep.subr.mxu0 0.0
    %4504 = vmatpush1.xpose.msra.mxu0 0.0
    %4505 = vmatprep.subr.mxu0 0.0
    %4506 = vmatpush1.xpose.msra.mxu0 0.0
    %4507 = vmatprep.subr.mxu0 0.0
    %4508 = vmatpush1.xpose.msra.mxu0 0.0
    %4509 = vmatprep.subr.mxu0 0.0
    %4510 = vmatpush1.xpose.msra.mxu0 0.0
    %4511 = vmatprep.subr.mxu0 0.0
    %4512 = vmatpush1.xpose.msra.mxu0 0.0
    %4513 = vmatprep.subr.mxu0 0.0
    %4514 = vmatpush1.xpose.msra.mxu0 0.0
    %4515 = vmatprep.mubr.f32.mxu0 0.0
    %4516 = vmatmul.mubr.f32.gmra.mrb[0].mxu0 %v4435
    %v4517 = vpop.f32.mrb[0].mxu0
    %v4518 = vadd.f32 0.0, %v4517
    %v4519 = vpop.f32.mrb[0].mxu0
    %4520 = vmatprep.mubr.f32.mxu0 0.0
    %4521 = vmatmul.mubr.f32.gmra.mrb[0].mxu0 %v4437
    %v4522 = vpop.f32.mrb[0].mxu0
    %v4523 = vadd.f32 0.0, %v4522
    %v4524 = vpop.f32.mrb[0].mxu0
    %4525 = vmatprep.mubr.f32.mxu0 0.0
    %4526 = vmatmul.mubr.f32.gmra.mrb[0].mxu0 %v4439
    %v4527 = vpop.f32.mrb[0].mxu0
    %v4528 = vadd.f32 0.0, %v4527
    %v4529 = vpop.f32.mrb[0].mxu0
    %4530 = vmatprep.mubr.f32.mxu0 0.0
    %4531 = vmatmul.mubr.f32.gmra.mrb[0].mxu0 %v4441
    %v4532 = vpop.f32.mrb[0].mxu0
    %v4533 = vadd.f32 0.0, %v4532
    %v4534 = vpop.f32.mrb[0].mxu0
    %4535 = vdwg.mxu0
    %v4536 = vmul.f32 %v4518, 0.35355338
    %v4537 = vmul.f32 %v4523, 0.35355338
    %v4538 = vmul.f32 %v4528, 0.35355338
    %v4539 = vmul.f32 %v4533, 0.35355338
    %v4540 = vsel %vm87, %v4536, -1e+30
    %v4541 = vsel %vm88, %v4537, -1e+30
    %v4542 = vsel %vm89, %v4538, -1e+30
    %v4543 = vsel %vm90, %v4539, -1e+30
    %v4544 = vsel %vm198, %v4540, -inf
    %4545 = vmax.xlane.f32.xlu0 %v4544
    %v4546 = vpop.xlane.xlu0 %4545
    %v4547 = vsel %vm198, %v4541, -inf
    %4548 = vmax.xlane.f32.xlu0 %v4547
    %v4549 = vpop.xlane.xlu0 %4548
    %v4550 = vsel %vm198, %v4542, -inf
    %4551 = vmax.xlane.f32.xlu0 %v4550
    %v4552 = vpop.xlane.xlu0 %4551
    %v4553 = vsel %vm198, %v4543, -inf
    %4554 = vmax.xlane.f32.xlu0 %v4553
    %v4555 = vpop.xlane.xlu0 %4554
    %v4556 = vsub.f32 %v4540, %v4546
    %v4557 = vsub.f32 %v4541, %v4549
    %v4558 = vsub.f32 %v4542, %v4552
    %v4559 = vsub.f32 %v4543, %v4555
    %v4560 = vmul.f32 %v4556, 1.442695
    %v4561 = vpow.pop %v4560
    %v4562 = vmul.f32 %v4557, 1.442695
    %v4563 = vpow.pop %v4562
    %v4564 = vmul.f32 %v4558, 1.442695
    %v4565 = vpow.pop %v4564
    %v4566 = vmul.f32 %v4559, 1.442695
    %v4567 = vpow.pop %v4566
    %v4568 = vsel %vm198, %v4561, 0.0
    %4569 = vadd.xlane.f32.xlu0 %v4568
    %v4570 = vpop.xlane.xlu0 %4569
    %v4571 = vsel %vm198, %v4563, 0.0
    %4572 = vadd.xlane.f32.xlu0 %v4571
    %v4573 = vpop.xlane.xlu0 %4572
    %v4574 = vsel %vm198, %v4565, 0.0
    %4575 = vadd.xlane.f32.xlu0 %v4574
    %v4576 = vpop.xlane.xlu0 %4575
    %v4577 = vsel %vm198, %v4567, 0.0
    %4578 = vadd.xlane.f32.xlu0 %v4577
    %v4579 = vpop.xlane.xlu0 %4578
    %v4580 = vrcp.pop %v4570
    %v4581 = vmul.f32 %v4561, %v4580
    %v4582 = vrcp.pop %v4573
    %v4583 = vmul.f32 %v4563, %v4582
    %v4584 = vrcp.pop %v4576
    %v4585 = vmul.f32 %v4565, %v4584
    %v4586 = vrcp.pop %v4579
    %v4587 = vmul.f32 %v4567, %v4586
    %4588 = vrot.lane.b32.xlu0 %v4419, 64
    %v4589 = vpop.permute.xlu0 %4588
    %4590 = vrot.lane.b32.xlu0 %v4420, 64
    %v4591 = vpop.permute.xlu0 %4590
    %4592 = vrot.lane.b32.xlu0 %v4421, 64
    %v4593 = vpop.permute.xlu0 %4592
    %4594 = vrot.lane.b32.xlu0 %v4422, 64
    %v4595 = vpop.permute.xlu0 %4594
    %v4601 = vsel %vm198, %v4581, 0
    %v4604 = vsel %vm198, %v4583, 0
    %v4607 = vsel %vm198, %v4585, 0
    %v4610 = vsel %vm198, %v4587, 0
    %4612 = vmatprep.subr.mxu0 0.0
    %4613 = vmatpush1.msra.mxu0 %v4589
    %4614 = vmatprep.subr.mxu0 0.0
    %4615 = vmatpush1.msra.mxu0 %v4591
    %4616 = vmatprep.subr.mxu0 0.0
    %4617 = vmatpush1.msra.mxu0 %v4593
    %4618 = vmatprep.subr.mxu0 0.0
    %4619 = vmatpush1.msra.mxu0 %v4595
    %4620 = vmatprep.subr.mxu0 0.0
    %4621 = vmatpush1.msra.mxu0 0.0
    %4622 = vmatprep.subr.mxu0 0.0
    %4623 = vmatpush1.msra.mxu0 0.0
    %4624 = vmatprep.subr.mxu0 0.0
    %4625 = vmatpush1.msra.mxu0 0.0
    %4626 = vmatprep.subr.mxu0 0.0
    %4627 = vmatpush1.msra.mxu0 0.0
    %4628 = vmatprep.subr.mxu0 0.0
    %4629 = vmatpush1.msra.mxu0 0.0
    %4630 = vmatprep.subr.mxu0 0.0
    %4631 = vmatpush1.msra.mxu0 0.0
    %4632 = vmatprep.subr.mxu0 0.0
    %4633 = vmatpush1.msra.mxu0 0.0
    %4634 = vmatprep.subr.mxu0 0.0
    %4635 = vmatpush1.msra.mxu0 0.0
    %4636 = vmatprep.subr.mxu0 0.0
    %4637 = vmatpush1.msra.mxu0 0.0
    %4638 = vmatprep.subr.mxu0 0.0
    %4639 = vmatpush1.msra.mxu0 0.0
    %4640 = vmatprep.subr.mxu0 0.0
    %4641 = vmatpush1.msra.mxu0 0.0
    %4642 = vmatprep.subr.mxu0 0.0
    %4643 = vmatpush1.msra.mxu0 0.0
    %4644 = vmatprep.subr.mxu0 0.0
    %4645 = vmatpush1.msra.mxu0 0.0
    %4646 = vmatprep.subr.mxu0 0.0
    %4647 = vmatpush1.msra.mxu0 0.0
    %4648 = vmatprep.subr.mxu0 0.0
    %4649 = vmatpush1.msra.mxu0 0.0
    %4650 = vmatprep.subr.mxu0 0.0
    %4651 = vmatpush1.msra.mxu0 0.0
    %4652 = vmatprep.subr.mxu0 0.0
    %4653 = vmatpush1.msra.mxu0 0.0
    %4654 = vmatprep.subr.mxu0 0.0
    %4655 = vmatpush1.msra.mxu0 0.0
    %4656 = vmatprep.subr.mxu0 0.0
    %4657 = vmatpush1.msra.mxu0 0.0
    %4658 = vmatprep.subr.mxu0 0.0
    %4659 = vmatpush1.msra.mxu0 0.0
    %4660 = vmatprep.subr.mxu0 0.0
    %4661 = vmatpush1.msra.mxu0 0.0
    %4662 = vmatprep.subr.mxu0 0.0
    %4663 = vmatpush1.msra.mxu0 0.0
    %4664 = vmatprep.subr.mxu0 0.0
    %4665 = vmatpush1.msra.mxu0 0.0
    %4666 = vmatprep.subr.mxu0 0.0
    %4667 = vmatpush1.msra.mxu0 0.0
    %4668 = vmatprep.subr.mxu0 0.0
    %4669 = vmatpush1.msra.mxu0 0.0
    %4670 = vmatprep.subr.mxu0 0.0
    %4671 = vmatpush1.msra.mxu0 0.0
    %4672 = vmatprep.subr.mxu0 0.0
    %4673 = vmatpush1.msra.mxu0 0.0
    %4674 = vmatprep.subr.mxu0 0.0
    %4675 = vmatpush1.msra.mxu0 0.0
    %4676 = vmatprep.mubr.f32.mxu0 0.0
    %4677 = vmatmul.mubr.f32.gmra.mrb[0].mxu0 %v4601
    %v4678 = vpop.f32.mrb[0].mxu0
    %v4679 = vadd.f32 0.0, %v4678
    %v4680 = vpop.f32.mrb[0].mxu0
    %4681 = vmatprep.mubr.f32.mxu0 0.0
    %4682 = vmatmul.mubr.f32.gmra.mrb[0].mxu0 %v4604
    %v4683 = vpop.f32.mrb[0].mxu0
    %v4684 = vadd.f32 0.0, %v4683
    %v4685 = vpop.f32.mrb[0].mxu0
    %4686 = vmatprep.mubr.f32.mxu0 0.0
    %4687 = vmatmul.mubr.f32.gmra.mrb[0].mxu0 %v4607
    %v4688 = vpop.f32.mrb[0].mxu0
    %v4689 = vadd.f32 0.0, %v4688
    %v4690 = vpop.f32.mrb[0].mxu0
    %4691 = vmatprep.mubr.f32.mxu0 0.0
    %4692 = vmatmul.mubr.f32.gmra.mrb[0].mxu0 %v4610
    %v4693 = vpop.f32.mrb[0].mxu0
    %v4694 = vadd.f32 0.0, %v4693
    %v4695 = vpop.f32.mrb[0].mxu0
    %4696 = vdwg.mxu0
    %4697 = vst.msk [vmem:[#allocation3] sm:$0xff] %vm217, %v4679
    %4698 = vst.msk [vmem:[#allocation3 + $0x8] sm:$0xff] %vm217, %v4684
    %4699 = vst.msk [vmem:[#allocation3 + $0x10] sm:$0xff] %vm217, %v4689
    %4700 = vst.msk [vmem:[#allocation3 + $0x18] sm:$0xff] %vm217, %v4694
    %v4701 = vld [vmem:[#allocation4] sm:$0xff]
    %v4702 = vld [vmem:[#allocation4 + $0x8] sm:$0xff]
    %v4703 = vld [vmem:[#allocation4 + $0x10] sm:$0xff]
    %v4704 = vld [vmem:[#allocation4 + $0x18] sm:$0xff]
    %4709 = vrot.lane.b32.xlu0 %v4701, 120
    %v4710 = vpop.permute.xlu0 %4709
    %4711 = vrot.lane.b32.xlu0 %v4702, 120
    %v4712 = vpop.permute.xlu0 %4711
    %4713 = vrot.lane.b32.xlu0 %v4703, 120
    %v4714 = vpop.permute.xlu0 %4713
    %4715 = vrot.lane.b32.xlu0 %v4704, 120
    %v4716 = vpop.permute.xlu0 %4715
    %4717 = vrot.lane.b32.xlu0 %v4701, 88
    %v4718 = vpop.permute.xlu0 %4717
    %4719 = vrot.lane.b32.xlu0 %v4702, 88
    %v4720 = vpop.permute.xlu0 %4719
    %4721 = vrot.lane.b32.xlu0 %v4703, 88
    %v4722 = vpop.permute.xlu0 %4721
    %4723 = vrot.lane.b32.xlu0 %v4704, 88
    %v4724 = vpop.permute.xlu0 %4723
    %v4725 = vsel %vm217, %v4710, 0
    %v4727 = vsel %vm217, %v4712, 0
    %v4729 = vsel %vm217, %v4714, 0
    %v4731 = vsel %vm217, %v4716, 0
    %v4733 = vsel %vm217, %v4718, 0
    %v4735 = vsel %vm217, %v4720, 0
    %v4737 = vsel %vm217, %v4722, 0
    %v4739 = vsel %vm217, %v4724, 0
    %4741 = vmatprep.subr.mxu0 0.0
    %4742 = vmatpush1.xpose.msra.mxu0 %v4733
    %4743 = vmatprep.subr.mxu0 0.0
    %4744 = vmatpush1.xpose.msra.mxu0 %v4735
    %4745 = vmatprep.subr.mxu0 0.0
    %4746 = vmatpush1.xpose.msra.mxu0 %v4737
    %4747 = vmatprep.subr.mxu0 0.0
    %4748 = vmatpush1.xpose.msra.mxu0 %v4739
    %4749 = vmatprep.subr.mxu0 0.0
    %4750 = vmatpush1.xpose.msra.mxu0 0.0
    %4751 = vmatprep.subr.mxu0 0.0
    %4752 = vmatpush1.xpose.msra.mxu0 0.0
    %4753 = vmatprep.subr.mxu0 0.0
    %4754 = vmatpush1.xpose.msra.mxu0 0.0
    %4755 = vmatprep.subr.mxu0 0.0
    %4756 = vmatpush1.xpose.msra.mxu0 0.0
    %4757 = vmatprep.subr.mxu0 0.0
    %4758 = vmatpush1.xpose.msra.mxu0 0.0
    %4759 = vmatprep.subr.mxu0 0.0
    %4760 = vmatpush1.xpose.msra.mxu0 0.0
    %4761 = vmatprep.subr.mxu0 0.0
    %4762 = vmatpush1.xpose.msra.mxu0 0.0
    %4763 = vmatprep.subr.mxu0 0.0
    %4764 = vmatpush1.xpose.msra.mxu0 0.0
    %4765 = vmatprep.subr.mxu0 0.0
    %4766 = vmatpush1.xpose.msra.mxu0 0.0
    %4767 = vmatprep.subr.mxu0 0.0
    %4768 = vmatpush1.xpose.msra.mxu0 0.0
    %4769 = vmatprep.subr.mxu0 0.0
    %4770 = vmatpush1.xpose.msra.mxu0 0.0
    %4771 = vmatprep.subr.mxu0 0.0
    %4772 = vmatpush1.xpose.msra.mxu0 0.0
    %4773 = vmatprep.subr.mxu0 0.0
    %4774 = vmatpush1.xpose.msra.mxu0 0.0
    %4775 = vmatprep.subr.mxu0 0.0
    %4776 = vmatpush1.xpose.msra.mxu0 0.0
    %4777 = vmatprep.subr.mxu0 0.0
    %4778 = vmatpush1.xpose.msra.mxu0 0.0
    %4779 = vmatprep.subr.mxu0 0.0
    %4780 = vmatpush1.xpose.msra.mxu0 0.0
    %4781 = vmatprep.subr.mxu0 0.0
    %4782 = vmatpush1.xpose.msra.mxu0 0.0
    %4783 = vmatprep.subr.mxu0 0.0
    %4784 = vmatpush1.xpose.msra.mxu0 0.0
    %4785 = vmatprep.subr.mxu0 0.0
    %4786 = vmatpush1.xpose.msra.mxu0 0.0
    %4787 = vmatprep.subr.mxu0 0.0
    %4788 = vmatpush1.xpose.msra.mxu0 0.0
    %4789 = vmatprep.subr.mxu0 0.0
    %4790 = vmatpush1.xpose.msra.mxu0 0.0
    %4791 = vmatprep.subr.mxu0 0.0
    %4792 = vmatpush1.xpose.msra.mxu0 0.0
    %4793 = vmatprep.subr.mxu0 0.0
    %4794 = vmatpush1.xpose.msra.mxu0 0.0
    %4795 = vmatprep.subr.mxu0 0.0
    %4796 = vmatpush1.xpose.msra.mxu0 0.0
    %4797 = vmatprep.subr.mxu0 0.0
    %4798 = vmatpush1.xpose.msra.mxu0 0.0
    %4799 = vmatprep.subr.mxu0 0.0
    %4800 = vmatpush1.xpose.msra.mxu0 0.0
    %4801 = vmatprep.subr.mxu0 0.0
    %4802 = vmatpush1.xpose.msra.mxu0 0.0
    %4803 = vmatprep.subr.mxu0 0.0
    %4804 = vmatpush1.xpose.msra.mxu0 0.0
    %4805 = vmatprep.mubr.f32.mxu0 0.0
    %4806 = vmatmul.mubr.f32.gmra.mrb[0].mxu0 %v4725
    %v4807 = vpop.f32.mrb[0].mxu0
    %v4808 = vadd.f32 0.0, %v4807
    %v4809 = vpop.f32.mrb[0].mxu0
    %4810 = vmatprep.mubr.f32.mxu0 0.0
    %4811 = vmatmul.mubr.f32.gmra.mrb[0].mxu0 %v4727
    %v4812 = vpop.f32.mrb[0].mxu0
    %v4813 = vadd.f32 0.0, %v4812
    %v4814 = vpop.f32.mrb[0].mxu0
    %4815 = vmatprep.mubr.f32.mxu0 0.0
    %4816 = vmatmul.mubr.f32.gmra.mrb[0].mxu0 %v4729
    %v4817 = vpop.f32.mrb[0].mxu0
    %v4818 = vadd.f32 0.0, %v4817
    %v4819 = vpop.f32.mrb[0].mxu0
    %4820 = vmatprep.mubr.f32.mxu0 0.0
    %4821 = vmatmul.mubr.f32.gmra.mrb[0].mxu0 %v4731
    %v4822 = vpop.f32.mrb[0].mxu0
    %v4823 = vadd.f32 0.0, %v4822
    %v4824 = vpop.f32.mrb[0].mxu0
    %4825 = vdwg.mxu0
    %v4826 = vmul.f32 %v4808, 0.35355338
    %v4827 = vmul.f32 %v4813, 0.35355338
    %v4828 = vmul.f32 %v4818, 0.35355338
    %v4829 = vmul.f32 %v4823, 0.35355338
    %v4830 = vsel %vm87, %v4826, -1e+30
    %v4831 = vsel %vm88, %v4827, -1e+30
    %v4832 = vsel %vm89, %v4828, -1e+30
    %v4833 = vsel %vm90, %v4829, -1e+30
    %v4834 = vsel %vm198, %v4830, -inf
    %4835 = vmax.xlane.f32.xlu0 %v4834
    %v4836 = vpop.xlane.xlu0 %4835
    %v4837 = vsel %vm198, %v4831, -inf
    %4838 = vmax.xlane.f32.xlu0 %v4837
    %v4839 = vpop.xlane.xlu0 %4838
    %v4840 = vsel %vm198, %v4832, -inf
    %4841 = vmax.xlane.f32.xlu0 %v4840
    %v4842 = vpop.xlane.xlu0 %4841
    %v4843 = vsel %vm198, %v4833, -inf
    %4844 = vmax.xlane.f32.xlu0 %v4843
    %v4845 = vpop.xlane.xlu0 %4844
    %v4846 = vsub.f32 %v4830, %v4836
    %v4847 = vsub.f32 %v4831, %v4839
    %v4848 = vsub.f32 %v4832, %v4842
    %v4849 = vsub.f32 %v4833, %v4845
    %v4850 = vmul.f32 %v4846, 1.442695
    %v4851 = vpow.pop %v4850
    %v4852 = vmul.f32 %v4847, 1.442695
    %v4853 = vpow.pop %v4852
    %v4854 = vmul.f32 %v4848, 1.442695
    %v4855 = vpow.pop %v4854
    %v4856 = vmul.f32 %v4849, 1.442695
    %v4857 = vpow.pop %v4856
    %v4858 = vsel %vm198, %v4851, 0.0
    %4859 = vadd.xlane.f32.xlu0 %v4858
    %v4860 = vpop.xlane.xlu0 %4859
    %v4861 = vsel %vm198, %v4853, 0.0
    %4862 = vadd.xlane.f32.xlu0 %v4861
    %v4863 = vpop.xlane.xlu0 %4862
    %v4864 = vsel %vm198, %v4855, 0.0
    %4865 = vadd.xlane.f32.xlu0 %v4864
    %v4866 = vpop.xlane.xlu0 %4865
    %v4867 = vsel %vm198, %v4857, 0.0
    %4868 = vadd.xlane.f32.xlu0 %v4867
    %v4869 = vpop.xlane.xlu0 %4868
    %v4870 = vrcp.pop %v4860
    %v4871 = vmul.f32 %v4851, %v4870
    %v4872 = vrcp.pop %v4863
    %v4873 = vmul.f32 %v4853, %v4872
    %v4874 = vrcp.pop %v4866
    %v4875 = vmul.f32 %v4855, %v4874
    %v4876 = vrcp.pop %v4869
    %v4877 = vmul.f32 %v4857, %v4876
    %4878 = vrot.lane.b32.xlu0 %v4701, 56
    %v4879 = vpop.permute.xlu0 %4878
    %4880 = vrot.lane.b32.xlu0 %v4702, 56
    %v4881 = vpop.permute.xlu0 %4880
    %4882 = vrot.lane.b32.xlu0 %v4703, 56
    %v4883 = vpop.permute.xlu0 %4882
    %4884 = vrot.lane.b32.xlu0 %v4704, 56
    %v4885 = vpop.permute.xlu0 %4884
    %v4891 = vsel %vm198, %v4871, 0
    %v4894 = vsel %vm198, %v4873, 0
    %v4897 = vsel %vm198, %v4875, 0
    %v4900 = vsel %vm198, %v4877, 0
    %4902 = vmatprep.subr.mxu0 0.0
    %4903 = vmatpush1.msra.mxu0 %v4879
    %4904 = vmatprep.subr.mxu0 0.0
    %4905 = vmatpush1.msra.mxu0 %v4881
    %4906 = vmatprep.subr.mxu0 0.0
    %4907 = vmatpush1.msra.mxu0 %v4883
    %4908 = vmatprep.subr.mxu0 0.0
    %4909 = vmatpush1.msra.mxu0 %v4885
    %4910 = vmatprep.subr.mxu0 0.0
    %4911 = vmatpush1.msra.mxu0 0.0
    %4912 = vmatprep.subr.mxu0 0.0
    %4913 = vmatpush1.msra.mxu0 0.0
    %4914 = vmatprep.subr.mxu0 0.0
    %4915 = vmatpush1.msra.mxu0 0.0
    %4916 = vmatprep.subr.mxu0 0.0
    %4917 = vmatpush1.msra.mxu0 0.0
    %4918 = vmatprep.subr.mxu0 0.0
    %4919 = vmatpush1.msra.mxu0 0.0
    %4920 = vmatprep.subr.mxu0 0.0
    %4921 = vmatpush1.msra.mxu0 0.0
    %4922 = vmatprep.subr.mxu0 0.0
    %4923 = vmatpush1.msra.mxu0 0.0
    %4924 = vmatprep.subr.mxu0 0.0
    %4925 = vmatpush1.msra.mxu0 0.0
    %4926 = vmatprep.subr.mxu0 0.0
    %4927 = vmatpush1.msra.mxu0 0.0
    %4928 = vmatprep.subr.mxu0 0.0
    %4929 = vmatpush1.msra.mxu0 0.0
    %4930 = vmatprep.subr.mxu0 0.0
    %4931 = vmatpush1.msra.mxu0 0.0
    %4932 = vmatprep.subr.mxu0 0.0
    %4933 = vmatpush1.msra.mxu0 0.0
    %4934 = vmatprep.subr.mxu0 0.0
    %4935 = vmatpush1.msra.mxu0 0.0
    %4936 = vmatprep.subr.mxu0 0.0
    %4937 = vmatpush1.msra.mxu0 0.0
    %4938 = vmatprep.subr.mxu0 0.0
    %4939 = vmatpush1.msra.mxu0 0.0
    %4940 = vmatprep.subr.mxu0 0.0
    %4941 = vmatpush1.msra.mxu0 0.0
    %4942 = vmatprep.subr.mxu0 0.0
    %4943 = vmatpush1.msra.mxu0 0.0
    %4944 = vmatprep.subr.mxu0 0.0
    %4945 = vmatpush1.msra.mxu0 0.0
    %4946 = vmatprep.subr.mxu0 0.0
    %4947 = vmatpush1.msra.mxu0 0.0
    %4948 = vmatprep.subr.mxu0 0.0
    %4949 = vmatpush1.msra.mxu0 0.0
    %4950 = vmatprep.subr.mxu0 0.0
    %4951 = vmatpush1.msra.mxu0 0.0
    %4952 = vmatprep.subr.mxu0 0.0
    %4953 = vmatpush1.msra.mxu0 0.0
    %4954 = vmatprep.subr.mxu0 0.0
    %4955 = vmatpush1.msra.mxu0 0.0
    %4956 = vmatprep.subr.mxu0 0.0
    %4957 = vmatpush1.msra.mxu0 0.0
    %4958 = vmatprep.subr.mxu0 0.0
    %4959 = vmatpush1.msra.mxu0 0.0
    %4960 = vmatprep.subr.mxu0 0.0
    %4961 = vmatpush1.msra.mxu0 0.0
    %4962 = vmatprep.subr.mxu0 0.0
    %4963 = vmatpush1.msra.mxu0 0.0
    %4964 = vmatprep.subr.mxu0 0.0
    %4965 = vmatpush1.msra.mxu0 0.0
    %4966 = vmatprep.mubr.f32.mxu0 0.0
    %4967 = vmatmul.mubr.f32.gmra.mrb[0].mxu0 %v4891
    %v4968 = vpop.f32.mrb[0].mxu0
    %v4969 = vadd.f32 0.0, %v4968
    %v4970 = vpop.f32.mrb[0].mxu0
    %4971 = vmatprep.mubr.f32.mxu0 0.0
    %4972 = vmatmul.mubr.f32.gmra.mrb[0].mxu0 %v4894
    %v4973 = vpop.f32.mrb[0].mxu0
    %v4974 = vadd.f32 0.0, %v4973
    %v4975 = vpop.f32.mrb[0].mxu0
    %4976 = vmatprep.mubr.f32.mxu0 0.0
    %4977 = vmatmul.mubr.f32.gmra.mrb[0].mxu0 %v4897
    %v4978 = vpop.f32.mrb[0].mxu0
    %v4979 = vadd.f32 0.0, %v4978
    %v4980 = vpop.f32.mrb[0].mxu0
    %4981 = vmatprep.mubr.f32.mxu0 0.0
    %4982 = vmatmul.mubr.f32.gmra.mrb[0].mxu0 %v4900
    %v4983 = vpop.f32.mrb[0].mxu0
    %v4984 = vadd.f32 0.0, %v4983
    %v4985 = vpop.f32.mrb[0].mxu0
    %4986 = vdwg.mxu0
    %4991 = vrot.lane.b32.xlu0 %v4969, 8
    %v4992 = vpop.permute.xlu0 %4991
    %4993 = vrot.lane.b32.xlu0 %v4974, 8
    %v4994 = vpop.permute.xlu0 %4993
    %4995 = vrot.lane.b32.xlu0 %v4979, 8
    %v4996 = vpop.permute.xlu0 %4995
    %4997 = vrot.lane.b32.xlu0 %v4984, 8
    %v4998 = vpop.permute.xlu0 %4997
    %5003 = vst.msk [vmem:[#allocation3] sm:$0xff] %vm808, %v4992
    %5004 = vst.msk [vmem:[#allocation3 + $0x8] sm:$0xff] %vm808, %v4994
    %5005 = vst.msk [vmem:[#allocation3 + $0x10] sm:$0xff] %vm808, %v4996
    %5006 = vst.msk [vmem:[#allocation3 + $0x18] sm:$0xff] %vm808, %v4998
    %v5007 = vld [vmem:[#allocation4] sm:$0xff]
    %v5008 = vld [vmem:[#allocation4 + $0x8] sm:$0xff]
    %v5009 = vld [vmem:[#allocation4 + $0x10] sm:$0xff]
    %v5010 = vld [vmem:[#allocation4 + $0x18] sm:$0xff]
    %5015 = vrot.lane.b32.xlu0 %v5007, 112
    %v5016 = vpop.permute.xlu0 %5015
    %5017 = vrot.lane.b32.xlu0 %v5008, 112
    %v5018 = vpop.permute.xlu0 %5017
    %5019 = vrot.lane.b32.xlu0 %v5009, 112
    %v5020 = vpop.permute.xlu0 %5019
    %5021 = vrot.lane.b32.xlu0 %v5010, 112
    %v5022 = vpop.permute.xlu0 %5021
    %5023 = vrot.lane.b32.xlu0 %v5007, 80
    %v5024 = vpop.permute.xlu0 %5023
    %5025 = vrot.lane.b32.xlu0 %v5008, 80
    %v5026 = vpop.permute.xlu0 %5025
    %5027 = vrot.lane.b32.xlu0 %v5009, 80
    %v5028 = vpop.permute.xlu0 %5027
    %5029 = vrot.lane.b32.xlu0 %v5010, 80
    %v5030 = vpop.permute.xlu0 %5029
    %v5031 = vsel %vm217, %v5016, 0
    %v5033 = vsel %vm217, %v5018, 0
    %v5035 = vsel %vm217, %v5020, 0
    %v5037 = vsel %vm217, %v5022, 0
    %v5039 = vsel %vm217, %v5024, 0
    %v5041 = vsel %vm217, %v5026, 0
    %v5043 = vsel %vm217, %v5028, 0
    %v5045 = vsel %vm217, %v5030, 0
    %5047 = vmatprep.subr.mxu0 0.0
    %5048 = vmatpush1.xpose.msra.mxu0 %v5039
    %5049 = vmatprep.subr.mxu0 0.0
    %5050 = vmatpush1.xpose.msra.mxu0 %v5041
    %5051 = vmatprep.subr.mxu0 0.0
    %5052 = vmatpush1.xpose.msra.mxu0 %v5043
    %5053 = vmatprep.subr.mxu0 0.0
    %5054 = vmatpush1.xpose.msra.mxu0 %v5045
    %5055 = vmatprep.subr.mxu0 0.0
    %5056 = vmatpush1.xpose.msra.mxu0 0.0
    %5057 = vmatprep.subr.mxu0 0.0
    %5058 = vmatpush1.xpose.msra.mxu0 0.0
    %5059 = vmatprep.subr.mxu0 0.0
    %5060 = vmatpush1.xpose.msra.mxu0 0.0
    %5061 = vmatprep.subr.mxu0 0.0
    %5062 = vmatpush1.xpose.msra.mxu0 0.0
    %5063 = vmatprep.subr.mxu0 0.0
    %5064 = vmatpush1.xpose.msra.mxu0 0.0
    %5065 = vmatprep.subr.mxu0 0.0
    %5066 = vmatpush1.xpose.msra.mxu0 0.0
    %5067 = vmatprep.subr.mxu0 0.0
    %5068 = vmatpush1.xpose.msra.mxu0 0.0
    %5069 = vmatprep.subr.mxu0 0.0
    %5070 = vmatpush1.xpose.msra.mxu0 0.0
    %5071 = vmatprep.subr.mxu0 0.0
    %5072 = vmatpush1.xpose.msra.mxu0 0.0
    %5073 = vmatprep.subr.mxu0 0.0
    %5074 = vmatpush1.xpose.msra.mxu0 0.0
    %5075 = vmatprep.subr.mxu0 0.0
    %5076 = vmatpush1.xpose.msra.mxu0 0.0
    %5077 = vmatprep.subr.mxu0 0.0
    %5078 = vmatpush1.xpose.msra.mxu0 0.0
    %5079 = vmatprep.subr.mxu0 0.0
    %5080 = vmatpush1.xpose.msra.mxu0 0.0
    %5081 = vmatprep.subr.mxu0 0.0
    %5082 = vmatpush1.xpose.msra.mxu0 0.0
    %5083 = vmatprep.subr.mxu0 0.0
    %5084 = vmatpush1.xpose.msra.mxu0 0.0
    %5085 = vmatprep.subr.mxu0 0.0
    %5086 = vmatpush1.xpose.msra.mxu0 0.0
    %5087 = vmatprep.subr.mxu0 0.0
    %5088 = vmatpush1.xpose.msra.mxu0 0.0
    %5089 = vmatprep.subr.mxu0 0.0
    %5090 = vmatpush1.xpose.msra.mxu0 0.0
    %5091 = vmatprep.subr.mxu0 0.0
    %5092 = vmatpush1.xpose.msra.mxu0 0.0
    %5093 = vmatprep.subr.mxu0 0.0
    %5094 = vmatpush1.xpose.msra.mxu0 0.0
    %5095 = vmatprep.subr.mxu0 0.0
    %5096 = vmatpush1.xpose.msra.mxu0 0.0
    %5097 = vmatprep.subr.mxu0 0.0
    %5098 = vmatpush1.xpose.msra.mxu0 0.0
    %5099 = vmatprep.subr.mxu0 0.0
    %5100 = vmatpush1.xpose.msra.mxu0 0.0
    %5101 = vmatprep.subr.mxu0 0.0
    %5102 = vmatpush1.xpose.msra.mxu0 0.0
    %5103 = vmatprep.subr.mxu0 0.0
    %5104 = vmatpush1.xpose.msra.mxu0 0.0
    %5105 = vmatprep.subr.mxu0 0.0
    %5106 = vmatpush1.xpose.msra.mxu0 0.0
    %5107 = vmatprep.subr.mxu0 0.0
    %5108 = vmatpush1.xpose.msra.mxu0 0.0
    %5109 = vmatprep.subr.mxu0 0.0
    %5110 = vmatpush1.xpose.msra.mxu0 0.0
    %5111 = vmatprep.mubr.f32.mxu0 0.0
    %5112 = vmatmul.mubr.f32.gmra.mrb[0].mxu0 %v5031
    %v5113 = vpop.f32.mrb[0].mxu0
    %v5114 = vadd.f32 0.0, %v5113
    %v5115 = vpop.f32.mrb[0].mxu0
    %5116 = vmatprep.mubr.f32.mxu0 0.0
    %5117 = vmatmul.mubr.f32.gmra.mrb[0].mxu0 %v5033
    %v5118 = vpop.f32.mrb[0].mxu0
    %v5119 = vadd.f32 0.0, %v5118
    %v5120 = vpop.f32.mrb[0].mxu0
    %5121 = vmatprep.mubr.f32.mxu0 0.0
    %5122 = vmatmul.mubr.f32.gmra.mrb[0].mxu0 %v5035
    %v5123 = vpop.f32.mrb[0].mxu0
    %v5124 = vadd.f32 0.0, %v5123
    %v5125 = vpop.f32.mrb[0].mxu0
    %5126 = vmatprep.mubr.f32.mxu0 0.0
    %5127 = vmatmul.mubr.f32.gmra.mrb[0].mxu0 %v5037
    %v5128 = vpop.f32.mrb[0].mxu0
    %v5129 = vadd.f32 0.0, %v5128
    %v5130 = vpop.f32.mrb[0].mxu0
    %5131 = vdwg.mxu0
    %v5132 = vmul.f32 %v5114, 0.35355338
    %v5133 = vmul.f32 %v5119, 0.35355338
    %v5134 = vmul.f32 %v5124, 0.35355338
    %v5135 = vmul.f32 %v5129, 0.35355338
    %v5136 = vsel %vm87, %v5132, -1e+30
    %v5137 = vsel %vm88, %v5133, -1e+30
    %v5138 = vsel %vm89, %v5134, -1e+30
    %v5139 = vsel %vm90, %v5135, -1e+30
    %v5140 = vsel %vm198, %v5136, -inf
    %5141 = vmax.xlane.f32.xlu0 %v5140
    %v5142 = vpop.xlane.xlu0 %5141
    %v5143 = vsel %vm198, %v5137, -inf
    %5144 = vmax.xlane.f32.xlu0 %v5143
    %v5145 = vpop.xlane.xlu0 %5144
    %v5146 = vsel %vm198, %v5138, -inf
    %5147 = vmax.xlane.f32.xlu0 %v5146
    %v5148 = vpop.xlane.xlu0 %5147
    %v5149 = vsel %vm198, %v5139, -inf
    %5150 = vmax.xlane.f32.xlu0 %v5149
    %v5151 = vpop.xlane.xlu0 %5150
    %v5152 = vsub.f32 %v5136, %v5142
    %v5153 = vsub.f32 %v5137, %v5145
    %v5154 = vsub.f32 %v5138, %v5148
    %v5155 = vsub.f32 %v5139, %v5151
    %v5156 = vmul.f32 %v5152, 1.442695
    %v5157 = vpow.pop %v5156
    %v5158 = vmul.f32 %v5153, 1.442695
    %v5159 = vpow.pop %v5158
    %v5160 = vmul.f32 %v5154, 1.442695
    %v5161 = vpow.pop %v5160
    %v5162 = vmul.f32 %v5155, 1.442695
    %v5163 = vpow.pop %v5162
    %v5164 = vsel %vm198, %v5157, 0.0
    %5165 = vadd.xlane.f32.xlu0 %v5164
    %v5166 = vpop.xlane.xlu0 %5165
    %v5167 = vsel %vm198, %v5159, 0.0
    %5168 = vadd.xlane.f32.xlu0 %v5167
    %v5169 = vpop.xlane.xlu0 %5168
    %v5170 = vsel %vm198, %v5161, 0.0
    %5171 = vadd.xlane.f32.xlu0 %v5170
    %v5172 = vpop.xlane.xlu0 %5171
    %v5173 = vsel %vm198, %v5163, 0.0
    %5174 = vadd.xlane.f32.xlu0 %v5173
    %v5175 = vpop.xlane.xlu0 %5174
    %v5176 = vrcp.pop %v5166
    %v5177 = vmul.f32 %v5157, %v5176
    %v5178 = vrcp.pop %v5169
    %v5179 = vmul.f32 %v5159, %v5178
    %v5180 = vrcp.pop %v5172
    %v5181 = vmul.f32 %v5161, %v5180
    %v5182 = vrcp.pop %v5175
    %v5183 = vmul.f32 %v5163, %v5182
    %5184 = vrot.lane.b32.xlu0 %v5007, 48
    %v5185 = vpop.permute.xlu0 %5184
    %5186 = vrot.lane.b32.xlu0 %v5008, 48
    %v5187 = vpop.permute.xlu0 %5186
    %5188 = vrot.lane.b32.xlu0 %v5009, 48
    %v5189 = vpop.permute.xlu0 %5188
    %5190 = vrot.lane.b32.xlu0 %v5010, 48
    %v5191 = vpop.permute.xlu0 %5190
    %v5197 = vsel %vm198, %v5177, 0
    %v5200 = vsel %vm198, %v5179, 0
    %v5203 = vsel %vm198, %v5181, 0
    %v5206 = vsel %vm198, %v5183, 0
    %5208 = vmatprep.subr.mxu0 0.0
    %5209 = vmatpush1.msra.mxu0 %v5185
    %5210 = vmatprep.subr.mxu0 0.0
    %5211 = vmatpush1.msra.mxu0 %v5187
    %5212 = vmatprep.subr.mxu0 0.0
    %5213 = vmatpush1.msra.mxu0 %v5189
    %5214 = vmatprep.subr.mxu0 0.0
    %5215 = vmatpush1.msra.mxu0 %v5191
    %5216 = vmatprep.subr.mxu0 0.0
    %5217 = vmatpush1.msra.mxu0 0.0
    %5218 = vmatprep.subr.mxu0 0.0
    %5219 = vmatpush1.msra.mxu0 0.0
    %5220 = vmatprep.subr.mxu0 0.0
    %5221 = vmatpush1.msra.mxu0 0.0
    %5222 = vmatprep.subr.mxu0 0.0
    %5223 = vmatpush1.msra.mxu0 0.0
    %5224 = vmatprep.subr.mxu0 0.0
    %5225 = vmatpush1.msra.mxu0 0.0
    %5226 = vmatprep.subr.mxu0 0.0
    %5227 = vmatpush1.msra.mxu0 0.0
    %5228 = vmatprep.subr.mxu0 0.0
    %5229 = vmatpush1.msra.mxu0 0.0
    %5230 = vmatprep.subr.mxu0 0.0
    %5231 = vmatpush1.msra.mxu0 0.0
    %5232 = vmatprep.subr.mxu0 0.0
    %5233 = vmatpush1.msra.mxu0 0.0
    %5234 = vmatprep.subr.mxu0 0.0
    %5235 = vmatpush1.msra.mxu0 0.0
    %5236 = vmatprep.subr.mxu0 0.0
    %5237 = vmatpush1.msra.mxu0 0.0
    %5238 = vmatprep.subr.mxu0 0.0
    %5239 = vmatpush1.msra.mxu0 0.0
    %5240 = vmatprep.subr.mxu0 0.0
    %5241 = vmatpush1.msra.mxu0 0.0
    %5242 = vmatprep.subr.mxu0 0.0
    %5243 = vmatpush1.msra.mxu0 0.0
    %5244 = vmatprep.subr.mxu0 0.0
    %5245 = vmatpush1.msra.mxu0 0.0
    %5246 = vmatprep.subr.mxu0 0.0
    %5247 = vmatpush1.msra.mxu0 0.0
    %5248 = vmatprep.subr.mxu0 0.0
    %5249 = vmatpush1.msra.mxu0 0.0
    %5250 = vmatprep.subr.mxu0 0.0
    %5251 = vmatpush1.msra.mxu0 0.0
    %5252 = vmatprep.subr.mxu0 0.0
    %5253 = vmatpush1.msra.mxu0 0.0
    %5254 = vmatprep.subr.mxu0 0.0
    %5255 = vmatpush1.msra.mxu0 0.0
    %5256 = vmatprep.subr.mxu0 0.0
    %5257 = vmatpush1.msra.mxu0 0.0
    %5258 = vmatprep.subr.mxu0 0.0
    %5259 = vmatpush1.msra.mxu0 0.0
    %5260 = vmatprep.subr.mxu0 0.0
    %5261 = vmatpush1.msra.mxu0 0.0
    %5262 = vmatprep.subr.mxu0 0.0
    %5263 = vmatpush1.msra.mxu0 0.0
    %5264 = vmatprep.subr.mxu0 0.0
    %5265 = vmatpush1.msra.mxu0 0.0
    %5266 = vmatprep.subr.mxu0 0.0
    %5267 = vmatpush1.msra.mxu0 0.0
    %5268 = vmatprep.subr.mxu0 0.0
    %5269 = vmatpush1.msra.mxu0 0.0
    %5270 = vmatprep.subr.mxu0 0.0
    %5271 = vmatpush1.msra.mxu0 0.0
    %5272 = vmatprep.mubr.f32.mxu0 0.0
    %5273 = vmatmul.mubr.f32.gmra.mrb[0].mxu0 %v5197
    %v5274 = vpop.f32.mrb[0].mxu0
    %v5275 = vadd.f32 0.0, %v5274
    %v5276 = vpop.f32.mrb[0].mxu0
    %5277 = vmatprep.mubr.f32.mxu0 0.0
    %5278 = vmatmul.mubr.f32.gmra.mrb[0].mxu0 %v5200
    %v5279 = vpop.f32.mrb[0].mxu0
    %v5280 = vadd.f32 0.0, %v5279
    %v5281 = vpop.f32.mrb[0].mxu0
    %5282 = vmatprep.mubr.f32.mxu0 0.0
    %5283 = vmatmul.mubr.f32.gmra.mrb[0].mxu0 %v5203
    %v5284 = vpop.f32.mrb[0].mxu0
    %v5285 = vadd.f32 0.0, %v5284
    %v5286 = vpop.f32.mrb[0].mxu0
    %5287 = vmatprep.mubr.f32.mxu0 0.0
    %5288 = vmatmul.mubr.f32.gmra.mrb[0].mxu0 %v5206
    %v5289 = vpop.f32.mrb[0].mxu0
    %v5290 = vadd.f32 0.0, %v5289
    %v5291 = vpop.f32.mrb[0].mxu0
    %5292 = vdwg.mxu0
    %5297 = vrot.lane.b32.xlu0 %v5275, 16
    %v5298 = vpop.permute.xlu0 %5297
    %5299 = vrot.lane.b32.xlu0 %v5280, 16
    %v5300 = vpop.permute.xlu0 %5299
    %5301 = vrot.lane.b32.xlu0 %v5285, 16
    %v5302 = vpop.permute.xlu0 %5301
    %5303 = vrot.lane.b32.xlu0 %v5290, 16
    %v5304 = vpop.permute.xlu0 %5303
    %5309 = vst.msk [vmem:[#allocation3] sm:$0xff] %vm1137, %v5298
    %5310 = vst.msk [vmem:[#allocation3 + $0x8] sm:$0xff] %vm1137, %v5300
    %5311 = vst.msk [vmem:[#allocation3 + $0x10] sm:$0xff] %vm1137, %v5302
    %5312 = vst.msk [vmem:[#allocation3 + $0x18] sm:$0xff] %vm1137, %v5304
    %v5313 = vld [vmem:[#allocation4] sm:$0xff]
    %v5314 = vld [vmem:[#allocation4 + $0x8] sm:$0xff]
    %v5315 = vld [vmem:[#allocation4 + $0x10] sm:$0xff]
    %v5316 = vld [vmem:[#allocation4 + $0x18] sm:$0xff]
    %5321 = vrot.lane.b32.xlu0 %v5313, 104
    %v5322 = vpop.permute.xlu0 %5321
    %5323 = vrot.lane.b32.xlu0 %v5314, 104
    %v5324 = vpop.permute.xlu0 %5323
    %5325 = vrot.lane.b32.xlu0 %v5315, 104
    %v5326 = vpop.permute.xlu0 %5325
    %5327 = vrot.lane.b32.xlu0 %v5316, 104
    %v5328 = vpop.permute.xlu0 %5327
    %5329 = vrot.lane.b32.xlu0 %v5313, 72
    %v5330 = vpop.permute.xlu0 %5329
    %5331 = vrot.lane.b32.xlu0 %v5314, 72
    %v5332 = vpop.permute.xlu0 %5331
    %5333 = vrot.lane.b32.xlu0 %v5315, 72
    %v5334 = vpop.permute.xlu0 %5333
    %5335 = vrot.lane.b32.xlu0 %v5316, 72
    %v5336 = vpop.permute.xlu0 %5335
    %v5337 = vsel %vm217, %v5322, 0
    %v5339 = vsel %vm217, %v5324, 0
    %v5341 = vsel %vm217, %v5326, 0
    %v5343 = vsel %vm217, %v5328, 0
    %v5345 = vsel %vm217, %v5330, 0
    %v5347 = vsel %vm217, %v5332, 0
    %v5349 = vsel %vm217, %v5334, 0
    %v5351 = vsel %vm217, %v5336, 0
    %5353 = vmatprep.subr.mxu0 0.0
    %5354 = vmatpush1.xpose.msra.mxu0 %v5345
    %5355 = vmatprep.subr.mxu0 0.0
    %5356 = vmatpush1.xpose.msra.mxu0 %v5347
    %5357 = vmatprep.subr.mxu0 0.0
    %5358 = vmatpush1.xpose.msra.mxu0 %v5349
    %5359 = vmatprep.subr.mxu0 0.0
    %5360 = vmatpush1.xpose.msra.mxu0 %v5351
    %5361 = vmatprep.subr.mxu0 0.0
    %5362 = vmatpush1.xpose.msra.mxu0 0.0
    %5363 = vmatprep.subr.mxu0 0.0
    %5364 = vmatpush1.xpose.msra.mxu0 0.0
    %5365 = vmatprep.subr.mxu0 0.0
    %5366 = vmatpush1.xpose.msra.mxu0 0.0
    %5367 = vmatprep.subr.mxu0 0.0
    %5368 = vmatpush1.xpose.msra.mxu0 0.0
    %5369 = vmatprep.subr.mxu0 0.0
    %5370 = vmatpush1.xpose.msra.mxu0 0.0
    %5371 = vmatprep.subr.mxu0 0.0
    %5372 = vmatpush1.xpose.msra.mxu0 0.0
    %5373 = vmatprep.subr.mxu0 0.0
    %5374 = vmatpush1.xpose.msra.mxu0 0.0
    %5375 = vmatprep.subr.mxu0 0.0
    %5376 = vmatpush1.xpose.msra.mxu0 0.0
    %5377 = vmatprep.subr.mxu0 0.0
    %5378 = vmatpush1.xpose.msra.mxu0 0.0
    %5379 = vmatprep.subr.mxu0 0.0
    %5380 = vmatpush1.xpose.msra.mxu0 0.0
    %5381 = vmatprep.subr.mxu0 0.0
    %5382 = vmatpush1.xpose.msra.mxu0 0.0
    %5383 = vmatprep.subr.mxu0 0.0
    %5384 = vmatpush1.xpose.msra.mxu0 0.0
    %5385 = vmatprep.subr.mxu0 0.0
    %5386 = vmatpush1.xpose.msra.mxu0 0.0
    %5387 = vmatprep.subr.mxu0 0.0
    %5388 = vmatpush1.xpose.msra.mxu0 0.0
    %5389 = vmatprep.subr.mxu0 0.0
    %5390 = vmatpush1.xpose.msra.mxu0 0.0
    %5391 = vmatprep.subr.mxu0 0.0
    %5392 = vmatpush1.xpose.msra.mxu0 0.0
    %5393 = vmatprep.subr.mxu0 0.0
    %5394 = vmatpush1.xpose.msra.mxu0 0.0
    %5395 = vmatprep.subr.mxu0 0.0
    %5396 = vmatpush1.xpose.msra.mxu0 0.0
    %5397 = vmatprep.subr.mxu0 0.0
    %5398 = vmatpush1.xpose.msra.mxu0 0.0
    %5399 = vmatprep.subr.mxu0 0.0
    %5400 = vmatpush1.xpose.msra.mxu0 0.0
    %5401 = vmatprep.subr.mxu0 0.0
    %5402 = vmatpush1.xpose.msra.mxu0 0.0
    %5403 = vmatprep.subr.mxu0 0.0
    %5404 = vmatpush1.xpose.msra.mxu0 0.0
    %5405 = vmatprep.subr.mxu0 0.0
    %5406 = vmatpush1.xpose.msra.mxu0 0.0
    %5407 = vmatprep.subr.mxu0 0.0
    %5408 = vmatpush1.xpose.msra.mxu0 0.0
    %5409 = vmatprep.subr.mxu0 0.0
    %5410 = vmatpush1.xpose.msra.mxu0 0.0
    %5411 = vmatprep.subr.mxu0 0.0
    %5412 = vmatpush1.xpose.msra.mxu0 0.0
    %5413 = vmatprep.subr.mxu0 0.0
    %5414 = vmatpush1.xpose.msra.mxu0 0.0
    %5415 = vmatprep.subr.mxu0 0.0
    %5416 = vmatpush1.xpose.msra.mxu0 0.0
    %5417 = vmatprep.mubr.f32.mxu0 0.0
    %5418 = vmatmul.mubr.f32.gmra.mrb[0].mxu0 %v5337
    %v5419 = vpop.f32.mrb[0].mxu0
    %v5420 = vadd.f32 0.0, %v5419
    %v5421 = vpop.f32.mrb[0].mxu0
    %5422 = vmatprep.mubr.f32.mxu0 0.0
    %5423 = vmatmul.mubr.f32.gmra.mrb[0].mxu0 %v5339
    %v5424 = vpop.f32.mrb[0].mxu0
    %v5425 = vadd.f32 0.0, %v5424
    %v5426 = vpop.f32.mrb[0].mxu0
    %5427 = vmatprep.mubr.f32.mxu0 0.0
    %5428 = vmatmul.mubr.f32.gmra.mrb[0].mxu0 %v5341
    %v5429 = vpop.f32.mrb[0].mxu0
    %v5430 = vadd.f32 0.0, %v5429
    %v5431 = vpop.f32.mrb[0].mxu0
    %5432 = vmatprep.mubr.f32.mxu0 0.0
    %5433 = vmatmul.mubr.f32.gmra.mrb[0].mxu0 %v5343
    %v5434 = vpop.f32.mrb[0].mxu0
    %v5435 = vadd.f32 0.0, %v5434
    %v5436 = vpop.f32.mrb[0].mxu0
    %5437 = vdwg.mxu0
    %v5438 = vmul.f32 %v5420, 0.35355338
    %v5439 = vmul.f32 %v5425, 0.35355338
    %v5440 = vmul.f32 %v5430, 0.35355338
    %v5441 = vmul.f32 %v5435, 0.35355338
    %v5442 = vsel %vm87, %v5438, -1e+30
    %v5443 = vsel %vm88, %v5439, -1e+30
    %v5444 = vsel %vm89, %v5440, -1e+30
    %v5445 = vsel %vm90, %v5441, -1e+30
    %v5446 = vsel %vm198, %v5442, -inf
    %5447 = vmax.xlane.f32.xlu0 %v5446
    %v5448 = vpop.xlane.xlu0 %5447
    %v5449 = vsel %vm198, %v5443, -inf
    %5450 = vmax.xlane.f32.xlu0 %v5449
    %v5451 = vpop.xlane.xlu0 %5450
    %v5452 = vsel %vm198, %v5444, -inf
    %5453 = vmax.xlane.f32.xlu0 %v5452
    %v5454 = vpop.xlane.xlu0 %5453
    %v5455 = vsel %vm198, %v5445, -inf
    %5456 = vmax.xlane.f32.xlu0 %v5455
    %v5457 = vpop.xlane.xlu0 %5456
    %v5458 = vsub.f32 %v5442, %v5448
    %v5459 = vsub.f32 %v5443, %v5451
    %v5460 = vsub.f32 %v5444, %v5454
    %v5461 = vsub.f32 %v5445, %v5457
    %v5462 = vmul.f32 %v5458, 1.442695
    %v5463 = vpow.pop %v5462
    %v5464 = vmul.f32 %v5459, 1.442695
    %v5465 = vpow.pop %v5464
    %v5466 = vmul.f32 %v5460, 1.442695
    %v5467 = vpow.pop %v5466
    %v5468 = vmul.f32 %v5461, 1.442695
    %v5469 = vpow.pop %v5468
    %v5470 = vsel %vm198, %v5463, 0.0
    %5471 = vadd.xlane.f32.xlu0 %v5470
    %v5472 = vpop.xlane.xlu0 %5471
    %v5473 = vsel %vm198, %v5465, 0.0
    %5474 = vadd.xlane.f32.xlu0 %v5473
    %v5475 = vpop.xlane.xlu0 %5474
    %v5476 = vsel %vm198, %v5467, 0.0
    %5477 = vadd.xlane.f32.xlu0 %v5476
    %v5478 = vpop.xlane.xlu0 %5477
    %v5479 = vsel %vm198, %v5469, 0.0
    %5480 = vadd.xlane.f32.xlu0 %v5479
    %v5481 = vpop.xlane.xlu0 %5480
    %v5482 = vrcp.pop %v5472
    %v5483 = vmul.f32 %v5463, %v5482
    %v5484 = vrcp.pop %v5475
    %v5485 = vmul.f32 %v5465, %v5484
    %v5486 = vrcp.pop %v5478
    %v5487 = vmul.f32 %v5467, %v5486
    %v5488 = vrcp.pop %v5481
    %v5489 = vmul.f32 %v5469, %v5488
    %5490 = vrot.lane.b32.xlu0 %v5313, 40
    %v5491 = vpop.permute.xlu0 %5490
    %5492 = vrot.lane.b32.xlu0 %v5314, 40
    %v5493 = vpop.permute.xlu0 %5492
    %5494 = vrot.lane.b32.xlu0 %v5315, 40
    %v5495 = vpop.permute.xlu0 %5494
    %5496 = vrot.lane.b32.xlu0 %v5316, 40
    %v5497 = vpop.permute.xlu0 %5496
    %v5503 = vsel %vm198, %v5483, 0
    %v5506 = vsel %vm198, %v5485, 0
    %v5509 = vsel %vm198, %v5487, 0
    %v5512 = vsel %vm198, %v5489, 0
    %5514 = vmatprep.subr.mxu0 0.0
    %5515 = vmatpush1.msra.mxu0 %v5491
    %5516 = vmatprep.subr.mxu0 0.0
    %5517 = vmatpush1.msra.mxu0 %v5493
    %5518 = vmatprep.subr.mxu0 0.0
    %5519 = vmatpush1.msra.mxu0 %v5495
    %5520 = vmatprep.subr.mxu0 0.0
    %5521 = vmatpush1.msra.mxu0 %v5497
    %5522 = vmatprep.subr.mxu0 0.0
    %5523 = vmatpush1.msra.mxu0 0.0
    %5524 = vmatprep.subr.mxu0 0.0
    %5525 = vmatpush1.msra.mxu0 0.0
    %5526 = vmatprep.subr.mxu0 0.0
    %5527 = vmatpush1.msra.mxu0 0.0
    %5528 = vmatprep.subr.mxu0 0.0
    %5529 = vmatpush1.msra.mxu0 0.0
    %5530 = vmatprep.subr.mxu0 0.0
    %5531 = vmatpush1.msra.mxu0 0.0
    %5532 = vmatprep.subr.mxu0 0.0
    %5533 = vmatpush1.msra.mxu0 0.0
    %5534 = vmatprep.subr.mxu0 0.0
    %5535 = vmatpush1.msra.mxu0 0.0
    %5536 = vmatprep.subr.mxu0 0.0
    %5537 = vmatpush1.msra.mxu0 0.0
    %5538 = vmatprep.subr.mxu0 0.0
    %5539 = vmatpush1.msra.mxu0 0.0
    %5540 = vmatprep.subr.mxu0 0.0
    %5541 = vmatpush1.msra.mxu0 0.0
    %5542 = vmatprep.subr.mxu0 0.0
    %5543 = vmatpush1.msra.mxu0 0.0
    %5544 = vmatprep.subr.mxu0 0.0
    %5545 = vmatpush1.msra.mxu0 0.0
    %5546 = vmatprep.subr.mxu0 0.0
    %5547 = vmatpush1.msra.mxu0 0.0
    %5548 = vmatprep.subr.mxu0 0.0
    %5549 = vmatpush1.msra.mxu0 0.0
    %5550 = vmatprep.subr.mxu0 0.0
    %5551 = vmatpush1.msra.mxu0 0.0
    %5552 = vmatprep.subr.mxu0 0.0
    %5553 = vmatpush1.msra.mxu0 0.0
    %5554 = vmatprep.subr.mxu0 0.0
    %5555 = vmatpush1.msra.mxu0 0.0
    %5556 = vmatprep.subr.mxu0 0.0
    %5557 = vmatpush1.msra.mxu0 0.0
    %5558 = vmatprep.subr.mxu0 0.0
    %5559 = vmatpush1.msra.mxu0 0.0
    %5560 = vmatprep.subr.mxu0 0.0
    %5561 = vmatpush1.msra.mxu0 0.0
    %5562 = vmatprep.subr.mxu0 0.0
    %5563 = vmatpush1.msra.mxu0 0.0
    %5564 = vmatprep.subr.mxu0 0.0
    %5565 = vmatpush1.msra.mxu0 0.0
    %5566 = vmatprep.subr.mxu0 0.0
    %5567 = vmatpush1.msra.mxu0 0.0
    %5568 = vmatprep.subr.mxu0 0.0
    %5569 = vmatpush1.msra.mxu0 0.0
    %5570 = vmatprep.subr.mxu0 0.0
    %5571 = vmatpush1.msra.mxu0 0.0
    %5572 = vmatprep.subr.mxu0 0.0
    %5573 = vmatpush1.msra.mxu0 0.0
    %5574 = vmatprep.subr.mxu0 0.0
    %5575 = vmatpush1.msra.mxu0 0.0
    %5576 = vmatprep.subr.mxu0 0.0
    %5577 = vmatpush1.msra.mxu0 0.0
    %5578 = vmatprep.mubr.f32.mxu0 0.0
    %5579 = vmatmul.mubr.f32.gmra.mrb[0].mxu0 %v5503
    %v5580 = vpop.f32.mrb[0].mxu0
    %v5581 = vadd.f32 0.0, %v5580
    %v5582 = vpop.f32.mrb[0].mxu0
    %5583 = vmatprep.mubr.f32.mxu0 0.0
    %5584 = vmatmul.mubr.f32.gmra.mrb[0].mxu0 %v5506
    %v5585 = vpop.f32.mrb[0].mxu0
    %v5586 = vadd.f32 0.0, %v5585
    %v5587 = vpop.f32.mrb[0].mxu0
    %5588 = vmatprep.mubr.f32.mxu0 0.0
    %5589 = vmatmul.mubr.f32.gmra.mrb[0].mxu0 %v5509
    %v5590 = vpop.f32.mrb[0].mxu0
    %v5591 = vadd.f32 0.0, %v5590
    %v5592 = vpop.f32.mrb[0].mxu0
    %5593 = vmatprep.mubr.f32.mxu0 0.0
    %5594 = vmatmul.mubr.f32.gmra.mrb[0].mxu0 %v5512
    %v5595 = vpop.f32.mrb[0].mxu0
    %v5596 = vadd.f32 0.0, %v5595
    %v5597 = vpop.f32.mrb[0].mxu0
    %5598 = vdwg.mxu0
    %5603 = vrot.lane.b32.xlu0 %v5581, 24
    %v5604 = vpop.permute.xlu0 %5603
    %5605 = vrot.lane.b32.xlu0 %v5586, 24
    %v5606 = vpop.permute.xlu0 %5605
    %5607 = vrot.lane.b32.xlu0 %v5591, 24
    %v5608 = vpop.permute.xlu0 %5607
    %5609 = vrot.lane.b32.xlu0 %v5596, 24
    %v5610 = vpop.permute.xlu0 %5609
    %5615 = vst.msk [vmem:[#allocation3] sm:$0xff] %vm1466, %v5604
    %5616 = vst.msk [vmem:[#allocation3 + $0x8] sm:$0xff] %vm1466, %v5606
    %5617 = vst.msk [vmem:[#allocation3 + $0x10] sm:$0xff] %vm1466, %v5608
    %5618 = vst.msk [vmem:[#allocation3 + $0x18] sm:$0xff] %vm1466, %v5610
    %v5619 = vld [vmem:[#allocation3] sm:$0xff]
    %v5620 = vld [vmem:[#allocation3 + $0x8] sm:$0xff]
    %v5621 = vld [vmem:[#allocation3 + $0x10] sm:$0xff]
    %v5622 = vld [vmem:[#allocation3 + $0x18] sm:$0xff]
    %v5623 = vld [vmem:[%s17] sm:$0xff]
    %v5624 = vld [vmem:[%s17 + $0x8] sm:$0xff]
    %v5625 = vld [vmem:[%s17 + $0x10] sm:$0xff]
    %v5626 = vld [vmem:[%s17 + $0x18] sm:$0xff]
    %v5627 = vld [vmem:[%s18] sm:$0x1]
    %v5629 = vlaneseq
    %v5630 = vshrl.u32 %v5629, 7
    %v5631 = vsub.s32 0, %v5630
    %v5632 = vrot.slane %v5627, %v5631
    %v5635 = vsel %vm198, %v5619, 0
    %v5638 = vsel %vm198, %v5620, 0
    %v5641 = vsel %vm198, %v5621, 0
    %v5644 = vsel %vm198, %v5622, 0
    %5646 = vmatprep.subr.mxu0 0.0
    %5647 = vmatpush1.msra.mxu0 %v5623
    %5648 = vmatprep.subr.mxu0 0.0
    %5649 = vmatpush1.msra.mxu0 %v5624
    %5650 = vmatprep.subr.mxu0 0.0
    %5651 = vmatpush1.msra.mxu0 %v5625
    %5652 = vmatprep.subr.mxu0 0.0
    %5653 = vmatpush1.msra.mxu0 %v5626
    %5654 = vmatprep.subr.mxu0 0.0
    %5655 = vmatpush1.msra.mxu0 0.0
    %5656 = vmatprep.subr.mxu0 0.0
    %5657 = vmatpush1.msra.mxu0 0.0
    %5658 = vmatprep.subr.mxu0 0.0
    %5659 = vmatpush1.msra.mxu0 0.0
    %5660 = vmatprep.subr.mxu0 0.0
    %5661 = vmatpush1.msra.mxu0 0.0
    %5662 = vmatprep.subr.mxu0 0.0
    %5663 = vmatpush1.msra.mxu0 0.0
    %5664 = vmatprep.subr.mxu0 0.0
    %5665 = vmatpush1.msra.mxu0 0.0
    %5666 = vmatprep.subr.mxu0 0.0
    %5667 = vmatpush1.msra.mxu0 0.0
    %5668 = vmatprep.subr.mxu0 0.0
    %5669 = vmatpush1.msra.mxu0 0.0
    %5670 = vmatprep.subr.mxu0 0.0
    %5671 = vmatpush1.msra.mxu0 0.0
    %5672 = vmatprep.subr.mxu0 0.0
    %5673 = vmatpush1.msra.mxu0 0.0
    %5674 = vmatprep.subr.mxu0 0.0
    %5675 = vmatpush1.msra.mxu0 0.0
    %5676 = vmatprep.subr.mxu0 0.0
    %5677 = vmatpush1.msra.mxu0 0.0
    %5678 = vmatprep.subr.mxu0 0.0
    %5679 = vmatpush1.msra.mxu0 0.0
    %5680 = vmatprep.subr.mxu0 0.0
    %5681 = vmatpush1.msra.mxu0 0.0
    %5682 = vmatprep.subr.mxu0 0.0
    %5683 = vmatpush1.msra.mxu0 0.0
    %5684 = vmatprep.subr.mxu0 0.0
    %5685 = vmatpush1.msra.mxu0 0.0
    %5686 = vmatprep.subr.mxu0 0.0
    %5687 = vmatpush1.msra.mxu0 0.0
    %5688 = vmatprep.subr.mxu0 0.0
    %5689 = vmatpush1.msra.mxu0 0.0
    %5690 = vmatprep.subr.mxu0 0.0
    %5691 = vmatpush1.msra.mxu0 0.0
    %5692 = vmatprep.subr.mxu0 0.0
    %5693 = vmatpush1.msra.mxu0 0.0
    %5694 = vmatprep.subr.mxu0 0.0
    %5695 = vmatpush1.msra.mxu0 0.0
    %5696 = vmatprep.subr.mxu0 0.0
    %5697 = vmatpush1.msra.mxu0 0.0
    %5698 = vmatprep.subr.mxu0 0.0
    %5699 = vmatpush1.msra.mxu0 0.0
    %5700 = vmatprep.subr.mxu0 0.0
    %5701 = vmatpush1.msra.mxu0 0.0
    %5702 = vmatprep.subr.mxu0 0.0
    %5703 = vmatpush1.msra.mxu0 0.0
    %5704 = vmatprep.subr.mxu0 0.0
    %5705 = vmatpush1.msra.mxu0 0.0
    %5706 = vmatprep.subr.mxu0 0.0
    %5707 = vmatpush1.msra.mxu0 0.0
    %5708 = vmatprep.subr.mxu0 0.0
    %5709 = vmatpush1.msra.mxu0 0.0
    %5710 = vmatprep.mubr.f32.mxu0 0.0
    %5711 = vmatmul.mubr.f32.gmra.mrb[0].mxu0 %v5635
    %v5712 = vpop.f32.mrb[0].mxu0
    %v5713 = vadd.f32 %v5632, %v5712
    %v5714 = vpop.f32.mrb[0].mxu0
    %5715 = vmatprep.mubr.f32.mxu0 0.0
    %5716 = vmatmul.mubr.f32.gmra.mrb[0].mxu0 %v5638
    %v5717 = vpop.f32.mrb[0].mxu0
    %v5718 = vadd.f32 %v5632, %v5717
    %v5719 = vpop.f32.mrb[0].mxu0
    %5720 = vmatprep.mubr.f32.mxu0 0.0
    %5721 = vmatmul.mubr.f32.gmra.mrb[0].mxu0 %v5641
    %v5722 = vpop.f32.mrb[0].mxu0
    %v5723 = vadd.f32 %v5632, %v5722
    %v5724 = vpop.f32.mrb[0].mxu0
    %5725 = vmatprep.mubr.f32.mxu0 0.0
    %5726 = vmatmul.mubr.f32.gmra.mrb[0].mxu0 %v5644
    %v5727 = vpop.f32.mrb[0].mxu0
    %v5728 = vadd.f32 %v5632, %v5727
    %v5729 = vpop.f32.mrb[0].mxu0
    %5730 = vdwg.mxu0
    %v5731 = vmax.f32 %v5713, 0.0
    %v5732 = vmax.f32 %v5718, 0.0
    %v5733 = vmax.f32 %v5723, 0.0
    %v5734 = vmax.f32 %v5728, 0.0
    %v5735 = vld [vmem:[%s19] sm:$0xff]
    %v5736 = vld [vmem:[%s19 + $0x8] sm:$0xff]
    %v5737 = vld [vmem:[%s19 + $0x10] sm:$0xff]
    %v5738 = vld [vmem:[%s19 + $0x18] sm:$0xff]
    %v5739 = vld [vmem:[%s20] sm:$0x1]
    %v5741 = vlaneseq
    %v5742 = vshrl.u32 %v5741, 7
    %v5743 = vsub.s32 0, %v5742
    %v5744 = vrot.slane %v5739, %v5743
    %v5747 = vsel %vm198, %v5731, 0
    %v5750 = vsel %vm198, %v5732, 0
    %v5753 = vsel %vm198, %v5733, 0
    %v5756 = vsel %vm198, %v5734, 0
    %5758 = vmatprep.subr.mxu0 0.0
    %5759 = vmatpush1.msra.mxu0 %v5735
    %5760 = vmatprep.subr.mxu0 0.0
    %5761 = vmatpush1.msra.mxu0 %v5736
    %5762 = vmatprep.subr.mxu0 0.0
    %5763 = vmatpush1.msra.mxu0 %v5737
    %5764 = vmatprep.subr.mxu0 0.0
    %5765 = vmatpush1.msra.mxu0 %v5738
    %5766 = vmatprep.subr.mxu0 0.0
    %5767 = vmatpush1.msra.mxu0 0.0
    %5768 = vmatprep.subr.mxu0 0.0
    %5769 = vmatpush1.msra.mxu0 0.0
    %5770 = vmatprep.subr.mxu0 0.0
    %5771 = vmatpush1.msra.mxu0 0.0
    %5772 = vmatprep.subr.mxu0 0.0
    %5773 = vmatpush1.msra.mxu0 0.0
    %5774 = vmatprep.subr.mxu0 0.0
    %5775 = vmatpush1.msra.mxu0 0.0
    %5776 = vmatprep.subr.mxu0 0.0
    %5777 = vmatpush1.msra.mxu0 0.0
    %5778 = vmatprep.subr.mxu0 0.0
    %5779 = vmatpush1.msra.mxu0 0.0
    %5780 = vmatprep.subr.mxu0 0.0
    %5781 = vmatpush1.msra.mxu0 0.0
    %5782 = vmatprep.subr.mxu0 0.0
    %5783 = vmatpush1.msra.mxu0 0.0
    %5784 = vmatprep.subr.mxu0 0.0
    %5785 = vmatpush1.msra.mxu0 0.0
    %5786 = vmatprep.subr.mxu0 0.0
    %5787 = vmatpush1.msra.mxu0 0.0
    %5788 = vmatprep.subr.mxu0 0.0
    %5789 = vmatpush1.msra.mxu0 0.0
    %5790 = vmatprep.subr.mxu0 0.0
    %5791 = vmatpush1.msra.mxu0 0.0
    %5792 = vmatprep.subr.mxu0 0.0
    %5793 = vmatpush1.msra.mxu0 0.0
    %5794 = vmatprep.subr.mxu0 0.0
    %5795 = vmatpush1.msra.mxu0 0.0
    %5796 = vmatprep.subr.mxu0 0.0
    %5797 = vmatpush1.msra.mxu0 0.0
    %5798 = vmatprep.subr.mxu0 0.0
    %5799 = vmatpush1.msra.mxu0 0.0
    %5800 = vmatprep.subr.mxu0 0.0
    %5801 = vmatpush1.msra.mxu0 0.0
    %5802 = vmatprep.subr.mxu0 0.0
    %5803 = vmatpush1.msra.mxu0 0.0
    %5804 = vmatprep.subr.mxu0 0.0
    %5805 = vmatpush1.msra.mxu0 0.0
    %5806 = vmatprep.subr.mxu0 0.0
    %5807 = vmatpush1.msra.mxu0 0.0
    %5808 = vmatprep.subr.mxu0 0.0
    %5809 = vmatpush1.msra.mxu0 0.0
    %5810 = vmatprep.subr.mxu0 0.0
    %5811 = vmatpush1.msra.mxu0 0.0
    %5812 = vmatprep.subr.mxu0 0.0
    %5813 = vmatpush1.msra.mxu0 0.0
    %5814 = vmatprep.subr.mxu0 0.0
    %5815 = vmatpush1.msra.mxu0 0.0
    %5816 = vmatprep.subr.mxu0 0.0
    %5817 = vmatpush1.msra.mxu0 0.0
    %5818 = vmatprep.subr.mxu0 0.0
    %5819 = vmatpush1.msra.mxu0 0.0
    %5820 = vmatprep.subr.mxu0 0.0
    %5821 = vmatpush1.msra.mxu0 0.0
    %5822 = vmatprep.mubr.f32.mxu0 0.0
    %5823 = vmatmul.mubr.f32.gmra.mrb[0].mxu0 %v5747
    %v5824 = vpop.f32.mrb[0].mxu0
    %v5825 = vadd.f32 %v5744, %v5824
    %v5826 = vpop.f32.mrb[0].mxu0
    %5827 = vmatprep.mubr.f32.mxu0 0.0
    %5828 = vmatmul.mubr.f32.gmra.mrb[0].mxu0 %v5750
    %v5829 = vpop.f32.mrb[0].mxu0
    %v5830 = vadd.f32 %v5744, %v5829
    %v5831 = vpop.f32.mrb[0].mxu0
    %5832 = vmatprep.mubr.f32.mxu0 0.0
    %5833 = vmatmul.mubr.f32.gmra.mrb[0].mxu0 %v5753
    %v5834 = vpop.f32.mrb[0].mxu0
    %v5835 = vadd.f32 %v5744, %v5834
    %v5836 = vpop.f32.mrb[0].mxu0
    %5837 = vmatprep.mubr.f32.mxu0 0.0
    %5838 = vmatmul.mubr.f32.gmra.mrb[0].mxu0 %v5756
    %v5839 = vpop.f32.mrb[0].mxu0
    %v5840 = vadd.f32 %v5744, %v5839
    %v5841 = vpop.f32.mrb[0].mxu0
    %5842 = vdwg.mxu0
    %5843 = vst.msk [vmem:[#allocation2] sm:$0xff] %vm198, %v5825
    %5844 = vst.msk [vmem:[#allocation2 + $0x8] sm:$0xff] %vm198, %v5830
    %5845 = vst.msk [vmem:[#allocation2 + $0x10] sm:$0xff] %vm198, %v5835
    %5846 = vst.msk [vmem:[#allocation2 + $0x18] sm:$0xff] %vm198, %v5840
    %v5847 = vld [vmem:[#allocation2] sm:$0x1]
    %vm5848 = vcmask 253952
    %5849 = vst.msk [vmem:[#allocation5] sm:$0x1] %vm5848, %v5847
    %v5850 = vld [vmem:[#allocation2 + $0x1] sm:$0x1]
    %5852 = vrot.lane.b32.xlu0 %v5850, 32
    %v5853 = vpop.permute.xlu0 %5852
    %vm5855 = vcmask 516352
    %5856 = vst.msk [vmem:[#allocation5] sm:$0x1] %vm5855, %v5853
    %v5857 = vld [vmem:[#allocation2 + $0x2] sm:$0x1]
    %5859 = vrot.lane.b32.xlu0 %v5857, 64
    %v5860 = vpop.permute.xlu0 %5859
    %vm5862 = vcmask 778752
    %5863 = vst.msk [vmem:[#allocation5] sm:$0x1] %vm5862, %v5860
    %v5864 = vld [vmem:[#allocation2 + $0x3] sm:$0x1]
    %5866 = vrot.lane.b32.xlu0 %v5864, 96
    %v5867 = vpop.permute.xlu0 %5866
    %vm5869 = vcmask 1041152
    %5870 = vst.msk [vmem:[#allocation5] sm:$0x1] %vm5869, %v5867
    %v5871 = vld [vmem:[#allocation2 + $0x4] sm:$0x1]
    %5872 = vst.msk [vmem:[#allocation5 + $0x4] sm:$0x1] %vm5848, %v5871
    %v5873 = vld [vmem:[#allocation2 + $0x5] sm:$0x1]
    %5875 = vrot.lane.b32.xlu0 %v5873, 32
    %v5876 = vpop.permute.xlu0 %5875
    %5878 = vst.msk [vmem:[#allocation5 + $0x4] sm:$0x1] %vm5855, %v5876
    %v5879 = vld [vmem:[#allocation2 + $0x6] sm:$0x1]
    %5881 = vrot.lane.b32.xlu0 %v5879, 64
    %v5882 = vpop.permute.xlu0 %5881
    %5884 = vst.msk [vmem:[#allocation5 + $0x4] sm:$0x1] %vm5862, %v5882
    %v5885 = vld [vmem:[#allocation2 + $0x7] sm:$0x1]
    %5887 = vrot.lane.b32.xlu0 %v5885, 96
    %v5888 = vpop.permute.xlu0 %5887
    %5890 = vst.msk [vmem:[#allocation5 + $0x4] sm:$0x1] %vm5869, %v5888
    %v5891 = vld [vmem:[#allocation2 + $0x8] sm:$0x1]
    %5892 = vst.msk [vmem:[#allocation5 + $0x1] sm:$0x1] %vm5848, %v5891
    %v5893 = vld [vmem:[#allocation2 + $0x9] sm:$0x1]
    %5895 = vrot.lane.b32.xlu0 %v5893, 32
    %v5896 = vpop.permute.xlu0 %5895
    %5898 = vst.msk [vmem:[#allocation5 + $0x1] sm:$0x1] %vm5855, %v5896
    %v5899 = vld [vmem:[#allocation2 + $0xa] sm:$0x1]
    %5901 = vrot.lane.b32.xlu0 %v5899, 64
    %v5902 = vpop.permute.xlu0 %5901
    %5904 = vst.msk [vmem:[#allocation5 + $0x1] sm:$0x1] %vm5862, %v5902
    %v5905 = vld [vmem:[#allocation2 + $0xb] sm:$0x1]
    %5907 = vrot.lane.b32.xlu0 %v5905, 96
    %v5908 = vpop.permute.xlu0 %5907
    %5910 = vst.msk [vmem:[#allocation5 + $0x1] sm:$0x1] %vm5869, %v5908
    %v5911 = vld [vmem:[#allocation2 + $0xc] sm:$0x1]
    %5912 = vst.msk [vmem:[#allocation5 + $0x5] sm:$0x1] %vm5848, %v5911
    %v5913 = vld [vmem:[#allocation2 + $0xd] sm:$0x1]
    %5915 = vrot.lane.b32.xlu0 %v5913, 32
    %v5916 = vpop.permute.xlu0 %5915
    %5918 = vst.msk [vmem:[#allocation5 + $0x5] sm:$0x1] %vm5855, %v5916
    %v5919 = vld [vmem:[#allocation2 + $0xe] sm:$0x1]
    %5921 = vrot.lane.b32.xlu0 %v5919, 64
    %v5922 = vpop.permute.xlu0 %5921
    %5924 = vst.msk [vmem:[#allocation5 + $0x5] sm:$0x1] %vm5862, %v5922
    %v5925 = vld [vmem:[#allocation2 + $0xf] sm:$0x1]
    %5927 = vrot.lane.b32.xlu0 %v5925, 96
    %v5928 = vpop.permute.xlu0 %5927
    %5930 = vst.msk [vmem:[#allocation5 + $0x5] sm:$0x1] %vm5869, %v5928
    %v5931 = vld [vmem:[#allocation2 + $0x10] sm:$0x1]
    %5932 = vst.msk [vmem:[#allocation5 + $0x2] sm:$0x1] %vm5848, %v5931
    %v5933 = vld [vmem:[#allocation2 + $0x11] sm:$0x1]
    %5935 = vrot.lane.b32.xlu0 %v5933, 32
    %v5936 = vpop.permute.xlu0 %5935
    %5938 = vst.msk [vmem:[#allocation5 + $0x2] sm:$0x1] %vm5855, %v5936
    %v5939 = vld [vmem:[#allocation2 + $0x12] sm:$0x1]
    %5941 = vrot.lane.b32.xlu0 %v5939, 64
    %v5942 = vpop.permute.xlu0 %5941
    %5944 = vst.msk [vmem:[#allocation5 + $0x2] sm:$0x1] %vm5862, %v5942
    %v5945 = vld [vmem:[#allocation2 + $0x13] sm:$0x1]
    %5947 = vrot.lane.b32.xlu0 %v5945, 96
    %v5948 = vpop.permute.xlu0 %5947
    %5950 = vst.msk [vmem:[#allocation5 + $0x2] sm:$0x1] %vm5869, %v5948
    %v5951 = vld [vmem:[#allocation2 + $0x14] sm:$0x1]
    %5952 = vst.msk [vmem:[#allocation5 + $0x6] sm:$0x1] %vm5848, %v5951
    %v5953 = vld [vmem:[#allocation2 + $0x15] sm:$0x1]
    %5955 = vrot.lane.b32.xlu0 %v5953, 32
    %v5956 = vpop.permute.xlu0 %5955
    %5958 = vst.msk [vmem:[#allocation5 + $0x6] sm:$0x1] %vm5855, %v5956
    %v5959 = vld [vmem:[#allocation2 + $0x16] sm:$0x1]
    %5961 = vrot.lane.b32.xlu0 %v5959, 64
    %v5962 = vpop.permute.xlu0 %5961
    %5964 = vst.msk [vmem:[#allocation5 + $0x6] sm:$0x1] %vm5862, %v5962
    %v5965 = vld [vmem:[#allocation2 + $0x17] sm:$0x1]
    %5967 = vrot.lane.b32.xlu0 %v5965, 96
    %v5968 = vpop.permute.xlu0 %5967
    %5970 = vst.msk [vmem:[#allocation5 + $0x6] sm:$0x1] %vm5869, %v5968
    %v5971 = vld [vmem:[#allocation2 + $0x18] sm:$0x1]
    %5972 = vst.msk [vmem:[#allocation5 + $0x3] sm:$0x1] %vm5848, %v5971
    %v5973 = vld [vmem:[#allocation2 + $0x19] sm:$0x1]
    %5975 = vrot.lane.b32.xlu0 %v5973, 32
    %v5976 = vpop.permute.xlu0 %5975
    %5978 = vst.msk [vmem:[#allocation5 + $0x3] sm:$0x1] %vm5855, %v5976
    %v5979 = vld [vmem:[#allocation2 + $0x1a] sm:$0x1]
    %5981 = vrot.lane.b32.xlu0 %v5979, 64
    %v5982 = vpop.permute.xlu0 %5981
    %5984 = vst.msk [vmem:[#allocation5 + $0x3] sm:$0x1] %vm5862, %v5982
    %v5985 = vld [vmem:[#allocation2 + $0x1b] sm:$0x1]
    %5987 = vrot.lane.b32.xlu0 %v5985, 96
    %v5988 = vpop.permute.xlu0 %5987
    %5990 = vst.msk [vmem:[#allocation5 + $0x3] sm:$0x1] %vm5869, %v5988
    %v5991 = vld [vmem:[#allocation2 + $0x1c] sm:$0x1]
    %5992 = vst.msk [vmem:[#allocation5 + $0x7] sm:$0x1] %vm5848, %v5991
    %v5993 = vld [vmem:[#allocation2 + $0x1d] sm:$0x1]
    %5995 = vrot.lane.b32.xlu0 %v5993, 32
    %v5996 = vpop.permute.xlu0 %5995
    %5998 = vst.msk [vmem:[#allocation5 + $0x7] sm:$0x1] %vm5855, %v5996
    %v5999 = vld [vmem:[#allocation2 + $0x1e] sm:$0x1]
    %6001 = vrot.lane.b32.xlu0 %v5999, 64
    %v6002 = vpop.permute.xlu0 %6001
    %6004 = vst.msk [vmem:[#allocation5 + $0x7] sm:$0x1] %vm5862, %v6002
    %v6005 = vld [vmem:[#allocation2 + $0x1f] sm:$0x1]
    %6007 = vrot.lane.b32.xlu0 %v6005, 96
    %v6008 = vpop.permute.xlu0 %6007
    %6010 = vst.msk [vmem:[#allocation5 + $0x7] sm:$0x1] %vm5869, %v6008
    %v6011 = vld [vmem:[#allocation5] sm:$0xff]
    %v6012 = vld [vmem:[%s21] sm:$0xff]
    %v6013 = vld [vmem:[%s21 + $0x8] sm:$0xff]
    %v6014 = vld [vmem:[%s21 + $0x10] sm:$0xff]
    %v6015 = vld [vmem:[%s21 + $0x18] sm:$0xff]
    %v6016 = vld [vmem:[%s21 + $0x20] sm:$0xff]
    %v6017 = vld [vmem:[%s21 + $0x28] sm:$0xff]
    %v6018 = vld [vmem:[%s21 + $0x30] sm:$0xff]
    %v6019 = vld [vmem:[%s21 + $0x38] sm:$0xff]
    %v6020 = vld [vmem:[%s21 + $0x40] sm:$0xff]
    %v6021 = vld [vmem:[%s21 + $0x48] sm:$0xff]
    %v6022 = vld [vmem:[%s21 + $0x50] sm:$0xff]
    %v6023 = vld [vmem:[%s21 + $0x58] sm:$0xff]
    %v6024 = vld [vmem:[%s21 + $0x60] sm:$0xff]
    %v6025 = vld [vmem:[%s21 + $0x68] sm:$0xff]
    %v6026 = vld [vmem:[%s21 + $0x70] sm:$0xff]
    %v6027 = vld [vmem:[%s21 + $0x78] sm:$0xff]
    %v6028 = vld [vmem:[%s21 + $0x80] sm:$0xff]
    %v6029 = vld [vmem:[%s21 + $0x88] sm:$0xff]
    %v6030 = vld [vmem:[%s21 + $0x90] sm:$0xff]
    %v6031 = vld [vmem:[%s21 + $0x98] sm:$0xff]
    %v6032 = vld [vmem:[%s21 + $0xa0] sm:$0xff]
    %v6033 = vld [vmem:[%s21 + $0xa8] sm:$0xff]
    %v6034 = vld [vmem:[%s21 + $0xb0] sm:$0xff]
    %v6035 = vld [vmem:[%s21 + $0xb8] sm:$0xff]
    %v6036 = vld [vmem:[%s21 + $0xc0] sm:$0xff]
    %v6037 = vld [vmem:[%s21 + $0xc8] sm:$0xff]
    %v6038 = vld [vmem:[%s21 + $0xd0] sm:$0xff]
    %v6039 = vld [vmem:[%s21 + $0xd8] sm:$0xff]
    %v6040 = vld [vmem:[%s21 + $0xe0] sm:$0xff]
    %v6041 = vld [vmem:[%s21 + $0xe8] sm:$0xff]
    %v6042 = vld [vmem:[%s21 + $0xf0] sm:$0xff]
    %v6043 = vld [vmem:[%s21 + $0xf8] sm:$0xff]
    %v6044 = vld [vmem:[%s22] sm:$0x1]
    %v6046 = vlaneseq
    %v6047 = vshrl.u32 %v6046, 7
    %v6048 = vsub.s32 0, %v6047
    %v6049 = vrot.slane %v6044, %v6048
    %v6052 = vcombine.high %v6011, %v6011
    %6054 = vmatprep.subr.mxu0 0.0
    %6055 = vmatpush1.msra.mxu0 %v6012
    %6056 = vmatprep.subr.mxu0 0.0
    %6057 = vmatpush1.msra.mxu0 %v6013
    %6058 = vmatprep.subr.mxu0 0.0
    %6059 = vmatpush1.msra.mxu0 %v6014
    %6060 = vmatprep.subr.mxu0 0.0
    %6061 = vmatpush1.msra.mxu0 %v6015
    %6062 = vmatprep.subr.mxu0 0.0
    %6063 = vmatpush1.msra.mxu0 %v6016
    %6064 = vmatprep.subr.mxu0 0.0
    %6065 = vmatpush1.msra.mxu0 %v6017
    %6066 = vmatprep.subr.mxu0 0.0
    %6067 = vmatpush1.msra.mxu0 %v6018
    %6068 = vmatprep.subr.mxu0 0.0
    %6069 = vmatpush1.msra.mxu0 %v6019
    %6070 = vmatprep.subr.mxu0 0.0
    %6071 = vmatpush1.msra.mxu0 %v6020
    %6072 = vmatprep.subr.mxu0 0.0
    %6073 = vmatpush1.msra.mxu0 %v6021
    %6074 = vmatprep.subr.mxu0 0.0
    %6075 = vmatpush1.msra.mxu0 %v6022
    %6076 = vmatprep.subr.mxu0 0.0
    %6077 = vmatpush1.msra.mxu0 %v6023
    %6078 = vmatprep.subr.mxu0 0.0
    %6079 = vmatpush1.msra.mxu0 %v6024
    %6080 = vmatprep.subr.mxu0 0.0
    %6081 = vmatpush1.msra.mxu0 %v6025
    %6082 = vmatprep.subr.mxu0 0.0
    %6083 = vmatpush1.msra.mxu0 %v6026
    %6084 = vmatprep.subr.mxu0 0.0
    %6085 = vmatpush1.msra.mxu0 %v6027
    %6086 = vmatprep.subr.mxu0 0.0
    %6087 = vmatpush1.msra.mxu0 %v6028
    %6088 = vmatprep.subr.mxu0 0.0
    %6089 = vmatpush1.msra.mxu0 %v6029
    %6090 = vmatprep.subr.mxu0 0.0
    %6091 = vmatpush1.msra.mxu0 %v6030
    %6092 = vmatprep.subr.mxu0 0.0
    %6093 = vmatpush1.msra.mxu0 %v6031
    %6094 = vmatprep.subr.mxu0 0.0
    %6095 = vmatpush1.msra.mxu0 %v6032
    %6096 = vmatprep.subr.mxu0 0.0
    %6097 = vmatpush1.msra.mxu0 %v6033
    %6098 = vmatprep.subr.mxu0 0.0
    %6099 = vmatpush1.msra.mxu0 %v6034
    %6100 = vmatprep.subr.mxu0 0.0
    %6101 = vmatpush1.msra.mxu0 %v6035
    %6102 = vmatprep.subr.mxu0 0.0
    %6103 = vmatpush1.msra.mxu0 %v6036
    %6104 = vmatprep.subr.mxu0 0.0
    %6105 = vmatpush1.msra.mxu0 %v6037
    %6106 = vmatprep.subr.mxu0 0.0
    %6107 = vmatpush1.msra.mxu0 %v6038
    %6108 = vmatprep.subr.mxu0 0.0
    %6109 = vmatpush1.msra.mxu0 %v6039
    %6110 = vmatprep.subr.mxu0 0.0
    %6111 = vmatpush1.msra.mxu0 %v6040
    %6112 = vmatprep.subr.mxu0 0.0
    %6113 = vmatpush1.msra.mxu0 %v6041
    %6114 = vmatprep.subr.mxu0 0.0
    %6115 = vmatpush1.msra.mxu0 %v6042
    %6116 = vmatprep.subr.mxu0 0.0
    %6117 = vmatpush1.msra.mxu0 %v6043
    %6118 = vmatprep.mubr.f32.mxu0 %v6052
    %6119 = vmatmul.mubr.f32.gmra.mrb[0].mxu0 %v6011
    %v6120 = vpop.f32.mrb[0].mxu0
    %v6121 = vadd.f32 %v6049, %v6120
    %v6122 = vpop.f32.mrb[0].mxu0
    %6123 = vdwg.mxu0
    %vm6124 = vcmask 125952
    %6125 = vst.msk [vmem:[#allocation6] sm:$0xf] %vm6124, %v6121
    // Predicated region
    $region94: #{tpu_custom_call.1} parent=1 // pred_check
      _
    $region95: #{tpu_custom_call.1} parent=1 // pred_check_branch
      %6127 = sbr.rel (0) target = $region97
    $region96: #{tpu_custom_call.1} parent=1 // pred_region
      %s6129 = ssub.s32 64, 64
      %6130 = vsyncadd [#allocation7], %s6129
      %s6132 = sshll.u32 [#allocation6], 4
      %s6133 = int_to_ptr.vmem [resolvable:$true] %s6132
      %6135 = dma.vmem_to_hbm [thread:$0]  %s6133, 64, %s23, [#allocation7]
    $region97: #{tpu_custom_call.1} parent=1 // pred_fallthru
      _
    // Predicated region
    $region98: #{tpu_custom_call.1} parent=1 // pred_check
      _
    $region99: #{tpu_custom_call.1} parent=1 // pred_check_branch
      %6137 = sbr.rel (0) target = $region101
    $region100: #{tpu_custom_call.1} parent=1 // pred_region
      %6138 = dma.done [#allocation7], 64
    $region101: #{tpu_custom_call.1} parent=1 // pred_fallthru
      _
    %6139 = vsyncpa [#allocation7], 1

</llo_original>
